<compile_context>
chip_gen: v7x
topology: tpu7x:2x2x1
jax: 0.10.0
libtpu: 0.0.40
codegen_flags: <defaults>
</compile_context>

<pallas_src>
import jax
import jax.numpy as jnp
from jax import lax
from jax.experimental import pallas as pl
from jax.experimental.pallas import tpu as pltpu

# ---------------- small test shapes consistent with the module ----------------
B = 2            # batch
H1, W1 = 8, 8    # spatial size of the query feature map
H2, W2 = 16, 16  # spatial size of the key/value feature map
N1 = H1 * W1     # 64 query tokens
N2 = H2 * W2     # 256 kv tokens (pre-pooling)
D1 = 64          # dim1
D2 = 32          # dim2
HEADS = 8
HD = D1 // HEADS
POOL = 4         # pool_ratio
HP, WP = H2 // POOL, W2 // POOL
NP = HP * WP     # pooled kv tokens (16)
HID = D1 * 4     # mlp hidden (mlp_ratio=4)
SCALE = float(HD) ** -0.5
LN_EPS = 1e-5


def _ln(v, w, b):
    m = jnp.mean(v, axis=-1, keepdims=True)
    c = v - m
    var = jnp.mean(c * c, axis=-1, keepdims=True)
    return c * lax.rsqrt(var + LN_EPS) * w + b


def _erf(v):
    # Abramowitz & Stegun 7.1.26 (max abs err ~1.5e-7); only VPU/EUP ops.
    a1, a2, a3 = 0.254829592, -0.284496736, 1.421413741
    a4, a5, p = -1.453152027, 1.061405429, 0.3275911
    sgn = jnp.where(v >= 0.0, 1.0, -1.0)
    a = jnp.abs(v)
    t = 1.0 / (1.0 + p * a)
    poly = ((((a5 * t + a4) * t + a3) * t + a2) * t + a1) * t
    return sgn * (1.0 - poly * jnp.exp(-a * a))


def _gelu(v):  # exact (erf) GELU, matching nn.GELU() default
    return 0.5 * v * (1.0 + _erf(v * 0.7071067811865476))


def block_kernel(x_ref, y_ref,
                 ln1w_ref, ln1b_ref, ln2w_ref, ln2b_ref,
                 pmat_ref, wsr_ref, bsr_ref, lnrw_ref, lnrb_ref,
                 wq_ref, wkv_ref, hmask_ref, wpr_ref, bpr_ref,
                 ln3w_ref, ln3b_ref,
                 wf1_ref, bf1_ref,
                 smat_ref, wdw_ref, bdw_ref,
                 wf2_ref, bf2_ref,
                 o_ref,
                 p_ref):
    f32 = jnp.float32

    # ---- pre-norms -------------------------------------------------------
    x1 = _ln(x_ref[...], ln1w_ref[...], ln1b_ref[...])          # [N1, D1]
    y1 = _ln(y_ref[...], ln2w_ref[...], ln2b_ref[...])          # [N2, D2]

    # ---- spatial reduction path: avg-pool (as matmul) + 1x1 conv + LN + GELU
    pooled = jnp.dot(pmat_ref[...], y1, preferred_element_type=f32)            # [NP, D2]
    xr = jnp.dot(pooled, wsr_ref[...], preferred_element_type=f32) + bsr_ref[...]
    xr = _gelu(_ln(xr, lnrw_ref[...], lnrb_ref[...]))                          # [NP, D2]

    # ---- q / fused kv projections ---------------------------------------
    q_full = jnp.dot(x1, wq_ref[...], preferred_element_type=f32)              # [N1, D1]
    kv_full = jnp.dot(xr, wkv_ref[...], preferred_element_type=f32)            # [NP, 2*D1]
    k_full = kv_full[:, :D1]                                                   # [NP, D1]
    v_full = kv_full[:, D1:]                                                   # [NP, D1]

    # ---- heads packed on the lane axis via block-masked K/V stacks -------
    # K_stack[h*NP+n, c] = k_full[n, c] iff c belongs to head h, else 0.
    hmask = hmask_ref[...]                                                     # [HEADS*NP, D1]
    k_stack = jnp.tile(k_full, (HEADS, 1)) * hmask                             # [HEADS*NP, D1]
    v_stack = jnp.tile(v_full, (HEADS, 1)) * hmask                             # [HEADS*NP, D1]

    # scores[:, h*NP:(h+1)*NP] == q_h @ k_h^T  (one full-width MXU matmul)
    scores = lax.dot_general(q_full, k_stack, (((1,), (1,)), ((), ())),
                             preferred_element_type=f32) * SCALE               # [N1, HEADS*NP]

    # per-head (16-lane segment) numerically-stable softmax -> VMEM scratch
    for h in range(HEADS):
        s_h = scores[:, h * NP:(h + 1) * NP]                                   # [N1, NP]
        m_h = jnp.max(s_h, axis=-1, keepdims=True)
        e_h = jnp.exp(s_h - m_h)
        p_ref[:, h * NP:(h + 1) * NP] = e_h / jnp.sum(e_h, axis=-1, keepdims=True)

    p_all = p_ref[...]                                                         # [N1, HEADS*NP]
    ctx = jnp.dot(p_all, v_stack, preferred_element_type=f32)                  # [N1, D1] (head-concat)
    x2 = x1 + jnp.dot(ctx, wpr_ref[...], preferred_element_type=f32) + bpr_ref[...]

    # ---- norm3 + MLP (fc1 -> depthwise 3x3 conv -> GELU -> fc2) + residual
    x3 = _ln(x2, ln3w_ref[...], ln3b_ref[...])
    hbuf = jnp.dot(x3, wf1_ref[...], preferred_element_type=f32) + bf1_ref[...]  # [N1, HID]

    wdw = wdw_ref[...]                                                         # [9, HID]
    conv = jnp.zeros((N1, HID), f32)
    for kk in range(9):  # depthwise 3x3 conv = 9 shift-matmuls * per-channel tap
        shifted = jnp.dot(smat_ref[kk], hbuf, preferred_element_type=f32)      # [N1, HID]
        conv = conv + shifted * wdw[kk:kk + 1, :]
    hact = _gelu(conv + bdw_ref[...])

    o_ref[...] = x3 + jnp.dot(hact, wf2_ref[...], preferred_element_type=f32) + bf2_ref[...]


def block_forward(x, y, params):
    def batch_spec(shape):
        return pl.BlockSpec((None,) + shape, lambda b: (b,) + (0,) * len(shape))

    def full_spec(a):
        nd = a.ndim
        return pl.BlockSpec(a.shape, lambda b, _nd=nd: (0,) * _nd)

    in_specs = ([batch_spec((N1, D1)), batch_spec((N2, D2))]
                + [full_spec(a) for a in params])

    return pl.pallas_call(
        block_kernel,
        out_shape=jax.ShapeDtypeStruct((B, N1, D1), jnp.float32),
        grid=(B,),
        in_specs=in_specs,
        out_specs=batch_spec((N1, D1)),
        scratch_shapes=[pltpu.VMEM((N1, HEADS * NP), jnp.float32)],
        compiler_params=pltpu.CompilerParams(dimension_semantics=("parallel",)),
    )(x, y, *params)


# ------------------------------ pure-JAX reference ------------------------------
def reference(x, y, kp, wdw3):
    (ln1w, ln1b, ln2w, ln2b, pmat, wsr, bsr, lnrw, lnrb,
     wq, wkv, hmask, wpr, bpr, ln3w, ln3b, wf1, bf1, smat, wdw, bdw, wf2, bf2) = kp
    del pmat, hmask, smat, wdw  # kernel-only helper matrices

    def ln(v, w, b):
        m = v.mean(-1, keepdims=True)
        va = ((v - m) ** 2).mean(-1, keepdims=True)
        return (v - m) / jnp.sqrt(va + LN_EPS) * w + b

    def gelu(v):
        return jax.nn.gelu(v, approximate=False)

    x1 = ln(x, ln1w, ln1b)
    y1 = ln(y, ln2w, ln2b)

    t = jnp.transpose(y1, (0, 2, 1)).reshape(B, D2, H2, W2)
    t = t.reshape(B, D2, HP, POOL, WP, POOL).mean(axis=(3, 5))
    t = t.reshape(B, D2, NP).transpose(0, 2, 1)                   # [B, NP, D2]
    t = gelu(ln(t @ wsr + bsr, lnrw, lnrb))

    q = (x1 @ wq).reshape(B, N1, HEADS, HD).transpose(0, 2, 1, 3)
    kv = (t @ wkv).reshape(B, NP, 2, HEADS, HD).transpose(2, 0, 3, 1, 4)
    k, v = kv[0], kv[1]
    attn = jax.nn.softmax((q @ jnp.swapaxes(k, -1, -2)) * SCALE, axis=-1)
    av = (attn @ v).transpose(0, 2, 1, 3).reshape(B, N1, D1)
    x2 = x1 + av @ wpr + bpr

    x3 = ln(x2, ln3w, ln3b)
    h = x3 @ wf1 + bf1
    img = h.reshape(B, H1, W1, HID)
    w_hwio = jnp.transpose(wdw3, (1, 2, 0))[:, :, None, :]        # [3,3,1,HID]
    conv = lax.conv_general_dilated(img, w_hwio, (1, 1), "SAME",
                                    dimension_numbers=("NHWC", "HWIO", "NHWC"),
                                    feature_group_count=HID)
    h2 = gelu(conv.reshape(B, N1, HID) + bdw)
    return x3 + h2 @ wf2 + bf2


if __name__ == "__main__":
    keys = iter(jax.random.split(jax.random.PRNGKey(0), 32))

    def nrm(shape, std=0.02):
        return std * jax.random.normal(next(keys), shape, dtype=jnp.float32)

    x = jax.random.normal(next(keys), (B, N1, D1), dtype=jnp.float32)
    y = jax.random.normal(next(keys), (B, N2, D2), dtype=jnp.float32)

    ln1w = 1.0 + nrm((1, D1), 0.1); ln1b = nrm((1, D1), 0.1)
    ln2w = 1.0 + nrm((1, D2), 0.1); ln2b = nrm((1, D2), 0.1)
    lnrw = 1.0 + nrm((1, D2), 0.1); lnrb = nrm((1, D2), 0.1)
    ln3w = 1.0 + nrm((1, D1), 0.1); ln3b = nrm((1, D1), 0.1)

    wsr = nrm((D2, D2), 0.1);  bsr = nrm((1, D2), 0.05)
    wq  = nrm((D1, D1), 0.05)
    wkv = nrm((D2, 2 * D1), 0.05)
    wpr = nrm((D1, D1), 0.05); bpr = nrm((1, D1), 0.05)
    wf1 = nrm((D1, HID), 0.05); bf1 = nrm((1, HID), 0.05)
    wf2 = nrm((HID, D1), 0.05); bf2 = nrm((1, D1), 0.05)
    wdw3 = nrm((HID, 3, 3), 0.2); bdw = nrm((1, HID), 0.05)

    # Average-pool matrix [NP, N2] (AvgPool2d(POOL, POOL) as a matmul).
    hh = jnp.arange(N2) // W2
    ww = jnp.arange(N2) % W2
    pooled_idx = (hh // POOL) * WP + (ww // POOL)
    pmat = (jnp.arange(NP)[:, None] == pooled_idx[None, :]).astype(jnp.float32) / float(POOL * POOL)

    # Head block mask [HEADS*NP, D1]: row r keeps only head (r // NP)'s columns.
    rr = jnp.arange(HEADS * NP)
    cc = jnp.arange(D1)
    hmask = ((cc[None, :] // HD) == (rr[:, None] // NP)).astype(jnp.float32)

    # Depthwise 3x3 conv (padding=1) as 9 token-shift matrices + per-tap weights.
    th = jnp.arange(N1) // W1
    tw = jnp.arange(N1) % W1
    s_list, w_list = [], []
    for i in range(3):
        for j in range(3):
            sh = th + (i - 1)
            sw = tw + (j - 1)
            valid = (sh >= 0) & (sh < H1) & (sw >= 0) & (sw < W1)
            src = jnp.clip(sh * W1 + sw, 0, N1 - 1)
            m = (jnp.arange(N1)[None, :] == src[:, None]) & valid[:, None]
            s_list.append(m.astype(jnp.float32))
            w_list.append(wdw3[:, i, j])
    smat = jnp.stack(s_list)          # [9, N1, N1]
    wdw = jnp.stack(w_list)           # [9, HID]

    kp = (ln1w, ln1b, ln2w, ln2b, pmat, wsr, bsr, lnrw, lnrb,
          wq, wkv, hmask, wpr, bpr, ln3w, ln3b, wf1, bf1, smat, wdw, bdw, wf2, bf2)

    out = block_forward(x, y, kp)
    jax.block_until_ready(out)

    ref = reference(x, y, kp, wdw3)
    max_err = float(jnp.max(jnp.abs(out - ref)))
    assert jnp.allclose(out, ref, atol=2e-4, rtol=2e-4), f"max abs err {max_err}"
    print("KERNEL_OK")
</pallas_src>

<mosaic_0001>
module attributes {stable_mosaic.version = 11 : i64} {
  func.func @block_kernel(%arg0: i32, %arg1: memref<1x64x64xf32, #tpu.memory_space<vmem>>, %arg2: memref<1x256x32xf32, #tpu.memory_space<vmem>>, %arg3: memref<1x64xf32, #tpu.memory_space<vmem>>, %arg4: memref<1x64xf32, #tpu.memory_space<vmem>>, %arg5: memref<1x32xf32, #tpu.memory_space<vmem>>, %arg6: memref<1x32xf32, #tpu.memory_space<vmem>>, %arg7: memref<16x256xf32, #tpu.memory_space<vmem>>, %arg8: memref<32x32xf32, #tpu.memory_space<vmem>>, %arg9: memref<1x32xf32, #tpu.memory_space<vmem>>, %arg10: memref<1x32xf32, #tpu.memory_space<vmem>>, %arg11: memref<1x32xf32, #tpu.memory_space<vmem>>, %arg12: memref<64x64xf32, #tpu.memory_space<vmem>>, %arg13: memref<32x128xf32, #tpu.memory_space<vmem>>, %arg14: memref<128x64xf32, #tpu.memory_space<vmem>>, %arg15: memref<64x64xf32, #tpu.memory_space<vmem>>, %arg16: memref<1x64xf32, #tpu.memory_space<vmem>>, %arg17: memref<1x64xf32, #tpu.memory_space<vmem>>, %arg18: memref<1x64xf32, #tpu.memory_space<vmem>>, %arg19: memref<64x256xf32, #tpu.memory_space<vmem>>, %arg20: memref<1x256xf32, #tpu.memory_space<vmem>>, %arg21: memref<9x64x64xf32, #tpu.memory_space<vmem>>, %arg22: memref<9x256xf32, #tpu.memory_space<vmem>>, %arg23: memref<1x256xf32, #tpu.memory_space<vmem>>, %arg24: memref<256x64xf32, #tpu.memory_space<vmem>>, %arg25: memref<1x64xf32, #tpu.memory_space<vmem>>, %arg26: memref<1x64x64xf32, #tpu.memory_space<vmem>>, %arg27: memref<64x128xf32, #tpu.memory_space<vmem>>) attributes {dimension_semantics = [#tpu.dimension_semantics<parallel>], iteration_bounds = array<i64: 2>, scalar_prefetch = 0 : i64, scratch_operands = 1 : i64, tpu.core_type = #tpu.core_type<tc>, window_params = [{transform_indices = @transform_0, window_bounds = array<i64: 1, 64, 64>}, {transform_indices = @transform_1, window_bounds = array<i64: 1, 256, 32>}, {pipeline_mode = #tpu.pipeline_mode<synchronous>, transform_indices = @transform_2, window_bounds = array<i64: 1, 64>}, {pipeline_mode = #tpu.pipeline_mode<synchronous>, transform_indices = @transform_3, window_bounds = array<i64: 1, 64>}, {pipeline_mode = #tpu.pipeline_mode<synchronous>, transform_indices = @transform_4, window_bounds = array<i64: 1, 32>}, {pipeline_mode = #tpu.pipeline_mode<synchronous>, transform_indices = @transform_5, window_bounds = array<i64: 1, 32>}, {pipeline_mode = #tpu.pipeline_mode<synchronous>, transform_indices = @transform_6, window_bounds = array<i64: 16, 256>}, {pipeline_mode = #tpu.pipeline_mode<synchronous>, transform_indices = @transform_7, window_bounds = array<i64: 32, 32>}, {pipeline_mode = #tpu.pipeline_mode<synchronous>, transform_indices = @transform_8, window_bounds = array<i64: 1, 32>}, {pipeline_mode = #tpu.pipeline_mode<synchronous>, transform_indices = @transform_9, window_bounds = array<i64: 1, 32>}, {pipeline_mode = #tpu.pipeline_mode<synchronous>, transform_indices = @transform_10, window_bounds = array<i64: 1, 32>}, {pipeline_mode = #tpu.pipeline_mode<synchronous>, transform_indices = @transform_11, window_bounds = array<i64: 64, 64>}, {pipeline_mode = #tpu.pipeline_mode<synchronous>, transform_indices = @transform_12, window_bounds = array<i64: 32, 128>}, {pipeline_mode = #tpu.pipeline_mode<synchronous>, transform_indices = @transform_13, window_bounds = array<i64: 128, 64>}, {pipeline_mode = #tpu.pipeline_mode<synchronous>, transform_indices = @transform_14, window_bounds = array<i64: 64, 64>}, {pipeline_mode = #tpu.pipeline_mode<synchronous>, transform_indices = @transform_15, window_bounds = array<i64: 1, 64>}, {pipeline_mode = #tpu.pipeline_mode<synchronous>, transform_indices = @transform_16, window_bounds = array<i64: 1, 64>}, {pipeline_mode = #tpu.pipeline_mode<synchronous>, transform_indices = @transform_17, window_bounds = array<i64: 1, 64>}, {pipeline_mode = #tpu.pipeline_mode<synchronous>, transform_indices = @transform_18, window_bounds = array<i64: 64, 256>}, {pipeline_mode = #tpu.pipeline_mode<synchronous>, transform_indices = @transform_19, window_bounds = array<i64: 1, 256>}, {pipeline_mode = #tpu.pipeline_mode<synchronous>, transform_indices = @transform_20, window_bounds = array<i64: 9, 64, 64>}, {pipeline_mode = #tpu.pipeline_mode<synchronous>, transform_indices = @transform_21, window_bounds = array<i64: 9, 256>}, {pipeline_mode = #tpu.pipeline_mode<synchronous>, transform_indices = @transform_22, window_bounds = array<i64: 1, 256>}, {pipeline_mode = #tpu.pipeline_mode<synchronous>, transform_indices = @transform_23, window_bounds = array<i64: 256, 64>}, {pipeline_mode = #tpu.pipeline_mode<synchronous>, transform_indices = @transform_24, window_bounds = array<i64: 1, 64>}, {transform_indices = @transform_25, window_bounds = array<i64: 1, 64, 64>}]} {
    %c0 = arith.constant 0 : index
    %c0_0 = arith.constant 0 : index
    %c0_1 = arith.constant 0 : index
    %0 = vector.load %arg1[%c0, %c0_0, %c0_1] : memref<1x64x64xf32, #tpu.memory_space<vmem>>, vector<1x64x64xf32>
    %1 = vector.shape_cast %0 : vector<1x64x64xf32> to vector<64x64xf32>
    %c0_2 = arith.constant 0 : index
    %c0_3 = arith.constant 0 : index
    %2 = vector.load %arg3[%c0_2, %c0_3] : memref<1x64xf32, #tpu.memory_space<vmem>>, vector<1x64xf32>
    %c0_4 = arith.constant 0 : index
    %c0_5 = arith.constant 0 : index
    %3 = vector.load %arg4[%c0_4, %c0_5] : memref<1x64xf32, #tpu.memory_space<vmem>>, vector<1x64xf32>
    %cst = arith.constant dense<0.000000e+00> : vector<64xf32>
    %4 = vector.multi_reduction <add>, %1, %cst [1] : vector<64x64xf32> to vector<64xf32>
    %5 = vector.shape_cast %4 : vector<64xf32> to vector<64x1xf32>
    %cst_6 = arith.constant 6.400000e+01 : f32
    %6 = vector.broadcast %cst_6 : f32 to vector<64x1xf32>
    %7 = arith.divf %5, %6 : vector<64x1xf32>
    %8 = vector.broadcast %7 : vector<64x1xf32> to vector<64x64xf32>
    %9 = arith.subf %1, %8 : vector<64x64xf32>
    %10 = arith.mulf %9, %9 : vector<64x64xf32>
    %cst_7 = arith.constant dense<0.000000e+00> : vector<64xf32>
    %11 = vector.multi_reduction <add>, %10, %cst_7 [1] : vector<64x64xf32> to vector<64xf32>
    %12 = vector.shape_cast %11 : vector<64xf32> to vector<64x1xf32>
    %cst_8 = arith.constant 6.400000e+01 : f32
    %13 = vector.broadcast %cst_8 : f32 to vector<64x1xf32>
    %14 = arith.divf %12, %13 : vector<64x1xf32>
    %cst_9 = arith.constant 9.99999974E-6 : f32
    %15 = vector.broadcast %cst_9 : f32 to vector<64x1xf32>
    %16 = arith.addf %14, %15 : vector<64x1xf32>
    %17 = math.rsqrt %16 : vector<64x1xf32>
    %18 = vector.broadcast %17 : vector<64x1xf32> to vector<64x64xf32>
    %19 = arith.mulf %9, %18 : vector<64x64xf32>
    %20 = vector.broadcast %2 : vector<1x64xf32> to vector<64x64xf32>
    %21 = arith.mulf %19, %20 : vector<64x64xf32>
    %22 = vector.broadcast %3 : vector<1x64xf32> to vector<64x64xf32>
    %23 = arith.addf %21, %22 : vector<64x64xf32>
    %c0_10 = arith.constant 0 : index
    %c0_11 = arith.constant 0 : index
    %c0_12 = arith.constant 0 : index
    %24 = vector.load %arg2[%c0_10, %c0_11, %c0_12] : memref<1x256x32xf32, #tpu.memory_space<vmem>>, vector<1x256x32xf32>
    %25 = vector.shape_cast %24 : vector<1x256x32xf32> to vector<256x32xf32>
    %c0_13 = arith.constant 0 : index
    %c0_14 = arith.constant 0 : index
    %26 = vector.load %arg5[%c0_13, %c0_14] : memref<1x32xf32, #tpu.memory_space<vmem>>, vector<1x32xf32>
    %c0_15 = arith.constant 0 : index
    %c0_16 = arith.constant 0 : index
    %27 = vector.load %arg6[%c0_15, %c0_16] : memref<1x32xf32, #tpu.memory_space<vmem>>, vector<1x32xf32>
    %cst_17 = arith.constant dense<0.000000e+00> : vector<256xf32>
    %28 = vector.multi_reduction <add>, %25, %cst_17 [1] : vector<256x32xf32> to vector<256xf32>
    %29 = vector.shape_cast %28 : vector<256xf32> to vector<256x1xf32>
    %cst_18 = arith.constant 3.200000e+01 : f32
    %30 = vector.broadcast %cst_18 : f32 to vector<256x1xf32>
    %31 = arith.divf %29, %30 : vector<256x1xf32>
    %32 = vector.broadcast %31 : vector<256x1xf32> to vector<256x32xf32>
    %33 = arith.subf %25, %32 : vector<256x32xf32>
    %34 = arith.mulf %33, %33 : vector<256x32xf32>
    %cst_19 = arith.constant dense<0.000000e+00> : vector<256xf32>
    %35 = vector.multi_reduction <add>, %34, %cst_19 [1] : vector<256x32xf32> to vector<256xf32>
    %36 = vector.shape_cast %35 : vector<256xf32> to vector<256x1xf32>
    %cst_20 = arith.constant 3.200000e+01 : f32
    %37 = vector.broadcast %cst_20 : f32 to vector<256x1xf32>
    %38 = arith.divf %36, %37 : vector<256x1xf32>
    %cst_21 = arith.constant 9.99999974E-6 : f32
    %39 = vector.broadcast %cst_21 : f32 to vector<256x1xf32>
    %40 = arith.addf %38, %39 : vector<256x1xf32>
    %41 = math.rsqrt %40 : vector<256x1xf32>
    %42 = vector.broadcast %41 : vector<256x1xf32> to vector<256x32xf32>
    %43 = arith.mulf %33, %42 : vector<256x32xf32>
    %44 = vector.broadcast %26 : vector<1x32xf32> to vector<256x32xf32>
    %45 = arith.mulf %43, %44 : vector<256x32xf32>
    %46 = vector.broadcast %27 : vector<1x32xf32> to vector<256x32xf32>
    %47 = arith.addf %45, %46 : vector<256x32xf32>
    %c0_22 = arith.constant 0 : index
    %c0_23 = arith.constant 0 : index
    %48 = vector.load %arg7[%c0_22, %c0_23] : memref<16x256xf32, #tpu.memory_space<vmem>>, vector<16x256xf32>
    %cst_24 = arith.constant dense<0.000000e+00> : vector<16x32xf32>
    %49 = tpu.matmul %48, %47, %cst_24 {dimension_numbers = #tpu.dot_dimension_numbers<[1], [0], [0], [1], [0, 0, 1, 1], [], []>} : vector<16x256xf32>, vector<256x32xf32>, vector<16x32xf32> -> vector<16x32xf32>
    %c0_25 = arith.constant 0 : index
    %c0_26 = arith.constant 0 : index
    %50 = vector.load %arg8[%c0_25, %c0_26] : memref<32x32xf32, #tpu.memory_space<vmem>>, vector<32x32xf32>
    %cst_27 = arith.constant dense<0.000000e+00> : vector<16x32xf32>
    %51 = tpu.matmul %49, %50, %cst_27 {dimension_numbers = #tpu.dot_dimension_numbers<[1], [0], [0], [1], [0, 0, 1, 1], [], []>} : vector<16x32xf32>, vector<32x32xf32>, vector<16x32xf32> -> vector<16x32xf32>
    %c0_28 = arith.constant 0 : index
    %c0_29 = arith.constant 0 : index
    %52 = vector.load %arg9[%c0_28, %c0_29] : memref<1x32xf32, #tpu.memory_space<vmem>>, vector<1x32xf32>
    %53 = vector.broadcast %52 : vector<1x32xf32> to vector<16x32xf32>
    %54 = arith.addf %51, %53 : vector<16x32xf32>
    %c0_30 = arith.constant 0 : index
    %c0_31 = arith.constant 0 : index
    %55 = vector.load %arg10[%c0_30, %c0_31] : memref<1x32xf32, #tpu.memory_space<vmem>>, vector<1x32xf32>
    %c0_32 = arith.constant 0 : index
    %c0_33 = arith.constant 0 : index
    %56 = vector.load %arg11[%c0_32, %c0_33] : memref<1x32xf32, #tpu.memory_space<vmem>>, vector<1x32xf32>
    %cst_34 = arith.constant dense<0.000000e+00> : vector<16xf32>
    %57 = vector.multi_reduction <add>, %54, %cst_34 [1] : vector<16x32xf32> to vector<16xf32>
    %58 = vector.shape_cast %57 : vector<16xf32> to vector<16x1xf32>
    %cst_35 = arith.constant 3.200000e+01 : f32
    %59 = vector.broadcast %cst_35 : f32 to vector<16x1xf32>
    %60 = arith.divf %58, %59 : vector<16x1xf32>
    %61 = vector.broadcast %60 : vector<16x1xf32> to vector<16x32xf32>
    %62 = arith.subf %54, %61 : vector<16x32xf32>
    %63 = arith.mulf %62, %62 : vector<16x32xf32>
    %cst_36 = arith.constant dense<0.000000e+00> : vector<16xf32>
    %64 = vector.multi_reduction <add>, %63, %cst_36 [1] : vector<16x32xf32> to vector<16xf32>
    %65 = vector.shape_cast %64 : vector<16xf32> to vector<16x1xf32>
    %cst_37 = arith.constant 3.200000e+01 : f32
    %66 = vector.broadcast %cst_37 : f32 to vector<16x1xf32>
    %67 = arith.divf %65, %66 : vector<16x1xf32>
    %cst_38 = arith.constant 9.99999974E-6 : f32
    %68 = vector.broadcast %cst_38 : f32 to vector<16x1xf32>
    %69 = arith.addf %67, %68 : vector<16x1xf32>
    %70 = math.rsqrt %69 : vector<16x1xf32>
    %71 = vector.broadcast %70 : vector<16x1xf32> to vector<16x32xf32>
    %72 = arith.mulf %62, %71 : vector<16x32xf32>
    %73 = vector.broadcast %55 : vector<1x32xf32> to vector<16x32xf32>
    %74 = arith.mulf %72, %73 : vector<16x32xf32>
    %75 = vector.broadcast %56 : vector<1x32xf32> to vector<16x32xf32>
    %76 = arith.addf %74, %75 : vector<16x32xf32>
    %cst_39 = arith.constant 5.000000e-01 : f32
    %77 = vector.broadcast %cst_39 : f32 to vector<16x32xf32>
    %78 = arith.mulf %77, %76 : vector<16x32xf32>
    %cst_40 = arith.constant 0.707106769 : f32
    %79 = vector.broadcast %cst_40 : f32 to vector<16x32xf32>
    %80 = arith.mulf %76, %79 : vector<16x32xf32>
    %cst_41 = arith.constant 0.000000e+00 : f32
    %81 = vector.broadcast %cst_41 : f32 to vector<16x32xf32>
    %82 = arith.cmpf oge, %80, %81 : vector<16x32xf32>
    %cst_42 = arith.constant 1.000000e+00 : f32
    %cst_43 = arith.constant -1.000000e+00 : f32
    %83 = vector.broadcast %cst_42 : f32 to vector<16x32xf32>
    %84 = vector.broadcast %cst_43 : f32 to vector<16x32xf32>
    %85 = arith.select %82, %83, %84 : vector<16x32xi1>, vector<16x32xf32>
    %86 = math.absf %80 : vector<16x32xf32>
    %cst_44 = arith.constant 0.327591091 : f32
    %87 = vector.broadcast %cst_44 : f32 to vector<16x32xf32>
    %88 = arith.mulf %87, %86 : vector<16x32xf32>
    %cst_45 = arith.constant 1.000000e+00 : f32
    %89 = vector.broadcast %cst_45 : f32 to vector<16x32xf32>
    %90 = arith.addf %89, %88 : vector<16x32xf32>
    %cst_46 = arith.constant 1.000000e+00 : f32
    %91 = vector.broadcast %cst_46 : f32 to vector<16x32xf32>
    %92 = arith.divf %91, %90 : vector<16x32xf32>
    %cst_47 = arith.constant 1.06140542 : f32
    %93 = vector.broadcast %cst_47 : f32 to vector<16x32xf32>
    %94 = arith.mulf %93, %92 : vector<16x32xf32>
    %cst_48 = arith.constant -1.45315206 : f32
    %95 = vector.broadcast %cst_48 : f32 to vector<16x32xf32>
    %96 = arith.addf %94, %95 : vector<16x32xf32>
    %97 = arith.mulf %96, %92 : vector<16x32xf32>
    %cst_49 = arith.constant 1.42141378 : f32
    %98 = vector.broadcast %cst_49 : f32 to vector<16x32xf32>
    %99 = arith.addf %97, %98 : vector<16x32xf32>
    %100 = arith.mulf %99, %92 : vector<16x32xf32>
    %cst_50 = arith.constant -0.284496725 : f32
    %101 = vector.broadcast %cst_50 : f32 to vector<16x32xf32>
    %102 = arith.addf %100, %101 : vector<16x32xf32>
    %103 = arith.mulf %102, %92 : vector<16x32xf32>
    %cst_51 = arith.constant 0.254829586 : f32
    %104 = vector.broadcast %cst_51 : f32 to vector<16x32xf32>
    %105 = arith.addf %103, %104 : vector<16x32xf32>
    %106 = arith.mulf %105, %92 : vector<16x32xf32>
    %cst_52 = arith.constant 0.000000e+00 : f32
    %107 = vector.broadcast %cst_52 : f32 to vector<16x32xf32>
    %108 = arith.subf %107, %86 : vector<16x32xf32>
    %109 = arith.mulf %108, %86 : vector<16x32xf32>
    %110 = math.exp %109 : vector<16x32xf32>
    %111 = arith.mulf %106, %110 : vector<16x32xf32>
    %cst_53 = arith.constant 1.000000e+00 : f32
    %112 = vector.broadcast %cst_53 : f32 to vector<16x32xf32>
    %113 = arith.subf %112, %111 : vector<16x32xf32>
    %114 = arith.mulf %85, %113 : vector<16x32xf32>
    %cst_54 = arith.constant 1.000000e+00 : f32
    %115 = vector.broadcast %cst_54 : f32 to vector<16x32xf32>
    %116 = arith.addf %115, %114 : vector<16x32xf32>
    %117 = arith.mulf %78, %116 : vector<16x32xf32>
    %c0_55 = arith.constant 0 : index
    %c0_56 = arith.constant 0 : index
    %118 = vector.load %arg12[%c0_55, %c0_56] : memref<64x64xf32, #tpu.memory_space<vmem>>, vector<64x64xf32>
    %cst_57 = arith.constant dense<0.000000e+00> : vector<64x64xf32>
    %119 = tpu.matmul %23, %118, %cst_57 {dimension_numbers = #tpu.dot_dimension_numbers<[1], [0], [0], [1], [0, 0, 1, 1], [], []>} : vector<64x64xf32>, vector<64x64xf32>, vector<64x64xf32> -> vector<64x64xf32>
    %c0_58 = arith.constant 0 : index
    %c0_59 = arith.constant 0 : index
    %120 = vector.load %arg13[%c0_58, %c0_59] : memref<32x128xf32, #tpu.memory_space<vmem>>, vector<32x128xf32>
    %cst_60 = arith.constant dense<0.000000e+00> : vector<16x128xf32>
    %121 = tpu.matmul %117, %120, %cst_60 {dimension_numbers = #tpu.dot_dimension_numbers<[1], [0], [0], [1], [0, 0, 1, 1], [], []>} : vector<16x32xf32>, vector<32x128xf32>, vector<16x128xf32> -> vector<16x128xf32>
    %122 = vector.extract_strided_slice %121 {offsets = [0, 0], sizes = [16, 64], strides = [1, 1]} : vector<16x128xf32> to vector<16x64xf32>
    %123 = vector.extract_strided_slice %121 {offsets = [0, 64], sizes = [16, 64], strides = [1, 1]} : vector<16x128xf32> to vector<16x64xf32>
    %c0_61 = arith.constant 0 : index
    %c0_62 = arith.constant 0 : index
    %124 = vector.load %arg14[%c0_61, %c0_62] : memref<128x64xf32, #tpu.memory_space<vmem>>, vector<128x64xf32>
    %125 = tpu.concatenate %122, %122, %122, %122, %122, %122, %122, %122 in 0 : vector<16x64xf32>, vector<16x64xf32>, vector<16x64xf32>, vector<16x64xf32>, vector<16x64xf32>, vector<16x64xf32>, vector<16x64xf32>, vector<16x64xf32> -> vector<128x64xf32>
    %126 = arith.mulf %125, %124 : vector<128x64xf32>
    %127 = tpu.concatenate %123, %123, %123, %123, %123, %123, %123, %123 in 0 : vector<16x64xf32>, vector<16x64xf32>, vector<16x64xf32>, vector<16x64xf32>, vector<16x64xf32>, vector<16x64xf32>, vector<16x64xf32>, vector<16x64xf32> -> vector<128x64xf32>
    %128 = arith.mulf %127, %124 : vector<128x64xf32>
    %cst_63 = arith.constant dense<0.000000e+00> : vector<64x128xf32>
    %129 = tpu.matmul %119, %126, %cst_63 {dimension_numbers = #tpu.dot_dimension_numbers<[1], [1], [0], [0], [0, 0, 1, 0], [], []>} : vector<64x64xf32>, vector<128x64xf32>, vector<64x128xf32> -> vector<64x128xf32>
    %cst_64 = arith.constant 0.353553385 : f32
    %130 = vector.broadcast %cst_64 : f32 to vector<64x128xf32>
    %131 = arith.mulf %129, %130 : vector<64x128xf32>
    %132 = vector.extract_strided_slice %131 {offsets = [0, 0], sizes = [64, 16], strides = [1, 1]} : vector<64x128xf32> to vector<64x16xf32>
    %cst_65 = arith.constant dense<0xFF800000> : vector<64xf32>
    %133 = vector.multi_reduction <maximumf>, %132, %cst_65 [1] : vector<64x16xf32> to vector<64xf32>
    %134 = vector.shape_cast %133 : vector<64xf32> to vector<64x1xf32>
    %135 = vector.broadcast %134 : vector<64x1xf32> to vector<64x16xf32>
    %136 = arith.subf %132, %135 : vector<64x16xf32>
    %137 = math.exp %136 : vector<64x16xf32>
    %cst_66 = arith.constant dense<0.000000e+00> : vector<64xf32>
    %138 = vector.multi_reduction <add>, %137, %cst_66 [1] : vector<64x16xf32> to vector<64xf32>
    %139 = vector.shape_cast %138 : vector<64xf32> to vector<64x1xf32>
    %140 = vector.broadcast %139 : vector<64x1xf32> to vector<64x16xf32>
    %141 = arith.divf %137, %140 : vector<64x16xf32>
    %c0_67 = arith.constant 0 : index
    %c0_68 = arith.constant 0 : index
    %142 = vector.load %arg27[%c0_67, %c0_68] : memref<64x128xf32, #tpu.memory_space<vmem>>, vector<64x16xf32>
    tpu.vector_store %arg27[%c0_67, %c0_68], %141 {strides = array<i32>} : memref<64x128xf32, #tpu.memory_space<vmem>>, vector<64x16xf32>,
    %143 = vector.extract_strided_slice %131 {offsets = [0, 16], sizes = [64, 16], strides = [1, 1]} : vector<64x128xf32> to vector<64x16xf32>
    %cst_69 = arith.constant dense<0xFF800000> : vector<64xf32>
    %144 = vector.multi_reduction <maximumf>, %143, %cst_69 [1] : vector<64x16xf32> to vector<64xf32>
    %145 = vector.shape_cast %144 : vector<64xf32> to vector<64x1xf32>
    %146 = vector.broadcast %145 : vector<64x1xf32> to vector<64x16xf32>
    %147 = arith.subf %143, %146 : vector<64x16xf32>
    %148 = math.exp %147 : vector<64x16xf32>
    %cst_70 = arith.constant dense<0.000000e+00> : vector<64xf32>
    %149 = vector.multi_reduction <add>, %148, %cst_70 [1] : vector<64x16xf32> to vector<64xf32>
    %150 = vector.shape_cast %149 : vector<64xf32> to vector<64x1xf32>
    %151 = vector.broadcast %150 : vector<64x1xf32> to vector<64x16xf32>
    %152 = arith.divf %148, %151 : vector<64x16xf32>
    %c0_71 = arith.constant 0 : index
    %c16 = arith.constant 16 : index
    %153 = vector.load %arg27[%c0_71, %c16] : memref<64x128xf32, #tpu.memory_space<vmem>>, vector<64x16xf32>
    tpu.vector_store %arg27[%c0_71, %c16], %152 {strides = array<i32>} : memref<64x128xf32, #tpu.memory_space<vmem>>, vector<64x16xf32>,
    %154 = vector.extract_strided_slice %131 {offsets = [0, 32], sizes = [64, 16], strides = [1, 1]} : vector<64x128xf32> to vector<64x16xf32>
    %cst_72 = arith.constant dense<0xFF800000> : vector<64xf32>
    %155 = vector.multi_reduction <maximumf>, %154, %cst_72 [1] : vector<64x16xf32> to vector<64xf32>
    %156 = vector.shape_cast %155 : vector<64xf32> to vector<64x1xf32>
    %157 = vector.broadcast %156 : vector<64x1xf32> to vector<64x16xf32>
    %158 = arith.subf %154, %157 : vector<64x16xf32>
    %159 = math.exp %158 : vector<64x16xf32>
    %cst_73 = arith.constant dense<0.000000e+00> : vector<64xf32>
    %160 = vector.multi_reduction <add>, %159, %cst_73 [1] : vector<64x16xf32> to vector<64xf32>
    %161 = vector.shape_cast %160 : vector<64xf32> to vector<64x1xf32>
    %162 = vector.broadcast %161 : vector<64x1xf32> to vector<64x16xf32>
    %163 = arith.divf %159, %162 : vector<64x16xf32>
    %c0_74 = arith.constant 0 : index
    %c32 = arith.constant 32 : index
    %164 = vector.load %arg27[%c0_74, %c32] : memref<64x128xf32, #tpu.memory_space<vmem>>, vector<64x16xf32>
    tpu.vector_store %arg27[%c0_74, %c32], %163 {strides = array<i32>} : memref<64x128xf32, #tpu.memory_space<vmem>>, vector<64x16xf32>,
    %165 = vector.extract_strided_slice %131 {offsets = [0, 48], sizes = [64, 16], strides = [1, 1]} : vector<64x128xf32> to vector<64x16xf32>
    %cst_75 = arith.constant dense<0xFF800000> : vector<64xf32>
    %166 = vector.multi_reduction <maximumf>, %165, %cst_75 [1] : vector<64x16xf32> to vector<64xf32>
    %167 = vector.shape_cast %166 : vector<64xf32> to vector<64x1xf32>
    %168 = vector.broadcast %167 : vector<64x1xf32> to vector<64x16xf32>
    %169 = arith.subf %165, %168 : vector<64x16xf32>
    %170 = math.exp %169 : vector<64x16xf32>
    %cst_76 = arith.constant dense<0.000000e+00> : vector<64xf32>
    %171 = vector.multi_reduction <add>, %170, %cst_76 [1] : vector<64x16xf32> to vector<64xf32>
    %172 = vector.shape_cast %171 : vector<64xf32> to vector<64x1xf32>
    %173 = vector.broadcast %172 : vector<64x1xf32> to vector<64x16xf32>
    %174 = arith.divf %170, %173 : vector<64x16xf32>
    %c0_77 = arith.constant 0 : index
    %c48 = arith.constant 48 : index
    %175 = vector.load %arg27[%c0_77, %c48] : memref<64x128xf32, #tpu.memory_space<vmem>>, vector<64x16xf32>
    tpu.vector_store %arg27[%c0_77, %c48], %174 {strides = array<i32>} : memref<64x128xf32, #tpu.memory_space<vmem>>, vector<64x16xf32>,
    %176 = vector.extract_strided_slice %131 {offsets = [0, 64], sizes = [64, 16], strides = [1, 1]} : vector<64x128xf32> to vector<64x16xf32>
    %cst_78 = arith.constant dense<0xFF800000> : vector<64xf32>
    %177 = vector.multi_reduction <maximumf>, %176, %cst_78 [1] : vector<64x16xf32> to vector<64xf32>
    %178 = vector.shape_cast %177 : vector<64xf32> to vector<64x1xf32>
    %179 = vector.broadcast %178 : vector<64x1xf32> to vector<64x16xf32>
    %180 = arith.subf %176, %179 : vector<64x16xf32>
    %181 = math.exp %180 : vector<64x16xf32>
    %cst_79 = arith.constant dense<0.000000e+00> : vector<64xf32>
    %182 = vector.multi_reduction <add>, %181, %cst_79 [1] : vector<64x16xf32> to vector<64xf32>
    %183 = vector.shape_cast %182 : vector<64xf32> to vector<64x1xf32>
    %184 = vector.broadcast %183 : vector<64x1xf32> to vector<64x16xf32>
    %185 = arith.divf %181, %184 : vector<64x16xf32>
    %c0_80 = arith.constant 0 : index
    %c64 = arith.constant 64 : index
    %186 = vector.load %arg27[%c0_80, %c64] : memref<64x128xf32, #tpu.memory_space<vmem>>, vector<64x16xf32>
    tpu.vector_store %arg27[%c0_80, %c64], %185 {strides = array<i32>} : memref<64x128xf32, #tpu.memory_space<vmem>>, vector<64x16xf32>,
    %187 = vector.extract_strided_slice %131 {offsets = [0, 80], sizes = [64, 16], strides = [1, 1]} : vector<64x128xf32> to vector<64x16xf32>
    %cst_81 = arith.constant dense<0xFF800000> : vector<64xf32>
    %188 = vector.multi_reduction <maximumf>, %187, %cst_81 [1] : vector<64x16xf32> to vector<64xf32>
    %189 = vector.shape_cast %188 : vector<64xf32> to vector<64x1xf32>
    %190 = vector.broadcast %189 : vector<64x1xf32> to vector<64x16xf32>
    %191 = arith.subf %187, %190 : vector<64x16xf32>
    %192 = math.exp %191 : vector<64x16xf32>
    %cst_82 = arith.constant dense<0.000000e+00> : vector<64xf32>
    %193 = vector.multi_reduction <add>, %192, %cst_82 [1] : vector<64x16xf32> to vector<64xf32>
    %194 = vector.shape_cast %193 : vector<64xf32> to vector<64x1xf32>
    %195 = vector.broadcast %194 : vector<64x1xf32> to vector<64x16xf32>
    %196 = arith.divf %192, %195 : vector<64x16xf32>
    %c0_83 = arith.constant 0 : index
    %c80 = arith.constant 80 : index
    %197 = vector.load %arg27[%c0_83, %c80] : memref<64x128xf32, #tpu.memory_space<vmem>>, vector<64x16xf32>
    tpu.vector_store %arg27[%c0_83, %c80], %196 {strides = array<i32>} : memref<64x128xf32, #tpu.memory_space<vmem>>, vector<64x16xf32>,
    %198 = vector.extract_strided_slice %131 {offsets = [0, 96], sizes = [64, 16], strides = [1, 1]} : vector<64x128xf32> to vector<64x16xf32>
    %cst_84 = arith.constant dense<0xFF800000> : vector<64xf32>
    %199 = vector.multi_reduction <maximumf>, %198, %cst_84 [1] : vector<64x16xf32> to vector<64xf32>
    %200 = vector.shape_cast %199 : vector<64xf32> to vector<64x1xf32>
    %201 = vector.broadcast %200 : vector<64x1xf32> to vector<64x16xf32>
    %202 = arith.subf %198, %201 : vector<64x16xf32>
    %203 = math.exp %202 : vector<64x16xf32>
    %cst_85 = arith.constant dense<0.000000e+00> : vector<64xf32>
    %204 = vector.multi_reduction <add>, %203, %cst_85 [1] : vector<64x16xf32> to vector<64xf32>
    %205 = vector.shape_cast %204 : vector<64xf32> to vector<64x1xf32>
    %206 = vector.broadcast %205 : vector<64x1xf32> to vector<64x16xf32>
    %207 = arith.divf %203, %206 : vector<64x16xf32>
    %c0_86 = arith.constant 0 : index
    %c96 = arith.constant 96 : index
    %208 = vector.load %arg27[%c0_86, %c96] : memref<64x128xf32, #tpu.memory_space<vmem>>, vector<64x16xf32>
    tpu.vector_store %arg27[%c0_86, %c96], %207 {strides = array<i32>} : memref<64x128xf32, #tpu.memory_space<vmem>>, vector<64x16xf32>,
    %209 = vector.extract_strided_slice %131 {offsets = [0, 112], sizes = [64, 16], strides = [1, 1]} : vector<64x128xf32> to vector<64x16xf32>
    %cst_87 = arith.constant dense<0xFF800000> : vector<64xf32>
    %210 = vector.multi_reduction <maximumf>, %209, %cst_87 [1] : vector<64x16xf32> to vector<64xf32>
    %211 = vector.shape_cast %210 : vector<64xf32> to vector<64x1xf32>
    %212 = vector.broadcast %211 : vector<64x1xf32> to vector<64x16xf32>
    %213 = arith.subf %209, %212 : vector<64x16xf32>
    %214 = math.exp %213 : vector<64x16xf32>
    %cst_88 = arith.constant dense<0.000000e+00> : vector<64xf32>
    %215 = vector.multi_reduction <add>, %214, %cst_88 [1] : vector<64x16xf32> to vector<64xf32>
    %216 = vector.shape_cast %215 : vector<64xf32> to vector<64x1xf32>
    %217 = vector.broadcast %216 : vector<64x1xf32> to vector<64x16xf32>
    %218 = arith.divf %214, %217 : vector<64x16xf32>
    %c0_89 = arith.constant 0 : index
    %c112 = arith.constant 112 : index
    %219 = vector.load %arg27[%c0_89, %c112] : memref<64x128xf32, #tpu.memory_space<vmem>>, vector<64x16xf32>
    tpu.vector_store %arg27[%c0_89, %c112], %218 {strides = array<i32>} : memref<64x128xf32, #tpu.memory_space<vmem>>, vector<64x16xf32>,
    %c0_90 = arith.constant 0 : index
    %c0_91 = arith.constant 0 : index
    %220 = vector.load %arg27[%c0_90, %c0_91] : memref<64x128xf32, #tpu.memory_space<vmem>>, vector<64x128xf32>
    %cst_92 = arith.constant dense<0.000000e+00> : vector<64x64xf32>
    %221 = tpu.matmul %220, %128, %cst_92 {dimension_numbers = #tpu.dot_dimension_numbers<[1], [0], [0], [1], [0, 0, 1, 1], [], []>} : vector<64x128xf32>, vector<128x64xf32>, vector<64x64xf32> -> vector<64x64xf32>
    %c0_93 = arith.constant 0 : index
    %c0_94 = arith.constant 0 : index
    %222 = vector.load %arg15[%c0_93, %c0_94] : memref<64x64xf32, #tpu.memory_space<vmem>>, vector<64x64xf32>
    %cst_95 = arith.constant dense<0.000000e+00> : vector<64x64xf32>
    %223 = tpu.matmul %221, %222, %cst_95 {dimension_numbers = #tpu.dot_dimension_numbers<[1], [0], [0], [1], [0, 0, 1, 1], [], []>} : vector<64x64xf32>, vector<64x64xf32>, vector<64x64xf32> -> vector<64x64xf32>
    %224 = arith.addf %23, %223 : vector<64x64xf32>
    %c0_96 = arith.constant 0 : index
    %c0_97 = arith.constant 0 : index
    %225 = vector.load %arg16[%c0_96, %c0_97] : memref<1x64xf32, #tpu.memory_space<vmem>>, vector<1x64xf32>
    %226 = vector.broadcast %225 : vector<1x64xf32> to vector<64x64xf32>
    %227 = arith.addf %224, %226 : vector<64x64xf32>
    %c0_98 = arith.constant 0 : index
    %c0_99 = arith.constant 0 : index
    %228 = vector.load %arg17[%c0_98, %c0_99] : memref<1x64xf32, #tpu.memory_space<vmem>>, vector<1x64xf32>
    %c0_100 = arith.constant 0 : index
    %c0_101 = arith.constant 0 : index
    %229 = vector.load %arg18[%c0_100, %c0_101] : memref<1x64xf32, #tpu.memory_space<vmem>>, vector<1x64xf32>
    %cst_102 = arith.constant dense<0.000000e+00> : vector<64xf32>
    %230 = vector.multi_reduction <add>, %227, %cst_102 [1] : vector<64x64xf32> to vector<64xf32>
    %231 = vector.shape_cast %230 : vector<64xf32> to vector<64x1xf32>
    %cst_103 = arith.constant 6.400000e+01 : f32
    %232 = vector.broadcast %cst_103 : f32 to vector<64x1xf32>
    %233 = arith.divf %231, %232 : vector<64x1xf32>
    %234 = vector.broadcast %233 : vector<64x1xf32> to vector<64x64xf32>
    %235 = arith.subf %227, %234 : vector<64x64xf32>
    %236 = arith.mulf %235, %235 : vector<64x64xf32>
    %cst_104 = arith.constant dense<0.000000e+00> : vector<64xf32>
    %237 = vector.multi_reduction <add>, %236, %cst_104 [1] : vector<64x64xf32> to vector<64xf32>
    %238 = vector.shape_cast %237 : vector<64xf32> to vector<64x1xf32>
    %cst_105 = arith.constant 6.400000e+01 : f32
    %239 = vector.broadcast %cst_105 : f32 to vector<64x1xf32>
    %240 = arith.divf %238, %239 : vector<64x1xf32>
    %cst_106 = arith.constant 9.99999974E-6 : f32
    %241 = vector.broadcast %cst_106 : f32 to vector<64x1xf32>
    %242 = arith.addf %240, %241 : vector<64x1xf32>
    %243 = math.rsqrt %242 : vector<64x1xf32>
    %244 = vector.broadcast %243 : vector<64x1xf32> to vector<64x64xf32>
    %245 = arith.mulf %235, %244 : vector<64x64xf32>
    %246 = vector.broadcast %228 : vector<1x64xf32> to vector<64x64xf32>
    %247 = arith.mulf %245, %246 : vector<64x64xf32>
    %248 = vector.broadcast %229 : vector<1x64xf32> to vector<64x64xf32>
    %249 = arith.addf %247, %248 : vector<64x64xf32>
    %c0_107 = arith.constant 0 : index
    %c0_108 = arith.constant 0 : index
    %250 = vector.load %arg19[%c0_107, %c0_108] : memref<64x256xf32, #tpu.memory_space<vmem>>, vector<64x256xf32>
    %cst_109 = arith.constant dense<0.000000e+00> : vector<64x256xf32>
    %251 = tpu.matmul %249, %250, %cst_109 {dimension_numbers = #tpu.dot_dimension_numbers<[1], [0], [0], [1], [0, 0, 1, 1], [], []>} : vector<64x64xf32>, vector<64x256xf32>, vector<64x256xf32> -> vector<64x256xf32>
    %c0_110 = arith.constant 0 : index
    %c0_111 = arith.constant 0 : index
    %252 = vector.load %arg20[%c0_110, %c0_111] : memref<1x256xf32, #tpu.memory_space<vmem>>, vector<1x256xf32>
    %253 = vector.broadcast %252 : vector<1x256xf32> to vector<64x256xf32>
    %254 = arith.addf %251, %253 : vector<64x256xf32>
    %c0_112 = arith.constant 0 : index
    %c0_113 = arith.constant 0 : index
    %255 = vector.load %arg22[%c0_112, %c0_113] : memref<9x256xf32, #tpu.memory_space<vmem>>, vector<9x256xf32>
    %cst_114 = arith.constant 0.000000e+00 : f32
    %256 = vector.broadcast %cst_114 : f32 to vector<64x256xf32>
    %c0_115 = arith.constant 0 : index
    %c0_116 = arith.constant 0 : index
    %c0_117 = arith.constant 0 : index
    %257 = vector.load %arg21[%c0_115, %c0_116, %c0_117] : memref<9x64x64xf32, #tpu.memory_space<vmem>>, vector<1x64x64xf32>
    %258 = vector.shape_cast %257 : vector<1x64x64xf32> to vector<64x64xf32>
    %cst_118 = arith.constant dense<0.000000e+00> : vector<64x256xf32>
    %259 = tpu.matmul %258, %254, %cst_118 {dimension_numbers = #tpu.dot_dimension_numbers<[1], [0], [0], [1], [0, 0, 1, 1], [], []>} : vector<64x64xf32>, vector<64x256xf32>, vector<64x256xf32> -> vector<64x256xf32>
    %260 = vector.extract_strided_slice %255 {offsets = [0, 0], sizes = [1, 256], strides = [1, 1]} : vector<9x256xf32> to vector<1x256xf32>
    %261 = vector.broadcast %260 : vector<1x256xf32> to vector<64x256xf32>
    %262 = arith.mulf %259, %261 : vector<64x256xf32>
    %263 = arith.addf %256, %262 : vector<64x256xf32>
    %c1 = arith.constant 1 : index
    %c0_119 = arith.constant 0 : index
    %c0_120 = arith.constant 0 : index
    %264 = vector.load %arg21[%c1, %c0_119, %c0_120] : memref<9x64x64xf32, #tpu.memory_space<vmem>>, vector<1x64x64xf32>
    %265 = vector.shape_cast %264 : vector<1x64x64xf32> to vector<64x64xf32>
    %cst_121 = arith.constant dense<0.000000e+00> : vector<64x256xf32>
    %266 = tpu.matmul %265, %254, %cst_121 {dimension_numbers = #tpu.dot_dimension_numbers<[1], [0], [0], [1], [0, 0, 1, 1], [], []>} : vector<64x64xf32>, vector<64x256xf32>, vector<64x256xf32> -> vector<64x256xf32>
    %267 = vector.extract_strided_slice %255 {offsets = [1, 0], sizes = [1, 256], strides = [1, 1]} : vector<9x256xf32> to vector<1x256xf32>
    %268 = vector.broadcast %267 : vector<1x256xf32> to vector<64x256xf32>
    %269 = arith.mulf %266, %268 : vector<64x256xf32>
    %270 = arith.addf %263, %269 : vector<64x256xf32>
    %c2 = arith.constant 2 : index
    %c0_122 = arith.constant 0 : index
    %c0_123 = arith.constant 0 : index
    %271 = vector.load %arg21[%c2, %c0_122, %c0_123] : memref<9x64x64xf32, #tpu.memory_space<vmem>>, vector<1x64x64xf32>
    %272 = vector.shape_cast %271 : vector<1x64x64xf32> to vector<64x64xf32>
    %cst_124 = arith.constant dense<0.000000e+00> : vector<64x256xf32>
    %273 = tpu.matmul %272, %254, %cst_124 {dimension_numbers = #tpu.dot_dimension_numbers<[1], [0], [0], [1], [0, 0, 1, 1], [], []>} : vector<64x64xf32>, vector<64x256xf32>, vector<64x256xf32> -> vector<64x256xf32>
    %274 = vector.extract_strided_slice %255 {offsets = [2, 0], sizes = [1, 256], strides = [1, 1]} : vector<9x256xf32> to vector<1x256xf32>
    %275 = vector.broadcast %274 : vector<1x256xf32> to vector<64x256xf32>
    %276 = arith.mulf %273, %275 : vector<64x256xf32>
    %277 = arith.addf %270, %276 : vector<64x256xf32>
    %c3 = arith.constant 3 : index
    %c0_125 = arith.constant 0 : index
    %c0_126 = arith.constant 0 : index
    %278 = vector.load %arg21[%c3, %c0_125, %c0_126] : memref<9x64x64xf32, #tpu.memory_space<vmem>>, vector<1x64x64xf32>
    %279 = vector.shape_cast %278 : vector<1x64x64xf32> to vector<64x64xf32>
    %cst_127 = arith.constant dense<0.000000e+00> : vector<64x256xf32>
    %280 = tpu.matmul %279, %254, %cst_127 {dimension_numbers = #tpu.dot_dimension_numbers<[1], [0], [0], [1], [0, 0, 1, 1], [], []>} : vector<64x64xf32>, vector<64x256xf32>, vector<64x256xf32> -> vector<64x256xf32>
    %281 = vector.extract_strided_slice %255 {offsets = [3, 0], sizes = [1, 256], strides = [1, 1]} : vector<9x256xf32> to vector<1x256xf32>
    %282 = vector.broadcast %281 : vector<1x256xf32> to vector<64x256xf32>
    %283 = arith.mulf %280, %282 : vector<64x256xf32>
    %284 = arith.addf %277, %283 : vector<64x256xf32>
    %c4 = arith.constant 4 : index
    %c0_128 = arith.constant 0 : index
    %c0_129 = arith.constant 0 : index
    %285 = vector.load %arg21[%c4, %c0_128, %c0_129] : memref<9x64x64xf32, #tpu.memory_space<vmem>>, vector<1x64x64xf32>
    %286 = vector.shape_cast %285 : vector<1x64x64xf32> to vector<64x64xf32>
    %cst_130 = arith.constant dense<0.000000e+00> : vector<64x256xf32>
    %287 = tpu.matmul %286, %254, %cst_130 {dimension_numbers = #tpu.dot_dimension_numbers<[1], [0], [0], [1], [0, 0, 1, 1], [], []>} : vector<64x64xf32>, vector<64x256xf32>, vector<64x256xf32> -> vector<64x256xf32>
    %288 = vector.extract_strided_slice %255 {offsets = [4, 0], sizes = [1, 256], strides = [1, 1]} : vector<9x256xf32> to vector<1x256xf32>
    %289 = vector.broadcast %288 : vector<1x256xf32> to vector<64x256xf32>
    %290 = arith.mulf %287, %289 : vector<64x256xf32>
    %291 = arith.addf %284, %290 : vector<64x256xf32>
    %c5 = arith.constant 5 : index
    %c0_131 = arith.constant 0 : index
    %c0_132 = arith.constant 0 : index
    %292 = vector.load %arg21[%c5, %c0_131, %c0_132] : memref<9x64x64xf32, #tpu.memory_space<vmem>>, vector<1x64x64xf32>
    %293 = vector.shape_cast %292 : vector<1x64x64xf32> to vector<64x64xf32>
    %cst_133 = arith.constant dense<0.000000e+00> : vector<64x256xf32>
    %294 = tpu.matmul %293, %254, %cst_133 {dimension_numbers = #tpu.dot_dimension_numbers<[1], [0], [0], [1], [0, 0, 1, 1], [], []>} : vector<64x64xf32>, vector<64x256xf32>, vector<64x256xf32> -> vector<64x256xf32>
    %295 = vector.extract_strided_slice %255 {offsets = [5, 0], sizes = [1, 256], strides = [1, 1]} : vector<9x256xf32> to vector<1x256xf32>
    %296 = vector.broadcast %295 : vector<1x256xf32> to vector<64x256xf32>
    %297 = arith.mulf %294, %296 : vector<64x256xf32>
    %298 = arith.addf %291, %297 : vector<64x256xf32>
    %c6 = arith.constant 6 : index
    %c0_134 = arith.constant 0 : index
    %c0_135 = arith.constant 0 : index
    %299 = vector.load %arg21[%c6, %c0_134, %c0_135] : memref<9x64x64xf32, #tpu.memory_space<vmem>>, vector<1x64x64xf32>
    %300 = vector.shape_cast %299 : vector<1x64x64xf32> to vector<64x64xf32>
    %cst_136 = arith.constant dense<0.000000e+00> : vector<64x256xf32>
    %301 = tpu.matmul %300, %254, %cst_136 {dimension_numbers = #tpu.dot_dimension_numbers<[1], [0], [0], [1], [0, 0, 1, 1], [], []>} : vector<64x64xf32>, vector<64x256xf32>, vector<64x256xf32> -> vector<64x256xf32>
    %302 = vector.extract_strided_slice %255 {offsets = [6, 0], sizes = [1, 256], strides = [1, 1]} : vector<9x256xf32> to vector<1x256xf32>
    %303 = vector.broadcast %302 : vector<1x256xf32> to vector<64x256xf32>
    %304 = arith.mulf %301, %303 : vector<64x256xf32>
    %305 = arith.addf %298, %304 : vector<64x256xf32>
    %c7 = arith.constant 7 : index
    %c0_137 = arith.constant 0 : index
    %c0_138 = arith.constant 0 : index
    %306 = vector.load %arg21[%c7, %c0_137, %c0_138] : memref<9x64x64xf32, #tpu.memory_space<vmem>>, vector<1x64x64xf32>
    %307 = vector.shape_cast %306 : vector<1x64x64xf32> to vector<64x64xf32>
    %cst_139 = arith.constant dense<0.000000e+00> : vector<64x256xf32>
    %308 = tpu.matmul %307, %254, %cst_139 {dimension_numbers = #tpu.dot_dimension_numbers<[1], [0], [0], [1], [0, 0, 1, 1], [], []>} : vector<64x64xf32>, vector<64x256xf32>, vector<64x256xf32> -> vector<64x256xf32>
    %309 = vector.extract_strided_slice %255 {offsets = [7, 0], sizes = [1, 256], strides = [1, 1]} : vector<9x256xf32> to vector<1x256xf32>
    %310 = vector.broadcast %309 : vector<1x256xf32> to vector<64x256xf32>
    %311 = arith.mulf %308, %310 : vector<64x256xf32>
    %312 = arith.addf %305, %311 : vector<64x256xf32>
    %c8 = arith.constant 8 : index
    %c0_140 = arith.constant 0 : index
    %c0_141 = arith.constant 0 : index
    %313 = vector.load %arg21[%c8, %c0_140, %c0_141] : memref<9x64x64xf32, #tpu.memory_space<vmem>>, vector<1x64x64xf32>
    %314 = vector.shape_cast %313 : vector<1x64x64xf32> to vector<64x64xf32>
    %cst_142 = arith.constant dense<0.000000e+00> : vector<64x256xf32>
    %315 = tpu.matmul %314, %254, %cst_142 {dimension_numbers = #tpu.dot_dimension_numbers<[1], [0], [0], [1], [0, 0, 1, 1], [], []>} : vector<64x64xf32>, vector<64x256xf32>, vector<64x256xf32> -> vector<64x256xf32>
    %316 = vector.extract_strided_slice %255 {offsets = [8, 0], sizes = [1, 256], strides = [1, 1]} : vector<9x256xf32> to vector<1x256xf32>
    %317 = vector.broadcast %316 : vector<1x256xf32> to vector<64x256xf32>
    %318 = arith.mulf %315, %317 : vector<64x256xf32>
    %319 = arith.addf %312, %318 : vector<64x256xf32>
    %c0_143 = arith.constant 0 : index
    %c0_144 = arith.constant 0 : index
    %320 = vector.load %arg23[%c0_143, %c0_144] : memref<1x256xf32, #tpu.memory_space<vmem>>, vector<1x256xf32>
    %321 = vector.broadcast %320 : vector<1x256xf32> to vector<64x256xf32>
    %322 = arith.addf %319, %321 : vector<64x256xf32>
    %cst_145 = arith.constant 5.000000e-01 : f32
    %323 = vector.broadcast %cst_145 : f32 to vector<64x256xf32>
    %324 = arith.mulf %323, %322 : vector<64x256xf32>
    %cst_146 = arith.constant 0.707106769 : f32
    %325 = vector.broadcast %cst_146 : f32 to vector<64x256xf32>
    %326 = arith.mulf %322, %325 : vector<64x256xf32>
    %cst_147 = arith.constant 0.000000e+00 : f32
    %327 = vector.broadcast %cst_147 : f32 to vector<64x256xf32>
    %328 = arith.cmpf oge, %326, %327 : vector<64x256xf32>
    %cst_148 = arith.constant 1.000000e+00 : f32
    %cst_149 = arith.constant -1.000000e+00 : f32
    %329 = vector.broadcast %cst_148 : f32 to vector<64x256xf32>
    %330 = vector.broadcast %cst_149 : f32 to vector<64x256xf32>
    %331 = arith.select %328, %329, %330 : vector<64x256xi1>, vector<64x256xf32>
    %332 = math.absf %326 : vector<64x256xf32>
    %cst_150 = arith.constant 0.327591091 : f32
    %333 = vector.broadcast %cst_150 : f32 to vector<64x256xf32>
    %334 = arith.mulf %333, %332 : vector<64x256xf32>
    %cst_151 = arith.constant 1.000000e+00 : f32
    %335 = vector.broadcast %cst_151 : f32 to vector<64x256xf32>
    %336 = arith.addf %335, %334 : vector<64x256xf32>
    %cst_152 = arith.constant 1.000000e+00 : f32
    %337 = vector.broadcast %cst_152 : f32 to vector<64x256xf32>
    %338 = arith.divf %337, %336 : vector<64x256xf32>
    %cst_153 = arith.constant 1.06140542 : f32
    %339 = vector.broadcast %cst_153 : f32 to vector<64x256xf32>
    %340 = arith.mulf %339, %338 : vector<64x256xf32>
    %cst_154 = arith.constant -1.45315206 : f32
    %341 = vector.broadcast %cst_154 : f32 to vector<64x256xf32>
    %342 = arith.addf %340, %341 : vector<64x256xf32>
    %343 = arith.mulf %342, %338 : vector<64x256xf32>
    %cst_155 = arith.constant 1.42141378 : f32
    %344 = vector.broadcast %cst_155 : f32 to vector<64x256xf32>
    %345 = arith.addf %343, %344 : vector<64x256xf32>
    %346 = arith.mulf %345, %338 : vector<64x256xf32>
    %cst_156 = arith.constant -0.284496725 : f32
    %347 = vector.broadcast %cst_156 : f32 to vector<64x256xf32>
    %348 = arith.addf %346, %347 : vector<64x256xf32>
    %349 = arith.mulf %348, %338 : vector<64x256xf32>
    %cst_157 = arith.constant 0.254829586 : f32
    %350 = vector.broadcast %cst_157 : f32 to vector<64x256xf32>
    %351 = arith.addf %349, %350 : vector<64x256xf32>
    %352 = arith.mulf %351, %338 : vector<64x256xf32>
    %cst_158 = arith.constant 0.000000e+00 : f32
    %353 = vector.broadcast %cst_158 : f32 to vector<64x256xf32>
    %354 = arith.subf %353, %332 : vector<64x256xf32>
    %355 = arith.mulf %354, %332 : vector<64x256xf32>
    %356 = math.exp %355 : vector<64x256xf32>
    %357 = arith.mulf %352, %356 : vector<64x256xf32>
    %cst_159 = arith.constant 1.000000e+00 : f32
    %358 = vector.broadcast %cst_159 : f32 to vector<64x256xf32>
    %359 = arith.subf %358, %357 : vector<64x256xf32>
    %360 = arith.mulf %331, %359 : vector<64x256xf32>
    %cst_160 = arith.constant 1.000000e+00 : f32
    %361 = vector.broadcast %cst_160 : f32 to vector<64x256xf32>
    %362 = arith.addf %361, %360 : vector<64x256xf32>
    %363 = arith.mulf %324, %362 : vector<64x256xf32>
    %c0_161 = arith.constant 0 : index
    %c0_162 = arith.constant 0 : index
    %364 = vector.load %arg24[%c0_161, %c0_162] : memref<256x64xf32, #tpu.memory_space<vmem>>, vector<256x64xf32>
    %cst_163 = arith.constant dense<0.000000e+00> : vector<64x64xf32>
    %365 = tpu.matmul %363, %364, %cst_163 {dimension_numbers = #tpu.dot_dimension_numbers<[1], [0], [0], [1], [0, 0, 1, 1], [], []>} : vector<64x256xf32>, vector<256x64xf32>, vector<64x64xf32> -> vector<64x64xf32>
    %366 = arith.addf %249, %365 : vector<64x64xf32>
    %c0_164 = arith.constant 0 : index
    %c0_165 = arith.constant 0 : index
    %367 = vector.load %arg25[%c0_164, %c0_165] : memref<1x64xf32, #tpu.memory_space<vmem>>, vector<1x64xf32>
    %368 = vector.broadcast %367 : vector<1x64xf32> to vector<64x64xf32>
    %369 = arith.addf %366, %368 : vector<64x64xf32>
    %c0_166 = arith.constant 0 : index
    %c0_167 = arith.constant 0 : index
    %c0_168 = arith.constant 0 : index
    %370 = vector.load %arg26[%c0_166, %c0_167, %c0_168] : memref<1x64x64xf32, #tpu.memory_space<vmem>>, vector<1x64x64xf32>
    %371 = vector.shape_cast %370 : vector<1x64x64xf32> to vector<64x64xf32>
    %372 = vector.shape_cast %369 : vector<64x64xf32> to vector<1x64x64xf32>
    tpu.vector_store %arg26[%c0_166, %c0_167, %c0_168], %372 {strides = array<i32>} : memref<1x64x64xf32, #tpu.memory_space<vmem>>, vector<1x64x64xf32>,
    return
  }
  func.func @transform_0(%arg0: i32) -> (i32, i32, i32) {
    %c0_i32 = arith.constant 0 : i32
    %c0_i32_0 = arith.constant 0 : i32
    %c0_i32_1 = arith.constant 0 : i32
    return %arg0, %c0_i32, %c0_i32_0 : i32, i32, i32
  }
  func.func @transform_1(%arg0: i32) -> (i32, i32, i32) {
    %c0_i32 = arith.constant 0 : i32
    %c0_i32_0 = arith.constant 0 : i32
    %c0_i32_1 = arith.constant 0 : i32
    return %arg0, %c0_i32, %c0_i32_0 : i32, i32, i32
  }
  func.func @transform_2(%arg0: i32) -> (i32, i32) {
    %c0_i32 = arith.constant 0 : i32
    %c0_i32_0 = arith.constant 0 : i32
    %c0_i32_1 = arith.constant 0 : i32
    return %c0_i32, %c0_i32_0 : i32, i32
  }
  func.func @transform_3(%arg0: i32) -> (i32, i32) {
    %c0_i32 = arith.constant 0 : i32
    %c0_i32_0 = arith.constant 0 : i32
    %c0_i32_1 = arith.constant 0 : i32
    return %c0_i32, %c0_i32_0 : i32, i32
  }
  func.func @transform_4(%arg0: i32) -> (i32, i32) {
    %c0_i32 = arith.constant 0 : i32
    %c0_i32_0 = arith.constant 0 : i32
    %c0_i32_1 = arith.constant 0 : i32
    return %c0_i32, %c0_i32_0 : i32, i32
  }
  func.func @transform_5(%arg0: i32) -> (i32, i32) {
    %c0_i32 = arith.constant 0 : i32
    %c0_i32_0 = arith.constant 0 : i32
    %c0_i32_1 = arith.constant 0 : i32
    return %c0_i32, %c0_i32_0 : i32, i32
  }
  func.func @transform_6(%arg0: i32) -> (i32, i32) {
    %c0_i32 = arith.constant 0 : i32
    %c0_i32_0 = arith.constant 0 : i32
    %c0_i32_1 = arith.constant 0 : i32
    return %c0_i32, %c0_i32_0 : i32, i32
  }
  func.func @transform_7(%arg0: i32) -> (i32, i32) {
    %c0_i32 = arith.constant 0 : i32
    %c0_i32_0 = arith.constant 0 : i32
    %c0_i32_1 = arith.constant 0 : i32
    return %c0_i32, %c0_i32_0 : i32, i32
  }
  func.func @transform_8(%arg0: i32) -> (i32, i32) {
    %c0_i32 = arith.constant 0 : i32
    %c0_i32_0 = arith.constant 0 : i32
    %c0_i32_1 = arith.constant 0 : i32
    return %c0_i32, %c0_i32_0 : i32, i32
  }
  func.func @transform_9(%arg0: i32) -> (i32, i32) {
    %c0_i32 = arith.constant 0 : i32
    %c0_i32_0 = arith.constant 0 : i32
    %c0_i32_1 = arith.constant 0 : i32
    return %c0_i32, %c0_i32_0 : i32, i32
  }
  func.func @transform_10(%arg0: i32) -> (i32, i32) {
    %c0_i32 = arith.constant 0 : i32
    %c0_i32_0 = arith.constant 0 : i32
    %c0_i32_1 = arith.constant 0 : i32
    return %c0_i32, %c0_i32_0 : i32, i32
  }
  func.func @transform_11(%arg0: i32) -> (i32, i32) {
    %c0_i32 = arith.constant 0 : i32
    %c0_i32_0 = arith.constant 0 : i32
    %c0_i32_1 = arith.constant 0 : i32
    return %c0_i32, %c0_i32_0 : i32, i32
  }
  func.func @transform_12(%arg0: i32) -> (i32, i32) {
    %c0_i32 = arith.constant 0 : i32
    %c0_i32_0 = arith.constant 0 : i32
    %c0_i32_1 = arith.constant 0 : i32
    return %c0_i32, %c0_i32_0 : i32, i32
  }
  func.func @transform_13(%arg0: i32) -> (i32, i32) {
    %c0_i32 = arith.constant 0 : i32
    %c0_i32_0 = arith.constant 0 : i32
    %c0_i32_1 = arith.constant 0 : i32
    return %c0_i32, %c0_i32_0 : i32, i32
  }
  func.func @transform_14(%arg0: i32) -> (i32, i32) {
    %c0_i32 = arith.constant 0 : i32
    %c0_i32_0 = arith.constant 0 : i32
    %c0_i32_1 = arith.constant 0 : i32
    return %c0_i32, %c0_i32_0 : i32, i32
  }
  func.func @transform_15(%arg0: i32) -> (i32, i32) {
    %c0_i32 = arith.constant 0 : i32
    %c0_i32_0 = arith.constant 0 : i32
    %c0_i32_1 = arith.constant 0 : i32
    return %c0_i32, %c0_i32_0 : i32, i32
  }
  func.func @transform_16(%arg0: i32) -> (i32, i32) {
    %c0_i32 = arith.constant 0 : i32
    %c0_i32_0 = arith.constant 0 : i32
    %c0_i32_1 = arith.constant 0 : i32
    return %c0_i32, %c0_i32_0 : i32, i32
  }
  func.func @transform_17(%arg0: i32) -> (i32, i32) {
    %c0_i32 = arith.constant 0 : i32
    %c0_i32_0 = arith.constant 0 : i32
    %c0_i32_1 = arith.constant 0 : i32
    return %c0_i32, %c0_i32_0 : i32, i32
  }
  func.func @transform_18(%arg0: i32) -> (i32, i32) {
    %c0_i32 = arith.constant 0 : i32
    %c0_i32_0 = arith.constant 0 : i32
    %c0_i32_1 = arith.constant 0 : i32
    return %c0_i32, %c0_i32_0 : i32, i32
  }
  func.func @transform_19(%arg0: i32) -> (i32, i32) {
    %c0_i32 = arith.constant 0 : i32
    %c0_i32_0 = arith.constant 0 : i32
    %c0_i32_1 = arith.constant 0 : i32
    return %c0_i32, %c0_i32_0 : i32, i32
  }
  func.func @transform_20(%arg0: i32) -> (i32, i32, i32) {
    %c0_i32 = arith.constant 0 : i32
    %c0_i32_0 = arith.constant 0 : i32
    %c0_i32_1 = arith.constant 0 : i32
    %c0_i32_2 = arith.constant 0 : i32
    return %c0_i32, %c0_i32_0, %c0_i32_1 : i32, i32, i32
  }
  func.func @transform_21(%arg0: i32) -> (i32, i32) {
    %c0_i32 = arith.constant 0 : i32
    %c0_i32_0 = arith.constant 0 : i32
    %c0_i32_1 = arith.constant 0 : i32
    return %c0_i32, %c0_i32_0 : i32, i32
  }
  func.func @transform_22(%arg0: i32) -> (i32, i32) {
    %c0_i32 = arith.constant 0 : i32
    %c0_i32_0 = arith.constant 0 : i32
    %c0_i32_1 = arith.constant 0 : i32
    return %c0_i32, %c0_i32_0 : i32, i32
  }
  func.func @transform_23(%arg0: i32) -> (i32, i32) {
    %c0_i32 = arith.constant 0 : i32
    %c0_i32_0 = arith.constant 0 : i32
    %c0_i32_1 = arith.constant 0 : i32
    return %c0_i32, %c0_i32_0 : i32, i32
  }
  func.func @transform_24(%arg0: i32) -> (i32, i32) {
    %c0_i32 = arith.constant 0 : i32
    %c0_i32_0 = arith.constant 0 : i32
    %c0_i32_1 = arith.constant 0 : i32
    return %c0_i32, %c0_i32_0 : i32, i32
  }
  func.func @transform_25(%arg0: i32) -> (i32, i32, i32) {
    %c0_i32 = arith.constant 0 : i32
    %c0_i32_0 = arith.constant 0 : i32
    %c0_i32_1 = arith.constant 0 : i32
    return %arg0, %c0_i32, %c0_i32_0 : i32, i32, i32
  }
}

</mosaic_0001>

<llo_original>
// kernel: tpu_custom_call.1
$region0: #{tpu_custom_call.1}
  #allocation0 [shape = 'u32[]', space=smem, size = 0x4, offset = 0x4, fixed_abs, tag = 'smem constant byte address 0x4 - core index']
  #allocation1 [shape = 'u32[144,128]{1,0:T(1,128)}', space=vmem, size = 0x12000, scoped, tag = 'internal scratch']
  #allocation2 [shape = 'f32[64,128]{1,0:T(8,128)}', space=vmem, size = 0x8000, scoped, tag = 'scratch operand']
  %s0 = inlined_call_operand.vmem [shape: f32[2,64,64], index: 0, kind: input, shape index: {}]
  %s1 = inlined_call_operand.vmem [shape: f32[2,256,32], index: 1, kind: input, shape index: {}]
  %s2 = inlined_call_operand.vmem [shape: f32[1,64], index: 2, kind: input, shape index: {}]
  %s3 = inlined_call_operand.vmem [shape: f32[1,64], index: 3, kind: input, shape index: {}]
  %s4 = inlined_call_operand.vmem [shape: f32[1,32], index: 4, kind: input, shape index: {}]
  %s5 = inlined_call_operand.vmem [shape: f32[1,32], index: 5, kind: input, shape index: {}]
  %s6 = inlined_call_operand.vmem [shape: f32[16,256], index: 6, kind: input, shape index: {}]
  %s7 = inlined_call_operand.vmem [shape: f32[32,32], index: 7, kind: input, shape index: {}]
  %s8 = inlined_call_operand.vmem [shape: f32[1,32], index: 8, kind: input, shape index: {}]
  %s9 = inlined_call_operand.vmem [shape: f32[1,32], index: 9, kind: input, shape index: {}]
  %s10 = inlined_call_operand.vmem [shape: f32[1,32], index: 10, kind: input, shape index: {}]
  %s11 = inlined_call_operand.vmem [shape: f32[64,64], index: 11, kind: input, shape index: {}]
  %s12 = inlined_call_operand.vmem [shape: f32[32,128], index: 12, kind: input, shape index: {}]
  %s13 = inlined_call_operand.vmem [shape: f32[128,64], index: 13, kind: input, shape index: {}]
  %s14 = inlined_call_operand.vmem [shape: f32[64,64], index: 14, kind: input, shape index: {}]
  %s15 = inlined_call_operand.vmem [shape: f32[1,64], index: 15, kind: input, shape index: {}]
  %s16 = inlined_call_operand.vmem [shape: f32[1,64], index: 16, kind: input, shape index: {}]
  %s17 = inlined_call_operand.vmem [shape: f32[1,64], index: 17, kind: input, shape index: {}]
  %s18 = inlined_call_operand.vmem [shape: f32[64,256], index: 18, kind: input, shape index: {}]
  %s19 = inlined_call_operand.vmem [shape: f32[1,256], index: 19, kind: input, shape index: {}]
  %s20 = inlined_call_operand.vmem [shape: f32[9,64,64], index: 20, kind: input, shape index: {}]
  %s21 = inlined_call_operand.vmem [shape: f32[9,256], index: 21, kind: input, shape index: {}]
  %s22 = inlined_call_operand.vmem [shape: f32[1,256], index: 22, kind: input, shape index: {}]
  %s23 = inlined_call_operand.vmem [shape: f32[256,64], index: 23, kind: input, shape index: {}]
  %s24 = inlined_call_operand.vmem [shape: f32[1,64], index: 24, kind: input, shape index: {}]
  %s25 = inlined_call_operand.hbm [shape: f32[2,64,64], index: 25, kind: output, shape index: {}]
  %s26 = sld [smem:[#allocation0]]
  $region133: #{tpu_custom_call.1} parent=0
    _
  %s28 = ssub.s32 1, %s26
  %s29 = scalar_select 0, %s28, %s26
  $region1: #{tpu_custom_call.1} parent=0
    #allocation3 [shape = 'u8[65536]{0}', space=vmem, size = 0x10000, scoped, tag = 'output window, operand 0']
    #allocation4 [shape = 's32[2]{0}', space=sflag, size = 0x8, scoped, tag = 'scoped memory for tpu_custom_call.1']
    %30 = vsyncpa [#allocation4], 0
    %s31 = scalar_lea.sflag [#allocation4], 1
    %32 = vsyncpa %s31, 0
    loop: start=0, step=1, limit=4
    $region2: #{tpu_custom_call.1} parent=1 // loop_pre_header
      _
    $region3: #{tpu_custom_call.1} parent=1 // loop_header
      %s34 = sphi 0, %s38
      %p35 = scmp.ge.s32.totalorder %s34, 4
      %s44 = sphi 0, %s46
      %s47 = sphi 0, %s44
      %s48 = sphi 0, %s47
      %s64 = sphi 0, %s48
      %s70 = sphi 0, %s72
      %s73 = sphi 0, %s70
      %s74 = sphi 0, %s73
      %s90 = sphi 0, %s74
      %s94 = sphi 0, %s94
      %s96 = sphi 0, %s94
      %s97 = sphi 0, %s96
      %s111 = sphi 0, %s97
      %s115 = sphi 0, %s115
      %s117 = sphi 0, %s115
      %s118 = sphi 0, %s117
      %s132 = sphi 0, %s118
      %s136 = sphi 0, %s136
      %s138 = sphi 0, %s136
      %s139 = sphi 0, %s138
      %s153 = sphi 0, %s139
      %s157 = sphi 0, %s157
      %s159 = sphi 0, %s157
      %s160 = sphi 0, %s159
      %s174 = sphi 0, %s160
      %s178 = sphi 0, %s178
      %s180 = sphi 0, %s178
      %s181 = sphi 0, %s180
      %s195 = sphi 0, %s181
      %s199 = sphi 0, %s199
      %s201 = sphi 0, %s199
      %s202 = sphi 0, %s201
      %s216 = sphi 0, %s202
      %s220 = sphi 0, %s220
      %s222 = sphi 0, %s220
      %s223 = sphi 0, %s222
      %s237 = sphi 0, %s223
      %s241 = sphi 0, %s241
      %s243 = sphi 0, %s241
      %s244 = sphi 0, %s243
      %s258 = sphi 0, %s244
      %s262 = sphi 0, %s262
      %s264 = sphi 0, %s262
      %s265 = sphi 0, %s264
      %s279 = sphi 0, %s265
      %s283 = sphi 0, %s283
      %s285 = sphi 0, %s283
      %s286 = sphi 0, %s285
      %s300 = sphi 0, %s286
      %s304 = sphi 0, %s304
      %s306 = sphi 0, %s304
      %s307 = sphi 0, %s306
      %s321 = sphi 0, %s307
      %s325 = sphi 0, %s325
      %s327 = sphi 0, %s325
      %s328 = sphi 0, %s327
      %s342 = sphi 0, %s328
      %s346 = sphi 0, %s346
      %s348 = sphi 0, %s346
      %s349 = sphi 0, %s348
      %s363 = sphi 0, %s349
      %s367 = sphi 0, %s367
      %s369 = sphi 0, %s367
      %s370 = sphi 0, %s369
      %s384 = sphi 0, %s370
      %s388 = sphi 0, %s388
      %s390 = sphi 0, %s388
      %s391 = sphi 0, %s390
      %s405 = sphi 0, %s391
      %s409 = sphi 0, %s409
      %s411 = sphi 0, %s409
      %s412 = sphi 0, %s411
      %s426 = sphi 0, %s412
      %s430 = sphi 0, %s430
      %s432 = sphi 0, %s430
      %s433 = sphi 0, %s432
      %s447 = sphi 0, %s433
      %s451 = sphi 0, %s451
      %s453 = sphi 0, %s451
      %s454 = sphi 0, %s453
      %s468 = sphi 0, %s454
      %s472 = sphi 0, %s472
      %s474 = sphi 0, %s472
      %s475 = sphi 0, %s474
      %s489 = sphi 0, %s475
      %s493 = sphi 0, %s493
      %s495 = sphi 0, %s493
      %s496 = sphi 0, %s495
      %s510 = sphi 0, %s496
      %s514 = sphi 0, %s514
      %s516 = sphi 0, %s514
      %s517 = sphi 0, %s516
      %s531 = sphi 0, %s517
      %s535 = sphi 0, %s535
      %s537 = sphi 0, %s535
      %s538 = sphi 0, %s537
      %s552 = sphi 0, %s538
      %s556 = sphi 0, %s556
      %s558 = sphi 0, %s556
      %s559 = sphi 0, %s558
      %s573 = sphi 0, %s559
      %s579 = sphi 0, %s581
      %s582 = sphi 0, %s579
      %s583 = sphi 0, %s582
      %s599 = sphi 0, %s583
    $region4: #{tpu_custom_call.1} parent=1 // loop_header_branch
      %37 = sbr.rel (%p35) target = $region8
    $region5: #{tpu_custom_call.1} parent=1 // loop_body
      %s39 = ssub.s32 %s34, 1
      %s40 = ssub.s32 %s34, 2
      %s41 = sadd.s32 %s34, 1
      %s42 = ssub.s32 %s34, %s41
      %p43 = scmp.eq.s32.totalorder %s42, 0
      %s45 = sadd.s32 %s44, 1
      %s46 = scalar_select %p43, %s44, %s45
      %p49 = pneg %p43
      %p50 = scmp.eq.s32.totalorder %s34, 1
      %p51 = por %p49, %p50
      %p52 = scmp.ne.s32.totalorder %s44, %s47
      %p53 = scmp.eq.s32.totalorder %s34, 0
      %p54 = por %p52, %p53
      %p55 = scmp.ne.s32.totalorder %s44, %s47
      %p56 = scmp.eq.s32.totalorder %s39, 1
      %p57 = por %p55, %p56
      %p58 = scmp.ne.s32.totalorder %s47, %s48
      %p59 = scmp.eq.s32.totalorder %s39, 0
      %p60 = por %p58, %p59
      %p61 = scmp.ne.s32.totalorder %s47, %s48
      %p62 = scmp.eq.s32.totalorder %s40, 1
      %p63 = por %p61, %p62
      %p65 = scmp.ne.s32.totalorder %s48, %s64
      %p66 = scmp.eq.s32.totalorder %s40, 0
      %p67 = por %p65, %p66
      %s68 = ssub.s32 %s34, %s41
      %p69 = scmp.eq.s32.totalorder %s68, 0
      %s71 = sadd.s32 %s70, 1
      %s72 = scalar_select %p69, %s70, %s71
      %p75 = pneg %p69
      %p76 = scmp.eq.s32.totalorder %s34, 1
      %p77 = por %p75, %p76
      %p78 = scmp.ne.s32.totalorder %s70, %s73
      %p79 = scmp.eq.s32.totalorder %s34, 0
      %p80 = por %p78, %p79
      %p81 = scmp.ne.s32.totalorder %s70, %s73
      %p82 = scmp.eq.s32.totalorder %s39, 1
      %p83 = por %p81, %p82
      %p84 = scmp.ne.s32.totalorder %s73, %s74
      %p85 = scmp.eq.s32.totalorder %s39, 0
      %p86 = por %p84, %p85
      %p87 = scmp.ne.s32.totalorder %s73, %s74
      %p88 = scmp.eq.s32.totalorder %s40, 1
      %p89 = por %p87, %p88
      %p91 = scmp.ne.s32.totalorder %s74, %s90
      %p92 = scmp.eq.s32.totalorder %s40, 0
      %p93 = por %p91, %p92
      %s95 = sadd.s32 %s94, 1
      %p98 = scmp.eq.s32.totalorder %s34, 1
      %p99 = scmp.ne.s32.totalorder %s94, %s96
      %p100 = scmp.eq.s32.totalorder %s34, 0
      %p101 = por %p99, %p100
      %p102 = scmp.ne.s32.totalorder %s94, %s96
      %p103 = scmp.eq.s32.totalorder %s39, 1
      %p104 = por %p102, %p103
      %p105 = scmp.ne.s32.totalorder %s96, %s97
      %p106 = scmp.eq.s32.totalorder %s39, 0
      %p107 = por %p105, %p106
      %p108 = scmp.ne.s32.totalorder %s96, %s97
      %p109 = scmp.eq.s32.totalorder %s40, 1
      %p110 = por %p108, %p109
      %p112 = scmp.ne.s32.totalorder %s97, %s111
      %p113 = scmp.eq.s32.totalorder %s40, 0
      %p114 = por %p112, %p113
      %s116 = sadd.s32 %s115, 1
      %p119 = scmp.eq.s32.totalorder %s34, 1
      %p120 = scmp.ne.s32.totalorder %s115, %s117
      %p121 = scmp.eq.s32.totalorder %s34, 0
      %p122 = por %p120, %p121
      %p123 = scmp.ne.s32.totalorder %s115, %s117
      %p124 = scmp.eq.s32.totalorder %s39, 1
      %p125 = por %p123, %p124
      %p126 = scmp.ne.s32.totalorder %s117, %s118
      %p127 = scmp.eq.s32.totalorder %s39, 0
      %p128 = por %p126, %p127
      %p129 = scmp.ne.s32.totalorder %s117, %s118
      %p130 = scmp.eq.s32.totalorder %s40, 1
      %p131 = por %p129, %p130
      %p133 = scmp.ne.s32.totalorder %s118, %s132
      %p134 = scmp.eq.s32.totalorder %s40, 0
      %p135 = por %p133, %p134
      %s137 = sadd.s32 %s136, 1
      %p140 = scmp.eq.s32.totalorder %s34, 1
      %p141 = scmp.ne.s32.totalorder %s136, %s138
      %p142 = scmp.eq.s32.totalorder %s34, 0
      %p143 = por %p141, %p142
      %p144 = scmp.ne.s32.totalorder %s136, %s138
      %p145 = scmp.eq.s32.totalorder %s39, 1
      %p146 = por %p144, %p145
      %p147 = scmp.ne.s32.totalorder %s138, %s139
      %p148 = scmp.eq.s32.totalorder %s39, 0
      %p149 = por %p147, %p148
      %p150 = scmp.ne.s32.totalorder %s138, %s139
      %p151 = scmp.eq.s32.totalorder %s40, 1
      %p152 = por %p150, %p151
      %p154 = scmp.ne.s32.totalorder %s139, %s153
      %p155 = scmp.eq.s32.totalorder %s40, 0
      %p156 = por %p154, %p155
      %s158 = sadd.s32 %s157, 1
      %p161 = scmp.eq.s32.totalorder %s34, 1
      %p162 = scmp.ne.s32.totalorder %s157, %s159
      %p163 = scmp.eq.s32.totalorder %s34, 0
      %p164 = por %p162, %p163
      %p165 = scmp.ne.s32.totalorder %s157, %s159
      %p166 = scmp.eq.s32.totalorder %s39, 1
      %p167 = por %p165, %p166
      %p168 = scmp.ne.s32.totalorder %s159, %s160
      %p169 = scmp.eq.s32.totalorder %s39, 0
      %p170 = por %p168, %p169
      %p171 = scmp.ne.s32.totalorder %s159, %s160
      %p172 = scmp.eq.s32.totalorder %s40, 1
      %p173 = por %p171, %p172
      %p175 = scmp.ne.s32.totalorder %s160, %s174
      %p176 = scmp.eq.s32.totalorder %s40, 0
      %p177 = por %p175, %p176
      %s179 = sadd.s32 %s178, 1
      %p182 = scmp.eq.s32.totalorder %s34, 1
      %p183 = scmp.ne.s32.totalorder %s178, %s180
      %p184 = scmp.eq.s32.totalorder %s34, 0
      %p185 = por %p183, %p184
      %p186 = scmp.ne.s32.totalorder %s178, %s180
      %p187 = scmp.eq.s32.totalorder %s39, 1
      %p188 = por %p186, %p187
      %p189 = scmp.ne.s32.totalorder %s180, %s181
      %p190 = scmp.eq.s32.totalorder %s39, 0
      %p191 = por %p189, %p190
      %p192 = scmp.ne.s32.totalorder %s180, %s181
      %p193 = scmp.eq.s32.totalorder %s40, 1
      %p194 = por %p192, %p193
      %p196 = scmp.ne.s32.totalorder %s181, %s195
      %p197 = scmp.eq.s32.totalorder %s40, 0
      %p198 = por %p196, %p197
      %s200 = sadd.s32 %s199, 1
      %p203 = scmp.eq.s32.totalorder %s34, 1
      %p204 = scmp.ne.s32.totalorder %s199, %s201
      %p205 = scmp.eq.s32.totalorder %s34, 0
      %p206 = por %p204, %p205
      %p207 = scmp.ne.s32.totalorder %s199, %s201
      %p208 = scmp.eq.s32.totalorder %s39, 1
      %p209 = por %p207, %p208
      %p210 = scmp.ne.s32.totalorder %s201, %s202
      %p211 = scmp.eq.s32.totalorder %s39, 0
      %p212 = por %p210, %p211
      %p213 = scmp.ne.s32.totalorder %s201, %s202
      %p214 = scmp.eq.s32.totalorder %s40, 1
      %p215 = por %p213, %p214
      %p217 = scmp.ne.s32.totalorder %s202, %s216
      %p218 = scmp.eq.s32.totalorder %s40, 0
      %p219 = por %p217, %p218
      %s221 = sadd.s32 %s220, 1
      %p224 = scmp.eq.s32.totalorder %s34, 1
      %p225 = scmp.ne.s32.totalorder %s220, %s222
      %p226 = scmp.eq.s32.totalorder %s34, 0
      %p227 = por %p225, %p226
      %p228 = scmp.ne.s32.totalorder %s220, %s222
      %p229 = scmp.eq.s32.totalorder %s39, 1
      %p230 = por %p228, %p229
      %p231 = scmp.ne.s32.totalorder %s222, %s223
      %p232 = scmp.eq.s32.totalorder %s39, 0
      %p233 = por %p231, %p232
      %p234 = scmp.ne.s32.totalorder %s222, %s223
      %p235 = scmp.eq.s32.totalorder %s40, 1
      %p236 = por %p234, %p235
      %p238 = scmp.ne.s32.totalorder %s223, %s237
      %p239 = scmp.eq.s32.totalorder %s40, 0
      %p240 = por %p238, %p239
      %s242 = sadd.s32 %s241, 1
      %p245 = scmp.eq.s32.totalorder %s34, 1
      %p246 = scmp.ne.s32.totalorder %s241, %s243
      %p247 = scmp.eq.s32.totalorder %s34, 0
      %p248 = por %p246, %p247
      %p249 = scmp.ne.s32.totalorder %s241, %s243
      %p250 = scmp.eq.s32.totalorder %s39, 1
      %p251 = por %p249, %p250
      %p252 = scmp.ne.s32.totalorder %s243, %s244
      %p253 = scmp.eq.s32.totalorder %s39, 0
      %p254 = por %p252, %p253
      %p255 = scmp.ne.s32.totalorder %s243, %s244
      %p256 = scmp.eq.s32.totalorder %s40, 1
      %p257 = por %p255, %p256
      %p259 = scmp.ne.s32.totalorder %s244, %s258
      %p260 = scmp.eq.s32.totalorder %s40, 0
      %p261 = por %p259, %p260
      %s263 = sadd.s32 %s262, 1
      %p266 = scmp.eq.s32.totalorder %s34, 1
      %p267 = scmp.ne.s32.totalorder %s262, %s264
      %p268 = scmp.eq.s32.totalorder %s34, 0
      %p269 = por %p267, %p268
      %p270 = scmp.ne.s32.totalorder %s262, %s264
      %p271 = scmp.eq.s32.totalorder %s39, 1
      %p272 = por %p270, %p271
      %p273 = scmp.ne.s32.totalorder %s264, %s265
      %p274 = scmp.eq.s32.totalorder %s39, 0
      %p275 = por %p273, %p274
      %p276 = scmp.ne.s32.totalorder %s264, %s265
      %p277 = scmp.eq.s32.totalorder %s40, 1
      %p278 = por %p276, %p277
      %p280 = scmp.ne.s32.totalorder %s265, %s279
      %p281 = scmp.eq.s32.totalorder %s40, 0
      %p282 = por %p280, %p281
      %s284 = sadd.s32 %s283, 1
      %p287 = scmp.eq.s32.totalorder %s34, 1
      %p288 = scmp.ne.s32.totalorder %s283, %s285
      %p289 = scmp.eq.s32.totalorder %s34, 0
      %p290 = por %p288, %p289
      %p291 = scmp.ne.s32.totalorder %s283, %s285
      %p292 = scmp.eq.s32.totalorder %s39, 1
      %p293 = por %p291, %p292
      %p294 = scmp.ne.s32.totalorder %s285, %s286
      %p295 = scmp.eq.s32.totalorder %s39, 0
      %p296 = por %p294, %p295
      %p297 = scmp.ne.s32.totalorder %s285, %s286
      %p298 = scmp.eq.s32.totalorder %s40, 1
      %p299 = por %p297, %p298
      %p301 = scmp.ne.s32.totalorder %s286, %s300
      %p302 = scmp.eq.s32.totalorder %s40, 0
      %p303 = por %p301, %p302
      %s305 = sadd.s32 %s304, 1
      %p308 = scmp.eq.s32.totalorder %s34, 1
      %p309 = scmp.ne.s32.totalorder %s304, %s306
      %p310 = scmp.eq.s32.totalorder %s34, 0
      %p311 = por %p309, %p310
      %p312 = scmp.ne.s32.totalorder %s304, %s306
      %p313 = scmp.eq.s32.totalorder %s39, 1
      %p314 = por %p312, %p313
      %p315 = scmp.ne.s32.totalorder %s306, %s307
      %p316 = scmp.eq.s32.totalorder %s39, 0
      %p317 = por %p315, %p316
      %p318 = scmp.ne.s32.totalorder %s306, %s307
      %p319 = scmp.eq.s32.totalorder %s40, 1
      %p320 = por %p318, %p319
      %p322 = scmp.ne.s32.totalorder %s307, %s321
      %p323 = scmp.eq.s32.totalorder %s40, 0
      %p324 = por %p322, %p323
      %s326 = sadd.s32 %s325, 1
      %p329 = scmp.eq.s32.totalorder %s34, 1
      %p330 = scmp.ne.s32.totalorder %s325, %s327
      %p331 = scmp.eq.s32.totalorder %s34, 0
      %p332 = por %p330, %p331
      %p333 = scmp.ne.s32.totalorder %s325, %s327
      %p334 = scmp.eq.s32.totalorder %s39, 1
      %p335 = por %p333, %p334
      %p336 = scmp.ne.s32.totalorder %s327, %s328
      %p337 = scmp.eq.s32.totalorder %s39, 0
      %p338 = por %p336, %p337
      %p339 = scmp.ne.s32.totalorder %s327, %s328
      %p340 = scmp.eq.s32.totalorder %s40, 1
      %p341 = por %p339, %p340
      %p343 = scmp.ne.s32.totalorder %s328, %s342
      %p344 = scmp.eq.s32.totalorder %s40, 0
      %p345 = por %p343, %p344
      %s347 = sadd.s32 %s346, 1
      %p350 = scmp.eq.s32.totalorder %s34, 1
      %p351 = scmp.ne.s32.totalorder %s346, %s348
      %p352 = scmp.eq.s32.totalorder %s34, 0
      %p353 = por %p351, %p352
      %p354 = scmp.ne.s32.totalorder %s346, %s348
      %p355 = scmp.eq.s32.totalorder %s39, 1
      %p356 = por %p354, %p355
      %p357 = scmp.ne.s32.totalorder %s348, %s349
      %p358 = scmp.eq.s32.totalorder %s39, 0
      %p359 = por %p357, %p358
      %p360 = scmp.ne.s32.totalorder %s348, %s349
      %p361 = scmp.eq.s32.totalorder %s40, 1
      %p362 = por %p360, %p361
      %p364 = scmp.ne.s32.totalorder %s349, %s363
      %p365 = scmp.eq.s32.totalorder %s40, 0
      %p366 = por %p364, %p365
      %s368 = sadd.s32 %s367, 1
      %p371 = scmp.eq.s32.totalorder %s34, 1
      %p372 = scmp.ne.s32.totalorder %s367, %s369
      %p373 = scmp.eq.s32.totalorder %s34, 0
      %p374 = por %p372, %p373
      %p375 = scmp.ne.s32.totalorder %s367, %s369
      %p376 = scmp.eq.s32.totalorder %s39, 1
      %p377 = por %p375, %p376
      %p378 = scmp.ne.s32.totalorder %s369, %s370
      %p379 = scmp.eq.s32.totalorder %s39, 0
      %p380 = por %p378, %p379
      %p381 = scmp.ne.s32.totalorder %s369, %s370
      %p382 = scmp.eq.s32.totalorder %s40, 1
      %p383 = por %p381, %p382
      %p385 = scmp.ne.s32.totalorder %s370, %s384
      %p386 = scmp.eq.s32.totalorder %s40, 0
      %p387 = por %p385, %p386
      %s389 = sadd.s32 %s388, 1
      %p392 = scmp.eq.s32.totalorder %s34, 1
      %p393 = scmp.ne.s32.totalorder %s388, %s390
      %p394 = scmp.eq.s32.totalorder %s34, 0
      %p395 = por %p393, %p394
      %p396 = scmp.ne.s32.totalorder %s388, %s390
      %p397 = scmp.eq.s32.totalorder %s39, 1
      %p398 = por %p396, %p397
      %p399 = scmp.ne.s32.totalorder %s390, %s391
      %p400 = scmp.eq.s32.totalorder %s39, 0
      %p401 = por %p399, %p400
      %p402 = scmp.ne.s32.totalorder %s390, %s391
      %p403 = scmp.eq.s32.totalorder %s40, 1
      %p404 = por %p402, %p403
      %p406 = scmp.ne.s32.totalorder %s391, %s405
      %p407 = scmp.eq.s32.totalorder %s40, 0
      %p408 = por %p406, %p407
      %s410 = sadd.s32 %s409, 1
      %p413 = scmp.eq.s32.totalorder %s34, 1
      %p414 = scmp.ne.s32.totalorder %s409, %s411
      %p415 = scmp.eq.s32.totalorder %s34, 0
      %p416 = por %p414, %p415
      %p417 = scmp.ne.s32.totalorder %s409, %s411
      %p418 = scmp.eq.s32.totalorder %s39, 1
      %p419 = por %p417, %p418
      %p420 = scmp.ne.s32.totalorder %s411, %s412
      %p421 = scmp.eq.s32.totalorder %s39, 0
      %p422 = por %p420, %p421
      %p423 = scmp.ne.s32.totalorder %s411, %s412
      %p424 = scmp.eq.s32.totalorder %s40, 1
      %p425 = por %p423, %p424
      %p427 = scmp.ne.s32.totalorder %s412, %s426
      %p428 = scmp.eq.s32.totalorder %s40, 0
      %p429 = por %p427, %p428
      %s431 = sadd.s32 %s430, 1
      %p434 = scmp.eq.s32.totalorder %s34, 1
      %p435 = scmp.ne.s32.totalorder %s430, %s432
      %p436 = scmp.eq.s32.totalorder %s34, 0
      %p437 = por %p435, %p436
      %p438 = scmp.ne.s32.totalorder %s430, %s432
      %p439 = scmp.eq.s32.totalorder %s39, 1
      %p440 = por %p438, %p439
      %p441 = scmp.ne.s32.totalorder %s432, %s433
      %p442 = scmp.eq.s32.totalorder %s39, 0
      %p443 = por %p441, %p442
      %p444 = scmp.ne.s32.totalorder %s432, %s433
      %p445 = scmp.eq.s32.totalorder %s40, 1
      %p446 = por %p444, %p445
      %p448 = scmp.ne.s32.totalorder %s433, %s447
      %p449 = scmp.eq.s32.totalorder %s40, 0
      %p450 = por %p448, %p449
      %s452 = sadd.s32 %s451, 1
      %p455 = scmp.eq.s32.totalorder %s34, 1
      %p456 = scmp.ne.s32.totalorder %s451, %s453
      %p457 = scmp.eq.s32.totalorder %s34, 0
      %p458 = por %p456, %p457
      %p459 = scmp.ne.s32.totalorder %s451, %s453
      %p460 = scmp.eq.s32.totalorder %s39, 1
      %p461 = por %p459, %p460
      %p462 = scmp.ne.s32.totalorder %s453, %s454
      %p463 = scmp.eq.s32.totalorder %s39, 0
      %p464 = por %p462, %p463
      %p465 = scmp.ne.s32.totalorder %s453, %s454
      %p466 = scmp.eq.s32.totalorder %s40, 1
      %p467 = por %p465, %p466
      %p469 = scmp.ne.s32.totalorder %s454, %s468
      %p470 = scmp.eq.s32.totalorder %s40, 0
      %p471 = por %p469, %p470
      %s473 = sadd.s32 %s472, 1
      %p476 = scmp.eq.s32.totalorder %s34, 1
      %p477 = scmp.ne.s32.totalorder %s472, %s474
      %p478 = scmp.eq.s32.totalorder %s34, 0
      %p479 = por %p477, %p478
      %p480 = scmp.ne.s32.totalorder %s472, %s474
      %p481 = scmp.eq.s32.totalorder %s39, 1
      %p482 = por %p480, %p481
      %p483 = scmp.ne.s32.totalorder %s474, %s475
      %p484 = scmp.eq.s32.totalorder %s39, 0
      %p485 = por %p483, %p484
      %p486 = scmp.ne.s32.totalorder %s474, %s475
      %p487 = scmp.eq.s32.totalorder %s40, 1
      %p488 = por %p486, %p487
      %p490 = scmp.ne.s32.totalorder %s475, %s489
      %p491 = scmp.eq.s32.totalorder %s40, 0
      %p492 = por %p490, %p491
      %s494 = sadd.s32 %s493, 1
      %p497 = scmp.eq.s32.totalorder %s34, 1
      %p498 = scmp.ne.s32.totalorder %s493, %s495
      %p499 = scmp.eq.s32.totalorder %s34, 0
      %p500 = por %p498, %p499
      %p501 = scmp.ne.s32.totalorder %s493, %s495
      %p502 = scmp.eq.s32.totalorder %s39, 1
      %p503 = por %p501, %p502
      %p504 = scmp.ne.s32.totalorder %s495, %s496
      %p505 = scmp.eq.s32.totalorder %s39, 0
      %p506 = por %p504, %p505
      %p507 = scmp.ne.s32.totalorder %s495, %s496
      %p508 = scmp.eq.s32.totalorder %s40, 1
      %p509 = por %p507, %p508
      %p511 = scmp.ne.s32.totalorder %s496, %s510
      %p512 = scmp.eq.s32.totalorder %s40, 0
      %p513 = por %p511, %p512
      %s515 = sadd.s32 %s514, 1
      %p518 = scmp.eq.s32.totalorder %s34, 1
      %p519 = scmp.ne.s32.totalorder %s514, %s516
      %p520 = scmp.eq.s32.totalorder %s34, 0
      %p521 = por %p519, %p520
      %p522 = scmp.ne.s32.totalorder %s514, %s516
      %p523 = scmp.eq.s32.totalorder %s39, 1
      %p524 = por %p522, %p523
      %p525 = scmp.ne.s32.totalorder %s516, %s517
      %p526 = scmp.eq.s32.totalorder %s39, 0
      %p527 = por %p525, %p526
      %p528 = scmp.ne.s32.totalorder %s516, %s517
      %p529 = scmp.eq.s32.totalorder %s40, 1
      %p530 = por %p528, %p529
      %p532 = scmp.ne.s32.totalorder %s517, %s531
      %p533 = scmp.eq.s32.totalorder %s40, 0
      %p534 = por %p532, %p533
      %s536 = sadd.s32 %s535, 1
      %p539 = scmp.eq.s32.totalorder %s34, 1
      %p540 = scmp.ne.s32.totalorder %s535, %s537
      %p541 = scmp.eq.s32.totalorder %s34, 0
      %p542 = por %p540, %p541
      %p543 = scmp.ne.s32.totalorder %s535, %s537
      %p544 = scmp.eq.s32.totalorder %s39, 1
      %p545 = por %p543, %p544
      %p546 = scmp.ne.s32.totalorder %s537, %s538
      %p547 = scmp.eq.s32.totalorder %s39, 0
      %p548 = por %p546, %p547
      %p549 = scmp.ne.s32.totalorder %s537, %s538
      %p550 = scmp.eq.s32.totalorder %s40, 1
      %p551 = por %p549, %p550
      %p553 = scmp.ne.s32.totalorder %s538, %s552
      %p554 = scmp.eq.s32.totalorder %s40, 0
      %p555 = por %p553, %p554
      %s557 = sadd.s32 %s556, 1
      %p560 = scmp.eq.s32.totalorder %s34, 1
      %p561 = scmp.ne.s32.totalorder %s556, %s558
      %p562 = scmp.eq.s32.totalorder %s34, 0
      %p563 = por %p561, %p562
      %p564 = scmp.ne.s32.totalorder %s556, %s558
      %p565 = scmp.eq.s32.totalorder %s39, 1
      %p566 = por %p564, %p565
      %p567 = scmp.ne.s32.totalorder %s558, %s559
      %p568 = scmp.eq.s32.totalorder %s39, 0
      %p569 = por %p567, %p568
      %p570 = scmp.ne.s32.totalorder %s558, %s559
      %p571 = scmp.eq.s32.totalorder %s40, 1
      %p572 = por %p570, %p571
      %p574 = scmp.ne.s32.totalorder %s559, %s573
      %p575 = scmp.eq.s32.totalorder %s40, 0
      %p576 = por %p574, %p575
      %s577 = ssub.s32 %s34, %s41
      %p578 = scmp.eq.s32.totalorder %s577, 0
      %s580 = sadd.s32 %s579, 1
      %s581 = scalar_select %p578, %s579, %s580
      %p584 = pneg %p578
      %p585 = scmp.eq.s32.totalorder %s34, 1
      %p586 = por %p584, %p585
      %p587 = scmp.ne.s32.totalorder %s579, %s582
      %p588 = scmp.eq.s32.totalorder %s34, 0
      %p589 = por %p587, %p588
      %p590 = scmp.ne.s32.totalorder %s579, %s582
      %p591 = scmp.eq.s32.totalorder %s39, 1
      %p592 = por %p590, %p591
      %p593 = scmp.ne.s32.totalorder %s582, %s583
      %p594 = scmp.eq.s32.totalorder %s39, 0
      %p595 = por %p593, %p594
      %p596 = scmp.ne.s32.totalorder %s582, %s583
      %p597 = scmp.eq.s32.totalorder %s40, 1
      %p598 = por %p596, %p597
      %p600 = scmp.ne.s32.totalorder %s583, %s599
      %p601 = scmp.eq.s32.totalorder %s40, 0
      %p602 = por %p600, %p601
      %p603 = scmp.le.s32.totalorder 1, %s34
      %p604 = scmp.lt.s32.totalorder %s34, 3
      %p605 = pnand %p603, %p604
      %p606 = pneg %p605
      // Predicated region
      $region9: #{tpu_custom_call.1} parent=5 // pred_check
        _
      $region10: #{tpu_custom_call.1} parent=5 // pred_check_branch
        %608 = sbr.rel (%p605) target = $region12
      $region11: #{tpu_custom_call.1} parent=5 // pred_region
        %s609 = ssub.s32 %s34, 1
        // Predicated region
        $region13: #{tpu_custom_call.1} parent=11 // pred_check
          %p610 = pneg %p107
        $region14: #{tpu_custom_call.1} parent=11 // pred_check_branch
          %612 = sbr.rel (%p610) target = $region16
        $region15: #{tpu_custom_call.1} parent=11 // pred_region
          _
        $region16: #{tpu_custom_call.1} parent=11 // pred_fallthru
          _
        // Predicated region
        $region17: #{tpu_custom_call.1} parent=11 // pred_check
          %p613 = pneg %p128
        $region18: #{tpu_custom_call.1} parent=11 // pred_check_branch
          %615 = sbr.rel (%p613) target = $region20
        $region19: #{tpu_custom_call.1} parent=11 // pred_region
          _
        $region20: #{tpu_custom_call.1} parent=11 // pred_fallthru
          _
        // Predicated region
        $region21: #{tpu_custom_call.1} parent=11 // pred_check
          %p616 = pneg %p149
        $region22: #{tpu_custom_call.1} parent=11 // pred_check_branch
          %618 = sbr.rel (%p616) target = $region24
        $region23: #{tpu_custom_call.1} parent=11 // pred_region
          _
        $region24: #{tpu_custom_call.1} parent=11 // pred_fallthru
          _
        // Predicated region
        $region25: #{tpu_custom_call.1} parent=11 // pred_check
          %p619 = pneg %p170
        $region26: #{tpu_custom_call.1} parent=11 // pred_check_branch
          %621 = sbr.rel (%p619) target = $region28
        $region27: #{tpu_custom_call.1} parent=11 // pred_region
          _
        $region28: #{tpu_custom_call.1} parent=11 // pred_fallthru
          _
        // Predicated region
        $region29: #{tpu_custom_call.1} parent=11 // pred_check
          %p622 = pneg %p191
        $region30: #{tpu_custom_call.1} parent=11 // pred_check_branch
          %624 = sbr.rel (%p622) target = $region32
        $region31: #{tpu_custom_call.1} parent=11 // pred_region
          _
        $region32: #{tpu_custom_call.1} parent=11 // pred_fallthru
          _
        // Predicated region
        $region33: #{tpu_custom_call.1} parent=11 // pred_check
          %p625 = pneg %p212
        $region34: #{tpu_custom_call.1} parent=11 // pred_check_branch
          %627 = sbr.rel (%p625) target = $region36
        $region35: #{tpu_custom_call.1} parent=11 // pred_region
          _
        $region36: #{tpu_custom_call.1} parent=11 // pred_fallthru
          _
        // Predicated region
        $region37: #{tpu_custom_call.1} parent=11 // pred_check
          %p628 = pneg %p233
        $region38: #{tpu_custom_call.1} parent=11 // pred_check_branch
          %630 = sbr.rel (%p628) target = $region40
        $region39: #{tpu_custom_call.1} parent=11 // pred_region
          _
        $region40: #{tpu_custom_call.1} parent=11 // pred_fallthru
          _
        // Predicated region
        $region41: #{tpu_custom_call.1} parent=11 // pred_check
          %p631 = pneg %p254
        $region42: #{tpu_custom_call.1} parent=11 // pred_check_branch
          %633 = sbr.rel (%p631) target = $region44
        $region43: #{tpu_custom_call.1} parent=11 // pred_region
          _
        $region44: #{tpu_custom_call.1} parent=11 // pred_fallthru
          _
        // Predicated region
        $region45: #{tpu_custom_call.1} parent=11 // pred_check
          %p634 = pneg %p275
        $region46: #{tpu_custom_call.1} parent=11 // pred_check_branch
          %636 = sbr.rel (%p634) target = $region48
        $region47: #{tpu_custom_call.1} parent=11 // pred_region
          _
        $region48: #{tpu_custom_call.1} parent=11 // pred_fallthru
          _
        // Predicated region
        $region49: #{tpu_custom_call.1} parent=11 // pred_check
          %p637 = pneg %p296
        $region50: #{tpu_custom_call.1} parent=11 // pred_check_branch
          %639 = sbr.rel (%p637) target = $region52
        $region51: #{tpu_custom_call.1} parent=11 // pred_region
          _
        $region52: #{tpu_custom_call.1} parent=11 // pred_fallthru
          _
        // Predicated region
        $region53: #{tpu_custom_call.1} parent=11 // pred_check
          %p640 = pneg %p317
        $region54: #{tpu_custom_call.1} parent=11 // pred_check_branch
          %642 = sbr.rel (%p640) target = $region56
        $region55: #{tpu_custom_call.1} parent=11 // pred_region
          _
        $region56: #{tpu_custom_call.1} parent=11 // pred_fallthru
          _
        // Predicated region
        $region57: #{tpu_custom_call.1} parent=11 // pred_check
          %p643 = pneg %p338
        $region58: #{tpu_custom_call.1} parent=11 // pred_check_branch
          %645 = sbr.rel (%p643) target = $region60
        $region59: #{tpu_custom_call.1} parent=11 // pred_region
          _
        $region60: #{tpu_custom_call.1} parent=11 // pred_fallthru
          _
        // Predicated region
        $region61: #{tpu_custom_call.1} parent=11 // pred_check
          %p646 = pneg %p359
        $region62: #{tpu_custom_call.1} parent=11 // pred_check_branch
          %648 = sbr.rel (%p646) target = $region64
        $region63: #{tpu_custom_call.1} parent=11 // pred_region
          _
        $region64: #{tpu_custom_call.1} parent=11 // pred_fallthru
          _
        // Predicated region
        $region65: #{tpu_custom_call.1} parent=11 // pred_check
          %p649 = pneg %p380
        $region66: #{tpu_custom_call.1} parent=11 // pred_check_branch
          %651 = sbr.rel (%p649) target = $region68
        $region67: #{tpu_custom_call.1} parent=11 // pred_region
          _
        $region68: #{tpu_custom_call.1} parent=11 // pred_fallthru
          _
        // Predicated region
        $region69: #{tpu_custom_call.1} parent=11 // pred_check
          %p652 = pneg %p401
        $region70: #{tpu_custom_call.1} parent=11 // pred_check_branch
          %654 = sbr.rel (%p652) target = $region72
        $region71: #{tpu_custom_call.1} parent=11 // pred_region
          _
        $region72: #{tpu_custom_call.1} parent=11 // pred_fallthru
          _
        // Predicated region
        $region73: #{tpu_custom_call.1} parent=11 // pred_check
          %p655 = pneg %p422
        $region74: #{tpu_custom_call.1} parent=11 // pred_check_branch
          %657 = sbr.rel (%p655) target = $region76
        $region75: #{tpu_custom_call.1} parent=11 // pred_region
          _
        $region76: #{tpu_custom_call.1} parent=11 // pred_fallthru
          _
        // Predicated region
        $region77: #{tpu_custom_call.1} parent=11 // pred_check
          %p658 = pneg %p443
        $region78: #{tpu_custom_call.1} parent=11 // pred_check_branch
          %660 = sbr.rel (%p658) target = $region80
        $region79: #{tpu_custom_call.1} parent=11 // pred_region
          _
        $region80: #{tpu_custom_call.1} parent=11 // pred_fallthru
          _
        // Predicated region
        $region81: #{tpu_custom_call.1} parent=11 // pred_check
          %p661 = pneg %p464
        $region82: #{tpu_custom_call.1} parent=11 // pred_check_branch
          %663 = sbr.rel (%p661) target = $region84
        $region83: #{tpu_custom_call.1} parent=11 // pred_region
          _
        $region84: #{tpu_custom_call.1} parent=11 // pred_fallthru
          _
        // Predicated region
        $region85: #{tpu_custom_call.1} parent=11 // pred_check
          %p664 = pneg %p485
        $region86: #{tpu_custom_call.1} parent=11 // pred_check_branch
          %666 = sbr.rel (%p664) target = $region88
        $region87: #{tpu_custom_call.1} parent=11 // pred_region
          _
        $region88: #{tpu_custom_call.1} parent=11 // pred_fallthru
          _
        // Predicated region
        $region89: #{tpu_custom_call.1} parent=11 // pred_check
          %p667 = pneg %p506
        $region90: #{tpu_custom_call.1} parent=11 // pred_check_branch
          %669 = sbr.rel (%p667) target = $region92
        $region91: #{tpu_custom_call.1} parent=11 // pred_region
          _
        $region92: #{tpu_custom_call.1} parent=11 // pred_fallthru
          _
        // Predicated region
        $region93: #{tpu_custom_call.1} parent=11 // pred_check
          %p670 = pneg %p527
        $region94: #{tpu_custom_call.1} parent=11 // pred_check_branch
          %672 = sbr.rel (%p670) target = $region96
        $region95: #{tpu_custom_call.1} parent=11 // pred_region
          _
        $region96: #{tpu_custom_call.1} parent=11 // pred_fallthru
          _
        // Predicated region
        $region97: #{tpu_custom_call.1} parent=11 // pred_check
          %p673 = pneg %p548
        $region98: #{tpu_custom_call.1} parent=11 // pred_check_branch
          %675 = sbr.rel (%p673) target = $region100
        $region99: #{tpu_custom_call.1} parent=11 // pred_region
          _
        $region100: #{tpu_custom_call.1} parent=11 // pred_fallthru
          _
        // Predicated region
        $region101: #{tpu_custom_call.1} parent=11 // pred_check
          %p676 = pneg %p569
        $region102: #{tpu_custom_call.1} parent=11 // pred_check_branch
          %678 = sbr.rel (%p676) target = $region104
        $region103: #{tpu_custom_call.1} parent=11 // pred_region
          _
        $region104: #{tpu_custom_call.1} parent=11 // pred_fallthru
          _
      $region12: #{tpu_custom_call.1} parent=5 // pred_fallthru
        _
      %p679 = scmp.lt.s32.totalorder %s34, 2
      // Predicated region
      $region105: #{tpu_custom_call.1} parent=5 // pred_check
        %p680 = pneg %p679
      $region106: #{tpu_custom_call.1} parent=5 // pred_check_branch
        %682 = sbr.rel (%p680) target = $region108
      $region107: #{tpu_custom_call.1} parent=5 // pred_region
        // Predicated region
        $region109: #{tpu_custom_call.1} parent=107 // pred_check
          %p683 = pneg %p54
        $region110: #{tpu_custom_call.1} parent=107 // pred_check_branch
          %685 = sbr.rel (%p683) target = $region112
        $region111: #{tpu_custom_call.1} parent=107 // pred_region
          %p686 = scmp.lt.s32.totalorder %s34, 1
          %s687 = scalar_select %p686, %s34, 1
          %s688 = smul.addr %s687, 8
          %s689 = smul.addr %s688, 8
          %s690 = scalar_lea.vmem %s0, %s689
        $region112: #{tpu_custom_call.1} parent=107 // pred_fallthru
          _
        // Predicated region
        $region113: #{tpu_custom_call.1} parent=107 // pred_check
          %p691 = pneg %p80
        $region114: #{tpu_custom_call.1} parent=107 // pred_check_branch
          %693 = sbr.rel (%p691) target = $region116
        $region115: #{tpu_custom_call.1} parent=107 // pred_region
          %p694 = scmp.lt.s32.totalorder %s34, 1
          %s695 = scalar_select %p694, %s34, 1
          %s696 = smul.addr %s695, 32
          %s697 = smul.addr %s696, 8
          %s698 = scalar_lea.vmem %s1, %s697
        $region116: #{tpu_custom_call.1} parent=107 // pred_fallthru
          _
      $region108: #{tpu_custom_call.1} parent=5 // pred_fallthru
        _
      %p699 = scmp.le.s32.totalorder 1, %s34
      %p700 = scmp.lt.s32.totalorder %s34, 3
      %p701 = pnand %p699, %p700
      %p702 = pneg %p701
      // Predicated region
      $region117: #{tpu_custom_call.1} parent=5 // pred_check
        _
      $region118: #{tpu_custom_call.1} parent=5 // pred_check_branch
        %704 = sbr.rel (%p701) target = $region120
      $region119: #{tpu_custom_call.1} parent=5 // pred_region
        %s705 = ssub.s32 %s34, 1
        %p706 = scmp.lt.s32.totalorder %s39, 1
        %s707 = scalar_select %p706, %s39, 1
        %s708 = smul.addr %s707, 8
        %s709 = smul.addr %s708, 8
        %s710 = scalar_lea.vmem %s0, %s709
        %p711 = pneg %p60
        %p712 = pneg %p57
        %p713 = scmp.lt.s32.totalorder %s39, 1
        %s714 = scalar_select %p713, %s39, 1
        %s715 = smul.addr %s714, 32
        %s716 = smul.addr %s715, 8
        %s717 = scalar_lea.vmem %s1, %s716
        %p718 = pneg %p86
        %p719 = pneg %p83
        %p720 = pneg %p107
        %p721 = pneg %p104
        %p722 = pneg %p128
        %p723 = pneg %p125
        %p724 = pneg %p149
        %p725 = pneg %p146
        %p726 = pneg %p170
        %p727 = pneg %p167
        %p728 = pneg %p191
        %p729 = pneg %p188
        %p730 = pneg %p212
        %p731 = pneg %p209
        %p732 = pneg %p233
        %p733 = pneg %p230
        %p734 = pneg %p254
        %p735 = pneg %p251
        %p736 = pneg %p275
        %p737 = pneg %p272
        %p738 = pneg %p296
        %p739 = pneg %p293
        %p740 = pneg %p317
        %p741 = pneg %p314
        %p742 = pneg %p338
        %p743 = pneg %p335
        %p744 = pneg %p359
        %p745 = pneg %p356
        %p746 = pneg %p380
        %p747 = pneg %p377
        %p748 = pneg %p401
        %p749 = pneg %p398
        %p750 = pneg %p422
        %p751 = pneg %p419
        %p752 = pneg %p443
        %p753 = pneg %p440
        %p754 = pneg %p464
        %p755 = pneg %p461
        %p756 = pneg %p485
        %p757 = pneg %p482
        %p758 = pneg %p506
        %p759 = pneg %p503
        %p760 = pneg %p527
        %p761 = pneg %p524
        %p762 = pneg %p548
        %p763 = pneg %p545
        %p764 = pneg %p569
        %p765 = pneg %p566
        %p766 = pneg %p595
        %p767 = pneg %p592
        %s768 = sand.u32 %s582, 1
        %s769 = scalar_lea.sflag [#allocation4], %s768
        %s770 = sand.u32 %s582, 1
        %s771 = smul.addr %s770, 64
        %s772 = scalar_lea.vmem [#allocation3], %s771
        %p773 = scmp.lt.s32.totalorder %s39, 1
        %s774 = scalar_select %p773, %s39, 1
        %s775 = smul.addr %s774, 8
        %s776 = smul.addr %s775, 8
        %s777 = scalar_lea.vmem %s0, %s776
        %p778 = scmp.lt.s32.totalorder %s39, 1
        %s779 = scalar_select %p778, %s39, 1
        %s780 = smul.addr %s779, 32
        %s781 = smul.addr %s780, 8
        %s782 = scalar_lea.vmem %s1, %s781
        %v783 = vld [vmem:[%s777] sm:$0xff]
        %v784 = vld [vmem:[%s777 + $0x8] sm:$0xff]
        %v785 = vld [vmem:[%s777 + $0x10] sm:$0xff]
        %v786 = vld [vmem:[%s777 + $0x18] sm:$0xff]
        %v787 = vld [vmem:[%s777 + $0x20] sm:$0xff]
        %v788 = vld [vmem:[%s777 + $0x28] sm:$0xff]
        %v789 = vld [vmem:[%s777 + $0x30] sm:$0xff]
        %v790 = vld [vmem:[%s777 + $0x38] sm:$0xff]
        %v791 = vld [vmem:[%s2] sm:$0x1]
        %v792 = vld [vmem:[%s3] sm:$0x1]
        %vm793 = vcmask 523264
        %v794 = vsel %vm793, %v783, 0.0
        %795 = vadd.xlane.f32.xlu0 %v794
        %v796 = vpop.xlane.xlu0 %795
        %v797 = vsel %vm793, %v784, 0.0
        %798 = vadd.xlane.f32.xlu0 %v797
        %v799 = vpop.xlane.xlu0 %798
        %v800 = vsel %vm793, %v785, 0.0
        %801 = vadd.xlane.f32.xlu0 %v800
        %v802 = vpop.xlane.xlu0 %801
        %v803 = vsel %vm793, %v786, 0.0
        %804 = vadd.xlane.f32.xlu0 %v803
        %v805 = vpop.xlane.xlu0 %804
        %v806 = vsel %vm793, %v787, 0.0
        %807 = vadd.xlane.f32.xlu0 %v806
        %v808 = vpop.xlane.xlu0 %807
        %v809 = vsel %vm793, %v788, 0.0
        %810 = vadd.xlane.f32.xlu0 %v809
        %v811 = vpop.xlane.xlu0 %810
        %v812 = vsel %vm793, %v789, 0.0
        %813 = vadd.xlane.f32.xlu0 %v812
        %v814 = vpop.xlane.xlu0 %813
        %v815 = vsel %vm793, %v790, 0.0
        %816 = vadd.xlane.f32.xlu0 %v815
        %v817 = vpop.xlane.xlu0 %816
        %v818 = vrcp.pop 64.0
        %v819 = vmul.f32 %v796, %v818
        %v820 = vmul.f32 %v799, %v818
        %v821 = vmul.f32 %v802, %v818
        %v822 = vmul.f32 %v805, %v818
        %v823 = vmul.f32 %v808, %v818
        %v824 = vmul.f32 %v811, %v818
        %v825 = vmul.f32 %v814, %v818
        %v826 = vmul.f32 %v817, %v818
        %v827 = vsub.f32 %v783, %v819
        %v828 = vsub.f32 %v784, %v820
        %v829 = vsub.f32 %v785, %v821
        %v830 = vsub.f32 %v786, %v822
        %v831 = vsub.f32 %v787, %v823
        %v832 = vsub.f32 %v788, %v824
        %v833 = vsub.f32 %v789, %v825
        %v834 = vsub.f32 %v790, %v826
        %v835 = vmul.f32 %v827, %v827
        %v836 = vmul.f32 %v828, %v828
        %v837 = vmul.f32 %v829, %v829
        %v838 = vmul.f32 %v830, %v830
        %v839 = vmul.f32 %v831, %v831
        %v840 = vmul.f32 %v832, %v832
        %v841 = vmul.f32 %v833, %v833
        %v842 = vmul.f32 %v834, %v834
        %v843 = vsel %vm793, %v835, 0.0
        %844 = vadd.xlane.f32.xlu0 %v843
        %v845 = vpop.xlane.xlu0 %844
        %v846 = vsel %vm793, %v836, 0.0
        %847 = vadd.xlane.f32.xlu0 %v846
        %v848 = vpop.xlane.xlu0 %847
        %v849 = vsel %vm793, %v837, 0.0
        %850 = vadd.xlane.f32.xlu0 %v849
        %v851 = vpop.xlane.xlu0 %850
        %v852 = vsel %vm793, %v838, 0.0
        %853 = vadd.xlane.f32.xlu0 %v852
        %v854 = vpop.xlane.xlu0 %853
        %v855 = vsel %vm793, %v839, 0.0
        %856 = vadd.xlane.f32.xlu0 %v855
        %v857 = vpop.xlane.xlu0 %856
        %v858 = vsel %vm793, %v840, 0.0
        %859 = vadd.xlane.f32.xlu0 %v858
        %v860 = vpop.xlane.xlu0 %859
        %v861 = vsel %vm793, %v841, 0.0
        %862 = vadd.xlane.f32.xlu0 %v861
        %v863 = vpop.xlane.xlu0 %862
        %v864 = vsel %vm793, %v842, 0.0
        %865 = vadd.xlane.f32.xlu0 %v864
        %v866 = vpop.xlane.xlu0 %865
        %v867 = vmul.f32 %v845, %v818
        %v868 = vmul.f32 %v848, %v818
        %v869 = vmul.f32 %v851, %v818
        %v870 = vmul.f32 %v854, %v818
        %v871 = vmul.f32 %v857, %v818
        %v872 = vmul.f32 %v860, %v818
        %v873 = vmul.f32 %v863, %v818
        %v874 = vmul.f32 %v866, %v818
        %v875 = vadd.f32 %v867, 1e-05
        %v876 = vadd.f32 %v868, 1e-05
        %v877 = vadd.f32 %v869, 1e-05
        %v878 = vadd.f32 %v870, 1e-05
        %v879 = vadd.f32 %v871, 1e-05
        %v880 = vadd.f32 %v872, 1e-05
        %v881 = vadd.f32 %v873, 1e-05
        %v882 = vadd.f32 %v874, 1e-05
        %v883 = vrsqrt.pop %v875
        %v884 = vrsqrt.pop %v876
        %v885 = vrsqrt.pop %v877
        %v886 = vrsqrt.pop %v878
        %v887 = vrsqrt.pop %v879
        %v888 = vrsqrt.pop %v880
        %v889 = vrsqrt.pop %v881
        %v890 = vrsqrt.pop %v882
        %v891 = vmul.f32 %v827, %v883
        %v892 = vmul.f32 %v828, %v884
        %v893 = vmul.f32 %v829, %v885
        %v894 = vmul.f32 %v830, %v886
        %v895 = vmul.f32 %v831, %v887
        %v896 = vmul.f32 %v832, %v888
        %v897 = vmul.f32 %v833, %v889
        %v898 = vmul.f32 %v834, %v890
        %v900 = vlaneseq
        %v901 = vshrl.u32 %v900, 7
        %v902 = vsub.s32 0, %v901
        %v903 = vrot.slane %v791, %v902
        %v905 = vmul.f32 %v891, %v903
        %v906 = vmul.f32 %v892, %v903
        %v907 = vmul.f32 %v893, %v903
        %v908 = vmul.f32 %v894, %v903
        %v909 = vmul.f32 %v895, %v903
        %v910 = vmul.f32 %v896, %v903
        %v911 = vmul.f32 %v897, %v903
        %v912 = vmul.f32 %v898, %v903
        %v914 = vlaneseq
        %v915 = vshrl.u32 %v914, 7
        %v916 = vsub.s32 0, %v915
        %v917 = vrot.slane %v792, %v916
        %v919 = vadd.f32 %v905, %v917
        %v920 = vadd.f32 %v906, %v917
        %v921 = vadd.f32 %v907, %v917
        %v922 = vadd.f32 %v908, %v917
        %v923 = vadd.f32 %v909, %v917
        %v924 = vadd.f32 %v910, %v917
        %v925 = vadd.f32 %v911, %v917
        %v926 = vadd.f32 %v912, %v917
        %v927 = vld [vmem:[%s782] sm:$0xff]
        %v928 = vld [vmem:[%s782 + $0x8] sm:$0xff]
        %v929 = vld [vmem:[%s782 + $0x10] sm:$0xff]
        %v930 = vld [vmem:[%s782 + $0x18] sm:$0xff]
        %v931 = vld [vmem:[%s782 + $0x20] sm:$0xff]
        %v932 = vld [vmem:[%s782 + $0x28] sm:$0xff]
        %v933 = vld [vmem:[%s782 + $0x30] sm:$0xff]
        %v934 = vld [vmem:[%s782 + $0x38] sm:$0xff]
        %v935 = vld [vmem:[%s782 + $0x40] sm:$0xff]
        %v936 = vld [vmem:[%s782 + $0x48] sm:$0xff]
        %v937 = vld [vmem:[%s782 + $0x50] sm:$0xff]
        %v938 = vld [vmem:[%s782 + $0x58] sm:$0xff]
        %v939 = vld [vmem:[%s782 + $0x60] sm:$0xff]
        %v940 = vld [vmem:[%s782 + $0x68] sm:$0xff]
        %v941 = vld [vmem:[%s782 + $0x70] sm:$0xff]
        %v942 = vld [vmem:[%s782 + $0x78] sm:$0xff]
        %v943 = vld [vmem:[%s782 + $0x80] sm:$0xff]
        %v944 = vld [vmem:[%s782 + $0x88] sm:$0xff]
        %v945 = vld [vmem:[%s782 + $0x90] sm:$0xff]
        %v946 = vld [vmem:[%s782 + $0x98] sm:$0xff]
        %v947 = vld [vmem:[%s782 + $0xa0] sm:$0xff]
        %v948 = vld [vmem:[%s782 + $0xa8] sm:$0xff]
        %v949 = vld [vmem:[%s782 + $0xb0] sm:$0xff]
        %v950 = vld [vmem:[%s782 + $0xb8] sm:$0xff]
        %v951 = vld [vmem:[%s782 + $0xc0] sm:$0xff]
        %v952 = vld [vmem:[%s782 + $0xc8] sm:$0xff]
        %v953 = vld [vmem:[%s782 + $0xd0] sm:$0xff]
        %v954 = vld [vmem:[%s782 + $0xd8] sm:$0xff]
        %v955 = vld [vmem:[%s782 + $0xe0] sm:$0xff]
        %v956 = vld [vmem:[%s782 + $0xe8] sm:$0xff]
        %v957 = vld [vmem:[%s782 + $0xf0] sm:$0xff]
        %v958 = vld [vmem:[%s782 + $0xf8] sm:$0xff]
        %v959 = vld [vmem:[%s4] sm:$0x1]
        %v960 = vld [vmem:[%s5] sm:$0x1]
        %vm961 = vcmask 261120
        %v962 = vsel %vm961, %v927, 0.0
        %963 = vadd.xlane.f32.xlu0 %v962
        %v964 = vpop.xlane.xlu0 %963
        %v965 = vsel %vm961, %v928, 0.0
        %966 = vadd.xlane.f32.xlu0 %v965
        %v967 = vpop.xlane.xlu0 %966
        %v968 = vsel %vm961, %v929, 0.0
        %969 = vadd.xlane.f32.xlu0 %v968
        %v970 = vpop.xlane.xlu0 %969
        %v971 = vsel %vm961, %v930, 0.0
        %972 = vadd.xlane.f32.xlu0 %v971
        %v973 = vpop.xlane.xlu0 %972
        %v974 = vsel %vm961, %v931, 0.0
        %975 = vadd.xlane.f32.xlu0 %v974
        %v976 = vpop.xlane.xlu0 %975
        %v977 = vsel %vm961, %v932, 0.0
        %978 = vadd.xlane.f32.xlu0 %v977
        %v979 = vpop.xlane.xlu0 %978
        %v980 = vsel %vm961, %v933, 0.0
        %981 = vadd.xlane.f32.xlu0 %v980
        %v982 = vpop.xlane.xlu0 %981
        %v983 = vsel %vm961, %v934, 0.0
        %984 = vadd.xlane.f32.xlu0 %v983
        %v985 = vpop.xlane.xlu0 %984
        %v986 = vsel %vm961, %v935, 0.0
        %987 = vadd.xlane.f32.xlu0 %v986
        %v988 = vpop.xlane.xlu0 %987
        %v989 = vsel %vm961, %v936, 0.0
        %990 = vadd.xlane.f32.xlu0 %v989
        %v991 = vpop.xlane.xlu0 %990
        %v992 = vsel %vm961, %v937, 0.0
        %993 = vadd.xlane.f32.xlu0 %v992
        %v994 = vpop.xlane.xlu0 %993
        %v995 = vsel %vm961, %v938, 0.0
        %996 = vadd.xlane.f32.xlu0 %v995
        %v997 = vpop.xlane.xlu0 %996
        %v998 = vsel %vm961, %v939, 0.0
        %999 = vadd.xlane.f32.xlu0 %v998
        %v1000 = vpop.xlane.xlu0 %999
        %v1001 = vsel %vm961, %v940, 0.0
        %1002 = vadd.xlane.f32.xlu0 %v1001
        %v1003 = vpop.xlane.xlu0 %1002
        %v1004 = vsel %vm961, %v941, 0.0
        %1005 = vadd.xlane.f32.xlu0 %v1004
        %v1006 = vpop.xlane.xlu0 %1005
        %v1007 = vsel %vm961, %v942, 0.0
        %1008 = vadd.xlane.f32.xlu0 %v1007
        %v1009 = vpop.xlane.xlu0 %1008
        %v1010 = vsel %vm961, %v943, 0.0
        %1011 = vadd.xlane.f32.xlu0 %v1010
        %v1012 = vpop.xlane.xlu0 %1011
        %v1013 = vsel %vm961, %v944, 0.0
        %1014 = vadd.xlane.f32.xlu0 %v1013
        %v1015 = vpop.xlane.xlu0 %1014
        %v1016 = vsel %vm961, %v945, 0.0
        %1017 = vadd.xlane.f32.xlu0 %v1016
        %v1018 = vpop.xlane.xlu0 %1017
        %v1019 = vsel %vm961, %v946, 0.0
        %1020 = vadd.xlane.f32.xlu0 %v1019
        %v1021 = vpop.xlane.xlu0 %1020
        %v1022 = vsel %vm961, %v947, 0.0
        %1023 = vadd.xlane.f32.xlu0 %v1022
        %v1024 = vpop.xlane.xlu0 %1023
        %v1025 = vsel %vm961, %v948, 0.0
        %1026 = vadd.xlane.f32.xlu0 %v1025
        %v1027 = vpop.xlane.xlu0 %1026
        %v1028 = vsel %vm961, %v949, 0.0
        %1029 = vadd.xlane.f32.xlu0 %v1028
        %v1030 = vpop.xlane.xlu0 %1029
        %v1031 = vsel %vm961, %v950, 0.0
        %1032 = vadd.xlane.f32.xlu0 %v1031
        %v1033 = vpop.xlane.xlu0 %1032
        %v1034 = vsel %vm961, %v951, 0.0
        %1035 = vadd.xlane.f32.xlu0 %v1034
        %v1036 = vpop.xlane.xlu0 %1035
        %v1037 = vsel %vm961, %v952, 0.0
        %1038 = vadd.xlane.f32.xlu0 %v1037
        %v1039 = vpop.xlane.xlu0 %1038
        %v1040 = vsel %vm961, %v953, 0.0
        %1041 = vadd.xlane.f32.xlu0 %v1040
        %v1042 = vpop.xlane.xlu0 %1041
        %v1043 = vsel %vm961, %v954, 0.0
        %1044 = vadd.xlane.f32.xlu0 %v1043
        %v1045 = vpop.xlane.xlu0 %1044
        %v1046 = vsel %vm961, %v955, 0.0
        %1047 = vadd.xlane.f32.xlu0 %v1046
        %v1048 = vpop.xlane.xlu0 %1047
        %v1049 = vsel %vm961, %v956, 0.0
        %1050 = vadd.xlane.f32.xlu0 %v1049
        %v1051 = vpop.xlane.xlu0 %1050
        %v1052 = vsel %vm961, %v957, 0.0
        %1053 = vadd.xlane.f32.xlu0 %v1052
        %v1054 = vpop.xlane.xlu0 %1053
        %v1055 = vsel %vm961, %v958, 0.0
        %1056 = vadd.xlane.f32.xlu0 %v1055
        %v1057 = vpop.xlane.xlu0 %1056
        %v1058 = vrcp.pop 32.0
        %v1059 = vmul.f32 %v964, %v1058
        %v1060 = vmul.f32 %v967, %v1058
        %v1061 = vmul.f32 %v970, %v1058
        %v1062 = vmul.f32 %v973, %v1058
        %v1063 = vmul.f32 %v976, %v1058
        %v1064 = vmul.f32 %v979, %v1058
        %v1065 = vmul.f32 %v982, %v1058
        %v1066 = vmul.f32 %v985, %v1058
        %v1067 = vmul.f32 %v988, %v1058
        %v1068 = vmul.f32 %v991, %v1058
        %v1069 = vmul.f32 %v994, %v1058
        %v1070 = vmul.f32 %v997, %v1058
        %v1071 = vmul.f32 %v1000, %v1058
        %v1072 = vmul.f32 %v1003, %v1058
        %v1073 = vmul.f32 %v1006, %v1058
        %v1074 = vmul.f32 %v1009, %v1058
        %v1075 = vmul.f32 %v1012, %v1058
        %v1076 = vmul.f32 %v1015, %v1058
        %v1077 = vmul.f32 %v1018, %v1058
        %v1078 = vmul.f32 %v1021, %v1058
        %v1079 = vmul.f32 %v1024, %v1058
        %v1080 = vmul.f32 %v1027, %v1058
        %v1081 = vmul.f32 %v1030, %v1058
        %v1082 = vmul.f32 %v1033, %v1058
        %v1083 = vmul.f32 %v1036, %v1058
        %v1084 = vmul.f32 %v1039, %v1058
        %v1085 = vmul.f32 %v1042, %v1058
        %v1086 = vmul.f32 %v1045, %v1058
        %v1087 = vmul.f32 %v1048, %v1058
        %v1088 = vmul.f32 %v1051, %v1058
        %v1089 = vmul.f32 %v1054, %v1058
        %v1090 = vmul.f32 %v1057, %v1058
        %v1091 = vsub.f32 %v927, %v1059
        %v1092 = vsub.f32 %v928, %v1060
        %v1093 = vsub.f32 %v929, %v1061
        %v1094 = vsub.f32 %v930, %v1062
        %v1095 = vsub.f32 %v931, %v1063
        %v1096 = vsub.f32 %v932, %v1064
        %v1097 = vsub.f32 %v933, %v1065
        %v1098 = vsub.f32 %v934, %v1066
        %v1099 = vsub.f32 %v935, %v1067
        %v1100 = vsub.f32 %v936, %v1068
        %v1101 = vsub.f32 %v937, %v1069
        %v1102 = vsub.f32 %v938, %v1070
        %v1103 = vsub.f32 %v939, %v1071
        %v1104 = vsub.f32 %v940, %v1072
        %v1105 = vsub.f32 %v941, %v1073
        %v1106 = vsub.f32 %v942, %v1074
        %v1107 = vsub.f32 %v943, %v1075
        %v1108 = vsub.f32 %v944, %v1076
        %v1109 = vsub.f32 %v945, %v1077
        %v1110 = vsub.f32 %v946, %v1078
        %v1111 = vsub.f32 %v947, %v1079
        %v1112 = vsub.f32 %v948, %v1080
        %v1113 = vsub.f32 %v949, %v1081
        %v1114 = vsub.f32 %v950, %v1082
        %v1115 = vsub.f32 %v951, %v1083
        %v1116 = vsub.f32 %v952, %v1084
        %v1117 = vsub.f32 %v953, %v1085
        %v1118 = vsub.f32 %v954, %v1086
        %v1119 = vsub.f32 %v955, %v1087
        %v1120 = vsub.f32 %v956, %v1088
        %v1121 = vsub.f32 %v957, %v1089
        %v1122 = vsub.f32 %v958, %v1090
        %v1123 = vmul.f32 %v1091, %v1091
        %v1124 = vmul.f32 %v1092, %v1092
        %v1125 = vmul.f32 %v1093, %v1093
        %v1126 = vmul.f32 %v1094, %v1094
        %v1127 = vmul.f32 %v1095, %v1095
        %v1128 = vmul.f32 %v1096, %v1096
        %v1129 = vmul.f32 %v1097, %v1097
        %v1130 = vmul.f32 %v1098, %v1098
        %v1131 = vmul.f32 %v1099, %v1099
        %v1132 = vmul.f32 %v1100, %v1100
        %v1133 = vmul.f32 %v1101, %v1101
        %v1134 = vmul.f32 %v1102, %v1102
        %v1135 = vmul.f32 %v1103, %v1103
        %v1136 = vmul.f32 %v1104, %v1104
        %v1137 = vmul.f32 %v1105, %v1105
        %v1138 = vmul.f32 %v1106, %v1106
        %v1139 = vmul.f32 %v1107, %v1107
        %v1140 = vmul.f32 %v1108, %v1108
        %v1141 = vmul.f32 %v1109, %v1109
        %v1142 = vmul.f32 %v1110, %v1110
        %v1143 = vmul.f32 %v1111, %v1111
        %v1144 = vmul.f32 %v1112, %v1112
        %v1145 = vmul.f32 %v1113, %v1113
        %v1146 = vmul.f32 %v1114, %v1114
        %v1147 = vmul.f32 %v1115, %v1115
        %v1148 = vmul.f32 %v1116, %v1116
        %v1149 = vmul.f32 %v1117, %v1117
        %v1150 = vmul.f32 %v1118, %v1118
        %v1151 = vmul.f32 %v1119, %v1119
        %v1152 = vmul.f32 %v1120, %v1120
        %v1153 = vmul.f32 %v1121, %v1121
        %v1154 = vmul.f32 %v1122, %v1122
        %v1155 = vsel %vm961, %v1123, 0.0
        %1156 = vadd.xlane.f32.xlu0 %v1155
        %v1157 = vpop.xlane.xlu0 %1156
        %v1158 = vsel %vm961, %v1124, 0.0
        %1159 = vadd.xlane.f32.xlu0 %v1158
        %v1160 = vpop.xlane.xlu0 %1159
        %v1161 = vsel %vm961, %v1125, 0.0
        %1162 = vadd.xlane.f32.xlu0 %v1161
        %v1163 = vpop.xlane.xlu0 %1162
        %v1164 = vsel %vm961, %v1126, 0.0
        %1165 = vadd.xlane.f32.xlu0 %v1164
        %v1166 = vpop.xlane.xlu0 %1165
        %v1167 = vsel %vm961, %v1127, 0.0
        %1168 = vadd.xlane.f32.xlu0 %v1167
        %v1169 = vpop.xlane.xlu0 %1168
        %v1170 = vsel %vm961, %v1128, 0.0
        %1171 = vadd.xlane.f32.xlu0 %v1170
        %v1172 = vpop.xlane.xlu0 %1171
        %v1173 = vsel %vm961, %v1129, 0.0
        %1174 = vadd.xlane.f32.xlu0 %v1173
        %v1175 = vpop.xlane.xlu0 %1174
        %v1176 = vsel %vm961, %v1130, 0.0
        %1177 = vadd.xlane.f32.xlu0 %v1176
        %v1178 = vpop.xlane.xlu0 %1177
        %v1179 = vsel %vm961, %v1131, 0.0
        %1180 = vadd.xlane.f32.xlu0 %v1179
        %v1181 = vpop.xlane.xlu0 %1180
        %v1182 = vsel %vm961, %v1132, 0.0
        %1183 = vadd.xlane.f32.xlu0 %v1182
        %v1184 = vpop.xlane.xlu0 %1183
        %v1185 = vsel %vm961, %v1133, 0.0
        %1186 = vadd.xlane.f32.xlu0 %v1185
        %v1187 = vpop.xlane.xlu0 %1186
        %v1188 = vsel %vm961, %v1134, 0.0
        %1189 = vadd.xlane.f32.xlu0 %v1188
        %v1190 = vpop.xlane.xlu0 %1189
        %v1191 = vsel %vm961, %v1135, 0.0
        %1192 = vadd.xlane.f32.xlu0 %v1191
        %v1193 = vpop.xlane.xlu0 %1192
        %v1194 = vsel %vm961, %v1136, 0.0
        %1195 = vadd.xlane.f32.xlu0 %v1194
        %v1196 = vpop.xlane.xlu0 %1195
        %v1197 = vsel %vm961, %v1137, 0.0
        %1198 = vadd.xlane.f32.xlu0 %v1197
        %v1199 = vpop.xlane.xlu0 %1198
        %v1200 = vsel %vm961, %v1138, 0.0
        %1201 = vadd.xlane.f32.xlu0 %v1200
        %v1202 = vpop.xlane.xlu0 %1201
        %v1203 = vsel %vm961, %v1139, 0.0
        %1204 = vadd.xlane.f32.xlu0 %v1203
        %v1205 = vpop.xlane.xlu0 %1204
        %v1206 = vsel %vm961, %v1140, 0.0
        %1207 = vadd.xlane.f32.xlu0 %v1206
        %v1208 = vpop.xlane.xlu0 %1207
        %v1209 = vsel %vm961, %v1141, 0.0
        %1210 = vadd.xlane.f32.xlu0 %v1209
        %v1211 = vpop.xlane.xlu0 %1210
        %v1212 = vsel %vm961, %v1142, 0.0
        %1213 = vadd.xlane.f32.xlu0 %v1212
        %v1214 = vpop.xlane.xlu0 %1213
        %v1215 = vsel %vm961, %v1143, 0.0
        %1216 = vadd.xlane.f32.xlu0 %v1215
        %v1217 = vpop.xlane.xlu0 %1216
        %v1218 = vsel %vm961, %v1144, 0.0
        %1219 = vadd.xlane.f32.xlu0 %v1218
        %v1220 = vpop.xlane.xlu0 %1219
        %v1221 = vsel %vm961, %v1145, 0.0
        %1222 = vadd.xlane.f32.xlu0 %v1221
        %v1223 = vpop.xlane.xlu0 %1222
        %v1224 = vsel %vm961, %v1146, 0.0
        %1225 = vadd.xlane.f32.xlu0 %v1224
        %v1226 = vpop.xlane.xlu0 %1225
        %v1227 = vsel %vm961, %v1147, 0.0
        %1228 = vadd.xlane.f32.xlu0 %v1227
        %v1229 = vpop.xlane.xlu0 %1228
        %v1230 = vsel %vm961, %v1148, 0.0
        %1231 = vadd.xlane.f32.xlu0 %v1230
        %v1232 = vpop.xlane.xlu0 %1231
        %v1233 = vsel %vm961, %v1149, 0.0
        %1234 = vadd.xlane.f32.xlu0 %v1233
        %v1235 = vpop.xlane.xlu0 %1234
        %v1236 = vsel %vm961, %v1150, 0.0
        %1237 = vadd.xlane.f32.xlu0 %v1236
        %v1238 = vpop.xlane.xlu0 %1237
        %v1239 = vsel %vm961, %v1151, 0.0
        %1240 = vadd.xlane.f32.xlu0 %v1239
        %v1241 = vpop.xlane.xlu0 %1240
        %v1242 = vsel %vm961, %v1152, 0.0
        %1243 = vadd.xlane.f32.xlu0 %v1242
        %v1244 = vpop.xlane.xlu0 %1243
        %v1245 = vsel %vm961, %v1153, 0.0
        %1246 = vadd.xlane.f32.xlu0 %v1245
        %v1247 = vpop.xlane.xlu0 %1246
        %v1248 = vsel %vm961, %v1154, 0.0
        %1249 = vadd.xlane.f32.xlu0 %v1248
        %v1250 = vpop.xlane.xlu0 %1249
        %v1251 = vmul.f32 %v1157, %v1058
        %v1252 = vmul.f32 %v1160, %v1058
        %v1253 = vmul.f32 %v1163, %v1058
        %v1254 = vmul.f32 %v1166, %v1058
        %v1255 = vmul.f32 %v1169, %v1058
        %v1256 = vmul.f32 %v1172, %v1058
        %v1257 = vmul.f32 %v1175, %v1058
        %v1258 = vmul.f32 %v1178, %v1058
        %v1259 = vmul.f32 %v1181, %v1058
        %v1260 = vmul.f32 %v1184, %v1058
        %v1261 = vmul.f32 %v1187, %v1058
        %v1262 = vmul.f32 %v1190, %v1058
        %v1263 = vmul.f32 %v1193, %v1058
        %v1264 = vmul.f32 %v1196, %v1058
        %v1265 = vmul.f32 %v1199, %v1058
        %v1266 = vmul.f32 %v1202, %v1058
        %v1267 = vmul.f32 %v1205, %v1058
        %v1268 = vmul.f32 %v1208, %v1058
        %v1269 = vmul.f32 %v1211, %v1058
        %v1270 = vmul.f32 %v1214, %v1058
        %v1271 = vmul.f32 %v1217, %v1058
        %v1272 = vmul.f32 %v1220, %v1058
        %v1273 = vmul.f32 %v1223, %v1058
        %v1274 = vmul.f32 %v1226, %v1058
        %v1275 = vmul.f32 %v1229, %v1058
        %v1276 = vmul.f32 %v1232, %v1058
        %v1277 = vmul.f32 %v1235, %v1058
        %v1278 = vmul.f32 %v1238, %v1058
        %v1279 = vmul.f32 %v1241, %v1058
        %v1280 = vmul.f32 %v1244, %v1058
        %v1281 = vmul.f32 %v1247, %v1058
        %v1282 = vmul.f32 %v1250, %v1058
        %v1283 = vadd.f32 %v1251, 1e-05
        %v1284 = vadd.f32 %v1252, 1e-05
        %v1285 = vadd.f32 %v1253, 1e-05
        %v1286 = vadd.f32 %v1254, 1e-05
        %v1287 = vadd.f32 %v1255, 1e-05
        %v1288 = vadd.f32 %v1256, 1e-05
        %v1289 = vadd.f32 %v1257, 1e-05
        %v1290 = vadd.f32 %v1258, 1e-05
        %v1291 = vadd.f32 %v1259, 1e-05
        %v1292 = vadd.f32 %v1260, 1e-05
        %v1293 = vadd.f32 %v1261, 1e-05
        %v1294 = vadd.f32 %v1262, 1e-05
        %v1295 = vadd.f32 %v1263, 1e-05
        %v1296 = vadd.f32 %v1264, 1e-05
        %v1297 = vadd.f32 %v1265, 1e-05
        %v1298 = vadd.f32 %v1266, 1e-05
        %v1299 = vadd.f32 %v1267, 1e-05
        %v1300 = vadd.f32 %v1268, 1e-05
        %v1301 = vadd.f32 %v1269, 1e-05
        %v1302 = vadd.f32 %v1270, 1e-05
        %v1303 = vadd.f32 %v1271, 1e-05
        %v1304 = vadd.f32 %v1272, 1e-05
        %v1305 = vadd.f32 %v1273, 1e-05
        %v1306 = vadd.f32 %v1274, 1e-05
        %v1307 = vadd.f32 %v1275, 1e-05
        %v1308 = vadd.f32 %v1276, 1e-05
        %v1309 = vadd.f32 %v1277, 1e-05
        %v1310 = vadd.f32 %v1278, 1e-05
        %v1311 = vadd.f32 %v1279, 1e-05
        %v1312 = vadd.f32 %v1280, 1e-05
        %v1313 = vadd.f32 %v1281, 1e-05
        %v1314 = vadd.f32 %v1282, 1e-05
        %v1315 = vrsqrt.pop %v1283
        %v1316 = vrsqrt.pop %v1284
        %v1317 = vrsqrt.pop %v1285
        %v1318 = vrsqrt.pop %v1286
        %v1319 = vrsqrt.pop %v1287
        %v1320 = vrsqrt.pop %v1288
        %v1321 = vrsqrt.pop %v1289
        %v1322 = vrsqrt.pop %v1290
        %v1323 = vrsqrt.pop %v1291
        %v1324 = vrsqrt.pop %v1292
        %v1325 = vrsqrt.pop %v1293
        %v1326 = vrsqrt.pop %v1294
        %v1327 = vrsqrt.pop %v1295
        %v1328 = vrsqrt.pop %v1296
        %v1329 = vrsqrt.pop %v1297
        %v1330 = vrsqrt.pop %v1298
        %v1331 = vrsqrt.pop %v1299
        %v1332 = vrsqrt.pop %v1300
        %v1333 = vrsqrt.pop %v1301
        %v1334 = vrsqrt.pop %v1302
        %v1335 = vrsqrt.pop %v1303
        %v1336 = vrsqrt.pop %v1304
        %v1337 = vrsqrt.pop %v1305
        %v1338 = vrsqrt.pop %v1306
        %v1339 = vrsqrt.pop %v1307
        %v1340 = vrsqrt.pop %v1308
        %v1341 = vrsqrt.pop %v1309
        %v1342 = vrsqrt.pop %v1310
        %v1343 = vrsqrt.pop %v1311
        %v1344 = vrsqrt.pop %v1312
        %v1345 = vrsqrt.pop %v1313
        %v1346 = vrsqrt.pop %v1314
        %v1347 = vmul.f32 %v1091, %v1315
        %v1348 = vmul.f32 %v1092, %v1316
        %v1349 = vmul.f32 %v1093, %v1317
        %v1350 = vmul.f32 %v1094, %v1318
        %v1351 = vmul.f32 %v1095, %v1319
        %v1352 = vmul.f32 %v1096, %v1320
        %v1353 = vmul.f32 %v1097, %v1321
        %v1354 = vmul.f32 %v1098, %v1322
        %v1355 = vmul.f32 %v1099, %v1323
        %v1356 = vmul.f32 %v1100, %v1324
        %v1357 = vmul.f32 %v1101, %v1325
        %v1358 = vmul.f32 %v1102, %v1326
        %v1359 = vmul.f32 %v1103, %v1327
        %v1360 = vmul.f32 %v1104, %v1328
        %v1361 = vmul.f32 %v1105, %v1329
        %v1362 = vmul.f32 %v1106, %v1330
        %v1363 = vmul.f32 %v1107, %v1331
        %v1364 = vmul.f32 %v1108, %v1332
        %v1365 = vmul.f32 %v1109, %v1333
        %v1366 = vmul.f32 %v1110, %v1334
        %v1367 = vmul.f32 %v1111, %v1335
        %v1368 = vmul.f32 %v1112, %v1336
        %v1369 = vmul.f32 %v1113, %v1337
        %v1370 = vmul.f32 %v1114, %v1338
        %v1371 = vmul.f32 %v1115, %v1339
        %v1372 = vmul.f32 %v1116, %v1340
        %v1373 = vmul.f32 %v1117, %v1341
        %v1374 = vmul.f32 %v1118, %v1342
        %v1375 = vmul.f32 %v1119, %v1343
        %v1376 = vmul.f32 %v1120, %v1344
        %v1377 = vmul.f32 %v1121, %v1345
        %v1378 = vmul.f32 %v1122, %v1346
        %v1380 = vlaneseq
        %v1381 = vshrl.u32 %v1380, 7
        %v1382 = vsub.s32 0, %v1381
        %v1383 = vrot.slane %v959, %v1382
        %v1385 = vmul.f32 %v1347, %v1383
        %v1386 = vmul.f32 %v1348, %v1383
        %v1387 = vmul.f32 %v1349, %v1383
        %v1388 = vmul.f32 %v1350, %v1383
        %v1389 = vmul.f32 %v1351, %v1383
        %v1390 = vmul.f32 %v1352, %v1383
        %v1391 = vmul.f32 %v1353, %v1383
        %v1392 = vmul.f32 %v1354, %v1383
        %v1393 = vmul.f32 %v1355, %v1383
        %v1394 = vmul.f32 %v1356, %v1383
        %v1395 = vmul.f32 %v1357, %v1383
        %v1396 = vmul.f32 %v1358, %v1383
        %v1397 = vmul.f32 %v1359, %v1383
        %v1398 = vmul.f32 %v1360, %v1383
        %v1399 = vmul.f32 %v1361, %v1383
        %v1400 = vmul.f32 %v1362, %v1383
        %v1401 = vmul.f32 %v1363, %v1383
        %v1402 = vmul.f32 %v1364, %v1383
        %v1403 = vmul.f32 %v1365, %v1383
        %v1404 = vmul.f32 %v1366, %v1383
        %v1405 = vmul.f32 %v1367, %v1383
        %v1406 = vmul.f32 %v1368, %v1383
        %v1407 = vmul.f32 %v1369, %v1383
        %v1408 = vmul.f32 %v1370, %v1383
        %v1409 = vmul.f32 %v1371, %v1383
        %v1410 = vmul.f32 %v1372, %v1383
        %v1411 = vmul.f32 %v1373, %v1383
        %v1412 = vmul.f32 %v1374, %v1383
        %v1413 = vmul.f32 %v1375, %v1383
        %v1414 = vmul.f32 %v1376, %v1383
        %v1415 = vmul.f32 %v1377, %v1383
        %v1416 = vmul.f32 %v1378, %v1383
        %v1418 = vlaneseq
        %v1419 = vshrl.u32 %v1418, 7
        %v1420 = vsub.s32 0, %v1419
        %v1421 = vrot.slane %v960, %v1420
        %v1423 = vadd.f32 %v1385, %v1421
        %v1424 = vadd.f32 %v1386, %v1421
        %v1425 = vadd.f32 %v1387, %v1421
        %v1426 = vadd.f32 %v1388, %v1421
        %v1427 = vadd.f32 %v1389, %v1421
        %v1428 = vadd.f32 %v1390, %v1421
        %v1429 = vadd.f32 %v1391, %v1421
        %v1430 = vadd.f32 %v1392, %v1421
        %v1431 = vadd.f32 %v1393, %v1421
        %v1432 = vadd.f32 %v1394, %v1421
        %v1433 = vadd.f32 %v1395, %v1421
        %v1434 = vadd.f32 %v1396, %v1421
        %v1435 = vadd.f32 %v1397, %v1421
        %v1436 = vadd.f32 %v1398, %v1421
        %v1437 = vadd.f32 %v1399, %v1421
        %v1438 = vadd.f32 %v1400, %v1421
        %v1439 = vadd.f32 %v1401, %v1421
        %v1440 = vadd.f32 %v1402, %v1421
        %v1441 = vadd.f32 %v1403, %v1421
        %v1442 = vadd.f32 %v1404, %v1421
        %v1443 = vadd.f32 %v1405, %v1421
        %v1444 = vadd.f32 %v1406, %v1421
        %v1445 = vadd.f32 %v1407, %v1421
        %v1446 = vadd.f32 %v1408, %v1421
        %v1447 = vadd.f32 %v1409, %v1421
        %v1448 = vadd.f32 %v1410, %v1421
        %v1449 = vadd.f32 %v1411, %v1421
        %v1450 = vadd.f32 %v1412, %v1421
        %v1451 = vadd.f32 %v1413, %v1421
        %v1452 = vadd.f32 %v1414, %v1421
        %v1453 = vadd.f32 %v1415, %v1421
        %v1454 = vadd.f32 %v1416, %v1421
        %v1455 = vld [vmem:[%s6] sm:$0xff]
        %v1456 = vld [vmem:[%s6 + $0x8] sm:$0xff]
        %v1457 = vld [vmem:[%s6 + $0x10] sm:$0xff]
        %v1458 = vld [vmem:[%s6 + $0x18] sm:$0xff]
        %1459 = vmatprep.subr.mxu0 0.0
        %1460 = vmatpush1.msra.mxu0 %v1423
        %1461 = vmatprep.subr.mxu0 0.0
        %1462 = vmatpush1.msra.mxu0 %v1424
        %1463 = vmatprep.subr.mxu0 0.0
        %1464 = vmatpush1.msra.mxu0 %v1425
        %1465 = vmatprep.subr.mxu0 0.0
        %1466 = vmatpush1.msra.mxu0 %v1426
        %1467 = vmatprep.subr.mxu0 0.0
        %1468 = vmatpush1.msra.mxu0 %v1427
        %1469 = vmatprep.subr.mxu0 0.0
        %1470 = vmatpush1.msra.mxu0 %v1428
        %1471 = vmatprep.subr.mxu0 0.0
        %1472 = vmatpush1.msra.mxu0 %v1429
        %1473 = vmatprep.subr.mxu0 0.0
        %1474 = vmatpush1.msra.mxu0 %v1430
        %1475 = vmatprep.subr.mxu0 0.0
        %1476 = vmatpush1.msra.mxu0 %v1431
        %1477 = vmatprep.subr.mxu0 0.0
        %1478 = vmatpush1.msra.mxu0 %v1432
        %1479 = vmatprep.subr.mxu0 0.0
        %1480 = vmatpush1.msra.mxu0 %v1433
        %1481 = vmatprep.subr.mxu0 0.0
        %1482 = vmatpush1.msra.mxu0 %v1434
        %1483 = vmatprep.subr.mxu0 0.0
        %1484 = vmatpush1.msra.mxu0 %v1435
        %1485 = vmatprep.subr.mxu0 0.0
        %1486 = vmatpush1.msra.mxu0 %v1436
        %1487 = vmatprep.subr.mxu0 0.0
        %1488 = vmatpush1.msra.mxu0 %v1437
        %1489 = vmatprep.subr.mxu0 0.0
        %1490 = vmatpush1.msra.mxu0 %v1438
        %1491 = vmatprep.subr.mxu0 0.0
        %1492 = vmatpush1.msra.mxu0 %v1439
        %1493 = vmatprep.subr.mxu0 0.0
        %1494 = vmatpush1.msra.mxu0 %v1440
        %1495 = vmatprep.subr.mxu0 0.0
        %1496 = vmatpush1.msra.mxu0 %v1441
        %1497 = vmatprep.subr.mxu0 0.0
        %1498 = vmatpush1.msra.mxu0 %v1442
        %1499 = vmatprep.subr.mxu0 0.0
        %1500 = vmatpush1.msra.mxu0 %v1443
        %1501 = vmatprep.subr.mxu0 0.0
        %1502 = vmatpush1.msra.mxu0 %v1444
        %1503 = vmatprep.subr.mxu0 0.0
        %1504 = vmatpush1.msra.mxu0 %v1445
        %1505 = vmatprep.subr.mxu0 0.0
        %1506 = vmatpush1.msra.mxu0 %v1446
        %1507 = vmatprep.subr.mxu0 0.0
        %1508 = vmatpush1.msra.mxu0 %v1447
        %1509 = vmatprep.subr.mxu0 0.0
        %1510 = vmatpush1.msra.mxu0 %v1448
        %1511 = vmatprep.subr.mxu0 0.0
        %1512 = vmatpush1.msra.mxu0 %v1449
        %1513 = vmatprep.subr.mxu0 0.0
        %1514 = vmatpush1.msra.mxu0 %v1450
        %1515 = vmatprep.subr.mxu0 0.0
        %1516 = vmatpush1.msra.mxu0 %v1451
        %1517 = vmatprep.subr.mxu0 0.0
        %1518 = vmatpush1.msra.mxu0 %v1452
        %1519 = vmatprep.subr.mxu0 0.0
        %1520 = vmatpush1.msra.mxu0 %v1453
        %1521 = vmatprep.subr.mxu0 0.0
        %1522 = vmatpush1.msra.mxu0 %v1454
        %1523 = vmatprep.mubr.f32.mxu0 %v1456
        %1524 = vmatmul.mubr.f32.gmra.mrb[0].mxu0 %v1455
        %v1525 = vpop.f32.mrb[0].mxu0
        %v1526 = vadd.f32 0.0, %v1525
        %v1527 = vpop.f32.mrb[0].mxu0
        %1528 = vmatprep.mubr.f32.mxu0 %v1458
        %1529 = vmatmul.mubr.f32.gmra.mrb[0].mxu0 %v1457
        %v1530 = vpop.f32.mrb[0].mxu0
        %v1531 = vadd.f32 0.0, %v1530
        %v1532 = vpop.f32.mrb[0].mxu0
        %1533 = vdwg.mxu0
        %v1534 = vld [vmem:[%s7] sm:$0xff]
        %v1535 = vld [vmem:[%s7 + $0x8] sm:$0xff]
        %v1536 = vld [vmem:[%s7 + $0x10] sm:$0xff]
        %v1537 = vld [vmem:[%s7 + $0x18] sm:$0xff]
        %v1538 = vld [vmem:[%s8] sm:$0x1]
        %v1540 = vlaneseq
        %v1541 = vshrl.u32 %v1540, 7
        %v1542 = vsub.s32 0, %v1541
        %v1543 = vrot.slane %v1538, %v1542
        %v1546 = vsel %vm961, %v1526, 0
        %v1549 = vsel %vm961, %v1531, 0
        %1551 = vmatprep.subr.mxu0 0.0
        %1552 = vmatpush1.msra.mxu0 %v1534
        %1553 = vmatprep.subr.mxu0 0.0
        %1554 = vmatpush1.msra.mxu0 %v1535
        %1555 = vmatprep.subr.mxu0 0.0
        %1556 = vmatpush1.msra.mxu0 %v1536
        %1557 = vmatprep.subr.mxu0 0.0
        %1558 = vmatpush1.msra.mxu0 %v1537
        %1559 = vmatprep.subr.mxu0 0.0
        %1560 = vmatpush1.msra.mxu0 0.0
        %1561 = vmatprep.subr.mxu0 0.0
        %1562 = vmatpush1.msra.mxu0 0.0
        %1563 = vmatprep.subr.mxu0 0.0
        %1564 = vmatpush1.msra.mxu0 0.0
        %1565 = vmatprep.subr.mxu0 0.0
        %1566 = vmatpush1.msra.mxu0 0.0
        %1567 = vmatprep.subr.mxu0 0.0
        %1568 = vmatpush1.msra.mxu0 0.0
        %1569 = vmatprep.subr.mxu0 0.0
        %1570 = vmatpush1.msra.mxu0 0.0
        %1571 = vmatprep.subr.mxu0 0.0
        %1572 = vmatpush1.msra.mxu0 0.0
        %1573 = vmatprep.subr.mxu0 0.0
        %1574 = vmatpush1.msra.mxu0 0.0
        %1575 = vmatprep.subr.mxu0 0.0
        %1576 = vmatpush1.msra.mxu0 0.0
        %1577 = vmatprep.subr.mxu0 0.0
        %1578 = vmatpush1.msra.mxu0 0.0
        %1579 = vmatprep.subr.mxu0 0.0
        %1580 = vmatpush1.msra.mxu0 0.0
        %1581 = vmatprep.subr.mxu0 0.0
        %1582 = vmatpush1.msra.mxu0 0.0
        %1583 = vmatprep.subr.mxu0 0.0
        %1584 = vmatpush1.msra.mxu0 0.0
        %1585 = vmatprep.subr.mxu0 0.0
        %1586 = vmatpush1.msra.mxu0 0.0
        %1587 = vmatprep.subr.mxu0 0.0
        %1588 = vmatpush1.msra.mxu0 0.0
        %1589 = vmatprep.subr.mxu0 0.0
        %1590 = vmatpush1.msra.mxu0 0.0
        %1591 = vmatprep.subr.mxu0 0.0
        %1592 = vmatpush1.msra.mxu0 0.0
        %1593 = vmatprep.subr.mxu0 0.0
        %1594 = vmatpush1.msra.mxu0 0.0
        %1595 = vmatprep.subr.mxu0 0.0
        %1596 = vmatpush1.msra.mxu0 0.0
        %1597 = vmatprep.subr.mxu0 0.0
        %1598 = vmatpush1.msra.mxu0 0.0
        %1599 = vmatprep.subr.mxu0 0.0
        %1600 = vmatpush1.msra.mxu0 0.0
        %1601 = vmatprep.subr.mxu0 0.0
        %1602 = vmatpush1.msra.mxu0 0.0
        %1603 = vmatprep.subr.mxu0 0.0
        %1604 = vmatpush1.msra.mxu0 0.0
        %1605 = vmatprep.subr.mxu0 0.0
        %1606 = vmatpush1.msra.mxu0 0.0
        %1607 = vmatprep.subr.mxu0 0.0
        %1608 = vmatpush1.msra.mxu0 0.0
        %1609 = vmatprep.subr.mxu0 0.0
        %1610 = vmatpush1.msra.mxu0 0.0
        %1611 = vmatprep.subr.mxu0 0.0
        %1612 = vmatpush1.msra.mxu0 0.0
        %1613 = vmatprep.subr.mxu0 0.0
        %1614 = vmatpush1.msra.mxu0 0.0
        %1615 = vmatprep.mubr.f32.mxu0 0.0
        %1616 = vmatmul.mubr.f32.gmra.mrb[0].mxu0 %v1546
        %v1617 = vpop.f32.mrb[0].mxu0
        %v1618 = vadd.f32 %v1543, %v1617
        %v1619 = vpop.f32.mrb[0].mxu0
        %1620 = vmatprep.mubr.f32.mxu0 0.0
        %1621 = vmatmul.mubr.f32.gmra.mrb[0].mxu0 %v1549
        %v1622 = vpop.f32.mrb[0].mxu0
        %v1623 = vadd.f32 %v1543, %v1622
        %v1624 = vpop.f32.mrb[0].mxu0
        %1625 = vdwg.mxu0
        %v1626 = vld [vmem:[%s9] sm:$0x1]
        %v1627 = vld [vmem:[%s10] sm:$0x1]
        %v1628 = vsel %vm961, %v1618, 0.0
        %1629 = vadd.xlane.f32.xlu0 %v1628
        %v1630 = vpop.xlane.xlu0 %1629
        %v1631 = vsel %vm961, %v1623, 0.0
        %1632 = vadd.xlane.f32.xlu0 %v1631
        %v1633 = vpop.xlane.xlu0 %1632
        %v1634 = vmul.f32 %v1630, %v1058
        %v1635 = vmul.f32 %v1633, %v1058
        %v1636 = vsub.f32 %v1618, %v1634
        %v1637 = vsub.f32 %v1623, %v1635
        %v1638 = vmul.f32 %v1636, %v1636
        %v1639 = vmul.f32 %v1637, %v1637
        %v1640 = vsel %vm961, %v1638, 0.0
        %1641 = vadd.xlane.f32.xlu0 %v1640
        %v1642 = vpop.xlane.xlu0 %1641
        %v1643 = vsel %vm961, %v1639, 0.0
        %1644 = vadd.xlane.f32.xlu0 %v1643
        %v1645 = vpop.xlane.xlu0 %1644
        %v1646 = vmul.f32 %v1642, %v1058
        %v1647 = vmul.f32 %v1645, %v1058
        %v1648 = vadd.f32 %v1646, 1e-05
        %v1649 = vadd.f32 %v1647, 1e-05
        %v1650 = vrsqrt.pop %v1648
        %v1651 = vrsqrt.pop %v1649
        %v1652 = vmul.f32 %v1636, %v1650
        %v1653 = vmul.f32 %v1637, %v1651
        %v1655 = vlaneseq
        %v1656 = vshrl.u32 %v1655, 7
        %v1657 = vsub.s32 0, %v1656
        %v1658 = vrot.slane %v1626, %v1657
        %v1660 = vmul.f32 %v1652, %v1658
        %v1661 = vmul.f32 %v1653, %v1658
        %v1663 = vlaneseq
        %v1664 = vshrl.u32 %v1663, 7
        %v1665 = vsub.s32 0, %v1664
        %v1666 = vrot.slane %v1627, %v1665
        %v1668 = vadd.f32 %v1660, %v1666
        %v1669 = vadd.f32 %v1661, %v1666
        %v1670 = vmul.f32 %v1668, 0.5
        %v1671 = vmul.f32 %v1669, 0.5
        %v1672 = vmul.f32 %v1668, 0.70710677
        %v1673 = vmul.f32 %v1669, 0.70710677
        %vm1674 = vcmp.ge.f32.partialorder %v1672, 0.0
        %vm1675 = vcmp.ge.f32.partialorder %v1673, 0.0
        %v1676 = vsel %vm1674, 1.0, -1.0
        %v1677 = vsel %vm1675, 1.0, -1.0
        %v1678 = vand.u32 2147483647, %v1672
        %v1679 = vand.u32 2147483647, %v1673
        %v1680 = vmul.f32 %v1678, 0.3275911
        %v1681 = vmul.f32 %v1679, 0.3275911
        %v1682 = vadd.f32 %v1680, 1.0
        %v1683 = vadd.f32 %v1681, 1.0
        %v1684 = vrcp.pop %v1682
        %v1685 = vmul.f32 1.0, %v1684
        %v1686 = vrcp.pop %v1683
        %v1687 = vmul.f32 1.0, %v1686
        %v1688 = vmul.f32 %v1685, 1.0614054
        %v1689 = vmul.f32 %v1687, 1.0614054
        %v1690 = vadd.f32 %v1688, -1.4531521
        %v1691 = vadd.f32 %v1689, -1.4531521
        %v1692 = vmul.f32 %v1690, %v1685
        %v1693 = vmul.f32 %v1691, %v1687
        %v1694 = vadd.f32 %v1692, 1.4214138
        %v1695 = vadd.f32 %v1693, 1.4214138
        %v1696 = vmul.f32 %v1694, %v1685
        %v1697 = vmul.f32 %v1695, %v1687
        %v1698 = vadd.f32 %v1696, -0.28449672
        %v1699 = vadd.f32 %v1697, -0.28449672
        %v1700 = vmul.f32 %v1698, %v1685
        %v1701 = vmul.f32 %v1699, %v1687
        %v1702 = vadd.f32 %v1700, 0.2548296
        %v1703 = vadd.f32 %v1701, 0.2548296
        %v1704 = vmul.f32 %v1702, %v1685
        %v1705 = vmul.f32 %v1703, %v1687
        %v1706 = vsub.f32 0.0, %v1678
        %v1707 = vsub.f32 0.0, %v1679
        %v1708 = vmul.f32 %v1706, %v1678
        %v1709 = vmul.f32 %v1707, %v1679
        %v1710 = vmul.f32 %v1708, 1.442695
        %v1711 = vpow.pop %v1710
        %v1712 = vmul.f32 %v1709, 1.442695
        %v1713 = vpow.pop %v1712
        %v1714 = vmul.f32 %v1704, %v1711
        %v1715 = vmul.f32 %v1705, %v1713
        %v1716 = vsub.f32 1.0, %v1714
        %v1717 = vsub.f32 1.0, %v1715
        %v1718 = vmul.f32 %v1676, %v1716
        %v1719 = vmul.f32 %v1677, %v1717
        %v1720 = vadd.f32 %v1718, 1.0
        %v1721 = vadd.f32 %v1719, 1.0
        %v1722 = vmul.f32 %v1670, %v1720
        %v1723 = vmul.f32 %v1671, %v1721
        %v1724 = vld [vmem:[%s11] sm:$0xff]
        %v1725 = vld [vmem:[%s11 + $0x8] sm:$0xff]
        %v1726 = vld [vmem:[%s11 + $0x10] sm:$0xff]
        %v1727 = vld [vmem:[%s11 + $0x18] sm:$0xff]
        %v1728 = vld [vmem:[%s11 + $0x20] sm:$0xff]
        %v1729 = vld [vmem:[%s11 + $0x28] sm:$0xff]
        %v1730 = vld [vmem:[%s11 + $0x30] sm:$0xff]
        %v1731 = vld [vmem:[%s11 + $0x38] sm:$0xff]
        %v1733 = vsel %vm793, %v919, 0
        %v1736 = vsel %vm793, %v920, 0
        %v1739 = vsel %vm793, %v921, 0
        %v1742 = vsel %vm793, %v922, 0
        %v1745 = vsel %vm793, %v923, 0
        %v1748 = vsel %vm793, %v924, 0
        %v1751 = vsel %vm793, %v925, 0
        %v1754 = vsel %vm793, %v926, 0
        %1756 = vmatprep.subr.mxu0 0.0
        %1757 = vmatpush1.msra.mxu0 %v1724
        %1758 = vmatprep.subr.mxu0 0.0
        %1759 = vmatpush1.msra.mxu0 %v1725
        %1760 = vmatprep.subr.mxu0 0.0
        %1761 = vmatpush1.msra.mxu0 %v1726
        %1762 = vmatprep.subr.mxu0 0.0
        %1763 = vmatpush1.msra.mxu0 %v1727
        %1764 = vmatprep.subr.mxu0 0.0
        %1765 = vmatpush1.msra.mxu0 %v1728
        %1766 = vmatprep.subr.mxu0 0.0
        %1767 = vmatpush1.msra.mxu0 %v1729
        %1768 = vmatprep.subr.mxu0 0.0
        %1769 = vmatpush1.msra.mxu0 %v1730
        %1770 = vmatprep.subr.mxu0 0.0
        %1771 = vmatpush1.msra.mxu0 %v1731
        %1772 = vmatprep.subr.mxu0 0.0
        %1773 = vmatpush1.msra.mxu0 0.0
        %1774 = vmatprep.subr.mxu0 0.0
        %1775 = vmatpush1.msra.mxu0 0.0
        %1776 = vmatprep.subr.mxu0 0.0
        %1777 = vmatpush1.msra.mxu0 0.0
        %1778 = vmatprep.subr.mxu0 0.0
        %1779 = vmatpush1.msra.mxu0 0.0
        %1780 = vmatprep.subr.mxu0 0.0
        %1781 = vmatpush1.msra.mxu0 0.0
        %1782 = vmatprep.subr.mxu0 0.0
        %1783 = vmatpush1.msra.mxu0 0.0
        %1784 = vmatprep.subr.mxu0 0.0
        %1785 = vmatpush1.msra.mxu0 0.0
        %1786 = vmatprep.subr.mxu0 0.0
        %1787 = vmatpush1.msra.mxu0 0.0
        %1788 = vmatprep.subr.mxu0 0.0
        %1789 = vmatpush1.msra.mxu0 0.0
        %1790 = vmatprep.subr.mxu0 0.0
        %1791 = vmatpush1.msra.mxu0 0.0
        %1792 = vmatprep.subr.mxu0 0.0
        %1793 = vmatpush1.msra.mxu0 0.0
        %1794 = vmatprep.subr.mxu0 0.0
        %1795 = vmatpush1.msra.mxu0 0.0
        %1796 = vmatprep.subr.mxu0 0.0
        %1797 = vmatpush1.msra.mxu0 0.0
        %1798 = vmatprep.subr.mxu0 0.0
        %1799 = vmatpush1.msra.mxu0 0.0
        %1800 = vmatprep.subr.mxu0 0.0
        %1801 = vmatpush1.msra.mxu0 0.0
        %1802 = vmatprep.subr.mxu0 0.0
        %1803 = vmatpush1.msra.mxu0 0.0
        %1804 = vmatprep.subr.mxu0 0.0
        %1805 = vmatpush1.msra.mxu0 0.0
        %1806 = vmatprep.subr.mxu0 0.0
        %1807 = vmatpush1.msra.mxu0 0.0
        %1808 = vmatprep.subr.mxu0 0.0
        %1809 = vmatpush1.msra.mxu0 0.0
        %1810 = vmatprep.subr.mxu0 0.0
        %1811 = vmatpush1.msra.mxu0 0.0
        %1812 = vmatprep.subr.mxu0 0.0
        %1813 = vmatpush1.msra.mxu0 0.0
        %1814 = vmatprep.subr.mxu0 0.0
        %1815 = vmatpush1.msra.mxu0 0.0
        %1816 = vmatprep.subr.mxu0 0.0
        %1817 = vmatpush1.msra.mxu0 0.0
        %1818 = vmatprep.subr.mxu0 0.0
        %1819 = vmatpush1.msra.mxu0 0.0
        %1820 = vmatprep.mubr.f32.mxu0 0.0
        %1821 = vmatmul.mubr.f32.gmra.mrb[0].mxu0 %v1733
        %v1822 = vpop.f32.mrb[0].mxu0
        %v1823 = vadd.f32 0.0, %v1822
        %v1824 = vpop.f32.mrb[0].mxu0
        %1825 = vmatprep.mubr.f32.mxu0 0.0
        %1826 = vmatmul.mubr.f32.gmra.mrb[0].mxu0 %v1736
        %v1827 = vpop.f32.mrb[0].mxu0
        %v1828 = vadd.f32 0.0, %v1827
        %v1829 = vpop.f32.mrb[0].mxu0
        %1830 = vmatprep.mubr.f32.mxu0 0.0
        %1831 = vmatmul.mubr.f32.gmra.mrb[0].mxu0 %v1739
        %v1832 = vpop.f32.mrb[0].mxu0
        %v1833 = vadd.f32 0.0, %v1832
        %v1834 = vpop.f32.mrb[0].mxu0
        %1835 = vmatprep.mubr.f32.mxu0 0.0
        %1836 = vmatmul.mubr.f32.gmra.mrb[0].mxu0 %v1742
        %v1837 = vpop.f32.mrb[0].mxu0
        %v1838 = vadd.f32 0.0, %v1837
        %v1839 = vpop.f32.mrb[0].mxu0
        %1840 = vmatprep.mubr.f32.mxu0 0.0
        %1841 = vmatmul.mubr.f32.gmra.mrb[0].mxu0 %v1745
        %v1842 = vpop.f32.mrb[0].mxu0
        %v1843 = vadd.f32 0.0, %v1842
        %v1844 = vpop.f32.mrb[0].mxu0
        %1845 = vmatprep.mubr.f32.mxu0 0.0
        %1846 = vmatmul.mubr.f32.gmra.mrb[0].mxu0 %v1748
        %v1847 = vpop.f32.mrb[0].mxu0
        %v1848 = vadd.f32 0.0, %v1847
        %v1849 = vpop.f32.mrb[0].mxu0
        %1850 = vmatprep.mubr.f32.mxu0 0.0
        %1851 = vmatmul.mubr.f32.gmra.mrb[0].mxu0 %v1751
        %v1852 = vpop.f32.mrb[0].mxu0
        %v1853 = vadd.f32 0.0, %v1852
        %v1854 = vpop.f32.mrb[0].mxu0
        %1855 = vmatprep.mubr.f32.mxu0 0.0
        %1856 = vmatmul.mubr.f32.gmra.mrb[0].mxu0 %v1754
        %v1857 = vpop.f32.mrb[0].mxu0
        %v1858 = vadd.f32 0.0, %v1857
        %v1859 = vpop.f32.mrb[0].mxu0
        %1860 = vdwg.mxu0
        %v1861 = vld [vmem:[%s12] sm:$0xff]
        %v1862 = vld [vmem:[%s12 + $0x8] sm:$0xff]
        %v1863 = vld [vmem:[%s12 + $0x10] sm:$0xff]
        %v1864 = vld [vmem:[%s12 + $0x18] sm:$0xff]
        %v1866 = vsel %vm961, %v1722, 0
        %v1869 = vsel %vm961, %v1723, 0
        %1871 = vmatprep.subr.mxu0 0.0
        %1872 = vmatpush1.msra.mxu0 %v1861
        %1873 = vmatprep.subr.mxu0 0.0
        %1874 = vmatpush1.msra.mxu0 %v1862
        %1875 = vmatprep.subr.mxu0 0.0
        %1876 = vmatpush1.msra.mxu0 %v1863
        %1877 = vmatprep.subr.mxu0 0.0
        %1878 = vmatpush1.msra.mxu0 %v1864
        %1879 = vmatprep.subr.mxu0 0.0
        %1880 = vmatpush1.msra.mxu0 0.0
        %1881 = vmatprep.subr.mxu0 0.0
        %1882 = vmatpush1.msra.mxu0 0.0
        %1883 = vmatprep.subr.mxu0 0.0
        %1884 = vmatpush1.msra.mxu0 0.0
        %1885 = vmatprep.subr.mxu0 0.0
        %1886 = vmatpush1.msra.mxu0 0.0
        %1887 = vmatprep.subr.mxu0 0.0
        %1888 = vmatpush1.msra.mxu0 0.0
        %1889 = vmatprep.subr.mxu0 0.0
        %1890 = vmatpush1.msra.mxu0 0.0
        %1891 = vmatprep.subr.mxu0 0.0
        %1892 = vmatpush1.msra.mxu0 0.0
        %1893 = vmatprep.subr.mxu0 0.0
        %1894 = vmatpush1.msra.mxu0 0.0
        %1895 = vmatprep.subr.mxu0 0.0
        %1896 = vmatpush1.msra.mxu0 0.0
        %1897 = vmatprep.subr.mxu0 0.0
        %1898 = vmatpush1.msra.mxu0 0.0
        %1899 = vmatprep.subr.mxu0 0.0
        %1900 = vmatpush1.msra.mxu0 0.0
        %1901 = vmatprep.subr.mxu0 0.0
        %1902 = vmatpush1.msra.mxu0 0.0
        %1903 = vmatprep.subr.mxu0 0.0
        %1904 = vmatpush1.msra.mxu0 0.0
        %1905 = vmatprep.subr.mxu0 0.0
        %1906 = vmatpush1.msra.mxu0 0.0
        %1907 = vmatprep.subr.mxu0 0.0
        %1908 = vmatpush1.msra.mxu0 0.0
        %1909 = vmatprep.subr.mxu0 0.0
        %1910 = vmatpush1.msra.mxu0 0.0
        %1911 = vmatprep.subr.mxu0 0.0
        %1912 = vmatpush1.msra.mxu0 0.0
        %1913 = vmatprep.subr.mxu0 0.0
        %1914 = vmatpush1.msra.mxu0 0.0
        %1915 = vmatprep.subr.mxu0 0.0
        %1916 = vmatpush1.msra.mxu0 0.0
        %1917 = vmatprep.subr.mxu0 0.0
        %1918 = vmatpush1.msra.mxu0 0.0
        %1919 = vmatprep.subr.mxu0 0.0
        %1920 = vmatpush1.msra.mxu0 0.0
        %1921 = vmatprep.subr.mxu0 0.0
        %1922 = vmatpush1.msra.mxu0 0.0
        %1923 = vmatprep.subr.mxu0 0.0
        %1924 = vmatpush1.msra.mxu0 0.0
        %1925 = vmatprep.subr.mxu0 0.0
        %1926 = vmatpush1.msra.mxu0 0.0
        %1927 = vmatprep.subr.mxu0 0.0
        %1928 = vmatpush1.msra.mxu0 0.0
        %1929 = vmatprep.subr.mxu0 0.0
        %1930 = vmatpush1.msra.mxu0 0.0
        %1931 = vmatprep.subr.mxu0 0.0
        %1932 = vmatpush1.msra.mxu0 0.0
        %1933 = vmatprep.subr.mxu0 0.0
        %1934 = vmatpush1.msra.mxu0 0.0
        %1935 = vmatprep.mubr.f32.mxu0 0.0
        %1936 = vmatmul.mubr.f32.gmra.mrb[0].mxu0 %v1866
        %v1937 = vpop.f32.mrb[0].mxu0
        %v1938 = vadd.f32 0.0, %v1937
        %v1939 = vpop.f32.mrb[0].mxu0
        %1940 = vmatprep.mubr.f32.mxu0 0.0
        %1941 = vmatmul.mubr.f32.gmra.mrb[0].mxu0 %v1869
        %v1942 = vpop.f32.mrb[0].mxu0
        %v1943 = vadd.f32 0.0, %v1942
        %v1944 = vpop.f32.mrb[0].mxu0
        %1945 = vdwg.mxu0
        %v1946 = vld [vmem:[%s13] sm:$0xff]
        %v1947 = vld [vmem:[%s13 + $0x8] sm:$0xff]
        %v1948 = vld [vmem:[%s13 + $0x10] sm:$0xff]
        %v1949 = vld [vmem:[%s13 + $0x18] sm:$0xff]
        %v1950 = vld [vmem:[%s13 + $0x20] sm:$0xff]
        %v1951 = vld [vmem:[%s13 + $0x28] sm:$0xff]
        %v1952 = vld [vmem:[%s13 + $0x30] sm:$0xff]
        %v1953 = vld [vmem:[%s13 + $0x38] sm:$0xff]
        %v1954 = vld [vmem:[%s13 + $0x40] sm:$0xff]
        %v1955 = vld [vmem:[%s13 + $0x48] sm:$0xff]
        %v1956 = vld [vmem:[%s13 + $0x50] sm:$0xff]
        %v1957 = vld [vmem:[%s13 + $0x58] sm:$0xff]
        %v1958 = vld [vmem:[%s13 + $0x60] sm:$0xff]
        %v1959 = vld [vmem:[%s13 + $0x68] sm:$0xff]
        %v1960 = vld [vmem:[%s13 + $0x70] sm:$0xff]
        %v1961 = vld [vmem:[%s13 + $0x78] sm:$0xff]
        %v1962 = vmul.f32 %v1938, %v1946
        %v1963 = vmul.f32 %v1943, %v1947
        %v1964 = vmul.f32 %v1938, %v1948
        %v1965 = vmul.f32 %v1943, %v1949
        %v1966 = vmul.f32 %v1938, %v1950
        %v1967 = vmul.f32 %v1943, %v1951
        %v1968 = vmul.f32 %v1938, %v1952
        %v1969 = vmul.f32 %v1943, %v1953
        %v1970 = vmul.f32 %v1938, %v1954
        %v1971 = vmul.f32 %v1943, %v1955
        %v1972 = vmul.f32 %v1938, %v1956
        %v1973 = vmul.f32 %v1943, %v1957
        %v1974 = vmul.f32 %v1938, %v1958
        %v1975 = vmul.f32 %v1943, %v1959
        %v1976 = vmul.f32 %v1938, %v1960
        %v1977 = vmul.f32 %v1943, %v1961
        %1994 = vrot.lane.b32.xlu0 %v1946, 64
        %v1995 = vpop.permute.xlu0 %1994
        %1996 = vrot.lane.b32.xlu0 %v1947, 64
        %v1997 = vpop.permute.xlu0 %1996
        %1998 = vrot.lane.b32.xlu0 %v1948, 64
        %v1999 = vpop.permute.xlu0 %1998
        %2000 = vrot.lane.b32.xlu0 %v1949, 64
        %v2001 = vpop.permute.xlu0 %2000
        %2002 = vrot.lane.b32.xlu0 %v1950, 64
        %v2003 = vpop.permute.xlu0 %2002
        %2004 = vrot.lane.b32.xlu0 %v1951, 64
        %v2005 = vpop.permute.xlu0 %2004
        %2006 = vrot.lane.b32.xlu0 %v1952, 64
        %v2007 = vpop.permute.xlu0 %2006
        %2008 = vrot.lane.b32.xlu0 %v1953, 64
        %v2009 = vpop.permute.xlu0 %2008
        %2010 = vrot.lane.b32.xlu0 %v1954, 64
        %v2011 = vpop.permute.xlu0 %2010
        %2012 = vrot.lane.b32.xlu0 %v1955, 64
        %v2013 = vpop.permute.xlu0 %2012
        %2014 = vrot.lane.b32.xlu0 %v1956, 64
        %v2015 = vpop.permute.xlu0 %2014
        %2016 = vrot.lane.b32.xlu0 %v1957, 64
        %v2017 = vpop.permute.xlu0 %2016
        %2018 = vrot.lane.b32.xlu0 %v1958, 64
        %v2019 = vpop.permute.xlu0 %2018
        %2020 = vrot.lane.b32.xlu0 %v1959, 64
        %v2021 = vpop.permute.xlu0 %2020
        %2022 = vrot.lane.b32.xlu0 %v1960, 64
        %v2023 = vpop.permute.xlu0 %2022
        %2024 = vrot.lane.b32.xlu0 %v1961, 64
        %v2025 = vpop.permute.xlu0 %2024
        %v2042 = vmul.f32 %v1938, %v1995
        %v2043 = vmul.f32 %v1943, %v1997
        %v2044 = vmul.f32 %v1938, %v1999
        %v2045 = vmul.f32 %v1943, %v2001
        %v2046 = vmul.f32 %v1938, %v2003
        %v2047 = vmul.f32 %v1943, %v2005
        %v2048 = vmul.f32 %v1938, %v2007
        %v2049 = vmul.f32 %v1943, %v2009
        %v2050 = vmul.f32 %v1938, %v2011
        %v2051 = vmul.f32 %v1943, %v2013
        %v2052 = vmul.f32 %v1938, %v2015
        %v2053 = vmul.f32 %v1943, %v2017
        %v2054 = vmul.f32 %v1938, %v2019
        %v2055 = vmul.f32 %v1943, %v2021
        %v2056 = vmul.f32 %v1938, %v2023
        %v2057 = vmul.f32 %v1943, %v2025
        %v2059 = vsel %vm793, %v1823, 0
        %v2062 = vsel %vm793, %v1828, 0
        %v2065 = vsel %vm793, %v1833, 0
        %v2068 = vsel %vm793, %v1838, 0
        %v2071 = vsel %vm793, %v1843, 0
        %v2074 = vsel %vm793, %v1848, 0
        %v2077 = vsel %vm793, %v1853, 0
        %v2080 = vsel %vm793, %v1858, 0
        %v2083 = vsel %vm793, %v1962, 0
        %v2086 = vsel %vm793, %v1963, 0
        %v2089 = vsel %vm793, %v1964, 0
        %v2092 = vsel %vm793, %v1965, 0
        %v2095 = vsel %vm793, %v1966, 0
        %v2098 = vsel %vm793, %v1967, 0
        %v2101 = vsel %vm793, %v1968, 0
        %v2104 = vsel %vm793, %v1969, 0
        %v2107 = vsel %vm793, %v1970, 0
        %v2110 = vsel %vm793, %v1971, 0
        %v2113 = vsel %vm793, %v1972, 0
        %v2116 = vsel %vm793, %v1973, 0
        %v2119 = vsel %vm793, %v1974, 0
        %v2122 = vsel %vm793, %v1975, 0
        %v2125 = vsel %vm793, %v1976, 0
        %v2128 = vsel %vm793, %v1977, 0
        %2130 = vmatprep.subr.mxu0 0.0
        %2131 = vmatpush1.xpose.msra.mxu0 %v2083
        %2132 = vmatprep.subr.mxu0 0.0
        %2133 = vmatpush1.xpose.msra.mxu0 %v2086
        %2134 = vmatprep.subr.mxu0 0.0
        %2135 = vmatpush1.xpose.msra.mxu0 %v2089
        %2136 = vmatprep.subr.mxu0 0.0
        %2137 = vmatpush1.xpose.msra.mxu0 %v2092
        %2138 = vmatprep.subr.mxu0 0.0
        %2139 = vmatpush1.xpose.msra.mxu0 %v2095
        %2140 = vmatprep.subr.mxu0 0.0
        %2141 = vmatpush1.xpose.msra.mxu0 %v2098
        %2142 = vmatprep.subr.mxu0 0.0
        %2143 = vmatpush1.xpose.msra.mxu0 %v2101
        %2144 = vmatprep.subr.mxu0 0.0
        %2145 = vmatpush1.xpose.msra.mxu0 %v2104
        %2146 = vmatprep.subr.mxu0 0.0
        %2147 = vmatpush1.xpose.msra.mxu0 %v2107
        %2148 = vmatprep.subr.mxu0 0.0
        %2149 = vmatpush1.xpose.msra.mxu0 %v2110
        %2150 = vmatprep.subr.mxu0 0.0
        %2151 = vmatpush1.xpose.msra.mxu0 %v2113
        %2152 = vmatprep.subr.mxu0 0.0
        %2153 = vmatpush1.xpose.msra.mxu0 %v2116
        %2154 = vmatprep.subr.mxu0 0.0
        %2155 = vmatpush1.xpose.msra.mxu0 %v2119
        %2156 = vmatprep.subr.mxu0 0.0
        %2157 = vmatpush1.xpose.msra.mxu0 %v2122
        %2158 = vmatprep.subr.mxu0 0.0
        %2159 = vmatpush1.xpose.msra.mxu0 %v2125
        %2160 = vmatprep.subr.mxu0 0.0
        %2161 = vmatpush1.xpose.msra.mxu0 %v2128
        %2162 = vmatprep.subr.mxu0 0.0
        %2163 = vmatpush1.xpose.msra.mxu0 0.0
        %2164 = vmatprep.subr.mxu0 0.0
        %2165 = vmatpush1.xpose.msra.mxu0 0.0
        %2166 = vmatprep.subr.mxu0 0.0
        %2167 = vmatpush1.xpose.msra.mxu0 0.0
        %2168 = vmatprep.subr.mxu0 0.0
        %2169 = vmatpush1.xpose.msra.mxu0 0.0
        %2170 = vmatprep.subr.mxu0 0.0
        %2171 = vmatpush1.xpose.msra.mxu0 0.0
        %2172 = vmatprep.subr.mxu0 0.0
        %2173 = vmatpush1.xpose.msra.mxu0 0.0
        %2174 = vmatprep.subr.mxu0 0.0
        %2175 = vmatpush1.xpose.msra.mxu0 0.0
        %2176 = vmatprep.subr.mxu0 0.0
        %2177 = vmatpush1.xpose.msra.mxu0 0.0
        %2178 = vmatprep.subr.mxu0 0.0
        %2179 = vmatpush1.xpose.msra.mxu0 0.0
        %2180 = vmatprep.subr.mxu0 0.0
        %2181 = vmatpush1.xpose.msra.mxu0 0.0
        %2182 = vmatprep.subr.mxu0 0.0
        %2183 = vmatpush1.xpose.msra.mxu0 0.0
        %2184 = vmatprep.subr.mxu0 0.0
        %2185 = vmatpush1.xpose.msra.mxu0 0.0
        %2186 = vmatprep.subr.mxu0 0.0
        %2187 = vmatpush1.xpose.msra.mxu0 0.0
        %2188 = vmatprep.subr.mxu0 0.0
        %2189 = vmatpush1.xpose.msra.mxu0 0.0
        %2190 = vmatprep.subr.mxu0 0.0
        %2191 = vmatpush1.xpose.msra.mxu0 0.0
        %2192 = vmatprep.subr.mxu0 0.0
        %2193 = vmatpush1.xpose.msra.mxu0 0.0
        %2194 = vmatprep.mubr.f32.mxu0 0.0
        %2195 = vmatmul.mubr.f32.gmra.mrb[0].mxu0 %v2059
        %v2196 = vpop.f32.mrb[0].mxu0
        %v2197 = vadd.f32 0.0, %v2196
        %v2198 = vpop.f32.mrb[0].mxu0
        %2199 = vmatprep.mubr.f32.mxu0 0.0
        %2200 = vmatmul.mubr.f32.gmra.mrb[0].mxu0 %v2062
        %v2201 = vpop.f32.mrb[0].mxu0
        %v2202 = vadd.f32 0.0, %v2201
        %v2203 = vpop.f32.mrb[0].mxu0
        %2204 = vmatprep.mubr.f32.mxu0 0.0
        %2205 = vmatmul.mubr.f32.gmra.mrb[0].mxu0 %v2065
        %v2206 = vpop.f32.mrb[0].mxu0
        %v2207 = vadd.f32 0.0, %v2206
        %v2208 = vpop.f32.mrb[0].mxu0
        %2209 = vmatprep.mubr.f32.mxu0 0.0
        %2210 = vmatmul.mubr.f32.gmra.mrb[0].mxu0 %v2068
        %v2211 = vpop.f32.mrb[0].mxu0
        %v2212 = vadd.f32 0.0, %v2211
        %v2213 = vpop.f32.mrb[0].mxu0
        %2214 = vmatprep.mubr.f32.mxu0 0.0
        %2215 = vmatmul.mubr.f32.gmra.mrb[0].mxu0 %v2071
        %v2216 = vpop.f32.mrb[0].mxu0
        %v2217 = vadd.f32 0.0, %v2216
        %v2218 = vpop.f32.mrb[0].mxu0
        %2219 = vmatprep.mubr.f32.mxu0 0.0
        %2220 = vmatmul.mubr.f32.gmra.mrb[0].mxu0 %v2074
        %v2221 = vpop.f32.mrb[0].mxu0
        %v2222 = vadd.f32 0.0, %v2221
        %v2223 = vpop.f32.mrb[0].mxu0
        %2224 = vmatprep.mubr.f32.mxu0 0.0
        %2225 = vmatmul.mubr.f32.gmra.mrb[0].mxu0 %v2077
        %v2226 = vpop.f32.mrb[0].mxu0
        %v2227 = vadd.f32 0.0, %v2226
        %v2228 = vpop.f32.mrb[0].mxu0
        %2229 = vmatprep.mubr.f32.mxu0 0.0
        %2230 = vmatmul.mubr.f32.gmra.mrb[0].mxu0 %v2080
        %v2231 = vpop.f32.mrb[0].mxu0
        %v2232 = vadd.f32 0.0, %v2231
        %v2233 = vpop.f32.mrb[0].mxu0
        %2234 = vdwg.mxu0
        %v2235 = vmul.f32 %v2197, 0.35355338
        %v2236 = vmul.f32 %v2202, 0.35355338
        %v2237 = vmul.f32 %v2207, 0.35355338
        %v2238 = vmul.f32 %v2212, 0.35355338
        %v2239 = vmul.f32 %v2217, 0.35355338
        %v2240 = vmul.f32 %v2222, 0.35355338
        %v2241 = vmul.f32 %v2227, 0.35355338
        %v2242 = vmul.f32 %v2232, 0.35355338
        %vm2243 = vcmask 130048
        %v2244 = vsel %vm2243, %v2235, -inf
        %2245 = vmax.xlane.f32.xlu0 %v2244
        %v2246 = vpop.xlane.xlu0 %2245
        %v2247 = vsel %vm2243, %v2236, -inf
        %2248 = vmax.xlane.f32.xlu0 %v2247
        %v2249 = vpop.xlane.xlu0 %2248
        %v2250 = vsel %vm2243, %v2237, -inf
        %2251 = vmax.xlane.f32.xlu0 %v2250
        %v2252 = vpop.xlane.xlu0 %2251
        %v2253 = vsel %vm2243, %v2238, -inf
        %2254 = vmax.xlane.f32.xlu0 %v2253
        %v2255 = vpop.xlane.xlu0 %2254
        %v2256 = vsel %vm2243, %v2239, -inf
        %2257 = vmax.xlane.f32.xlu0 %v2256
        %v2258 = vpop.xlane.xlu0 %2257
        %v2259 = vsel %vm2243, %v2240, -inf
        %2260 = vmax.xlane.f32.xlu0 %v2259
        %v2261 = vpop.xlane.xlu0 %2260
        %v2262 = vsel %vm2243, %v2241, -inf
        %2263 = vmax.xlane.f32.xlu0 %v2262
        %v2264 = vpop.xlane.xlu0 %2263
        %v2265 = vsel %vm2243, %v2242, -inf
        %2266 = vmax.xlane.f32.xlu0 %v2265
        %v2267 = vpop.xlane.xlu0 %2266
        %v2268 = vsub.f32 %v2235, %v2246
        %v2269 = vsub.f32 %v2236, %v2249
        %v2270 = vsub.f32 %v2237, %v2252
        %v2271 = vsub.f32 %v2238, %v2255
        %v2272 = vsub.f32 %v2239, %v2258
        %v2273 = vsub.f32 %v2240, %v2261
        %v2274 = vsub.f32 %v2241, %v2264
        %v2275 = vsub.f32 %v2242, %v2267
        %v2276 = vmul.f32 %v2268, 1.442695
        %v2277 = vpow.pop %v2276
        %v2278 = vmul.f32 %v2269, 1.442695
        %v2279 = vpow.pop %v2278
        %v2280 = vmul.f32 %v2270, 1.442695
        %v2281 = vpow.pop %v2280
        %v2282 = vmul.f32 %v2271, 1.442695
        %v2283 = vpow.pop %v2282
        %v2284 = vmul.f32 %v2272, 1.442695
        %v2285 = vpow.pop %v2284
        %v2286 = vmul.f32 %v2273, 1.442695
        %v2287 = vpow.pop %v2286
        %v2288 = vmul.f32 %v2274, 1.442695
        %v2289 = vpow.pop %v2288
        %v2290 = vmul.f32 %v2275, 1.442695
        %v2291 = vpow.pop %v2290
        %v2292 = vsel %vm2243, %v2277, 0.0
        %2293 = vadd.xlane.f32.xlu0 %v2292
        %v2294 = vpop.xlane.xlu0 %2293
        %v2295 = vsel %vm2243, %v2279, 0.0
        %2296 = vadd.xlane.f32.xlu0 %v2295
        %v2297 = vpop.xlane.xlu0 %2296
        %v2298 = vsel %vm2243, %v2281, 0.0
        %2299 = vadd.xlane.f32.xlu0 %v2298
        %v2300 = vpop.xlane.xlu0 %2299
        %v2301 = vsel %vm2243, %v2283, 0.0
        %2302 = vadd.xlane.f32.xlu0 %v2301
        %v2303 = vpop.xlane.xlu0 %2302
        %v2304 = vsel %vm2243, %v2285, 0.0
        %2305 = vadd.xlane.f32.xlu0 %v2304
        %v2306 = vpop.xlane.xlu0 %2305
        %v2307 = vsel %vm2243, %v2287, 0.0
        %2308 = vadd.xlane.f32.xlu0 %v2307
        %v2309 = vpop.xlane.xlu0 %2308
        %v2310 = vsel %vm2243, %v2289, 0.0
        %2311 = vadd.xlane.f32.xlu0 %v2310
        %v2312 = vpop.xlane.xlu0 %2311
        %v2313 = vsel %vm2243, %v2291, 0.0
        %2314 = vadd.xlane.f32.xlu0 %v2313
        %v2315 = vpop.xlane.xlu0 %2314
        %v2316 = vrcp.pop %v2294
        %v2317 = vmul.f32 %v2277, %v2316
        %v2318 = vrcp.pop %v2297
        %v2319 = vmul.f32 %v2279, %v2318
        %v2320 = vrcp.pop %v2300
        %v2321 = vmul.f32 %v2281, %v2320
        %v2322 = vrcp.pop %v2303
        %v2323 = vmul.f32 %v2283, %v2322
        %v2324 = vrcp.pop %v2306
        %v2325 = vmul.f32 %v2285, %v2324
        %v2326 = vrcp.pop %v2309
        %v2327 = vmul.f32 %v2287, %v2326
        %v2328 = vrcp.pop %v2312
        %v2329 = vmul.f32 %v2289, %v2328
        %v2330 = vrcp.pop %v2315
        %v2331 = vmul.f32 %v2291, %v2330
        %2332 = vst.msk [vmem:[#allocation2] sm:$0xff] %vm2243, %v2317
        %2333 = vst.msk [vmem:[#allocation2 + $0x8] sm:$0xff] %vm2243, %v2319
        %2334 = vst.msk [vmem:[#allocation2 + $0x10] sm:$0xff] %vm2243, %v2321
        %2335 = vst.msk [vmem:[#allocation2 + $0x18] sm:$0xff] %vm2243, %v2323
        %2336 = vst.msk [vmem:[#allocation2 + $0x20] sm:$0xff] %vm2243, %v2325
        %2337 = vst.msk [vmem:[#allocation2 + $0x28] sm:$0xff] %vm2243, %v2327
        %2338 = vst.msk [vmem:[#allocation2 + $0x30] sm:$0xff] %vm2243, %v2329
        %2339 = vst.msk [vmem:[#allocation2 + $0x38] sm:$0xff] %vm2243, %v2331
        %vm2340 = vcmask 261248
        %v2341 = vsel %vm2340, %v2235, -inf
        %2342 = vmax.xlane.f32.xlu0 %v2341
        %v2343 = vpop.xlane.xlu0 %2342
        %v2344 = vsel %vm2340, %v2236, -inf
        %2345 = vmax.xlane.f32.xlu0 %v2344
        %v2346 = vpop.xlane.xlu0 %2345
        %v2347 = vsel %vm2340, %v2237, -inf
        %2348 = vmax.xlane.f32.xlu0 %v2347
        %v2349 = vpop.xlane.xlu0 %2348
        %v2350 = vsel %vm2340, %v2238, -inf
        %2351 = vmax.xlane.f32.xlu0 %v2350
        %v2352 = vpop.xlane.xlu0 %2351
        %v2353 = vsel %vm2340, %v2239, -inf
        %2354 = vmax.xlane.f32.xlu0 %v2353
        %v2355 = vpop.xlane.xlu0 %2354
        %v2356 = vsel %vm2340, %v2240, -inf
        %2357 = vmax.xlane.f32.xlu0 %v2356
        %v2358 = vpop.xlane.xlu0 %2357
        %v2359 = vsel %vm2340, %v2241, -inf
        %2360 = vmax.xlane.f32.xlu0 %v2359
        %v2361 = vpop.xlane.xlu0 %2360
        %v2362 = vsel %vm2340, %v2242, -inf
        %2363 = vmax.xlane.f32.xlu0 %v2362
        %v2364 = vpop.xlane.xlu0 %2363
        %v2365 = vsub.f32 %v2235, %v2343
        %v2366 = vsub.f32 %v2236, %v2346
        %v2367 = vsub.f32 %v2237, %v2349
        %v2368 = vsub.f32 %v2238, %v2352
        %v2369 = vsub.f32 %v2239, %v2355
        %v2370 = vsub.f32 %v2240, %v2358
        %v2371 = vsub.f32 %v2241, %v2361
        %v2372 = vsub.f32 %v2242, %v2364
        %v2373 = vmul.f32 %v2365, 1.442695
        %v2374 = vpow.pop %v2373
        %v2375 = vmul.f32 %v2366, 1.442695
        %v2376 = vpow.pop %v2375
        %v2377 = vmul.f32 %v2367, 1.442695
        %v2378 = vpow.pop %v2377
        %v2379 = vmul.f32 %v2368, 1.442695
        %v2380 = vpow.pop %v2379
        %v2381 = vmul.f32 %v2369, 1.442695
        %v2382 = vpow.pop %v2381
        %v2383 = vmul.f32 %v2370, 1.442695
        %v2384 = vpow.pop %v2383
        %v2385 = vmul.f32 %v2371, 1.442695
        %v2386 = vpow.pop %v2385
        %v2387 = vmul.f32 %v2372, 1.442695
        %v2388 = vpow.pop %v2387
        %2397 = vrot.lane.b32.xlu0 %v2374, 112
        %v2398 = vpop.permute.xlu0 %2397
        %2399 = vrot.lane.b32.xlu0 %v2376, 112
        %v2400 = vpop.permute.xlu0 %2399
        %2401 = vrot.lane.b32.xlu0 %v2378, 112
        %v2402 = vpop.permute.xlu0 %2401
        %2403 = vrot.lane.b32.xlu0 %v2380, 112
        %v2404 = vpop.permute.xlu0 %2403
        %2405 = vrot.lane.b32.xlu0 %v2382, 112
        %v2406 = vpop.permute.xlu0 %2405
        %2407 = vrot.lane.b32.xlu0 %v2384, 112
        %v2408 = vpop.permute.xlu0 %2407
        %2409 = vrot.lane.b32.xlu0 %v2386, 112
        %v2410 = vpop.permute.xlu0 %2409
        %2411 = vrot.lane.b32.xlu0 %v2388, 112
        %v2412 = vpop.permute.xlu0 %2411
        %v2421 = vsel %vm2243, %v2398, 0.0
        %2422 = vadd.xlane.f32.xlu0 %v2421
        %v2423 = vpop.xlane.xlu0 %2422
        %v2424 = vsel %vm2243, %v2400, 0.0
        %2425 = vadd.xlane.f32.xlu0 %v2424
        %v2426 = vpop.xlane.xlu0 %2425
        %v2427 = vsel %vm2243, %v2402, 0.0
        %2428 = vadd.xlane.f32.xlu0 %v2427
        %v2429 = vpop.xlane.xlu0 %2428
        %v2430 = vsel %vm2243, %v2404, 0.0
        %2431 = vadd.xlane.f32.xlu0 %v2430
        %v2432 = vpop.xlane.xlu0 %2431
        %v2433 = vsel %vm2243, %v2406, 0.0
        %2434 = vadd.xlane.f32.xlu0 %v2433
        %v2435 = vpop.xlane.xlu0 %2434
        %v2436 = vsel %vm2243, %v2408, 0.0
        %2437 = vadd.xlane.f32.xlu0 %v2436
        %v2438 = vpop.xlane.xlu0 %2437
        %v2439 = vsel %vm2243, %v2410, 0.0
        %2440 = vadd.xlane.f32.xlu0 %v2439
        %v2441 = vpop.xlane.xlu0 %2440
        %v2442 = vsel %vm2243, %v2412, 0.0
        %2443 = vadd.xlane.f32.xlu0 %v2442
        %v2444 = vpop.xlane.xlu0 %2443
        %v2445 = vrcp.pop %v2423
        %v2446 = vmul.f32 %v2374, %v2445
        %v2447 = vrcp.pop %v2426
        %v2448 = vmul.f32 %v2376, %v2447
        %v2449 = vrcp.pop %v2429
        %v2450 = vmul.f32 %v2378, %v2449
        %v2451 = vrcp.pop %v2432
        %v2452 = vmul.f32 %v2380, %v2451
        %v2453 = vrcp.pop %v2435
        %v2454 = vmul.f32 %v2382, %v2453
        %v2455 = vrcp.pop %v2438
        %v2456 = vmul.f32 %v2384, %v2455
        %v2457 = vrcp.pop %v2441
        %v2458 = vmul.f32 %v2386, %v2457
        %v2459 = vrcp.pop %v2444
        %v2460 = vmul.f32 %v2388, %v2459
        %2461 = vst.msk [vmem:[#allocation2] sm:$0xff] %vm2340, %v2446
        %2462 = vst.msk [vmem:[#allocation2 + $0x8] sm:$0xff] %vm2340, %v2448
        %2463 = vst.msk [vmem:[#allocation2 + $0x10] sm:$0xff] %vm2340, %v2450
        %2464 = vst.msk [vmem:[#allocation2 + $0x18] sm:$0xff] %vm2340, %v2452
        %2465 = vst.msk [vmem:[#allocation2 + $0x20] sm:$0xff] %vm2340, %v2454
        %2466 = vst.msk [vmem:[#allocation2 + $0x28] sm:$0xff] %vm2340, %v2456
        %2467 = vst.msk [vmem:[#allocation2 + $0x30] sm:$0xff] %vm2340, %v2458
        %2468 = vst.msk [vmem:[#allocation2 + $0x38] sm:$0xff] %vm2340, %v2460
        %vm2469 = vcmask 392448
        %v2470 = vsel %vm2469, %v2235, -inf
        %2471 = vmax.xlane.f32.xlu0 %v2470
        %v2472 = vpop.xlane.xlu0 %2471
        %v2473 = vsel %vm2469, %v2236, -inf
        %2474 = vmax.xlane.f32.xlu0 %v2473
        %v2475 = vpop.xlane.xlu0 %2474
        %v2476 = vsel %vm2469, %v2237, -inf
        %2477 = vmax.xlane.f32.xlu0 %v2476
        %v2478 = vpop.xlane.xlu0 %2477
        %v2479 = vsel %vm2469, %v2238, -inf
        %2480 = vmax.xlane.f32.xlu0 %v2479
        %v2481 = vpop.xlane.xlu0 %2480
        %v2482 = vsel %vm2469, %v2239, -inf
        %2483 = vmax.xlane.f32.xlu0 %v2482
        %v2484 = vpop.xlane.xlu0 %2483
        %v2485 = vsel %vm2469, %v2240, -inf
        %2486 = vmax.xlane.f32.xlu0 %v2485
        %v2487 = vpop.xlane.xlu0 %2486
        %v2488 = vsel %vm2469, %v2241, -inf
        %2489 = vmax.xlane.f32.xlu0 %v2488
        %v2490 = vpop.xlane.xlu0 %2489
        %v2491 = vsel %vm2469, %v2242, -inf
        %2492 = vmax.xlane.f32.xlu0 %v2491
        %v2493 = vpop.xlane.xlu0 %2492
        %v2494 = vsub.f32 %v2235, %v2472
        %v2495 = vsub.f32 %v2236, %v2475
        %v2496 = vsub.f32 %v2237, %v2478
        %v2497 = vsub.f32 %v2238, %v2481
        %v2498 = vsub.f32 %v2239, %v2484
        %v2499 = vsub.f32 %v2240, %v2487
        %v2500 = vsub.f32 %v2241, %v2490
        %v2501 = vsub.f32 %v2242, %v2493
        %v2502 = vmul.f32 %v2494, 1.442695
        %v2503 = vpow.pop %v2502
        %v2504 = vmul.f32 %v2495, 1.442695
        %v2505 = vpow.pop %v2504
        %v2506 = vmul.f32 %v2496, 1.442695
        %v2507 = vpow.pop %v2506
        %v2508 = vmul.f32 %v2497, 1.442695
        %v2509 = vpow.pop %v2508
        %v2510 = vmul.f32 %v2498, 1.442695
        %v2511 = vpow.pop %v2510
        %v2512 = vmul.f32 %v2499, 1.442695
        %v2513 = vpow.pop %v2512
        %v2514 = vmul.f32 %v2500, 1.442695
        %v2515 = vpow.pop %v2514
        %v2516 = vmul.f32 %v2501, 1.442695
        %v2517 = vpow.pop %v2516
        %2526 = vrot.lane.b32.xlu0 %v2503, 96
        %v2527 = vpop.permute.xlu0 %2526
        %2528 = vrot.lane.b32.xlu0 %v2505, 96
        %v2529 = vpop.permute.xlu0 %2528
        %2530 = vrot.lane.b32.xlu0 %v2507, 96
        %v2531 = vpop.permute.xlu0 %2530
        %2532 = vrot.lane.b32.xlu0 %v2509, 96
        %v2533 = vpop.permute.xlu0 %2532
        %2534 = vrot.lane.b32.xlu0 %v2511, 96
        %v2535 = vpop.permute.xlu0 %2534
        %2536 = vrot.lane.b32.xlu0 %v2513, 96
        %v2537 = vpop.permute.xlu0 %2536
        %2538 = vrot.lane.b32.xlu0 %v2515, 96
        %v2539 = vpop.permute.xlu0 %2538
        %2540 = vrot.lane.b32.xlu0 %v2517, 96
        %v2541 = vpop.permute.xlu0 %2540
        %v2550 = vsel %vm2243, %v2527, 0.0
        %2551 = vadd.xlane.f32.xlu0 %v2550
        %v2552 = vpop.xlane.xlu0 %2551
        %v2553 = vsel %vm2243, %v2529, 0.0
        %2554 = vadd.xlane.f32.xlu0 %v2553
        %v2555 = vpop.xlane.xlu0 %2554
        %v2556 = vsel %vm2243, %v2531, 0.0
        %2557 = vadd.xlane.f32.xlu0 %v2556
        %v2558 = vpop.xlane.xlu0 %2557
        %v2559 = vsel %vm2243, %v2533, 0.0
        %2560 = vadd.xlane.f32.xlu0 %v2559
        %v2561 = vpop.xlane.xlu0 %2560
        %v2562 = vsel %vm2243, %v2535, 0.0
        %2563 = vadd.xlane.f32.xlu0 %v2562
        %v2564 = vpop.xlane.xlu0 %2563
        %v2565 = vsel %vm2243, %v2537, 0.0
        %2566 = vadd.xlane.f32.xlu0 %v2565
        %v2567 = vpop.xlane.xlu0 %2566
        %v2568 = vsel %vm2243, %v2539, 0.0
        %2569 = vadd.xlane.f32.xlu0 %v2568
        %v2570 = vpop.xlane.xlu0 %2569
        %v2571 = vsel %vm2243, %v2541, 0.0
        %2572 = vadd.xlane.f32.xlu0 %v2571
        %v2573 = vpop.xlane.xlu0 %2572
        %v2574 = vrcp.pop %v2552
        %v2575 = vmul.f32 %v2503, %v2574
        %v2576 = vrcp.pop %v2555
        %v2577 = vmul.f32 %v2505, %v2576
        %v2578 = vrcp.pop %v2558
        %v2579 = vmul.f32 %v2507, %v2578
        %v2580 = vrcp.pop %v2561
        %v2581 = vmul.f32 %v2509, %v2580
        %v2582 = vrcp.pop %v2564
        %v2583 = vmul.f32 %v2511, %v2582
        %v2584 = vrcp.pop %v2567
        %v2585 = vmul.f32 %v2513, %v2584
        %v2586 = vrcp.pop %v2570
        %v2587 = vmul.f32 %v2515, %v2586
        %v2588 = vrcp.pop %v2573
        %v2589 = vmul.f32 %v2517, %v2588
        %2590 = vst.msk [vmem:[#allocation2] sm:$0xff] %vm2469, %v2575
        %2591 = vst.msk [vmem:[#allocation2 + $0x8] sm:$0xff] %vm2469, %v2577
        %2592 = vst.msk [vmem:[#allocation2 + $0x10] sm:$0xff] %vm2469, %v2579
        %2593 = vst.msk [vmem:[#allocation2 + $0x18] sm:$0xff] %vm2469, %v2581
        %2594 = vst.msk [vmem:[#allocation2 + $0x20] sm:$0xff] %vm2469, %v2583
        %2595 = vst.msk [vmem:[#allocation2 + $0x28] sm:$0xff] %vm2469, %v2585
        %2596 = vst.msk [vmem:[#allocation2 + $0x30] sm:$0xff] %vm2469, %v2587
        %2597 = vst.msk [vmem:[#allocation2 + $0x38] sm:$0xff] %vm2469, %v2589
        %vm2598 = vcmask 523648
        %v2599 = vsel %vm2598, %v2235, -inf
        %2600 = vmax.xlane.f32.xlu0 %v2599
        %v2601 = vpop.xlane.xlu0 %2600
        %v2602 = vsel %vm2598, %v2236, -inf
        %2603 = vmax.xlane.f32.xlu0 %v2602
        %v2604 = vpop.xlane.xlu0 %2603
        %v2605 = vsel %vm2598, %v2237, -inf
        %2606 = vmax.xlane.f32.xlu0 %v2605
        %v2607 = vpop.xlane.xlu0 %2606
        %v2608 = vsel %vm2598, %v2238, -inf
        %2609 = vmax.xlane.f32.xlu0 %v2608
        %v2610 = vpop.xlane.xlu0 %2609
        %v2611 = vsel %vm2598, %v2239, -inf
        %2612 = vmax.xlane.f32.xlu0 %v2611
        %v2613 = vpop.xlane.xlu0 %2612
        %v2614 = vsel %vm2598, %v2240, -inf
        %2615 = vmax.xlane.f32.xlu0 %v2614
        %v2616 = vpop.xlane.xlu0 %2615
        %v2617 = vsel %vm2598, %v2241, -inf
        %2618 = vmax.xlane.f32.xlu0 %v2617
        %v2619 = vpop.xlane.xlu0 %2618
        %v2620 = vsel %vm2598, %v2242, -inf
        %2621 = vmax.xlane.f32.xlu0 %v2620
        %v2622 = vpop.xlane.xlu0 %2621
        %v2623 = vsub.f32 %v2235, %v2601
        %v2624 = vsub.f32 %v2236, %v2604
        %v2625 = vsub.f32 %v2237, %v2607
        %v2626 = vsub.f32 %v2238, %v2610
        %v2627 = vsub.f32 %v2239, %v2613
        %v2628 = vsub.f32 %v2240, %v2616
        %v2629 = vsub.f32 %v2241, %v2619
        %v2630 = vsub.f32 %v2242, %v2622
        %v2631 = vmul.f32 %v2623, 1.442695
        %v2632 = vpow.pop %v2631
        %v2633 = vmul.f32 %v2624, 1.442695
        %v2634 = vpow.pop %v2633
        %v2635 = vmul.f32 %v2625, 1.442695
        %v2636 = vpow.pop %v2635
        %v2637 = vmul.f32 %v2626, 1.442695
        %v2638 = vpow.pop %v2637
        %v2639 = vmul.f32 %v2627, 1.442695
        %v2640 = vpow.pop %v2639
        %v2641 = vmul.f32 %v2628, 1.442695
        %v2642 = vpow.pop %v2641
        %v2643 = vmul.f32 %v2629, 1.442695
        %v2644 = vpow.pop %v2643
        %v2645 = vmul.f32 %v2630, 1.442695
        %v2646 = vpow.pop %v2645
        %2655 = vrot.lane.b32.xlu0 %v2632, 80
        %v2656 = vpop.permute.xlu0 %2655
        %2657 = vrot.lane.b32.xlu0 %v2634, 80
        %v2658 = vpop.permute.xlu0 %2657
        %2659 = vrot.lane.b32.xlu0 %v2636, 80
        %v2660 = vpop.permute.xlu0 %2659
        %2661 = vrot.lane.b32.xlu0 %v2638, 80
        %v2662 = vpop.permute.xlu0 %2661
        %2663 = vrot.lane.b32.xlu0 %v2640, 80
        %v2664 = vpop.permute.xlu0 %2663
        %2665 = vrot.lane.b32.xlu0 %v2642, 80
        %v2666 = vpop.permute.xlu0 %2665
        %2667 = vrot.lane.b32.xlu0 %v2644, 80
        %v2668 = vpop.permute.xlu0 %2667
        %2669 = vrot.lane.b32.xlu0 %v2646, 80
        %v2670 = vpop.permute.xlu0 %2669
        %v2679 = vsel %vm2243, %v2656, 0.0
        %2680 = vadd.xlane.f32.xlu0 %v2679
        %v2681 = vpop.xlane.xlu0 %2680
        %v2682 = vsel %vm2243, %v2658, 0.0
        %2683 = vadd.xlane.f32.xlu0 %v2682
        %v2684 = vpop.xlane.xlu0 %2683
        %v2685 = vsel %vm2243, %v2660, 0.0
        %2686 = vadd.xlane.f32.xlu0 %v2685
        %v2687 = vpop.xlane.xlu0 %2686
        %v2688 = vsel %vm2243, %v2662, 0.0
        %2689 = vadd.xlane.f32.xlu0 %v2688
        %v2690 = vpop.xlane.xlu0 %2689
        %v2691 = vsel %vm2243, %v2664, 0.0
        %2692 = vadd.xlane.f32.xlu0 %v2691
        %v2693 = vpop.xlane.xlu0 %2692
        %v2694 = vsel %vm2243, %v2666, 0.0
        %2695 = vadd.xlane.f32.xlu0 %v2694
        %v2696 = vpop.xlane.xlu0 %2695
        %v2697 = vsel %vm2243, %v2668, 0.0
        %2698 = vadd.xlane.f32.xlu0 %v2697
        %v2699 = vpop.xlane.xlu0 %2698
        %v2700 = vsel %vm2243, %v2670, 0.0
        %2701 = vadd.xlane.f32.xlu0 %v2700
        %v2702 = vpop.xlane.xlu0 %2701
        %v2703 = vrcp.pop %v2681
        %v2704 = vmul.f32 %v2632, %v2703
        %v2705 = vrcp.pop %v2684
        %v2706 = vmul.f32 %v2634, %v2705
        %v2707 = vrcp.pop %v2687
        %v2708 = vmul.f32 %v2636, %v2707
        %v2709 = vrcp.pop %v2690
        %v2710 = vmul.f32 %v2638, %v2709
        %v2711 = vrcp.pop %v2693
        %v2712 = vmul.f32 %v2640, %v2711
        %v2713 = vrcp.pop %v2696
        %v2714 = vmul.f32 %v2642, %v2713
        %v2715 = vrcp.pop %v2699
        %v2716 = vmul.f32 %v2644, %v2715
        %v2717 = vrcp.pop %v2702
        %v2718 = vmul.f32 %v2646, %v2717
        %2719 = vst.msk [vmem:[#allocation2] sm:$0xff] %vm2598, %v2704
        %2720 = vst.msk [vmem:[#allocation2 + $0x8] sm:$0xff] %vm2598, %v2706
        %2721 = vst.msk [vmem:[#allocation2 + $0x10] sm:$0xff] %vm2598, %v2708
        %2722 = vst.msk [vmem:[#allocation2 + $0x18] sm:$0xff] %vm2598, %v2710
        %2723 = vst.msk [vmem:[#allocation2 + $0x20] sm:$0xff] %vm2598, %v2712
        %2724 = vst.msk [vmem:[#allocation2 + $0x28] sm:$0xff] %vm2598, %v2714
        %2725 = vst.msk [vmem:[#allocation2 + $0x30] sm:$0xff] %vm2598, %v2716
        %2726 = vst.msk [vmem:[#allocation2 + $0x38] sm:$0xff] %vm2598, %v2718
        %vm2727 = vcmask 654848
        %v2728 = vsel %vm2727, %v2235, -inf
        %2729 = vmax.xlane.f32.xlu0 %v2728
        %v2730 = vpop.xlane.xlu0 %2729
        %v2731 = vsel %vm2727, %v2236, -inf
        %2732 = vmax.xlane.f32.xlu0 %v2731
        %v2733 = vpop.xlane.xlu0 %2732
        %v2734 = vsel %vm2727, %v2237, -inf
        %2735 = vmax.xlane.f32.xlu0 %v2734
        %v2736 = vpop.xlane.xlu0 %2735
        %v2737 = vsel %vm2727, %v2238, -inf
        %2738 = vmax.xlane.f32.xlu0 %v2737
        %v2739 = vpop.xlane.xlu0 %2738
        %v2740 = vsel %vm2727, %v2239, -inf
        %2741 = vmax.xlane.f32.xlu0 %v2740
        %v2742 = vpop.xlane.xlu0 %2741
        %v2743 = vsel %vm2727, %v2240, -inf
        %2744 = vmax.xlane.f32.xlu0 %v2743
        %v2745 = vpop.xlane.xlu0 %2744
        %v2746 = vsel %vm2727, %v2241, -inf
        %2747 = vmax.xlane.f32.xlu0 %v2746
        %v2748 = vpop.xlane.xlu0 %2747
        %v2749 = vsel %vm2727, %v2242, -inf
        %2750 = vmax.xlane.f32.xlu0 %v2749
        %v2751 = vpop.xlane.xlu0 %2750
        %v2752 = vsub.f32 %v2235, %v2730
        %v2753 = vsub.f32 %v2236, %v2733
        %v2754 = vsub.f32 %v2237, %v2736
        %v2755 = vsub.f32 %v2238, %v2739
        %v2756 = vsub.f32 %v2239, %v2742
        %v2757 = vsub.f32 %v2240, %v2745
        %v2758 = vsub.f32 %v2241, %v2748
        %v2759 = vsub.f32 %v2242, %v2751
        %v2760 = vmul.f32 %v2752, 1.442695
        %v2761 = vpow.pop %v2760
        %v2762 = vmul.f32 %v2753, 1.442695
        %v2763 = vpow.pop %v2762
        %v2764 = vmul.f32 %v2754, 1.442695
        %v2765 = vpow.pop %v2764
        %v2766 = vmul.f32 %v2755, 1.442695
        %v2767 = vpow.pop %v2766
        %v2768 = vmul.f32 %v2756, 1.442695
        %v2769 = vpow.pop %v2768
        %v2770 = vmul.f32 %v2757, 1.442695
        %v2771 = vpow.pop %v2770
        %v2772 = vmul.f32 %v2758, 1.442695
        %v2773 = vpow.pop %v2772
        %v2774 = vmul.f32 %v2759, 1.442695
        %v2775 = vpow.pop %v2774
        %2784 = vrot.lane.b32.xlu0 %v2761, 64
        %v2785 = vpop.permute.xlu0 %2784
        %2786 = vrot.lane.b32.xlu0 %v2763, 64
        %v2787 = vpop.permute.xlu0 %2786
        %2788 = vrot.lane.b32.xlu0 %v2765, 64
        %v2789 = vpop.permute.xlu0 %2788
        %2790 = vrot.lane.b32.xlu0 %v2767, 64
        %v2791 = vpop.permute.xlu0 %2790
        %2792 = vrot.lane.b32.xlu0 %v2769, 64
        %v2793 = vpop.permute.xlu0 %2792
        %2794 = vrot.lane.b32.xlu0 %v2771, 64
        %v2795 = vpop.permute.xlu0 %2794
        %2796 = vrot.lane.b32.xlu0 %v2773, 64
        %v2797 = vpop.permute.xlu0 %2796
        %2798 = vrot.lane.b32.xlu0 %v2775, 64
        %v2799 = vpop.permute.xlu0 %2798
        %v2808 = vsel %vm2243, %v2785, 0.0
        %2809 = vadd.xlane.f32.xlu0 %v2808
        %v2810 = vpop.xlane.xlu0 %2809
        %v2811 = vsel %vm2243, %v2787, 0.0
        %2812 = vadd.xlane.f32.xlu0 %v2811
        %v2813 = vpop.xlane.xlu0 %2812
        %v2814 = vsel %vm2243, %v2789, 0.0
        %2815 = vadd.xlane.f32.xlu0 %v2814
        %v2816 = vpop.xlane.xlu0 %2815
        %v2817 = vsel %vm2243, %v2791, 0.0
        %2818 = vadd.xlane.f32.xlu0 %v2817
        %v2819 = vpop.xlane.xlu0 %2818
        %v2820 = vsel %vm2243, %v2793, 0.0
        %2821 = vadd.xlane.f32.xlu0 %v2820
        %v2822 = vpop.xlane.xlu0 %2821
        %v2823 = vsel %vm2243, %v2795, 0.0
        %2824 = vadd.xlane.f32.xlu0 %v2823
        %v2825 = vpop.xlane.xlu0 %2824
        %v2826 = vsel %vm2243, %v2797, 0.0
        %2827 = vadd.xlane.f32.xlu0 %v2826
        %v2828 = vpop.xlane.xlu0 %2827
        %v2829 = vsel %vm2243, %v2799, 0.0
        %2830 = vadd.xlane.f32.xlu0 %v2829
        %v2831 = vpop.xlane.xlu0 %2830
        %v2832 = vrcp.pop %v2810
        %v2833 = vmul.f32 %v2761, %v2832
        %v2834 = vrcp.pop %v2813
        %v2835 = vmul.f32 %v2763, %v2834
        %v2836 = vrcp.pop %v2816
        %v2837 = vmul.f32 %v2765, %v2836
        %v2838 = vrcp.pop %v2819
        %v2839 = vmul.f32 %v2767, %v2838
        %v2840 = vrcp.pop %v2822
        %v2841 = vmul.f32 %v2769, %v2840
        %v2842 = vrcp.pop %v2825
        %v2843 = vmul.f32 %v2771, %v2842
        %v2844 = vrcp.pop %v2828
        %v2845 = vmul.f32 %v2773, %v2844
        %v2846 = vrcp.pop %v2831
        %v2847 = vmul.f32 %v2775, %v2846
        %2848 = vst.msk [vmem:[#allocation2] sm:$0xff] %vm2727, %v2833
        %2849 = vst.msk [vmem:[#allocation2 + $0x8] sm:$0xff] %vm2727, %v2835
        %2850 = vst.msk [vmem:[#allocation2 + $0x10] sm:$0xff] %vm2727, %v2837
        %2851 = vst.msk [vmem:[#allocation2 + $0x18] sm:$0xff] %vm2727, %v2839
        %2852 = vst.msk [vmem:[#allocation2 + $0x20] sm:$0xff] %vm2727, %v2841
        %2853 = vst.msk [vmem:[#allocation2 + $0x28] sm:$0xff] %vm2727, %v2843
        %2854 = vst.msk [vmem:[#allocation2 + $0x30] sm:$0xff] %vm2727, %v2845
        %2855 = vst.msk [vmem:[#allocation2 + $0x38] sm:$0xff] %vm2727, %v2847
        %vm2856 = vcmask 786048
        %v2857 = vsel %vm2856, %v2235, -inf
        %2858 = vmax.xlane.f32.xlu0 %v2857
        %v2859 = vpop.xlane.xlu0 %2858
        %v2860 = vsel %vm2856, %v2236, -inf
        %2861 = vmax.xlane.f32.xlu0 %v2860
        %v2862 = vpop.xlane.xlu0 %2861
        %v2863 = vsel %vm2856, %v2237, -inf
        %2864 = vmax.xlane.f32.xlu0 %v2863
        %v2865 = vpop.xlane.xlu0 %2864
        %v2866 = vsel %vm2856, %v2238, -inf
        %2867 = vmax.xlane.f32.xlu0 %v2866
        %v2868 = vpop.xlane.xlu0 %2867
        %v2869 = vsel %vm2856, %v2239, -inf
        %2870 = vmax.xlane.f32.xlu0 %v2869
        %v2871 = vpop.xlane.xlu0 %2870
        %v2872 = vsel %vm2856, %v2240, -inf
        %2873 = vmax.xlane.f32.xlu0 %v2872
        %v2874 = vpop.xlane.xlu0 %2873
        %v2875 = vsel %vm2856, %v2241, -inf
        %2876 = vmax.xlane.f32.xlu0 %v2875
        %v2877 = vpop.xlane.xlu0 %2876
        %v2878 = vsel %vm2856, %v2242, -inf
        %2879 = vmax.xlane.f32.xlu0 %v2878
        %v2880 = vpop.xlane.xlu0 %2879
        %v2881 = vsub.f32 %v2235, %v2859
        %v2882 = vsub.f32 %v2236, %v2862
        %v2883 = vsub.f32 %v2237, %v2865
        %v2884 = vsub.f32 %v2238, %v2868
        %v2885 = vsub.f32 %v2239, %v2871
        %v2886 = vsub.f32 %v2240, %v2874
        %v2887 = vsub.f32 %v2241, %v2877
        %v2888 = vsub.f32 %v2242, %v2880
        %v2889 = vmul.f32 %v2881, 1.442695
        %v2890 = vpow.pop %v2889
        %v2891 = vmul.f32 %v2882, 1.442695
        %v2892 = vpow.pop %v2891
        %v2893 = vmul.f32 %v2883, 1.442695
        %v2894 = vpow.pop %v2893
        %v2895 = vmul.f32 %v2884, 1.442695
        %v2896 = vpow.pop %v2895
        %v2897 = vmul.f32 %v2885, 1.442695
        %v2898 = vpow.pop %v2897
        %v2899 = vmul.f32 %v2886, 1.442695
        %v2900 = vpow.pop %v2899
        %v2901 = vmul.f32 %v2887, 1.442695
        %v2902 = vpow.pop %v2901
        %v2903 = vmul.f32 %v2888, 1.442695
        %v2904 = vpow.pop %v2903
        %2913 = vrot.lane.b32.xlu0 %v2890, 48
        %v2914 = vpop.permute.xlu0 %2913
        %2915 = vrot.lane.b32.xlu0 %v2892, 48
        %v2916 = vpop.permute.xlu0 %2915
        %2917 = vrot.lane.b32.xlu0 %v2894, 48
        %v2918 = vpop.permute.xlu0 %2917
        %2919 = vrot.lane.b32.xlu0 %v2896, 48
        %v2920 = vpop.permute.xlu0 %2919
        %2921 = vrot.lane.b32.xlu0 %v2898, 48
        %v2922 = vpop.permute.xlu0 %2921
        %2923 = vrot.lane.b32.xlu0 %v2900, 48
        %v2924 = vpop.permute.xlu0 %2923
        %2925 = vrot.lane.b32.xlu0 %v2902, 48
        %v2926 = vpop.permute.xlu0 %2925
        %2927 = vrot.lane.b32.xlu0 %v2904, 48
        %v2928 = vpop.permute.xlu0 %2927
        %v2937 = vsel %vm2243, %v2914, 0.0
        %2938 = vadd.xlane.f32.xlu0 %v2937
        %v2939 = vpop.xlane.xlu0 %2938
        %v2940 = vsel %vm2243, %v2916, 0.0
        %2941 = vadd.xlane.f32.xlu0 %v2940
        %v2942 = vpop.xlane.xlu0 %2941
        %v2943 = vsel %vm2243, %v2918, 0.0
        %2944 = vadd.xlane.f32.xlu0 %v2943
        %v2945 = vpop.xlane.xlu0 %2944
        %v2946 = vsel %vm2243, %v2920, 0.0
        %2947 = vadd.xlane.f32.xlu0 %v2946
        %v2948 = vpop.xlane.xlu0 %2947
        %v2949 = vsel %vm2243, %v2922, 0.0
        %2950 = vadd.xlane.f32.xlu0 %v2949
        %v2951 = vpop.xlane.xlu0 %2950
        %v2952 = vsel %vm2243, %v2924, 0.0
        %2953 = vadd.xlane.f32.xlu0 %v2952
        %v2954 = vpop.xlane.xlu0 %2953
        %v2955 = vsel %vm2243, %v2926, 0.0
        %2956 = vadd.xlane.f32.xlu0 %v2955
        %v2957 = vpop.xlane.xlu0 %2956
        %v2958 = vsel %vm2243, %v2928, 0.0
        %2959 = vadd.xlane.f32.xlu0 %v2958
        %v2960 = vpop.xlane.xlu0 %2959
        %v2961 = vrcp.pop %v2939
        %v2962 = vmul.f32 %v2890, %v2961
        %v2963 = vrcp.pop %v2942
        %v2964 = vmul.f32 %v2892, %v2963
        %v2965 = vrcp.pop %v2945
        %v2966 = vmul.f32 %v2894, %v2965
        %v2967 = vrcp.pop %v2948
        %v2968 = vmul.f32 %v2896, %v2967
        %v2969 = vrcp.pop %v2951
        %v2970 = vmul.f32 %v2898, %v2969
        %v2971 = vrcp.pop %v2954
        %v2972 = vmul.f32 %v2900, %v2971
        %v2973 = vrcp.pop %v2957
        %v2974 = vmul.f32 %v2902, %v2973
        %v2975 = vrcp.pop %v2960
        %v2976 = vmul.f32 %v2904, %v2975
        %2977 = vst.msk [vmem:[#allocation2] sm:$0xff] %vm2856, %v2962
        %2978 = vst.msk [vmem:[#allocation2 + $0x8] sm:$0xff] %vm2856, %v2964
        %2979 = vst.msk [vmem:[#allocation2 + $0x10] sm:$0xff] %vm2856, %v2966
        %2980 = vst.msk [vmem:[#allocation2 + $0x18] sm:$0xff] %vm2856, %v2968
        %2981 = vst.msk [vmem:[#allocation2 + $0x20] sm:$0xff] %vm2856, %v2970
        %2982 = vst.msk [vmem:[#allocation2 + $0x28] sm:$0xff] %vm2856, %v2972
        %2983 = vst.msk [vmem:[#allocation2 + $0x30] sm:$0xff] %vm2856, %v2974
        %2984 = vst.msk [vmem:[#allocation2 + $0x38] sm:$0xff] %vm2856, %v2976
        %vm2985 = vcmask 917248
        %v2986 = vsel %vm2985, %v2235, -inf
        %2987 = vmax.xlane.f32.xlu0 %v2986
        %v2988 = vpop.xlane.xlu0 %2987
        %v2989 = vsel %vm2985, %v2236, -inf
        %2990 = vmax.xlane.f32.xlu0 %v2989
        %v2991 = vpop.xlane.xlu0 %2990
        %v2992 = vsel %vm2985, %v2237, -inf
        %2993 = vmax.xlane.f32.xlu0 %v2992
        %v2994 = vpop.xlane.xlu0 %2993
        %v2995 = vsel %vm2985, %v2238, -inf
        %2996 = vmax.xlane.f32.xlu0 %v2995
        %v2997 = vpop.xlane.xlu0 %2996
        %v2998 = vsel %vm2985, %v2239, -inf
        %2999 = vmax.xlane.f32.xlu0 %v2998
        %v3000 = vpop.xlane.xlu0 %2999
        %v3001 = vsel %vm2985, %v2240, -inf
        %3002 = vmax.xlane.f32.xlu0 %v3001
        %v3003 = vpop.xlane.xlu0 %3002
        %v3004 = vsel %vm2985, %v2241, -inf
        %3005 = vmax.xlane.f32.xlu0 %v3004
        %v3006 = vpop.xlane.xlu0 %3005
        %v3007 = vsel %vm2985, %v2242, -inf
        %3008 = vmax.xlane.f32.xlu0 %v3007
        %v3009 = vpop.xlane.xlu0 %3008
        %v3010 = vsub.f32 %v2235, %v2988
        %v3011 = vsub.f32 %v2236, %v2991
        %v3012 = vsub.f32 %v2237, %v2994
        %v3013 = vsub.f32 %v2238, %v2997
        %v3014 = vsub.f32 %v2239, %v3000
        %v3015 = vsub.f32 %v2240, %v3003
        %v3016 = vsub.f32 %v2241, %v3006
        %v3017 = vsub.f32 %v2242, %v3009
        %v3018 = vmul.f32 %v3010, 1.442695
        %v3019 = vpow.pop %v3018
        %v3020 = vmul.f32 %v3011, 1.442695
        %v3021 = vpow.pop %v3020
        %v3022 = vmul.f32 %v3012, 1.442695
        %v3023 = vpow.pop %v3022
        %v3024 = vmul.f32 %v3013, 1.442695
        %v3025 = vpow.pop %v3024
        %v3026 = vmul.f32 %v3014, 1.442695
        %v3027 = vpow.pop %v3026
        %v3028 = vmul.f32 %v3015, 1.442695
        %v3029 = vpow.pop %v3028
        %v3030 = vmul.f32 %v3016, 1.442695
        %v3031 = vpow.pop %v3030
        %v3032 = vmul.f32 %v3017, 1.442695
        %v3033 = vpow.pop %v3032
        %3042 = vrot.lane.b32.xlu0 %v3019, 32
        %v3043 = vpop.permute.xlu0 %3042
        %3044 = vrot.lane.b32.xlu0 %v3021, 32
        %v3045 = vpop.permute.xlu0 %3044
        %3046 = vrot.lane.b32.xlu0 %v3023, 32
        %v3047 = vpop.permute.xlu0 %3046
        %3048 = vrot.lane.b32.xlu0 %v3025, 32
        %v3049 = vpop.permute.xlu0 %3048
        %3050 = vrot.lane.b32.xlu0 %v3027, 32
        %v3051 = vpop.permute.xlu0 %3050
        %3052 = vrot.lane.b32.xlu0 %v3029, 32
        %v3053 = vpop.permute.xlu0 %3052
        %3054 = vrot.lane.b32.xlu0 %v3031, 32
        %v3055 = vpop.permute.xlu0 %3054
        %3056 = vrot.lane.b32.xlu0 %v3033, 32
        %v3057 = vpop.permute.xlu0 %3056
        %v3066 = vsel %vm2243, %v3043, 0.0
        %3067 = vadd.xlane.f32.xlu0 %v3066
        %v3068 = vpop.xlane.xlu0 %3067
        %v3069 = vsel %vm2243, %v3045, 0.0
        %3070 = vadd.xlane.f32.xlu0 %v3069
        %v3071 = vpop.xlane.xlu0 %3070
        %v3072 = vsel %vm2243, %v3047, 0.0
        %3073 = vadd.xlane.f32.xlu0 %v3072
        %v3074 = vpop.xlane.xlu0 %3073
        %v3075 = vsel %vm2243, %v3049, 0.0
        %3076 = vadd.xlane.f32.xlu0 %v3075
        %v3077 = vpop.xlane.xlu0 %3076
        %v3078 = vsel %vm2243, %v3051, 0.0
        %3079 = vadd.xlane.f32.xlu0 %v3078
        %v3080 = vpop.xlane.xlu0 %3079
        %v3081 = vsel %vm2243, %v3053, 0.0
        %3082 = vadd.xlane.f32.xlu0 %v3081
        %v3083 = vpop.xlane.xlu0 %3082
        %v3084 = vsel %vm2243, %v3055, 0.0
        %3085 = vadd.xlane.f32.xlu0 %v3084
        %v3086 = vpop.xlane.xlu0 %3085
        %v3087 = vsel %vm2243, %v3057, 0.0
        %3088 = vadd.xlane.f32.xlu0 %v3087
        %v3089 = vpop.xlane.xlu0 %3088
        %v3090 = vrcp.pop %v3068
        %v3091 = vmul.f32 %v3019, %v3090
        %v3092 = vrcp.pop %v3071
        %v3093 = vmul.f32 %v3021, %v3092
        %v3094 = vrcp.pop %v3074
        %v3095 = vmul.f32 %v3023, %v3094
        %v3096 = vrcp.pop %v3077
        %v3097 = vmul.f32 %v3025, %v3096
        %v3098 = vrcp.pop %v3080
        %v3099 = vmul.f32 %v3027, %v3098
        %v3100 = vrcp.pop %v3083
        %v3101 = vmul.f32 %v3029, %v3100
        %v3102 = vrcp.pop %v3086
        %v3103 = vmul.f32 %v3031, %v3102
        %v3104 = vrcp.pop %v3089
        %v3105 = vmul.f32 %v3033, %v3104
        %3106 = vst.msk [vmem:[#allocation2] sm:$0xff] %vm2985, %v3091
        %3107 = vst.msk [vmem:[#allocation2 + $0x8] sm:$0xff] %vm2985, %v3093
        %3108 = vst.msk [vmem:[#allocation2 + $0x10] sm:$0xff] %vm2985, %v3095
        %3109 = vst.msk [vmem:[#allocation2 + $0x18] sm:$0xff] %vm2985, %v3097
        %3110 = vst.msk [vmem:[#allocation2 + $0x20] sm:$0xff] %vm2985, %v3099
        %3111 = vst.msk [vmem:[#allocation2 + $0x28] sm:$0xff] %vm2985, %v3101
        %3112 = vst.msk [vmem:[#allocation2 + $0x30] sm:$0xff] %vm2985, %v3103
        %3113 = vst.msk [vmem:[#allocation2 + $0x38] sm:$0xff] %vm2985, %v3105
        %vm3114 = vcmask 1048448
        %v3115 = vsel %vm3114, %v2235, -inf
        %3116 = vmax.xlane.f32.xlu0 %v3115
        %v3117 = vpop.xlane.xlu0 %3116
        %v3118 = vsel %vm3114, %v2236, -inf
        %3119 = vmax.xlane.f32.xlu0 %v3118
        %v3120 = vpop.xlane.xlu0 %3119
        %v3121 = vsel %vm3114, %v2237, -inf
        %3122 = vmax.xlane.f32.xlu0 %v3121
        %v3123 = vpop.xlane.xlu0 %3122
        %v3124 = vsel %vm3114, %v2238, -inf
        %3125 = vmax.xlane.f32.xlu0 %v3124
        %v3126 = vpop.xlane.xlu0 %3125
        %v3127 = vsel %vm3114, %v2239, -inf
        %3128 = vmax.xlane.f32.xlu0 %v3127
        %v3129 = vpop.xlane.xlu0 %3128
        %v3130 = vsel %vm3114, %v2240, -inf
        %3131 = vmax.xlane.f32.xlu0 %v3130
        %v3132 = vpop.xlane.xlu0 %3131
        %v3133 = vsel %vm3114, %v2241, -inf
        %3134 = vmax.xlane.f32.xlu0 %v3133
        %v3135 = vpop.xlane.xlu0 %3134
        %v3136 = vsel %vm3114, %v2242, -inf
        %3137 = vmax.xlane.f32.xlu0 %v3136
        %v3138 = vpop.xlane.xlu0 %3137
        %v3139 = vsub.f32 %v2235, %v3117
        %v3140 = vsub.f32 %v2236, %v3120
        %v3141 = vsub.f32 %v2237, %v3123
        %v3142 = vsub.f32 %v2238, %v3126
        %v3143 = vsub.f32 %v2239, %v3129
        %v3144 = vsub.f32 %v2240, %v3132
        %v3145 = vsub.f32 %v2241, %v3135
        %v3146 = vsub.f32 %v2242, %v3138
        %v3147 = vmul.f32 %v3139, 1.442695
        %v3148 = vpow.pop %v3147
        %v3149 = vmul.f32 %v3140, 1.442695
        %v3150 = vpow.pop %v3149
        %v3151 = vmul.f32 %v3141, 1.442695
        %v3152 = vpow.pop %v3151
        %v3153 = vmul.f32 %v3142, 1.442695
        %v3154 = vpow.pop %v3153
        %v3155 = vmul.f32 %v3143, 1.442695
        %v3156 = vpow.pop %v3155
        %v3157 = vmul.f32 %v3144, 1.442695
        %v3158 = vpow.pop %v3157
        %v3159 = vmul.f32 %v3145, 1.442695
        %v3160 = vpow.pop %v3159
        %v3161 = vmul.f32 %v3146, 1.442695
        %v3162 = vpow.pop %v3161
        %3171 = vrot.lane.b32.xlu0 %v3148, 16
        %v3172 = vpop.permute.xlu0 %3171
        %3173 = vrot.lane.b32.xlu0 %v3150, 16
        %v3174 = vpop.permute.xlu0 %3173
        %3175 = vrot.lane.b32.xlu0 %v3152, 16
        %v3176 = vpop.permute.xlu0 %3175
        %3177 = vrot.lane.b32.xlu0 %v3154, 16
        %v3178 = vpop.permute.xlu0 %3177
        %3179 = vrot.lane.b32.xlu0 %v3156, 16
        %v3180 = vpop.permute.xlu0 %3179
        %3181 = vrot.lane.b32.xlu0 %v3158, 16
        %v3182 = vpop.permute.xlu0 %3181
        %3183 = vrot.lane.b32.xlu0 %v3160, 16
        %v3184 = vpop.permute.xlu0 %3183
        %3185 = vrot.lane.b32.xlu0 %v3162, 16
        %v3186 = vpop.permute.xlu0 %3185
        %v3195 = vsel %vm2243, %v3172, 0.0
        %3196 = vadd.xlane.f32.xlu0 %v3195
        %v3197 = vpop.xlane.xlu0 %3196
        %v3198 = vsel %vm2243, %v3174, 0.0
        %3199 = vadd.xlane.f32.xlu0 %v3198
        %v3200 = vpop.xlane.xlu0 %3199
        %v3201 = vsel %vm2243, %v3176, 0.0
        %3202 = vadd.xlane.f32.xlu0 %v3201
        %v3203 = vpop.xlane.xlu0 %3202
        %v3204 = vsel %vm2243, %v3178, 0.0
        %3205 = vadd.xlane.f32.xlu0 %v3204
        %v3206 = vpop.xlane.xlu0 %3205
        %v3207 = vsel %vm2243, %v3180, 0.0
        %3208 = vadd.xlane.f32.xlu0 %v3207
        %v3209 = vpop.xlane.xlu0 %3208
        %v3210 = vsel %vm2243, %v3182, 0.0
        %3211 = vadd.xlane.f32.xlu0 %v3210
        %v3212 = vpop.xlane.xlu0 %3211
        %v3213 = vsel %vm2243, %v3184, 0.0
        %3214 = vadd.xlane.f32.xlu0 %v3213
        %v3215 = vpop.xlane.xlu0 %3214
        %v3216 = vsel %vm2243, %v3186, 0.0
        %3217 = vadd.xlane.f32.xlu0 %v3216
        %v3218 = vpop.xlane.xlu0 %3217
        %v3219 = vrcp.pop %v3197
        %v3220 = vmul.f32 %v3148, %v3219
        %v3221 = vrcp.pop %v3200
        %v3222 = vmul.f32 %v3150, %v3221
        %v3223 = vrcp.pop %v3203
        %v3224 = vmul.f32 %v3152, %v3223
        %v3225 = vrcp.pop %v3206
        %v3226 = vmul.f32 %v3154, %v3225
        %v3227 = vrcp.pop %v3209
        %v3228 = vmul.f32 %v3156, %v3227
        %v3229 = vrcp.pop %v3212
        %v3230 = vmul.f32 %v3158, %v3229
        %v3231 = vrcp.pop %v3215
        %v3232 = vmul.f32 %v3160, %v3231
        %v3233 = vrcp.pop %v3218
        %v3234 = vmul.f32 %v3162, %v3233
        %3235 = vst.msk [vmem:[#allocation2] sm:$0xff] %vm3114, %v3220
        %3236 = vst.msk [vmem:[#allocation2 + $0x8] sm:$0xff] %vm3114, %v3222
        %3237 = vst.msk [vmem:[#allocation2 + $0x10] sm:$0xff] %vm3114, %v3224
        %3238 = vst.msk [vmem:[#allocation2 + $0x18] sm:$0xff] %vm3114, %v3226
        %3239 = vst.msk [vmem:[#allocation2 + $0x20] sm:$0xff] %vm3114, %v3228
        %3240 = vst.msk [vmem:[#allocation2 + $0x28] sm:$0xff] %vm3114, %v3230
        %3241 = vst.msk [vmem:[#allocation2 + $0x30] sm:$0xff] %vm3114, %v3232
        %3242 = vst.msk [vmem:[#allocation2 + $0x38] sm:$0xff] %vm3114, %v3234
        %v3243 = vld [vmem:[#allocation2] sm:$0xff]
        %v3244 = vld [vmem:[#allocation2 + $0x8] sm:$0xff]
        %v3245 = vld [vmem:[#allocation2 + $0x10] sm:$0xff]
        %v3246 = vld [vmem:[#allocation2 + $0x18] sm:$0xff]
        %v3247 = vld [vmem:[#allocation2 + $0x20] sm:$0xff]
        %v3248 = vld [vmem:[#allocation2 + $0x28] sm:$0xff]
        %v3249 = vld [vmem:[#allocation2 + $0x30] sm:$0xff]
        %v3250 = vld [vmem:[#allocation2 + $0x38] sm:$0xff]
        %3267 = vrot.lane.b32.xlu0 %v2042, 64
        %v3268 = vpop.permute.xlu0 %3267
        %3269 = vrot.lane.b32.xlu0 %v2043, 64
        %v3270 = vpop.permute.xlu0 %3269
        %3271 = vrot.lane.b32.xlu0 %v2044, 64
        %v3272 = vpop.permute.xlu0 %3271
        %3273 = vrot.lane.b32.xlu0 %v2045, 64
        %v3274 = vpop.permute.xlu0 %3273
        %3275 = vrot.lane.b32.xlu0 %v2046, 64
        %v3276 = vpop.permute.xlu0 %3275
        %3277 = vrot.lane.b32.xlu0 %v2047, 64
        %v3278 = vpop.permute.xlu0 %3277
        %3279 = vrot.lane.b32.xlu0 %v2048, 64
        %v3280 = vpop.permute.xlu0 %3279
        %3281 = vrot.lane.b32.xlu0 %v2049, 64
        %v3282 = vpop.permute.xlu0 %3281
        %3283 = vrot.lane.b32.xlu0 %v2050, 64
        %v3284 = vpop.permute.xlu0 %3283
        %3285 = vrot.lane.b32.xlu0 %v2051, 64
        %v3286 = vpop.permute.xlu0 %3285
        %3287 = vrot.lane.b32.xlu0 %v2052, 64
        %v3288 = vpop.permute.xlu0 %3287
        %3289 = vrot.lane.b32.xlu0 %v2053, 64
        %v3290 = vpop.permute.xlu0 %3289
        %3291 = vrot.lane.b32.xlu0 %v2054, 64
        %v3292 = vpop.permute.xlu0 %3291
        %3293 = vrot.lane.b32.xlu0 %v2055, 64
        %v3294 = vpop.permute.xlu0 %3293
        %3295 = vrot.lane.b32.xlu0 %v2056, 64
        %v3296 = vpop.permute.xlu0 %3295
        %3297 = vrot.lane.b32.xlu0 %v2057, 64
        %v3298 = vpop.permute.xlu0 %3297
        %3315 = vmatprep.subr.mxu0 0.0
        %3316 = vmatpush1.msra.mxu0 %v3268
        %3317 = vmatprep.subr.mxu0 0.0
        %3318 = vmatpush1.msra.mxu0 %v3270
        %3319 = vmatprep.subr.mxu0 0.0
        %3320 = vmatpush1.msra.mxu0 %v3272
        %3321 = vmatprep.subr.mxu0 0.0
        %3322 = vmatpush1.msra.mxu0 %v3274
        %3323 = vmatprep.subr.mxu0 0.0
        %3324 = vmatpush1.msra.mxu0 %v3276
        %3325 = vmatprep.subr.mxu0 0.0
        %3326 = vmatpush1.msra.mxu0 %v3278
        %3327 = vmatprep.subr.mxu0 0.0
        %3328 = vmatpush1.msra.mxu0 %v3280
        %3329 = vmatprep.subr.mxu0 0.0
        %3330 = vmatpush1.msra.mxu0 %v3282
        %3331 = vmatprep.subr.mxu0 0.0
        %3332 = vmatpush1.msra.mxu0 %v3284
        %3333 = vmatprep.subr.mxu0 0.0
        %3334 = vmatpush1.msra.mxu0 %v3286
        %3335 = vmatprep.subr.mxu0 0.0
        %3336 = vmatpush1.msra.mxu0 %v3288
        %3337 = vmatprep.subr.mxu0 0.0
        %3338 = vmatpush1.msra.mxu0 %v3290
        %3339 = vmatprep.subr.mxu0 0.0
        %3340 = vmatpush1.msra.mxu0 %v3292
        %3341 = vmatprep.subr.mxu0 0.0
        %3342 = vmatpush1.msra.mxu0 %v3294
        %3343 = vmatprep.subr.mxu0 0.0
        %3344 = vmatpush1.msra.mxu0 %v3296
        %3345 = vmatprep.subr.mxu0 0.0
        %3346 = vmatpush1.msra.mxu0 %v3298
        %3347 = vmatprep.subr.mxu0 0.0
        %3348 = vmatpush1.msra.mxu0 0.0
        %3349 = vmatprep.subr.mxu0 0.0
        %3350 = vmatpush1.msra.mxu0 0.0
        %3351 = vmatprep.subr.mxu0 0.0
        %3352 = vmatpush1.msra.mxu0 0.0
        %3353 = vmatprep.subr.mxu0 0.0
        %3354 = vmatpush1.msra.mxu0 0.0
        %3355 = vmatprep.subr.mxu0 0.0
        %3356 = vmatpush1.msra.mxu0 0.0
        %3357 = vmatprep.subr.mxu0 0.0
        %3358 = vmatpush1.msra.mxu0 0.0
        %3359 = vmatprep.subr.mxu0 0.0
        %3360 = vmatpush1.msra.mxu0 0.0
        %3361 = vmatprep.subr.mxu0 0.0
        %3362 = vmatpush1.msra.mxu0 0.0
        %3363 = vmatprep.subr.mxu0 0.0
        %3364 = vmatpush1.msra.mxu0 0.0
        %3365 = vmatprep.subr.mxu0 0.0
        %3366 = vmatpush1.msra.mxu0 0.0
        %3367 = vmatprep.subr.mxu0 0.0
        %3368 = vmatpush1.msra.mxu0 0.0
        %3369 = vmatprep.subr.mxu0 0.0
        %3370 = vmatpush1.msra.mxu0 0.0
        %3371 = vmatprep.subr.mxu0 0.0
        %3372 = vmatpush1.msra.mxu0 0.0
        %3373 = vmatprep.subr.mxu0 0.0
        %3374 = vmatpush1.msra.mxu0 0.0
        %3375 = vmatprep.subr.mxu0 0.0
        %3376 = vmatpush1.msra.mxu0 0.0
        %3377 = vmatprep.subr.mxu0 0.0
        %3378 = vmatpush1.msra.mxu0 0.0
        %3379 = vmatprep.mubr.f32.mxu0 0.0
        %3380 = vmatmul.mubr.f32.gmra.mrb[0].mxu0 %v3243
        %v3381 = vpop.f32.mrb[0].mxu0
        %v3382 = vadd.f32 0.0, %v3381
        %v3383 = vpop.f32.mrb[0].mxu0
        %3384 = vmatprep.mubr.f32.mxu0 0.0
        %3385 = vmatmul.mubr.f32.gmra.mrb[0].mxu0 %v3244
        %v3386 = vpop.f32.mrb[0].mxu0
        %v3387 = vadd.f32 0.0, %v3386
        %v3388 = vpop.f32.mrb[0].mxu0
        %3389 = vmatprep.mubr.f32.mxu0 0.0
        %3390 = vmatmul.mubr.f32.gmra.mrb[0].mxu0 %v3245
        %v3391 = vpop.f32.mrb[0].mxu0
        %v3392 = vadd.f32 0.0, %v3391
        %v3393 = vpop.f32.mrb[0].mxu0
        %3394 = vmatprep.mubr.f32.mxu0 0.0
        %3395 = vmatmul.mubr.f32.gmra.mrb[0].mxu0 %v3246
        %v3396 = vpop.f32.mrb[0].mxu0
        %v3397 = vadd.f32 0.0, %v3396
        %v3398 = vpop.f32.mrb[0].mxu0
        %3399 = vmatprep.mubr.f32.mxu0 0.0
        %3400 = vmatmul.mubr.f32.gmra.mrb[0].mxu0 %v3247
        %v3401 = vpop.f32.mrb[0].mxu0
        %v3402 = vadd.f32 0.0, %v3401
        %v3403 = vpop.f32.mrb[0].mxu0
        %3404 = vmatprep.mubr.f32.mxu0 0.0
        %3405 = vmatmul.mubr.f32.gmra.mrb[0].mxu0 %v3248
        %v3406 = vpop.f32.mrb[0].mxu0
        %v3407 = vadd.f32 0.0, %v3406
        %v3408 = vpop.f32.mrb[0].mxu0
        %3409 = vmatprep.mubr.f32.mxu0 0.0
        %3410 = vmatmul.mubr.f32.gmra.mrb[0].mxu0 %v3249
        %v3411 = vpop.f32.mrb[0].mxu0
        %v3412 = vadd.f32 0.0, %v3411
        %v3413 = vpop.f32.mrb[0].mxu0
        %3414 = vmatprep.mubr.f32.mxu0 0.0
        %3415 = vmatmul.mubr.f32.gmra.mrb[0].mxu0 %v3250
        %v3416 = vpop.f32.mrb[0].mxu0
        %v3417 = vadd.f32 0.0, %v3416
        %v3418 = vpop.f32.mrb[0].mxu0
        %3419 = vdwg.mxu0
        %v3420 = vld [vmem:[%s14] sm:$0xff]
        %v3421 = vld [vmem:[%s14 + $0x8] sm:$0xff]
        %v3422 = vld [vmem:[%s14 + $0x10] sm:$0xff]
        %v3423 = vld [vmem:[%s14 + $0x18] sm:$0xff]
        %v3424 = vld [vmem:[%s14 + $0x20] sm:$0xff]
        %v3425 = vld [vmem:[%s14 + $0x28] sm:$0xff]
        %v3426 = vld [vmem:[%s14 + $0x30] sm:$0xff]
        %v3427 = vld [vmem:[%s14 + $0x38] sm:$0xff]
        %v3429 = vsel %vm793, %v3382, 0
        %v3432 = vsel %vm793, %v3387, 0
        %v3435 = vsel %vm793, %v3392, 0
        %v3438 = vsel %vm793, %v3397, 0
        %v3441 = vsel %vm793, %v3402, 0
        %v3444 = vsel %vm793, %v3407, 0
        %v3447 = vsel %vm793, %v3412, 0
        %v3450 = vsel %vm793, %v3417, 0
        %3452 = vmatprep.subr.mxu0 0.0
        %3453 = vmatpush1.msra.mxu0 %v3420
        %3454 = vmatprep.subr.mxu0 0.0
        %3455 = vmatpush1.msra.mxu0 %v3421
        %3456 = vmatprep.subr.mxu0 0.0
        %3457 = vmatpush1.msra.mxu0 %v3422
        %3458 = vmatprep.subr.mxu0 0.0
        %3459 = vmatpush1.msra.mxu0 %v3423
        %3460 = vmatprep.subr.mxu0 0.0
        %3461 = vmatpush1.msra.mxu0 %v3424
        %3462 = vmatprep.subr.mxu0 0.0
        %3463 = vmatpush1.msra.mxu0 %v3425
        %3464 = vmatprep.subr.mxu0 0.0
        %3465 = vmatpush1.msra.mxu0 %v3426
        %3466 = vmatprep.subr.mxu0 0.0
        %3467 = vmatpush1.msra.mxu0 %v3427
        %3468 = vmatprep.subr.mxu0 0.0
        %3469 = vmatpush1.msra.mxu0 0.0
        %3470 = vmatprep.subr.mxu0 0.0
        %3471 = vmatpush1.msra.mxu0 0.0
        %3472 = vmatprep.subr.mxu0 0.0
        %3473 = vmatpush1.msra.mxu0 0.0
        %3474 = vmatprep.subr.mxu0 0.0
        %3475 = vmatpush1.msra.mxu0 0.0
        %3476 = vmatprep.subr.mxu0 0.0
        %3477 = vmatpush1.msra.mxu0 0.0
        %3478 = vmatprep.subr.mxu0 0.0
        %3479 = vmatpush1.msra.mxu0 0.0
        %3480 = vmatprep.subr.mxu0 0.0
        %3481 = vmatpush1.msra.mxu0 0.0
        %3482 = vmatprep.subr.mxu0 0.0
        %3483 = vmatpush1.msra.mxu0 0.0
        %3484 = vmatprep.subr.mxu0 0.0
        %3485 = vmatpush1.msra.mxu0 0.0
        %3486 = vmatprep.subr.mxu0 0.0
        %3487 = vmatpush1.msra.mxu0 0.0
        %3488 = vmatprep.subr.mxu0 0.0
        %3489 = vmatpush1.msra.mxu0 0.0
        %3490 = vmatprep.subr.mxu0 0.0
        %3491 = vmatpush1.msra.mxu0 0.0
        %3492 = vmatprep.subr.mxu0 0.0
        %3493 = vmatpush1.msra.mxu0 0.0
        %3494 = vmatprep.subr.mxu0 0.0
        %3495 = vmatpush1.msra.mxu0 0.0
        %3496 = vmatprep.subr.mxu0 0.0
        %3497 = vmatpush1.msra.mxu0 0.0
        %3498 = vmatprep.subr.mxu0 0.0
        %3499 = vmatpush1.msra.mxu0 0.0
        %3500 = vmatprep.subr.mxu0 0.0
        %3501 = vmatpush1.msra.mxu0 0.0
        %3502 = vmatprep.subr.mxu0 0.0
        %3503 = vmatpush1.msra.mxu0 0.0
        %3504 = vmatprep.subr.mxu0 0.0
        %3505 = vmatpush1.msra.mxu0 0.0
        %3506 = vmatprep.subr.mxu0 0.0
        %3507 = vmatpush1.msra.mxu0 0.0
        %3508 = vmatprep.subr.mxu0 0.0
        %3509 = vmatpush1.msra.mxu0 0.0
        %3510 = vmatprep.subr.mxu0 0.0
        %3511 = vmatpush1.msra.mxu0 0.0
        %3512 = vmatprep.subr.mxu0 0.0
        %3513 = vmatpush1.msra.mxu0 0.0
        %3514 = vmatprep.subr.mxu0 0.0
        %3515 = vmatpush1.msra.mxu0 0.0
        %3516 = vmatprep.mubr.f32.mxu0 0.0
        %3517 = vmatmul.mubr.f32.gmra.mrb[0].mxu0 %v3429
        %v3518 = vpop.f32.mrb[0].mxu0
        %v3519 = vadd.f32 0.0, %v3518
        %v3520 = vpop.f32.mrb[0].mxu0
        %3521 = vmatprep.mubr.f32.mxu0 0.0
        %3522 = vmatmul.mubr.f32.gmra.mrb[0].mxu0 %v3432
        %v3523 = vpop.f32.mrb[0].mxu0
        %v3524 = vadd.f32 0.0, %v3523
        %v3525 = vpop.f32.mrb[0].mxu0
        %3526 = vmatprep.mubr.f32.mxu0 0.0
        %3527 = vmatmul.mubr.f32.gmra.mrb[0].mxu0 %v3435
        %v3528 = vpop.f32.mrb[0].mxu0
        %v3529 = vadd.f32 0.0, %v3528
        %v3530 = vpop.f32.mrb[0].mxu0
        %3531 = vmatprep.mubr.f32.mxu0 0.0
        %3532 = vmatmul.mubr.f32.gmra.mrb[0].mxu0 %v3438
        %v3533 = vpop.f32.mrb[0].mxu0
        %v3534 = vadd.f32 0.0, %v3533
        %v3535 = vpop.f32.mrb[0].mxu0
        %3536 = vmatprep.mubr.f32.mxu0 0.0
        %3537 = vmatmul.mubr.f32.gmra.mrb[0].mxu0 %v3441
        %v3538 = vpop.f32.mrb[0].mxu0
        %v3539 = vadd.f32 0.0, %v3538
        %v3540 = vpop.f32.mrb[0].mxu0
        %3541 = vmatprep.mubr.f32.mxu0 0.0
        %3542 = vmatmul.mubr.f32.gmra.mrb[0].mxu0 %v3444
        %v3543 = vpop.f32.mrb[0].mxu0
        %v3544 = vadd.f32 0.0, %v3543
        %v3545 = vpop.f32.mrb[0].mxu0
        %3546 = vmatprep.mubr.f32.mxu0 0.0
        %3547 = vmatmul.mubr.f32.gmra.mrb[0].mxu0 %v3447
        %v3548 = vpop.f32.mrb[0].mxu0
        %v3549 = vadd.f32 0.0, %v3548
        %v3550 = vpop.f32.mrb[0].mxu0
        %3551 = vmatprep.mubr.f32.mxu0 0.0
        %3552 = vmatmul.mubr.f32.gmra.mrb[0].mxu0 %v3450
        %v3553 = vpop.f32.mrb[0].mxu0
        %v3554 = vadd.f32 0.0, %v3553
        %v3555 = vpop.f32.mrb[0].mxu0
        %3556 = vdwg.mxu0
        %v3557 = vadd.f32 %v919, %v3519
        %v3558 = vadd.f32 %v920, %v3524
        %v3559 = vadd.f32 %v921, %v3529
        %v3560 = vadd.f32 %v922, %v3534
        %v3561 = vadd.f32 %v923, %v3539
        %v3562 = vadd.f32 %v924, %v3544
        %v3563 = vadd.f32 %v925, %v3549
        %v3564 = vadd.f32 %v926, %v3554
        %v3565 = vld [vmem:[%s15] sm:$0x1]
        %v3567 = vlaneseq
        %v3568 = vshrl.u32 %v3567, 7
        %v3569 = vsub.s32 0, %v3568
        %v3570 = vrot.slane %v3565, %v3569
        %v3572 = vadd.f32 %v3557, %v3570
        %v3573 = vadd.f32 %v3558, %v3570
        %v3574 = vadd.f32 %v3559, %v3570
        %v3575 = vadd.f32 %v3560, %v3570
        %v3576 = vadd.f32 %v3561, %v3570
        %v3577 = vadd.f32 %v3562, %v3570
        %v3578 = vadd.f32 %v3563, %v3570
        %v3579 = vadd.f32 %v3564, %v3570
        %v3580 = vld [vmem:[%s16] sm:$0x1]
        %v3581 = vld [vmem:[%s17] sm:$0x1]
        %v3582 = vsel %vm793, %v3572, 0.0
        %3583 = vadd.xlane.f32.xlu0 %v3582
        %v3584 = vpop.xlane.xlu0 %3583
        %v3585 = vsel %vm793, %v3573, 0.0
        %3586 = vadd.xlane.f32.xlu0 %v3585
        %v3587 = vpop.xlane.xlu0 %3586
        %v3588 = vsel %vm793, %v3574, 0.0
        %3589 = vadd.xlane.f32.xlu0 %v3588
        %v3590 = vpop.xlane.xlu0 %3589
        %v3591 = vsel %vm793, %v3575, 0.0
        %3592 = vadd.xlane.f32.xlu0 %v3591
        %v3593 = vpop.xlane.xlu0 %3592
        %v3594 = vsel %vm793, %v3576, 0.0
        %3595 = vadd.xlane.f32.xlu0 %v3594
        %v3596 = vpop.xlane.xlu0 %3595
        %v3597 = vsel %vm793, %v3577, 0.0
        %3598 = vadd.xlane.f32.xlu0 %v3597
        %v3599 = vpop.xlane.xlu0 %3598
        %v3600 = vsel %vm793, %v3578, 0.0
        %3601 = vadd.xlane.f32.xlu0 %v3600
        %v3602 = vpop.xlane.xlu0 %3601
        %v3603 = vsel %vm793, %v3579, 0.0
        %3604 = vadd.xlane.f32.xlu0 %v3603
        %v3605 = vpop.xlane.xlu0 %3604
        %v3606 = vmul.f32 %v3584, %v818
        %v3607 = vmul.f32 %v3587, %v818
        %v3608 = vmul.f32 %v3590, %v818
        %v3609 = vmul.f32 %v3593, %v818
        %v3610 = vmul.f32 %v3596, %v818
        %v3611 = vmul.f32 %v3599, %v818
        %v3612 = vmul.f32 %v3602, %v818
        %v3613 = vmul.f32 %v3605, %v818
        %v3614 = vsub.f32 %v3572, %v3606
        %v3615 = vsub.f32 %v3573, %v3607
        %v3616 = vsub.f32 %v3574, %v3608
        %v3617 = vsub.f32 %v3575, %v3609
        %v3618 = vsub.f32 %v3576, %v3610
        %v3619 = vsub.f32 %v3577, %v3611
        %v3620 = vsub.f32 %v3578, %v3612
        %v3621 = vsub.f32 %v3579, %v3613
        %v3622 = vmul.f32 %v3614, %v3614
        %v3623 = vmul.f32 %v3615, %v3615
        %v3624 = vmul.f32 %v3616, %v3616
        %v3625 = vmul.f32 %v3617, %v3617
        %v3626 = vmul.f32 %v3618, %v3618
        %v3627 = vmul.f32 %v3619, %v3619
        %v3628 = vmul.f32 %v3620, %v3620
        %v3629 = vmul.f32 %v3621, %v3621
        %v3630 = vsel %vm793, %v3622, 0.0
        %3631 = vadd.xlane.f32.xlu0 %v3630
        %v3632 = vpop.xlane.xlu0 %3631
        %v3633 = vsel %vm793, %v3623, 0.0
        %3634 = vadd.xlane.f32.xlu0 %v3633
        %v3635 = vpop.xlane.xlu0 %3634
        %v3636 = vsel %vm793, %v3624, 0.0
        %3637 = vadd.xlane.f32.xlu0 %v3636
        %v3638 = vpop.xlane.xlu0 %3637
        %v3639 = vsel %vm793, %v3625, 0.0
        %3640 = vadd.xlane.f32.xlu0 %v3639
        %v3641 = vpop.xlane.xlu0 %3640
        %v3642 = vsel %vm793, %v3626, 0.0
        %3643 = vadd.xlane.f32.xlu0 %v3642
        %v3644 = vpop.xlane.xlu0 %3643
        %v3645 = vsel %vm793, %v3627, 0.0
        %3646 = vadd.xlane.f32.xlu0 %v3645
        %v3647 = vpop.xlane.xlu0 %3646
        %v3648 = vsel %vm793, %v3628, 0.0
        %3649 = vadd.xlane.f32.xlu0 %v3648
        %v3650 = vpop.xlane.xlu0 %3649
        %v3651 = vsel %vm793, %v3629, 0.0
        %3652 = vadd.xlane.f32.xlu0 %v3651
        %v3653 = vpop.xlane.xlu0 %3652
        %v3654 = vmul.f32 %v3632, %v818
        %v3655 = vmul.f32 %v3635, %v818
        %v3656 = vmul.f32 %v3638, %v818
        %v3657 = vmul.f32 %v3641, %v818
        %v3658 = vmul.f32 %v3644, %v818
        %v3659 = vmul.f32 %v3647, %v818
        %v3660 = vmul.f32 %v3650, %v818
        %v3661 = vmul.f32 %v3653, %v818
        %v3662 = vadd.f32 %v3654, 1e-05
        %v3663 = vadd.f32 %v3655, 1e-05
        %v3664 = vadd.f32 %v3656, 1e-05
        %v3665 = vadd.f32 %v3657, 1e-05
        %v3666 = vadd.f32 %v3658, 1e-05
        %v3667 = vadd.f32 %v3659, 1e-05
        %v3668 = vadd.f32 %v3660, 1e-05
        %v3669 = vadd.f32 %v3661, 1e-05
        %v3670 = vrsqrt.pop %v3662
        %v3671 = vrsqrt.pop %v3663
        %v3672 = vrsqrt.pop %v3664
        %v3673 = vrsqrt.pop %v3665
        %v3674 = vrsqrt.pop %v3666
        %v3675 = vrsqrt.pop %v3667
        %v3676 = vrsqrt.pop %v3668
        %v3677 = vrsqrt.pop %v3669
        %v3678 = vmul.f32 %v3614, %v3670
        %v3679 = vmul.f32 %v3615, %v3671
        %v3680 = vmul.f32 %v3616, %v3672
        %v3681 = vmul.f32 %v3617, %v3673
        %v3682 = vmul.f32 %v3618, %v3674
        %v3683 = vmul.f32 %v3619, %v3675
        %v3684 = vmul.f32 %v3620, %v3676
        %v3685 = vmul.f32 %v3621, %v3677
        %v3687 = vlaneseq
        %v3688 = vshrl.u32 %v3687, 7
        %v3689 = vsub.s32 0, %v3688
        %v3690 = vrot.slane %v3580, %v3689
        %v3692 = vmul.f32 %v3678, %v3690
        %v3693 = vmul.f32 %v3679, %v3690
        %v3694 = vmul.f32 %v3680, %v3690
        %v3695 = vmul.f32 %v3681, %v3690
        %v3696 = vmul.f32 %v3682, %v3690
        %v3697 = vmul.f32 %v3683, %v3690
        %v3698 = vmul.f32 %v3684, %v3690
        %v3699 = vmul.f32 %v3685, %v3690
        %v3701 = vlaneseq
        %v3702 = vshrl.u32 %v3701, 7
        %v3703 = vsub.s32 0, %v3702
        %v3704 = vrot.slane %v3581, %v3703
        %v3706 = vadd.f32 %v3692, %v3704
        %v3707 = vadd.f32 %v3693, %v3704
        %v3708 = vadd.f32 %v3694, %v3704
        %v3709 = vadd.f32 %v3695, %v3704
        %v3710 = vadd.f32 %v3696, %v3704
        %v3711 = vadd.f32 %v3697, %v3704
        %v3712 = vadd.f32 %v3698, %v3704
        %v3713 = vadd.f32 %v3699, %v3704
        %v3714 = vld [vmem:[%s18] sm:$0xff]
        %v3715 = vld [vmem:[%s18 + $0x8] sm:$0xff]
        %v3716 = vld [vmem:[%s18 + $0x10] sm:$0xff]
        %v3717 = vld [vmem:[%s18 + $0x18] sm:$0xff]
        %v3718 = vld [vmem:[%s18 + $0x20] sm:$0xff]
        %v3719 = vld [vmem:[%s18 + $0x28] sm:$0xff]
        %v3720 = vld [vmem:[%s18 + $0x30] sm:$0xff]
        %v3721 = vld [vmem:[%s18 + $0x38] sm:$0xff]
        %v3722 = vld [vmem:[%s18 + $0x40] sm:$0xff]
        %v3723 = vld [vmem:[%s18 + $0x48] sm:$0xff]
        %v3724 = vld [vmem:[%s18 + $0x50] sm:$0xff]
        %v3725 = vld [vmem:[%s18 + $0x58] sm:$0xff]
        %v3726 = vld [vmem:[%s18 + $0x60] sm:$0xff]
        %v3727 = vld [vmem:[%s18 + $0x68] sm:$0xff]
        %v3728 = vld [vmem:[%s18 + $0x70] sm:$0xff]
        %v3729 = vld [vmem:[%s18 + $0x78] sm:$0xff]
        %v3730 = vld [vmem:[%s19] sm:$0x3]
        %v3732 = vlaneseq
        %v3733 = vshrl.u32 %v3732, 7
        %v3734 = vsub.s32 0, %v3733
        %v3735 = vrot.slane %v3730, %v3734
        %v3736 = vlaneseq
        %v3737 = vshrl.u32 %v3736, 7
        %v3738 = vsub.s32 1, %v3737
        %v3739 = vrot.slane %v3730, %v3738
        %v3743 = vsel %vm793, %v3706, 0
        %v3746 = vsel %vm793, %v3707, 0
        %v3749 = vsel %vm793, %v3708, 0
        %v3752 = vsel %vm793, %v3709, 0
        %v3755 = vsel %vm793, %v3710, 0
        %v3758 = vsel %vm793, %v3711, 0
        %v3761 = vsel %vm793, %v3712, 0
        %v3764 = vsel %vm793, %v3713, 0
        %3766 = vmatprep.subr.mxu0 %v3715
        %3767 = vmatpush1.msra.mxu0 %v3714
        %3768 = vmatprep.subr.mxu0 %v3717
        %3769 = vmatpush1.msra.mxu0 %v3716
        %3770 = vmatprep.subr.mxu0 %v3719
        %3771 = vmatpush1.msra.mxu0 %v3718
        %3772 = vmatprep.subr.mxu0 %v3721
        %3773 = vmatpush1.msra.mxu0 %v3720
        %3774 = vmatprep.subr.mxu0 %v3723
        %3775 = vmatpush1.msra.mxu0 %v3722
        %3776 = vmatprep.subr.mxu0 %v3725
        %3777 = vmatpush1.msra.mxu0 %v3724
        %3778 = vmatprep.subr.mxu0 %v3727
        %3779 = vmatpush1.msra.mxu0 %v3726
        %3780 = vmatprep.subr.mxu0 %v3729
        %3781 = vmatpush1.msra.mxu0 %v3728
        %3782 = vmatprep.subr.mxu0 0.0
        %3783 = vmatpush1.msra.mxu0 0.0
        %3784 = vmatprep.subr.mxu0 0.0
        %3785 = vmatpush1.msra.mxu0 0.0
        %3786 = vmatprep.subr.mxu0 0.0
        %3787 = vmatpush1.msra.mxu0 0.0
        %3788 = vmatprep.subr.mxu0 0.0
        %3789 = vmatpush1.msra.mxu0 0.0
        %3790 = vmatprep.subr.mxu0 0.0
        %3791 = vmatpush1.msra.mxu0 0.0
        %3792 = vmatprep.subr.mxu0 0.0
        %3793 = vmatpush1.msra.mxu0 0.0
        %3794 = vmatprep.subr.mxu0 0.0
        %3795 = vmatpush1.msra.mxu0 0.0
        %3796 = vmatprep.subr.mxu0 0.0
        %3797 = vmatpush1.msra.mxu0 0.0
        %3798 = vmatprep.subr.mxu0 0.0
        %3799 = vmatpush1.msra.mxu0 0.0
        %3800 = vmatprep.subr.mxu0 0.0
        %3801 = vmatpush1.msra.mxu0 0.0
        %3802 = vmatprep.subr.mxu0 0.0
        %3803 = vmatpush1.msra.mxu0 0.0
        %3804 = vmatprep.subr.mxu0 0.0
        %3805 = vmatpush1.msra.mxu0 0.0
        %3806 = vmatprep.subr.mxu0 0.0
        %3807 = vmatpush1.msra.mxu0 0.0
        %3808 = vmatprep.subr.mxu0 0.0
        %3809 = vmatpush1.msra.mxu0 0.0
        %3810 = vmatprep.subr.mxu0 0.0
        %3811 = vmatpush1.msra.mxu0 0.0
        %3812 = vmatprep.subr.mxu0 0.0
        %3813 = vmatpush1.msra.mxu0 0.0
        %3814 = vmatprep.subr.mxu0 0.0
        %3815 = vmatpush1.msra.mxu0 0.0
        %3816 = vmatprep.subr.mxu0 0.0
        %3817 = vmatpush1.msra.mxu0 0.0
        %3818 = vmatprep.subr.mxu0 0.0
        %3819 = vmatpush1.msra.mxu0 0.0
        %3820 = vmatprep.subr.mxu0 0.0
        %3821 = vmatpush1.msra.mxu0 0.0
        %3822 = vmatprep.subr.mxu0 0.0
        %3823 = vmatpush1.msra.mxu0 0.0
        %3824 = vmatprep.subr.mxu0 0.0
        %3825 = vmatpush1.msra.mxu0 0.0
        %3826 = vmatprep.subr.mxu0 0.0
        %3827 = vmatpush1.msra.mxu0 0.0
        %3828 = vmatprep.subr.mxu0 0.0
        %3829 = vmatpush1.msra.mxu0 0.0
        %3830 = vmatprep.mubr.f32.mxu0 0.0
        %3831 = vmatmul.mubr.f32.gmra.mrb[0].mxu0 %v3743
        %v3832 = vpop.f32.mrb[0].mxu0
        %v3833 = vadd.f32 %v3735, %v3832
        %v3834 = vpop.f32.mrb[0].mxu0
        %v3835 = vadd.f32 %v3739, %v3834
        %3836 = vmatprep.mubr.f32.mxu0 0.0
        %3837 = vmatmul.mubr.f32.gmra.mrb[0].mxu0 %v3746
        %v3838 = vpop.f32.mrb[0].mxu0
        %v3839 = vadd.f32 %v3735, %v3838
        %v3840 = vpop.f32.mrb[0].mxu0
        %v3841 = vadd.f32 %v3739, %v3840
        %3842 = vmatprep.mubr.f32.mxu0 0.0
        %3843 = vmatmul.mubr.f32.gmra.mrb[0].mxu0 %v3749
        %v3844 = vpop.f32.mrb[0].mxu0
        %v3845 = vadd.f32 %v3735, %v3844
        %v3846 = vpop.f32.mrb[0].mxu0
        %v3847 = vadd.f32 %v3739, %v3846
        %3848 = vmatprep.mubr.f32.mxu0 0.0
        %3849 = vmatmul.mubr.f32.gmra.mrb[0].mxu0 %v3752
        %v3850 = vpop.f32.mrb[0].mxu0
        %v3851 = vadd.f32 %v3735, %v3850
        %v3852 = vpop.f32.mrb[0].mxu0
        %v3853 = vadd.f32 %v3739, %v3852
        %3854 = vmatprep.mubr.f32.mxu0 0.0
        %3855 = vmatmul.mubr.f32.gmra.mrb[0].mxu0 %v3755
        %v3856 = vpop.f32.mrb[0].mxu0
        %v3857 = vadd.f32 %v3735, %v3856
        %v3858 = vpop.f32.mrb[0].mxu0
        %v3859 = vadd.f32 %v3739, %v3858
        %3860 = vmatprep.mubr.f32.mxu0 0.0
        %3861 = vmatmul.mubr.f32.gmra.mrb[0].mxu0 %v3758
        %v3862 = vpop.f32.mrb[0].mxu0
        %v3863 = vadd.f32 %v3735, %v3862
        %v3864 = vpop.f32.mrb[0].mxu0
        %v3865 = vadd.f32 %v3739, %v3864
        %3866 = vmatprep.mubr.f32.mxu0 0.0
        %3867 = vmatmul.mubr.f32.gmra.mrb[0].mxu0 %v3761
        %v3868 = vpop.f32.mrb[0].mxu0
        %v3869 = vadd.f32 %v3735, %v3868
        %v3870 = vpop.f32.mrb[0].mxu0
        %v3871 = vadd.f32 %v3739, %v3870
        %3872 = vmatprep.mubr.f32.mxu0 0.0
        %3873 = vmatmul.mubr.f32.gmra.mrb[0].mxu0 %v3764
        %v3874 = vpop.f32.mrb[0].mxu0
        %v3875 = vadd.f32 %v3735, %v3874
        %v3876 = vpop.f32.mrb[0].mxu0
        %v3877 = vadd.f32 %v3739, %v3876
        %3878 = vdwg.mxu0
        %v3879 = vld [vmem:[%s21] sm:$0xff]
        %v3880 = vld [vmem:[%s21 + $0x8] sm:$0xff]
        %v3881 = vld [vmem:[%s21 + $0x10] sm:$0x1]
        %v3882 = vld [vmem:[%s21 + $0x18] sm:$0x1]
        %v3883 = vld [vmem:[%s20] sm:$0xff]
        %v3884 = vld [vmem:[%s20 + $0x8] sm:$0xff]
        %v3885 = vld [vmem:[%s20 + $0x10] sm:$0xff]
        %v3886 = vld [vmem:[%s20 + $0x18] sm:$0xff]
        %v3887 = vld [vmem:[%s20 + $0x20] sm:$0xff]
        %v3888 = vld [vmem:[%s20 + $0x28] sm:$0xff]
        %v3889 = vld [vmem:[%s20 + $0x30] sm:$0xff]
        %v3890 = vld [vmem:[%s20 + $0x38] sm:$0xff]
        %v3892 = vsel %vm793, %v3883, 0
        %v3895 = vsel %vm793, %v3884, 0
        %v3898 = vsel %vm793, %v3885, 0
        %v3901 = vsel %vm793, %v3886, 0
        %v3904 = vsel %vm793, %v3887, 0
        %v3907 = vsel %vm793, %v3888, 0
        %v3910 = vsel %vm793, %v3889, 0
        %v3913 = vsel %vm793, %v3890, 0
        %3915 = vmatprep.subr.mxu0 %v3835
        %3916 = vmatpush1.msra.mxu0 %v3833
        %3917 = vmatprep.subr.mxu0 %v3841
        %3918 = vmatpush1.msra.mxu0 %v3839
        %3919 = vmatprep.subr.mxu0 %v3847
        %3920 = vmatpush1.msra.mxu0 %v3845
        %3921 = vmatprep.subr.mxu0 %v3853
        %3922 = vmatpush1.msra.mxu0 %v3851
        %3923 = vmatprep.subr.mxu0 %v3859
        %3924 = vmatpush1.msra.mxu0 %v3857
        %3925 = vmatprep.subr.mxu0 %v3865
        %3926 = vmatpush1.msra.mxu0 %v3863
        %3927 = vmatprep.subr.mxu0 %v3871
        %3928 = vmatpush1.msra.mxu0 %v3869
        %3929 = vmatprep.subr.mxu0 %v3877
        %3930 = vmatpush1.msra.mxu0 %v3875
        %3931 = vmatprep.subr.mxu0 0.0
        %3932 = vmatpush1.msra.mxu0 0.0
        %3933 = vmatprep.subr.mxu0 0.0
        %3934 = vmatpush1.msra.mxu0 0.0
        %3935 = vmatprep.subr.mxu0 0.0
        %3936 = vmatpush1.msra.mxu0 0.0
        %3937 = vmatprep.subr.mxu0 0.0
        %3938 = vmatpush1.msra.mxu0 0.0
        %3939 = vmatprep.subr.mxu0 0.0
        %3940 = vmatpush1.msra.mxu0 0.0
        %3941 = vmatprep.subr.mxu0 0.0
        %3942 = vmatpush1.msra.mxu0 0.0
        %3943 = vmatprep.subr.mxu0 0.0
        %3944 = vmatpush1.msra.mxu0 0.0
        %3945 = vmatprep.subr.mxu0 0.0
        %3946 = vmatpush1.msra.mxu0 0.0
        %3947 = vmatprep.subr.mxu0 0.0
        %3948 = vmatpush1.msra.mxu0 0.0
        %3949 = vmatprep.subr.mxu0 0.0
        %3950 = vmatpush1.msra.mxu0 0.0
        %3951 = vmatprep.subr.mxu0 0.0
        %3952 = vmatpush1.msra.mxu0 0.0
        %3953 = vmatprep.subr.mxu0 0.0
        %3954 = vmatpush1.msra.mxu0 0.0
        %3955 = vmatprep.subr.mxu0 0.0
        %3956 = vmatpush1.msra.mxu0 0.0
        %3957 = vmatprep.subr.mxu0 0.0
        %3958 = vmatpush1.msra.mxu0 0.0
        %3959 = vmatprep.subr.mxu0 0.0
        %3960 = vmatpush1.msra.mxu0 0.0
        %3961 = vmatprep.subr.mxu0 0.0
        %3962 = vmatpush1.msra.mxu0 0.0
        %3963 = vmatprep.subr.mxu0 0.0
        %3964 = vmatpush1.msra.mxu0 0.0
        %3965 = vmatprep.subr.mxu0 0.0
        %3966 = vmatpush1.msra.mxu0 0.0
        %3967 = vmatprep.subr.mxu0 0.0
        %3968 = vmatpush1.msra.mxu0 0.0
        %3969 = vmatprep.subr.mxu0 0.0
        %3970 = vmatpush1.msra.mxu0 0.0
        %3971 = vmatprep.subr.mxu0 0.0
        %3972 = vmatpush1.msra.mxu0 0.0
        %3973 = vmatprep.subr.mxu0 0.0
        %3974 = vmatpush1.msra.mxu0 0.0
        %3975 = vmatprep.subr.mxu0 0.0
        %3976 = vmatpush1.msra.mxu0 0.0
        %3977 = vmatprep.subr.mxu0 0.0
        %3978 = vmatpush1.msra.mxu0 0.0
        %3979 = vmatprep.mubr.f32.mxu0 0.0
        %3980 = vmatmul.mubr.f32.gmra.mrb[0].mxu0 %v3892
        %v3981 = vpop.f32.mrb[0].mxu0
        %v3982 = vadd.f32 0.0, %v3981
        %v3983 = vpop.f32.mrb[0].mxu0
        %v3984 = vadd.f32 0.0, %v3983
        %3985 = vmatprep.mubr.f32.mxu0 0.0
        %3986 = vmatmul.mubr.f32.gmra.mrb[0].mxu0 %v3895
        %v3987 = vpop.f32.mrb[0].mxu0
        %v3988 = vadd.f32 0.0, %v3987
        %v3989 = vpop.f32.mrb[0].mxu0
        %v3990 = vadd.f32 0.0, %v3989
        %3991 = vmatprep.mubr.f32.mxu0 0.0
        %3992 = vmatmul.mubr.f32.gmra.mrb[0].mxu0 %v3898
        %v3993 = vpop.f32.mrb[0].mxu0
        %v3994 = vadd.f32 0.0, %v3993
        %v3995 = vpop.f32.mrb[0].mxu0
        %v3996 = vadd.f32 0.0, %v3995
        %3997 = vmatprep.mubr.f32.mxu0 0.0
        %3998 = vmatmul.mubr.f32.gmra.mrb[0].mxu0 %v3901
        %v3999 = vpop.f32.mrb[0].mxu0
        %v4000 = vadd.f32 0.0, %v3999
        %v4001 = vpop.f32.mrb[0].mxu0
        %v4002 = vadd.f32 0.0, %v4001
        %4003 = vmatprep.mubr.f32.mxu0 0.0
        %4004 = vmatmul.mubr.f32.gmra.mrb[0].mxu0 %v3904
        %v4005 = vpop.f32.mrb[0].mxu0
        %v4006 = vadd.f32 0.0, %v4005
        %v4007 = vpop.f32.mrb[0].mxu0
        %v4008 = vadd.f32 0.0, %v4007
        %4009 = vmatprep.mubr.f32.mxu0 0.0
        %4010 = vmatmul.mubr.f32.gmra.mrb[0].mxu0 %v3907
        %v4011 = vpop.f32.mrb[0].mxu0
        %v4012 = vadd.f32 0.0, %v4011
        %v4013 = vpop.f32.mrb[0].mxu0
        %v4014 = vadd.f32 0.0, %v4013
        %4015 = vmatprep.mubr.f32.mxu0 0.0
        %4016 = vmatmul.mubr.f32.gmra.mrb[0].mxu0 %v3910
        %v4017 = vpop.f32.mrb[0].mxu0
        %v4018 = vadd.f32 0.0, %v4017
        %v4019 = vpop.f32.mrb[0].mxu0
        %v4020 = vadd.f32 0.0, %v4019
        %4021 = vmatprep.mubr.f32.mxu0 0.0
        %4022 = vmatmul.mubr.f32.gmra.mrb[0].mxu0 %v3913
        %v4023 = vpop.f32.mrb[0].mxu0
        %v4024 = vadd.f32 0.0, %v4023
        %v4025 = vpop.f32.mrb[0].mxu0
        %v4026 = vadd.f32 0.0, %v4025
        %4027 = vdwg.mxu0
        %v4028 = vlaneseq
        %v4029 = vshrl.u32 %v4028, 7
        %v4030 = vsub.s32 0, %v4029
        %v4031 = vrot.slane %v3879, %v4030
        %v4032 = vlaneseq
        %v4033 = vshrl.u32 %v4032, 7
        %v4034 = vsub.s32 0, %v4033
        %v4035 = vrot.slane %v3880, %v4034
        %v4036 = vmul.f32 %v3982, %v4031
        %v4037 = vmul.f32 %v3984, %v4035
        %v4038 = vmul.f32 %v3988, %v4031
        %v4039 = vmul.f32 %v3990, %v4035
        %v4040 = vmul.f32 %v3994, %v4031
        %v4041 = vmul.f32 %v3996, %v4035
        %v4042 = vmul.f32 %v4000, %v4031
        %v4043 = vmul.f32 %v4002, %v4035
        %v4044 = vmul.f32 %v4006, %v4031
        %v4045 = vmul.f32 %v4008, %v4035
        %v4046 = vmul.f32 %v4012, %v4031
        %v4047 = vmul.f32 %v4014, %v4035
        %v4048 = vmul.f32 %v4018, %v4031
        %v4049 = vmul.f32 %v4020, %v4035
        %v4050 = vmul.f32 %v4024, %v4031
        %v4051 = vmul.f32 %v4026, %v4035
        %v4052 = vadd.f32 %v4036, 0.0
        %v4053 = vadd.f32 %v4037, 0.0
        %v4054 = vadd.f32 %v4038, 0.0
        %v4055 = vadd.f32 %v4039, 0.0
        %v4056 = vadd.f32 %v4040, 0.0
        %v4057 = vadd.f32 %v4041, 0.0
        %v4058 = vadd.f32 %v4042, 0.0
        %v4059 = vadd.f32 %v4043, 0.0
        %v4060 = vadd.f32 %v4044, 0.0
        %v4061 = vadd.f32 %v4045, 0.0
        %v4062 = vadd.f32 %v4046, 0.0
        %v4063 = vadd.f32 %v4047, 0.0
        %v4064 = vadd.f32 %v4048, 0.0
        %v4065 = vadd.f32 %v4049, 0.0
        %v4066 = vadd.f32 %v4050, 0.0
        %v4067 = vadd.f32 %v4051, 0.0
        %s4068 = scalar_lea.vmem %s20, 64
        %v4069 = vld [vmem:[%s4068] sm:$0xff]
        %v4070 = vld [vmem:[%s4068 + $0x8] sm:$0xff]
        %v4071 = vld [vmem:[%s4068 + $0x10] sm:$0xff]
        %v4072 = vld [vmem:[%s4068 + $0x18] sm:$0xff]
        %v4073 = vld [vmem:[%s4068 + $0x20] sm:$0xff]
        %v4074 = vld [vmem:[%s4068 + $0x28] sm:$0xff]
        %v4075 = vld [vmem:[%s4068 + $0x30] sm:$0xff]
        %v4076 = vld [vmem:[%s4068 + $0x38] sm:$0xff]
        %v4078 = vsel %vm793, %v4069, 0
        %v4081 = vsel %vm793, %v4070, 0
        %v4084 = vsel %vm793, %v4071, 0
        %v4087 = vsel %vm793, %v4072, 0
        %v4090 = vsel %vm793, %v4073, 0
        %v4093 = vsel %vm793, %v4074, 0
        %v4096 = vsel %vm793, %v4075, 0
        %v4099 = vsel %vm793, %v4076, 0
        %4101 = vmatprep.subr.mxu0 %v3835
        %4102 = vmatpush1.msra.mxu0 %v3833
        %4103 = vmatprep.subr.mxu0 %v3841
        %4104 = vmatpush1.msra.mxu0 %v3839
        %4105 = vmatprep.subr.mxu0 %v3847
        %4106 = vmatpush1.msra.mxu0 %v3845
        %4107 = vmatprep.subr.mxu0 %v3853
        %4108 = vmatpush1.msra.mxu0 %v3851
        %4109 = vmatprep.subr.mxu0 %v3859
        %4110 = vmatpush1.msra.mxu0 %v3857
        %4111 = vmatprep.subr.mxu0 %v3865
        %4112 = vmatpush1.msra.mxu0 %v3863
        %4113 = vmatprep.subr.mxu0 %v3871
        %4114 = vmatpush1.msra.mxu0 %v3869
        %4115 = vmatprep.subr.mxu0 %v3877
        %4116 = vmatpush1.msra.mxu0 %v3875
        %4117 = vmatprep.subr.mxu0 0.0
        %4118 = vmatpush1.msra.mxu0 0.0
        %4119 = vmatprep.subr.mxu0 0.0
        %4120 = vmatpush1.msra.mxu0 0.0
        %4121 = vmatprep.subr.mxu0 0.0
        %4122 = vmatpush1.msra.mxu0 0.0
        %4123 = vmatprep.subr.mxu0 0.0
        %4124 = vmatpush1.msra.mxu0 0.0
        %4125 = vmatprep.subr.mxu0 0.0
        %4126 = vmatpush1.msra.mxu0 0.0
        %4127 = vmatprep.subr.mxu0 0.0
        %4128 = vmatpush1.msra.mxu0 0.0
        %4129 = vmatprep.subr.mxu0 0.0
        %4130 = vmatpush1.msra.mxu0 0.0
        %4131 = vmatprep.subr.mxu0 0.0
        %4132 = vmatpush1.msra.mxu0 0.0
        %4133 = vmatprep.subr.mxu0 0.0
        %4134 = vmatpush1.msra.mxu0 0.0
        %4135 = vmatprep.subr.mxu0 0.0
        %4136 = vmatpush1.msra.mxu0 0.0
        %4137 = vmatprep.subr.mxu0 0.0
        %4138 = vmatpush1.msra.mxu0 0.0
        %4139 = vmatprep.subr.mxu0 0.0
        %4140 = vmatpush1.msra.mxu0 0.0
        %4141 = vmatprep.subr.mxu0 0.0
        %4142 = vmatpush1.msra.mxu0 0.0
        %4143 = vmatprep.subr.mxu0 0.0
        %4144 = vmatpush1.msra.mxu0 0.0
        %4145 = vmatprep.subr.mxu0 0.0
        %4146 = vmatpush1.msra.mxu0 0.0
        %4147 = vmatprep.subr.mxu0 0.0
        %4148 = vmatpush1.msra.mxu0 0.0
        %4149 = vmatprep.subr.mxu0 0.0
        %4150 = vmatpush1.msra.mxu0 0.0
        %4151 = vmatprep.subr.mxu0 0.0
        %4152 = vmatpush1.msra.mxu0 0.0
        %4153 = vmatprep.subr.mxu0 0.0
        %4154 = vmatpush1.msra.mxu0 0.0
        %4155 = vmatprep.subr.mxu0 0.0
        %4156 = vmatpush1.msra.mxu0 0.0
        %4157 = vmatprep.subr.mxu0 0.0
        %4158 = vmatpush1.msra.mxu0 0.0
        %4159 = vmatprep.subr.mxu0 0.0
        %4160 = vmatpush1.msra.mxu0 0.0
        %4161 = vmatprep.subr.mxu0 0.0
        %4162 = vmatpush1.msra.mxu0 0.0
        %4163 = vmatprep.subr.mxu0 0.0
        %4164 = vmatpush1.msra.mxu0 0.0
        %4165 = vmatprep.mubr.f32.mxu0 0.0
        %4166 = vmatmul.mubr.f32.gmra.mrb[0].mxu0 %v4078
        %v4167 = vpop.f32.mrb[0].mxu0
        %v4168 = vadd.f32 0.0, %v4167
        %v4169 = vpop.f32.mrb[0].mxu0
        %v4170 = vadd.f32 0.0, %v4169
        %4171 = vmatprep.mubr.f32.mxu0 0.0
        %4172 = vmatmul.mubr.f32.gmra.mrb[0].mxu0 %v4081
        %v4173 = vpop.f32.mrb[0].mxu0
        %v4174 = vadd.f32 0.0, %v4173
        %v4175 = vpop.f32.mrb[0].mxu0
        %v4176 = vadd.f32 0.0, %v4175
        %4177 = vmatprep.mubr.f32.mxu0 0.0
        %4178 = vmatmul.mubr.f32.gmra.mrb[0].mxu0 %v4084
        %v4179 = vpop.f32.mrb[0].mxu0
        %v4180 = vadd.f32 0.0, %v4179
        %v4181 = vpop.f32.mrb[0].mxu0
        %v4182 = vadd.f32 0.0, %v4181
        %4183 = vmatprep.mubr.f32.mxu0 0.0
        %4184 = vmatmul.mubr.f32.gmra.mrb[0].mxu0 %v4087
        %v4185 = vpop.f32.mrb[0].mxu0
        %v4186 = vadd.f32 0.0, %v4185
        %v4187 = vpop.f32.mrb[0].mxu0
        %v4188 = vadd.f32 0.0, %v4187
        %4189 = vmatprep.mubr.f32.mxu0 0.0
        %4190 = vmatmul.mubr.f32.gmra.mrb[0].mxu0 %v4090
        %v4191 = vpop.f32.mrb[0].mxu0
        %v4192 = vadd.f32 0.0, %v4191
        %v4193 = vpop.f32.mrb[0].mxu0
        %v4194 = vadd.f32 0.0, %v4193
        %4195 = vmatprep.mubr.f32.mxu0 0.0
        %4196 = vmatmul.mubr.f32.gmra.mrb[0].mxu0 %v4093
        %v4197 = vpop.f32.mrb[0].mxu0
        %v4198 = vadd.f32 0.0, %v4197
        %v4199 = vpop.f32.mrb[0].mxu0
        %v4200 = vadd.f32 0.0, %v4199
        %4201 = vmatprep.mubr.f32.mxu0 0.0
        %4202 = vmatmul.mubr.f32.gmra.mrb[0].mxu0 %v4096
        %v4203 = vpop.f32.mrb[0].mxu0
        %v4204 = vadd.f32 0.0, %v4203
        %v4205 = vpop.f32.mrb[0].mxu0
        %v4206 = vadd.f32 0.0, %v4205
        %4207 = vmatprep.mubr.f32.mxu0 0.0
        %4208 = vmatmul.mubr.f32.gmra.mrb[0].mxu0 %v4099
        %v4209 = vpop.f32.mrb[0].mxu0
        %v4210 = vadd.f32 0.0, %v4209
        %v4211 = vpop.f32.mrb[0].mxu0
        %v4212 = vadd.f32 0.0, %v4211
        %4213 = vdwg.mxu0
        %v4214 = vlaneseq
        %v4215 = vshrl.u32 %v4214, 7
        %v4216 = vsub.s32 1, %v4215
        %v4217 = vrot.slane %v3879, %v4216
        %v4218 = vlaneseq
        %v4219 = vshrl.u32 %v4218, 7
        %v4220 = vsub.s32 1, %v4219
        %v4221 = vrot.slane %v3880, %v4220
        %v4222 = vmul.f32 %v4168, %v4217
        %v4223 = vmul.f32 %v4170, %v4221
        %v4224 = vmul.f32 %v4174, %v4217
        %v4225 = vmul.f32 %v4176, %v4221
        %v4226 = vmul.f32 %v4180, %v4217
        %v4227 = vmul.f32 %v4182, %v4221
        %v4228 = vmul.f32 %v4186, %v4217
        %v4229 = vmul.f32 %v4188, %v4221
        %v4230 = vmul.f32 %v4192, %v4217
        %v4231 = vmul.f32 %v4194, %v4221
        %v4232 = vmul.f32 %v4198, %v4217
        %v4233 = vmul.f32 %v4200, %v4221
        %v4234 = vmul.f32 %v4204, %v4217
        %v4235 = vmul.f32 %v4206, %v4221
        %v4236 = vmul.f32 %v4210, %v4217
        %v4237 = vmul.f32 %v4212, %v4221
        %v4238 = vadd.f32 %v4052, %v4222
        %v4239 = vadd.f32 %v4053, %v4223
        %v4240 = vadd.f32 %v4054, %v4224
        %v4241 = vadd.f32 %v4055, %v4225
        %v4242 = vadd.f32 %v4056, %v4226
        %v4243 = vadd.f32 %v4057, %v4227
        %v4244 = vadd.f32 %v4058, %v4228
        %v4245 = vadd.f32 %v4059, %v4229
        %v4246 = vadd.f32 %v4060, %v4230
        %v4247 = vadd.f32 %v4061, %v4231
        %v4248 = vadd.f32 %v4062, %v4232
        %v4249 = vadd.f32 %v4063, %v4233
        %v4250 = vadd.f32 %v4064, %v4234
        %v4251 = vadd.f32 %v4065, %v4235
        %v4252 = vadd.f32 %v4066, %v4236
        %v4253 = vadd.f32 %v4067, %v4237
        %s4254 = scalar_lea.vmem %s20, 128
        %v4255 = vld [vmem:[%s4254] sm:$0xff]
        %v4256 = vld [vmem:[%s4254 + $0x8] sm:$0xff]
        %v4257 = vld [vmem:[%s4254 + $0x10] sm:$0xff]
        %v4258 = vld [vmem:[%s4254 + $0x18] sm:$0xff]
        %v4259 = vld [vmem:[%s4254 + $0x20] sm:$0xff]
        %v4260 = vld [vmem:[%s4254 + $0x28] sm:$0xff]
        %v4261 = vld [vmem:[%s4254 + $0x30] sm:$0xff]
        %v4262 = vld [vmem:[%s4254 + $0x38] sm:$0xff]
        %v4264 = vsel %vm793, %v4255, 0
        %v4267 = vsel %vm793, %v4256, 0
        %v4270 = vsel %vm793, %v4257, 0
        %v4273 = vsel %vm793, %v4258, 0
        %v4276 = vsel %vm793, %v4259, 0
        %v4279 = vsel %vm793, %v4260, 0
        %v4282 = vsel %vm793, %v4261, 0
        %v4285 = vsel %vm793, %v4262, 0
        %4287 = vmatprep.subr.mxu0 %v3835
        %4288 = vmatpush1.msra.mxu0 %v3833
        %4289 = vmatprep.subr.mxu0 %v3841
        %4290 = vmatpush1.msra.mxu0 %v3839
        %4291 = vmatprep.subr.mxu0 %v3847
        %4292 = vmatpush1.msra.mxu0 %v3845
        %4293 = vmatprep.subr.mxu0 %v3853
        %4294 = vmatpush1.msra.mxu0 %v3851
        %4295 = vmatprep.subr.mxu0 %v3859
        %4296 = vmatpush1.msra.mxu0 %v3857
        %4297 = vmatprep.subr.mxu0 %v3865
        %4298 = vmatpush1.msra.mxu0 %v3863
        %4299 = vmatprep.subr.mxu0 %v3871
        %4300 = vmatpush1.msra.mxu0 %v3869
        %4301 = vmatprep.subr.mxu0 %v3877
        %4302 = vmatpush1.msra.mxu0 %v3875
        %4303 = vmatprep.subr.mxu0 0.0
        %4304 = vmatpush1.msra.mxu0 0.0
        %4305 = vmatprep.subr.mxu0 0.0
        %4306 = vmatpush1.msra.mxu0 0.0
        %4307 = vmatprep.subr.mxu0 0.0
        %4308 = vmatpush1.msra.mxu0 0.0
        %4309 = vmatprep.subr.mxu0 0.0
        %4310 = vmatpush1.msra.mxu0 0.0
        %4311 = vmatprep.subr.mxu0 0.0
        %4312 = vmatpush1.msra.mxu0 0.0
        %4313 = vmatprep.subr.mxu0 0.0
        %4314 = vmatpush1.msra.mxu0 0.0
        %4315 = vmatprep.subr.mxu0 0.0
        %4316 = vmatpush1.msra.mxu0 0.0
        %4317 = vmatprep.subr.mxu0 0.0
        %4318 = vmatpush1.msra.mxu0 0.0
        %4319 = vmatprep.subr.mxu0 0.0
        %4320 = vmatpush1.msra.mxu0 0.0
        %4321 = vmatprep.subr.mxu0 0.0
        %4322 = vmatpush1.msra.mxu0 0.0
        %4323 = vmatprep.subr.mxu0 0.0
        %4324 = vmatpush1.msra.mxu0 0.0
        %4325 = vmatprep.subr.mxu0 0.0
        %4326 = vmatpush1.msra.mxu0 0.0
        %4327 = vmatprep.subr.mxu0 0.0
        %4328 = vmatpush1.msra.mxu0 0.0
        %4329 = vmatprep.subr.mxu0 0.0
        %4330 = vmatpush1.msra.mxu0 0.0
        %4331 = vmatprep.subr.mxu0 0.0
        %4332 = vmatpush1.msra.mxu0 0.0
        %4333 = vmatprep.subr.mxu0 0.0
        %4334 = vmatpush1.msra.mxu0 0.0
        %4335 = vmatprep.subr.mxu0 0.0
        %4336 = vmatpush1.msra.mxu0 0.0
        %4337 = vmatprep.subr.mxu0 0.0
        %4338 = vmatpush1.msra.mxu0 0.0
        %4339 = vmatprep.subr.mxu0 0.0
        %4340 = vmatpush1.msra.mxu0 0.0
        %4341 = vmatprep.subr.mxu0 0.0
        %4342 = vmatpush1.msra.mxu0 0.0
        %4343 = vmatprep.subr.mxu0 0.0
        %4344 = vmatpush1.msra.mxu0 0.0
        %4345 = vmatprep.subr.mxu0 0.0
        %4346 = vmatpush1.msra.mxu0 0.0
        %4347 = vmatprep.subr.mxu0 0.0
        %4348 = vmatpush1.msra.mxu0 0.0
        %4349 = vmatprep.subr.mxu0 0.0
        %4350 = vmatpush1.msra.mxu0 0.0
        %4351 = vmatprep.mubr.f32.mxu0 0.0
        %4352 = vmatmul.mubr.f32.gmra.mrb[0].mxu0 %v4264
        %v4353 = vpop.f32.mrb[0].mxu0
        %v4354 = vadd.f32 0.0, %v4353
        %v4355 = vpop.f32.mrb[0].mxu0
        %v4356 = vadd.f32 0.0, %v4355
        %4357 = vmatprep.mubr.f32.mxu0 0.0
        %4358 = vmatmul.mubr.f32.gmra.mrb[0].mxu0 %v4267
        %v4359 = vpop.f32.mrb[0].mxu0
        %v4360 = vadd.f32 0.0, %v4359
        %v4361 = vpop.f32.mrb[0].mxu0
        %v4362 = vadd.f32 0.0, %v4361
        %4363 = vmatprep.mubr.f32.mxu0 0.0
        %4364 = vmatmul.mubr.f32.gmra.mrb[0].mxu0 %v4270
        %v4365 = vpop.f32.mrb[0].mxu0
        %v4366 = vadd.f32 0.0, %v4365
        %v4367 = vpop.f32.mrb[0].mxu0
        %v4368 = vadd.f32 0.0, %v4367
        %4369 = vmatprep.mubr.f32.mxu0 0.0
        %4370 = vmatmul.mubr.f32.gmra.mrb[0].mxu0 %v4273
        %v4371 = vpop.f32.mrb[0].mxu0
        %v4372 = vadd.f32 0.0, %v4371
        %v4373 = vpop.f32.mrb[0].mxu0
        %v4374 = vadd.f32 0.0, %v4373
        %4375 = vmatprep.mubr.f32.mxu0 0.0
        %4376 = vmatmul.mubr.f32.gmra.mrb[0].mxu0 %v4276
        %v4377 = vpop.f32.mrb[0].mxu0
        %v4378 = vadd.f32 0.0, %v4377
        %v4379 = vpop.f32.mrb[0].mxu0
        %v4380 = vadd.f32 0.0, %v4379
        %4381 = vmatprep.mubr.f32.mxu0 0.0
        %4382 = vmatmul.mubr.f32.gmra.mrb[0].mxu0 %v4279
        %v4383 = vpop.f32.mrb[0].mxu0
        %v4384 = vadd.f32 0.0, %v4383
        %v4385 = vpop.f32.mrb[0].mxu0
        %v4386 = vadd.f32 0.0, %v4385
        %4387 = vmatprep.mubr.f32.mxu0 0.0
        %4388 = vmatmul.mubr.f32.gmra.mrb[0].mxu0 %v4282
        %v4389 = vpop.f32.mrb[0].mxu0
        %v4390 = vadd.f32 0.0, %v4389
        %v4391 = vpop.f32.mrb[0].mxu0
        %v4392 = vadd.f32 0.0, %v4391
        %4393 = vmatprep.mubr.f32.mxu0 0.0
        %4394 = vmatmul.mubr.f32.gmra.mrb[0].mxu0 %v4285
        %v4395 = vpop.f32.mrb[0].mxu0
        %v4396 = vadd.f32 0.0, %v4395
        %v4397 = vpop.f32.mrb[0].mxu0
        %v4398 = vadd.f32 0.0, %v4397
        %4399 = vdwg.mxu0
        %v4400 = vlaneseq
        %v4401 = vshrl.u32 %v4400, 7
        %v4402 = vsub.s32 2, %v4401
        %v4403 = vrot.slane %v3879, %v4402
        %v4404 = vlaneseq
        %v4405 = vshrl.u32 %v4404, 7
        %v4406 = vsub.s32 2, %v4405
        %v4407 = vrot.slane %v3880, %v4406
        %v4408 = vmul.f32 %v4354, %v4403
        %v4409 = vmul.f32 %v4356, %v4407
        %v4410 = vmul.f32 %v4360, %v4403
        %v4411 = vmul.f32 %v4362, %v4407
        %v4412 = vmul.f32 %v4366, %v4403
        %v4413 = vmul.f32 %v4368, %v4407
        %v4414 = vmul.f32 %v4372, %v4403
        %v4415 = vmul.f32 %v4374, %v4407
        %v4416 = vmul.f32 %v4378, %v4403
        %v4417 = vmul.f32 %v4380, %v4407
        %v4418 = vmul.f32 %v4384, %v4403
        %v4419 = vmul.f32 %v4386, %v4407
        %v4420 = vmul.f32 %v4390, %v4403
        %v4421 = vmul.f32 %v4392, %v4407
        %v4422 = vmul.f32 %v4396, %v4403
        %v4423 = vmul.f32 %v4398, %v4407
        %v4424 = vadd.f32 %v4238, %v4408
        %v4425 = vadd.f32 %v4239, %v4409
        %v4426 = vadd.f32 %v4240, %v4410
        %v4427 = vadd.f32 %v4241, %v4411
        %v4428 = vadd.f32 %v4242, %v4412
        %v4429 = vadd.f32 %v4243, %v4413
        %v4430 = vadd.f32 %v4244, %v4414
        %v4431 = vadd.f32 %v4245, %v4415
        %v4432 = vadd.f32 %v4246, %v4416
        %v4433 = vadd.f32 %v4247, %v4417
        %v4434 = vadd.f32 %v4248, %v4418
        %v4435 = vadd.f32 %v4249, %v4419
        %v4436 = vadd.f32 %v4250, %v4420
        %v4437 = vadd.f32 %v4251, %v4421
        %v4438 = vadd.f32 %v4252, %v4422
        %v4439 = vadd.f32 %v4253, %v4423
        %s4440 = scalar_lea.vmem %s20, 192
        %v4441 = vld [vmem:[%s4440] sm:$0xff]
        %v4442 = vld [vmem:[%s4440 + $0x8] sm:$0xff]
        %v4443 = vld [vmem:[%s4440 + $0x10] sm:$0xff]
        %v4444 = vld [vmem:[%s4440 + $0x18] sm:$0xff]
        %v4445 = vld [vmem:[%s4440 + $0x20] sm:$0xff]
        %v4446 = vld [vmem:[%s4440 + $0x28] sm:$0xff]
        %v4447 = vld [vmem:[%s4440 + $0x30] sm:$0xff]
        %v4448 = vld [vmem:[%s4440 + $0x38] sm:$0xff]
        %v4450 = vsel %vm793, %v4441, 0
        %v4453 = vsel %vm793, %v4442, 0
        %v4456 = vsel %vm793, %v4443, 0
        %v4459 = vsel %vm793, %v4444, 0
        %v4462 = vsel %vm793, %v4445, 0
        %v4465 = vsel %vm793, %v4446, 0
        %v4468 = vsel %vm793, %v4447, 0
        %v4471 = vsel %vm793, %v4448, 0
        %4473 = vmatprep.subr.mxu0 %v3835
        %4474 = vmatpush1.msra.mxu0 %v3833
        %4475 = vmatprep.subr.mxu0 %v3841
        %4476 = vmatpush1.msra.mxu0 %v3839
        %4477 = vmatprep.subr.mxu0 %v3847
        %4478 = vmatpush1.msra.mxu0 %v3845
        %4479 = vmatprep.subr.mxu0 %v3853
        %4480 = vmatpush1.msra.mxu0 %v3851
        %4481 = vmatprep.subr.mxu0 %v3859
        %4482 = vmatpush1.msra.mxu0 %v3857
        %4483 = vmatprep.subr.mxu0 %v3865
        %4484 = vmatpush1.msra.mxu0 %v3863
        %4485 = vmatprep.subr.mxu0 %v3871
        %4486 = vmatpush1.msra.mxu0 %v3869
        %4487 = vmatprep.subr.mxu0 %v3877
        %4488 = vmatpush1.msra.mxu0 %v3875
        %4489 = vmatprep.subr.mxu0 0.0
        %4490 = vmatpush1.msra.mxu0 0.0
        %4491 = vmatprep.subr.mxu0 0.0
        %4492 = vmatpush1.msra.mxu0 0.0
        %4493 = vmatprep.subr.mxu0 0.0
        %4494 = vmatpush1.msra.mxu0 0.0
        %4495 = vmatprep.subr.mxu0 0.0
        %4496 = vmatpush1.msra.mxu0 0.0
        %4497 = vmatprep.subr.mxu0 0.0
        %4498 = vmatpush1.msra.mxu0 0.0
        %4499 = vmatprep.subr.mxu0 0.0
        %4500 = vmatpush1.msra.mxu0 0.0
        %4501 = vmatprep.subr.mxu0 0.0
        %4502 = vmatpush1.msra.mxu0 0.0
        %4503 = vmatprep.subr.mxu0 0.0
        %4504 = vmatpush1.msra.mxu0 0.0
        %4505 = vmatprep.subr.mxu0 0.0
        %4506 = vmatpush1.msra.mxu0 0.0
        %4507 = vmatprep.subr.mxu0 0.0
        %4508 = vmatpush1.msra.mxu0 0.0
        %4509 = vmatprep.subr.mxu0 0.0
        %4510 = vmatpush1.msra.mxu0 0.0
        %4511 = vmatprep.subr.mxu0 0.0
        %4512 = vmatpush1.msra.mxu0 0.0
        %4513 = vmatprep.subr.mxu0 0.0
        %4514 = vmatpush1.msra.mxu0 0.0
        %4515 = vmatprep.subr.mxu0 0.0
        %4516 = vmatpush1.msra.mxu0 0.0
        %4517 = vmatprep.subr.mxu0 0.0
        %4518 = vmatpush1.msra.mxu0 0.0
        %4519 = vmatprep.subr.mxu0 0.0
        %4520 = vmatpush1.msra.mxu0 0.0
        %4521 = vmatprep.subr.mxu0 0.0
        %4522 = vmatpush1.msra.mxu0 0.0
        %4523 = vmatprep.subr.mxu0 0.0
        %4524 = vmatpush1.msra.mxu0 0.0
        %4525 = vmatprep.subr.mxu0 0.0
        %4526 = vmatpush1.msra.mxu0 0.0
        %4527 = vmatprep.subr.mxu0 0.0
        %4528 = vmatpush1.msra.mxu0 0.0
        %4529 = vmatprep.subr.mxu0 0.0
        %4530 = vmatpush1.msra.mxu0 0.0
        %4531 = vmatprep.subr.mxu0 0.0
        %4532 = vmatpush1.msra.mxu0 0.0
        %4533 = vmatprep.subr.mxu0 0.0
        %4534 = vmatpush1.msra.mxu0 0.0
        %4535 = vmatprep.subr.mxu0 0.0
        %4536 = vmatpush1.msra.mxu0 0.0
        %4537 = vmatprep.mubr.f32.mxu0 0.0
        %4538 = vmatmul.mubr.f32.gmra.mrb[0].mxu0 %v4450
        %v4539 = vpop.f32.mrb[0].mxu0
        %v4540 = vadd.f32 0.0, %v4539
        %v4541 = vpop.f32.mrb[0].mxu0
        %v4542 = vadd.f32 0.0, %v4541
        %4543 = vmatprep.mubr.f32.mxu0 0.0
        %4544 = vmatmul.mubr.f32.gmra.mrb[0].mxu0 %v4453
        %v4545 = vpop.f32.mrb[0].mxu0
        %v4546 = vadd.f32 0.0, %v4545
        %v4547 = vpop.f32.mrb[0].mxu0
        %v4548 = vadd.f32 0.0, %v4547
        %4549 = vmatprep.mubr.f32.mxu0 0.0
        %4550 = vmatmul.mubr.f32.gmra.mrb[0].mxu0 %v4456
        %v4551 = vpop.f32.mrb[0].mxu0
        %v4552 = vadd.f32 0.0, %v4551
        %v4553 = vpop.f32.mrb[0].mxu0
        %v4554 = vadd.f32 0.0, %v4553
        %4555 = vmatprep.mubr.f32.mxu0 0.0
        %4556 = vmatmul.mubr.f32.gmra.mrb[0].mxu0 %v4459
        %v4557 = vpop.f32.mrb[0].mxu0
        %v4558 = vadd.f32 0.0, %v4557
        %v4559 = vpop.f32.mrb[0].mxu0
        %v4560 = vadd.f32 0.0, %v4559
        %4561 = vmatprep.mubr.f32.mxu0 0.0
        %4562 = vmatmul.mubr.f32.gmra.mrb[0].mxu0 %v4462
        %v4563 = vpop.f32.mrb[0].mxu0
        %v4564 = vadd.f32 0.0, %v4563
        %v4565 = vpop.f32.mrb[0].mxu0
        %v4566 = vadd.f32 0.0, %v4565
        %4567 = vmatprep.mubr.f32.mxu0 0.0
        %4568 = vmatmul.mubr.f32.gmra.mrb[0].mxu0 %v4465
        %v4569 = vpop.f32.mrb[0].mxu0
        %v4570 = vadd.f32 0.0, %v4569
        %v4571 = vpop.f32.mrb[0].mxu0
        %v4572 = vadd.f32 0.0, %v4571
        %4573 = vmatprep.mubr.f32.mxu0 0.0
        %4574 = vmatmul.mubr.f32.gmra.mrb[0].mxu0 %v4468
        %v4575 = vpop.f32.mrb[0].mxu0
        %v4576 = vadd.f32 0.0, %v4575
        %v4577 = vpop.f32.mrb[0].mxu0
        %v4578 = vadd.f32 0.0, %v4577
        %4579 = vmatprep.mubr.f32.mxu0 0.0
        %4580 = vmatmul.mubr.f32.gmra.mrb[0].mxu0 %v4471
        %v4581 = vpop.f32.mrb[0].mxu0
        %v4582 = vadd.f32 0.0, %v4581
        %v4583 = vpop.f32.mrb[0].mxu0
        %v4584 = vadd.f32 0.0, %v4583
        %4585 = vdwg.mxu0
        %v4586 = vlaneseq
        %v4587 = vshrl.u32 %v4586, 7
        %v4588 = vsub.s32 3, %v4587
        %v4589 = vrot.slane %v3879, %v4588
        %v4590 = vlaneseq
        %v4591 = vshrl.u32 %v4590, 7
        %v4592 = vsub.s32 3, %v4591
        %v4593 = vrot.slane %v3880, %v4592
        %v4594 = vmul.f32 %v4540, %v4589
        %v4595 = vmul.f32 %v4542, %v4593
        %v4596 = vmul.f32 %v4546, %v4589
        %v4597 = vmul.f32 %v4548, %v4593
        %v4598 = vmul.f32 %v4552, %v4589
        %v4599 = vmul.f32 %v4554, %v4593
        %v4600 = vmul.f32 %v4558, %v4589
        %v4601 = vmul.f32 %v4560, %v4593
        %v4602 = vmul.f32 %v4564, %v4589
        %v4603 = vmul.f32 %v4566, %v4593
        %v4604 = vmul.f32 %v4570, %v4589
        %v4605 = vmul.f32 %v4572, %v4593
        %v4606 = vmul.f32 %v4576, %v4589
        %v4607 = vmul.f32 %v4578, %v4593
        %v4608 = vmul.f32 %v4582, %v4589
        %v4609 = vmul.f32 %v4584, %v4593
        %v4610 = vadd.f32 %v4424, %v4594
        %v4611 = vadd.f32 %v4425, %v4595
        %v4612 = vadd.f32 %v4426, %v4596
        %v4613 = vadd.f32 %v4427, %v4597
        %v4614 = vadd.f32 %v4428, %v4598
        %v4615 = vadd.f32 %v4429, %v4599
        %v4616 = vadd.f32 %v4430, %v4600
        %v4617 = vadd.f32 %v4431, %v4601
        %v4618 = vadd.f32 %v4432, %v4602
        %v4619 = vadd.f32 %v4433, %v4603
        %v4620 = vadd.f32 %v4434, %v4604
        %v4621 = vadd.f32 %v4435, %v4605
        %v4622 = vadd.f32 %v4436, %v4606
        %v4623 = vadd.f32 %v4437, %v4607
        %v4624 = vadd.f32 %v4438, %v4608
        %v4625 = vadd.f32 %v4439, %v4609
        %s4626 = scalar_lea.vmem %s20, 256
        %v4627 = vld [vmem:[%s4626] sm:$0xff]
        %v4628 = vld [vmem:[%s4626 + $0x8] sm:$0xff]
        %v4629 = vld [vmem:[%s4626 + $0x10] sm:$0xff]
        %v4630 = vld [vmem:[%s4626 + $0x18] sm:$0xff]
        %v4631 = vld [vmem:[%s4626 + $0x20] sm:$0xff]
        %v4632 = vld [vmem:[%s4626 + $0x28] sm:$0xff]
        %v4633 = vld [vmem:[%s4626 + $0x30] sm:$0xff]
        %v4634 = vld [vmem:[%s4626 + $0x38] sm:$0xff]
        %v4636 = vsel %vm793, %v4627, 0
        %v4639 = vsel %vm793, %v4628, 0
        %v4642 = vsel %vm793, %v4629, 0
        %v4645 = vsel %vm793, %v4630, 0
        %v4648 = vsel %vm793, %v4631, 0
        %v4651 = vsel %vm793, %v4632, 0
        %v4654 = vsel %vm793, %v4633, 0
        %v4657 = vsel %vm793, %v4634, 0
        %4659 = vmatprep.subr.mxu0 %v3835
        %4660 = vmatpush1.msra.mxu0 %v3833
        %4661 = vmatprep.subr.mxu0 %v3841
        %4662 = vmatpush1.msra.mxu0 %v3839
        %4663 = vmatprep.subr.mxu0 %v3847
        %4664 = vmatpush1.msra.mxu0 %v3845
        %4665 = vmatprep.subr.mxu0 %v3853
        %4666 = vmatpush1.msra.mxu0 %v3851
        %4667 = vmatprep.subr.mxu0 %v3859
        %4668 = vmatpush1.msra.mxu0 %v3857
        %4669 = vmatprep.subr.mxu0 %v3865
        %4670 = vmatpush1.msra.mxu0 %v3863
        %4671 = vmatprep.subr.mxu0 %v3871
        %4672 = vmatpush1.msra.mxu0 %v3869
        %4673 = vmatprep.subr.mxu0 %v3877
        %4674 = vmatpush1.msra.mxu0 %v3875
        %4675 = vmatprep.subr.mxu0 0.0
        %4676 = vmatpush1.msra.mxu0 0.0
        %4677 = vmatprep.subr.mxu0 0.0
        %4678 = vmatpush1.msra.mxu0 0.0
        %4679 = vmatprep.subr.mxu0 0.0
        %4680 = vmatpush1.msra.mxu0 0.0
        %4681 = vmatprep.subr.mxu0 0.0
        %4682 = vmatpush1.msra.mxu0 0.0
        %4683 = vmatprep.subr.mxu0 0.0
        %4684 = vmatpush1.msra.mxu0 0.0
        %4685 = vmatprep.subr.mxu0 0.0
        %4686 = vmatpush1.msra.mxu0 0.0
        %4687 = vmatprep.subr.mxu0 0.0
        %4688 = vmatpush1.msra.mxu0 0.0
        %4689 = vmatprep.subr.mxu0 0.0
        %4690 = vmatpush1.msra.mxu0 0.0
        %4691 = vmatprep.subr.mxu0 0.0
        %4692 = vmatpush1.msra.mxu0 0.0
        %4693 = vmatprep.subr.mxu0 0.0
        %4694 = vmatpush1.msra.mxu0 0.0
        %4695 = vmatprep.subr.mxu0 0.0
        %4696 = vmatpush1.msra.mxu0 0.0
        %4697 = vmatprep.subr.mxu0 0.0
        %4698 = vmatpush1.msra.mxu0 0.0
        %4699 = vmatprep.subr.mxu0 0.0
        %4700 = vmatpush1.msra.mxu0 0.0
        %4701 = vmatprep.subr.mxu0 0.0
        %4702 = vmatpush1.msra.mxu0 0.0
        %4703 = vmatprep.subr.mxu0 0.0
        %4704 = vmatpush1.msra.mxu0 0.0
        %4705 = vmatprep.subr.mxu0 0.0
        %4706 = vmatpush1.msra.mxu0 0.0
        %4707 = vmatprep.subr.mxu0 0.0
        %4708 = vmatpush1.msra.mxu0 0.0
        %4709 = vmatprep.subr.mxu0 0.0
        %4710 = vmatpush1.msra.mxu0 0.0
        %4711 = vmatprep.subr.mxu0 0.0
        %4712 = vmatpush1.msra.mxu0 0.0
        %4713 = vmatprep.subr.mxu0 0.0
        %4714 = vmatpush1.msra.mxu0 0.0
        %4715 = vmatprep.subr.mxu0 0.0
        %4716 = vmatpush1.msra.mxu0 0.0
        %4717 = vmatprep.subr.mxu0 0.0
        %4718 = vmatpush1.msra.mxu0 0.0
        %4719 = vmatprep.subr.mxu0 0.0
        %4720 = vmatpush1.msra.mxu0 0.0
        %4721 = vmatprep.subr.mxu0 0.0
        %4722 = vmatpush1.msra.mxu0 0.0
        %4723 = vmatprep.mubr.f32.mxu0 0.0
        %4724 = vmatmul.mubr.f32.gmra.mrb[0].mxu0 %v4636
        %v4725 = vpop.f32.mrb[0].mxu0
        %v4726 = vadd.f32 0.0, %v4725
        %v4727 = vpop.f32.mrb[0].mxu0
        %v4728 = vadd.f32 0.0, %v4727
        %4729 = vmatprep.mubr.f32.mxu0 0.0
        %4730 = vmatmul.mubr.f32.gmra.mrb[0].mxu0 %v4639
        %v4731 = vpop.f32.mrb[0].mxu0
        %v4732 = vadd.f32 0.0, %v4731
        %v4733 = vpop.f32.mrb[0].mxu0
        %v4734 = vadd.f32 0.0, %v4733
        %4735 = vmatprep.mubr.f32.mxu0 0.0
        %4736 = vmatmul.mubr.f32.gmra.mrb[0].mxu0 %v4642
        %v4737 = vpop.f32.mrb[0].mxu0
        %v4738 = vadd.f32 0.0, %v4737
        %v4739 = vpop.f32.mrb[0].mxu0
        %v4740 = vadd.f32 0.0, %v4739
        %4741 = vmatprep.mubr.f32.mxu0 0.0
        %4742 = vmatmul.mubr.f32.gmra.mrb[0].mxu0 %v4645
        %v4743 = vpop.f32.mrb[0].mxu0
        %v4744 = vadd.f32 0.0, %v4743
        %v4745 = vpop.f32.mrb[0].mxu0
        %v4746 = vadd.f32 0.0, %v4745
        %4747 = vmatprep.mubr.f32.mxu0 0.0
        %4748 = vmatmul.mubr.f32.gmra.mrb[0].mxu0 %v4648
        %v4749 = vpop.f32.mrb[0].mxu0
        %v4750 = vadd.f32 0.0, %v4749
        %v4751 = vpop.f32.mrb[0].mxu0
        %v4752 = vadd.f32 0.0, %v4751
        %4753 = vmatprep.mubr.f32.mxu0 0.0
        %4754 = vmatmul.mubr.f32.gmra.mrb[0].mxu0 %v4651
        %v4755 = vpop.f32.mrb[0].mxu0
        %v4756 = vadd.f32 0.0, %v4755
        %v4757 = vpop.f32.mrb[0].mxu0
        %v4758 = vadd.f32 0.0, %v4757
        %4759 = vmatprep.mubr.f32.mxu0 0.0
        %4760 = vmatmul.mubr.f32.gmra.mrb[0].mxu0 %v4654
        %v4761 = vpop.f32.mrb[0].mxu0
        %v4762 = vadd.f32 0.0, %v4761
        %v4763 = vpop.f32.mrb[0].mxu0
        %v4764 = vadd.f32 0.0, %v4763
        %4765 = vmatprep.mubr.f32.mxu0 0.0
        %4766 = vmatmul.mubr.f32.gmra.mrb[0].mxu0 %v4657
        %v4767 = vpop.f32.mrb[0].mxu0
        %v4768 = vadd.f32 0.0, %v4767
        %v4769 = vpop.f32.mrb[0].mxu0
        %v4770 = vadd.f32 0.0, %v4769
        %4771 = vdwg.mxu0
        %v4772 = vlaneseq
        %v4773 = vshrl.u32 %v4772, 7
        %v4774 = vsub.s32 4, %v4773
        %v4775 = vrot.slane %v3879, %v4774
        %v4776 = vlaneseq
        %v4777 = vshrl.u32 %v4776, 7
        %v4778 = vsub.s32 4, %v4777
        %v4779 = vrot.slane %v3880, %v4778
        %v4780 = vmul.f32 %v4726, %v4775
        %v4781 = vmul.f32 %v4728, %v4779
        %v4782 = vmul.f32 %v4732, %v4775
        %v4783 = vmul.f32 %v4734, %v4779
        %v4784 = vmul.f32 %v4738, %v4775
        %v4785 = vmul.f32 %v4740, %v4779
        %v4786 = vmul.f32 %v4744, %v4775
        %v4787 = vmul.f32 %v4746, %v4779
        %v4788 = vmul.f32 %v4750, %v4775
        %v4789 = vmul.f32 %v4752, %v4779
        %v4790 = vmul.f32 %v4756, %v4775
        %v4791 = vmul.f32 %v4758, %v4779
        %v4792 = vmul.f32 %v4762, %v4775
        %v4793 = vmul.f32 %v4764, %v4779
        %v4794 = vmul.f32 %v4768, %v4775
        %v4795 = vmul.f32 %v4770, %v4779
        %v4796 = vadd.f32 %v4610, %v4780
        %v4797 = vadd.f32 %v4611, %v4781
        %v4798 = vadd.f32 %v4612, %v4782
        %v4799 = vadd.f32 %v4613, %v4783
        %v4800 = vadd.f32 %v4614, %v4784
        %v4801 = vadd.f32 %v4615, %v4785
        %v4802 = vadd.f32 %v4616, %v4786
        %v4803 = vadd.f32 %v4617, %v4787
        %v4804 = vadd.f32 %v4618, %v4788
        %v4805 = vadd.f32 %v4619, %v4789
        %v4806 = vadd.f32 %v4620, %v4790
        %v4807 = vadd.f32 %v4621, %v4791
        %v4808 = vadd.f32 %v4622, %v4792
        %v4809 = vadd.f32 %v4623, %v4793
        %v4810 = vadd.f32 %v4624, %v4794
        %v4811 = vadd.f32 %v4625, %v4795
        %s4812 = scalar_lea.vmem %s20, 320
        %v4813 = vld [vmem:[%s4812] sm:$0xff]
        %v4814 = vld [vmem:[%s4812 + $0x8] sm:$0xff]
        %v4815 = vld [vmem:[%s4812 + $0x10] sm:$0xff]
        %v4816 = vld [vmem:[%s4812 + $0x18] sm:$0xff]
        %v4817 = vld [vmem:[%s4812 + $0x20] sm:$0xff]
        %v4818 = vld [vmem:[%s4812 + $0x28] sm:$0xff]
        %v4819 = vld [vmem:[%s4812 + $0x30] sm:$0xff]
        %v4820 = vld [vmem:[%s4812 + $0x38] sm:$0xff]
        %v4822 = vsel %vm793, %v4813, 0
        %v4825 = vsel %vm793, %v4814, 0
        %v4828 = vsel %vm793, %v4815, 0
        %v4831 = vsel %vm793, %v4816, 0
        %v4834 = vsel %vm793, %v4817, 0
        %v4837 = vsel %vm793, %v4818, 0
        %v4840 = vsel %vm793, %v4819, 0
        %v4843 = vsel %vm793, %v4820, 0
        %4845 = vmatprep.subr.mxu0 %v3835
        %4846 = vmatpush1.msra.mxu0 %v3833
        %4847 = vmatprep.subr.mxu0 %v3841
        %4848 = vmatpush1.msra.mxu0 %v3839
        %4849 = vmatprep.subr.mxu0 %v3847
        %4850 = vmatpush1.msra.mxu0 %v3845
        %4851 = vmatprep.subr.mxu0 %v3853
        %4852 = vmatpush1.msra.mxu0 %v3851
        %4853 = vmatprep.subr.mxu0 %v3859
        %4854 = vmatpush1.msra.mxu0 %v3857
        %4855 = vmatprep.subr.mxu0 %v3865
        %4856 = vmatpush1.msra.mxu0 %v3863
        %4857 = vmatprep.subr.mxu0 %v3871
        %4858 = vmatpush1.msra.mxu0 %v3869
        %4859 = vmatprep.subr.mxu0 %v3877
        %4860 = vmatpush1.msra.mxu0 %v3875
        %4861 = vmatprep.subr.mxu0 0.0
        %4862 = vmatpush1.msra.mxu0 0.0
        %4863 = vmatprep.subr.mxu0 0.0
        %4864 = vmatpush1.msra.mxu0 0.0
        %4865 = vmatprep.subr.mxu0 0.0
        %4866 = vmatpush1.msra.mxu0 0.0
        %4867 = vmatprep.subr.mxu0 0.0
        %4868 = vmatpush1.msra.mxu0 0.0
        %4869 = vmatprep.subr.mxu0 0.0
        %4870 = vmatpush1.msra.mxu0 0.0
        %4871 = vmatprep.subr.mxu0 0.0
        %4872 = vmatpush1.msra.mxu0 0.0
        %4873 = vmatprep.subr.mxu0 0.0
        %4874 = vmatpush1.msra.mxu0 0.0
        %4875 = vmatprep.subr.mxu0 0.0
        %4876 = vmatpush1.msra.mxu0 0.0
        %4877 = vmatprep.subr.mxu0 0.0
        %4878 = vmatpush1.msra.mxu0 0.0
        %4879 = vmatprep.subr.mxu0 0.0
        %4880 = vmatpush1.msra.mxu0 0.0
        %4881 = vmatprep.subr.mxu0 0.0
        %4882 = vmatpush1.msra.mxu0 0.0
        %4883 = vmatprep.subr.mxu0 0.0
        %4884 = vmatpush1.msra.mxu0 0.0
        %4885 = vmatprep.subr.mxu0 0.0
        %4886 = vmatpush1.msra.mxu0 0.0
        %4887 = vmatprep.subr.mxu0 0.0
        %4888 = vmatpush1.msra.mxu0 0.0
        %4889 = vmatprep.subr.mxu0 0.0
        %4890 = vmatpush1.msra.mxu0 0.0
        %4891 = vmatprep.subr.mxu0 0.0
        %4892 = vmatpush1.msra.mxu0 0.0
        %4893 = vmatprep.subr.mxu0 0.0
        %4894 = vmatpush1.msra.mxu0 0.0
        %4895 = vmatprep.subr.mxu0 0.0
        %4896 = vmatpush1.msra.mxu0 0.0
        %4897 = vmatprep.subr.mxu0 0.0
        %4898 = vmatpush1.msra.mxu0 0.0
        %4899 = vmatprep.subr.mxu0 0.0
        %4900 = vmatpush1.msra.mxu0 0.0
        %4901 = vmatprep.subr.mxu0 0.0
        %4902 = vmatpush1.msra.mxu0 0.0
        %4903 = vmatprep.subr.mxu0 0.0
        %4904 = vmatpush1.msra.mxu0 0.0
        %4905 = vmatprep.subr.mxu0 0.0
        %4906 = vmatpush1.msra.mxu0 0.0
        %4907 = vmatprep.subr.mxu0 0.0
        %4908 = vmatpush1.msra.mxu0 0.0
        %4909 = vmatprep.mubr.f32.mxu0 0.0
        %4910 = vmatmul.mubr.f32.gmra.mrb[0].mxu0 %v4822
        %v4911 = vpop.f32.mrb[0].mxu0
        %v4912 = vadd.f32 0.0, %v4911
        %v4913 = vpop.f32.mrb[0].mxu0
        %v4914 = vadd.f32 0.0, %v4913
        %4915 = vmatprep.mubr.f32.mxu0 0.0
        %4916 = vmatmul.mubr.f32.gmra.mrb[0].mxu0 %v4825
        %v4917 = vpop.f32.mrb[0].mxu0
        %v4918 = vadd.f32 0.0, %v4917
        %v4919 = vpop.f32.mrb[0].mxu0
        %v4920 = vadd.f32 0.0, %v4919
        %4921 = vmatprep.mubr.f32.mxu0 0.0
        %4922 = vmatmul.mubr.f32.gmra.mrb[0].mxu0 %v4828
        %v4923 = vpop.f32.mrb[0].mxu0
        %v4924 = vadd.f32 0.0, %v4923
        %v4925 = vpop.f32.mrb[0].mxu0
        %v4926 = vadd.f32 0.0, %v4925
        %4927 = vmatprep.mubr.f32.mxu0 0.0
        %4928 = vmatmul.mubr.f32.gmra.mrb[0].mxu0 %v4831
        %v4929 = vpop.f32.mrb[0].mxu0
        %v4930 = vadd.f32 0.0, %v4929
        %v4931 = vpop.f32.mrb[0].mxu0
        %v4932 = vadd.f32 0.0, %v4931
        %4933 = vmatprep.mubr.f32.mxu0 0.0
        %4934 = vmatmul.mubr.f32.gmra.mrb[0].mxu0 %v4834
        %v4935 = vpop.f32.mrb[0].mxu0
        %v4936 = vadd.f32 0.0, %v4935
        %v4937 = vpop.f32.mrb[0].mxu0
        %v4938 = vadd.f32 0.0, %v4937
        %4939 = vmatprep.mubr.f32.mxu0 0.0
        %4940 = vmatmul.mubr.f32.gmra.mrb[0].mxu0 %v4837
        %v4941 = vpop.f32.mrb[0].mxu0
        %v4942 = vadd.f32 0.0, %v4941
        %v4943 = vpop.f32.mrb[0].mxu0
        %v4944 = vadd.f32 0.0, %v4943
        %4945 = vmatprep.mubr.f32.mxu0 0.0
        %4946 = vmatmul.mubr.f32.gmra.mrb[0].mxu0 %v4840
        %v4947 = vpop.f32.mrb[0].mxu0
        %v4948 = vadd.f32 0.0, %v4947
        %v4949 = vpop.f32.mrb[0].mxu0
        %v4950 = vadd.f32 0.0, %v4949
        %4951 = vmatprep.mubr.f32.mxu0 0.0
        %4952 = vmatmul.mubr.f32.gmra.mrb[0].mxu0 %v4843
        %v4953 = vpop.f32.mrb[0].mxu0
        %v4954 = vadd.f32 0.0, %v4953
        %v4955 = vpop.f32.mrb[0].mxu0
        %v4956 = vadd.f32 0.0, %v4955
        %4957 = vdwg.mxu0
        %v4958 = vlaneseq
        %v4959 = vshrl.u32 %v4958, 7
        %v4960 = vsub.s32 5, %v4959
        %v4961 = vrot.slane %v3879, %v4960
        %v4962 = vlaneseq
        %v4963 = vshrl.u32 %v4962, 7
        %v4964 = vsub.s32 5, %v4963
        %v4965 = vrot.slane %v3880, %v4964
        %v4966 = vmul.f32 %v4912, %v4961
        %v4967 = vmul.f32 %v4914, %v4965
        %v4968 = vmul.f32 %v4918, %v4961
        %v4969 = vmul.f32 %v4920, %v4965
        %v4970 = vmul.f32 %v4924, %v4961
        %v4971 = vmul.f32 %v4926, %v4965
        %v4972 = vmul.f32 %v4930, %v4961
        %v4973 = vmul.f32 %v4932, %v4965
        %v4974 = vmul.f32 %v4936, %v4961
        %v4975 = vmul.f32 %v4938, %v4965
        %v4976 = vmul.f32 %v4942, %v4961
        %v4977 = vmul.f32 %v4944, %v4965
        %v4978 = vmul.f32 %v4948, %v4961
        %v4979 = vmul.f32 %v4950, %v4965
        %v4980 = vmul.f32 %v4954, %v4961
        %v4981 = vmul.f32 %v4956, %v4965
        %v4982 = vadd.f32 %v4796, %v4966
        %v4983 = vadd.f32 %v4797, %v4967
        %v4984 = vadd.f32 %v4798, %v4968
        %v4985 = vadd.f32 %v4799, %v4969
        %v4986 = vadd.f32 %v4800, %v4970
        %v4987 = vadd.f32 %v4801, %v4971
        %v4988 = vadd.f32 %v4802, %v4972
        %v4989 = vadd.f32 %v4803, %v4973
        %v4990 = vadd.f32 %v4804, %v4974
        %v4991 = vadd.f32 %v4805, %v4975
        %v4992 = vadd.f32 %v4806, %v4976
        %v4993 = vadd.f32 %v4807, %v4977
        %v4994 = vadd.f32 %v4808, %v4978
        %v4995 = vadd.f32 %v4809, %v4979
        %v4996 = vadd.f32 %v4810, %v4980
        %v4997 = vadd.f32 %v4811, %v4981
        %s4998 = scalar_lea.vmem %s20, 384
        %v4999 = vld [vmem:[%s4998] sm:$0xff]
        %v5000 = vld [vmem:[%s4998 + $0x8] sm:$0xff]
        %v5001 = vld [vmem:[%s4998 + $0x10] sm:$0xff]
        %v5002 = vld [vmem:[%s4998 + $0x18] sm:$0xff]
        %v5003 = vld [vmem:[%s4998 + $0x20] sm:$0xff]
        %v5004 = vld [vmem:[%s4998 + $0x28] sm:$0xff]
        %v5005 = vld [vmem:[%s4998 + $0x30] sm:$0xff]
        %v5006 = vld [vmem:[%s4998 + $0x38] sm:$0xff]
        %v5008 = vsel %vm793, %v4999, 0
        %v5011 = vsel %vm793, %v5000, 0
        %v5014 = vsel %vm793, %v5001, 0
        %v5017 = vsel %vm793, %v5002, 0
        %v5020 = vsel %vm793, %v5003, 0
        %v5023 = vsel %vm793, %v5004, 0
        %v5026 = vsel %vm793, %v5005, 0
        %v5029 = vsel %vm793, %v5006, 0
        %5031 = vmatprep.subr.mxu0 %v3835
        %5032 = vmatpush1.msra.mxu0 %v3833
        %5033 = vmatprep.subr.mxu0 %v3841
        %5034 = vmatpush1.msra.mxu0 %v3839
        %5035 = vmatprep.subr.mxu0 %v3847
        %5036 = vmatpush1.msra.mxu0 %v3845
        %5037 = vmatprep.subr.mxu0 %v3853
        %5038 = vmatpush1.msra.mxu0 %v3851
        %5039 = vmatprep.subr.mxu0 %v3859
        %5040 = vmatpush1.msra.mxu0 %v3857
        %5041 = vmatprep.subr.mxu0 %v3865
        %5042 = vmatpush1.msra.mxu0 %v3863
        %5043 = vmatprep.subr.mxu0 %v3871
        %5044 = vmatpush1.msra.mxu0 %v3869
        %5045 = vmatprep.subr.mxu0 %v3877
        %5046 = vmatpush1.msra.mxu0 %v3875
        %5047 = vmatprep.subr.mxu0 0.0
        %5048 = vmatpush1.msra.mxu0 0.0
        %5049 = vmatprep.subr.mxu0 0.0
        %5050 = vmatpush1.msra.mxu0 0.0
        %5051 = vmatprep.subr.mxu0 0.0
        %5052 = vmatpush1.msra.mxu0 0.0
        %5053 = vmatprep.subr.mxu0 0.0
        %5054 = vmatpush1.msra.mxu0 0.0
        %5055 = vmatprep.subr.mxu0 0.0
        %5056 = vmatpush1.msra.mxu0 0.0
        %5057 = vmatprep.subr.mxu0 0.0
        %5058 = vmatpush1.msra.mxu0 0.0
        %5059 = vmatprep.subr.mxu0 0.0
        %5060 = vmatpush1.msra.mxu0 0.0
        %5061 = vmatprep.subr.mxu0 0.0
        %5062 = vmatpush1.msra.mxu0 0.0
        %5063 = vmatprep.subr.mxu0 0.0
        %5064 = vmatpush1.msra.mxu0 0.0
        %5065 = vmatprep.subr.mxu0 0.0
        %5066 = vmatpush1.msra.mxu0 0.0
        %5067 = vmatprep.subr.mxu0 0.0
        %5068 = vmatpush1.msra.mxu0 0.0
        %5069 = vmatprep.subr.mxu0 0.0
        %5070 = vmatpush1.msra.mxu0 0.0
        %5071 = vmatprep.subr.mxu0 0.0
        %5072 = vmatpush1.msra.mxu0 0.0
        %5073 = vmatprep.subr.mxu0 0.0
        %5074 = vmatpush1.msra.mxu0 0.0
        %5075 = vmatprep.subr.mxu0 0.0
        %5076 = vmatpush1.msra.mxu0 0.0
        %5077 = vmatprep.subr.mxu0 0.0
        %5078 = vmatpush1.msra.mxu0 0.0
        %5079 = vmatprep.subr.mxu0 0.0
        %5080 = vmatpush1.msra.mxu0 0.0
        %5081 = vmatprep.subr.mxu0 0.0
        %5082 = vmatpush1.msra.mxu0 0.0
        %5083 = vmatprep.subr.mxu0 0.0
        %5084 = vmatpush1.msra.mxu0 0.0
        %5085 = vmatprep.subr.mxu0 0.0
        %5086 = vmatpush1.msra.mxu0 0.0
        %5087 = vmatprep.subr.mxu0 0.0
        %5088 = vmatpush1.msra.mxu0 0.0
        %5089 = vmatprep.subr.mxu0 0.0
        %5090 = vmatpush1.msra.mxu0 0.0
        %5091 = vmatprep.subr.mxu0 0.0
        %5092 = vmatpush1.msra.mxu0 0.0
        %5093 = vmatprep.subr.mxu0 0.0
        %5094 = vmatpush1.msra.mxu0 0.0
        %5095 = vmatprep.mubr.f32.mxu0 0.0
        %5096 = vmatmul.mubr.f32.gmra.mrb[0].mxu0 %v5008
        %v5097 = vpop.f32.mrb[0].mxu0
        %v5098 = vadd.f32 0.0, %v5097
        %v5099 = vpop.f32.mrb[0].mxu0
        %v5100 = vadd.f32 0.0, %v5099
        %5101 = vmatprep.mubr.f32.mxu0 0.0
        %5102 = vmatmul.mubr.f32.gmra.mrb[0].mxu0 %v5011
        %v5103 = vpop.f32.mrb[0].mxu0
        %v5104 = vadd.f32 0.0, %v5103
        %v5105 = vpop.f32.mrb[0].mxu0
        %v5106 = vadd.f32 0.0, %v5105
        %5107 = vmatprep.mubr.f32.mxu0 0.0
        %5108 = vmatmul.mubr.f32.gmra.mrb[0].mxu0 %v5014
        %v5109 = vpop.f32.mrb[0].mxu0
        %v5110 = vadd.f32 0.0, %v5109
        %v5111 = vpop.f32.mrb[0].mxu0
        %v5112 = vadd.f32 0.0, %v5111
        %5113 = vmatprep.mubr.f32.mxu0 0.0
        %5114 = vmatmul.mubr.f32.gmra.mrb[0].mxu0 %v5017
        %v5115 = vpop.f32.mrb[0].mxu0
        %v5116 = vadd.f32 0.0, %v5115
        %v5117 = vpop.f32.mrb[0].mxu0
        %v5118 = vadd.f32 0.0, %v5117
        %5119 = vmatprep.mubr.f32.mxu0 0.0
        %5120 = vmatmul.mubr.f32.gmra.mrb[0].mxu0 %v5020
        %v5121 = vpop.f32.mrb[0].mxu0
        %v5122 = vadd.f32 0.0, %v5121
        %v5123 = vpop.f32.mrb[0].mxu0
        %v5124 = vadd.f32 0.0, %v5123
        %5125 = vmatprep.mubr.f32.mxu0 0.0
        %5126 = vmatmul.mubr.f32.gmra.mrb[0].mxu0 %v5023
        %v5127 = vpop.f32.mrb[0].mxu0
        %v5128 = vadd.f32 0.0, %v5127
        %v5129 = vpop.f32.mrb[0].mxu0
        %v5130 = vadd.f32 0.0, %v5129
        %5131 = vmatprep.mubr.f32.mxu0 0.0
        %5132 = vmatmul.mubr.f32.gmra.mrb[0].mxu0 %v5026
        %v5133 = vpop.f32.mrb[0].mxu0
        %v5134 = vadd.f32 0.0, %v5133
        %v5135 = vpop.f32.mrb[0].mxu0
        %v5136 = vadd.f32 0.0, %v5135
        %5137 = vmatprep.mubr.f32.mxu0 0.0
        %5138 = vmatmul.mubr.f32.gmra.mrb[0].mxu0 %v5029
        %v5139 = vpop.f32.mrb[0].mxu0
        %v5140 = vadd.f32 0.0, %v5139
        %v5141 = vpop.f32.mrb[0].mxu0
        %v5142 = vadd.f32 0.0, %v5141
        %5143 = vdwg.mxu0
        %v5144 = vlaneseq
        %v5145 = vshrl.u32 %v5144, 7
        %v5146 = vsub.s32 6, %v5145
        %v5147 = vrot.slane %v3879, %v5146
        %v5148 = vlaneseq
        %v5149 = vshrl.u32 %v5148, 7
        %v5150 = vsub.s32 6, %v5149
        %v5151 = vrot.slane %v3880, %v5150
        %v5152 = vmul.f32 %v5098, %v5147
        %v5153 = vmul.f32 %v5100, %v5151
        %v5154 = vmul.f32 %v5104, %v5147
        %v5155 = vmul.f32 %v5106, %v5151
        %v5156 = vmul.f32 %v5110, %v5147
        %v5157 = vmul.f32 %v5112, %v5151
        %v5158 = vmul.f32 %v5116, %v5147
        %v5159 = vmul.f32 %v5118, %v5151
        %v5160 = vmul.f32 %v5122, %v5147
        %v5161 = vmul.f32 %v5124, %v5151
        %v5162 = vmul.f32 %v5128, %v5147
        %v5163 = vmul.f32 %v5130, %v5151
        %v5164 = vmul.f32 %v5134, %v5147
        %v5165 = vmul.f32 %v5136, %v5151
        %v5166 = vmul.f32 %v5140, %v5147
        %v5167 = vmul.f32 %v5142, %v5151
        %v5168 = vadd.f32 %v4982, %v5152
        %v5169 = vadd.f32 %v4983, %v5153
        %v5170 = vadd.f32 %v4984, %v5154
        %v5171 = vadd.f32 %v4985, %v5155
        %v5172 = vadd.f32 %v4986, %v5156
        %v5173 = vadd.f32 %v4987, %v5157
        %v5174 = vadd.f32 %v4988, %v5158
        %v5175 = vadd.f32 %v4989, %v5159
        %v5176 = vadd.f32 %v4990, %v5160
        %v5177 = vadd.f32 %v4991, %v5161
        %v5178 = vadd.f32 %v4992, %v5162
        %v5179 = vadd.f32 %v4993, %v5163
        %v5180 = vadd.f32 %v4994, %v5164
        %v5181 = vadd.f32 %v4995, %v5165
        %v5182 = vadd.f32 %v4996, %v5166
        %v5183 = vadd.f32 %v4997, %v5167
        %s5184 = scalar_lea.vmem %s20, 448
        %v5185 = vld [vmem:[%s5184] sm:$0xff]
        %v5186 = vld [vmem:[%s5184 + $0x8] sm:$0xff]
        %v5187 = vld [vmem:[%s5184 + $0x10] sm:$0xff]
        %v5188 = vld [vmem:[%s5184 + $0x18] sm:$0xff]
        %v5189 = vld [vmem:[%s5184 + $0x20] sm:$0xff]
        %v5190 = vld [vmem:[%s5184 + $0x28] sm:$0xff]
        %v5191 = vld [vmem:[%s5184 + $0x30] sm:$0xff]
        %v5192 = vld [vmem:[%s5184 + $0x38] sm:$0xff]
        %v5194 = vsel %vm793, %v5185, 0
        %v5197 = vsel %vm793, %v5186, 0
        %v5200 = vsel %vm793, %v5187, 0
        %v5203 = vsel %vm793, %v5188, 0
        %v5206 = vsel %vm793, %v5189, 0
        %v5209 = vsel %vm793, %v5190, 0
        %v5212 = vsel %vm793, %v5191, 0
        %v5215 = vsel %vm793, %v5192, 0
        %5217 = vmatprep.subr.mxu0 %v3835
        %5218 = vmatpush1.msra.mxu0 %v3833
        %5219 = vmatprep.subr.mxu0 %v3841
        %5220 = vmatpush1.msra.mxu0 %v3839
        %5221 = vmatprep.subr.mxu0 %v3847
        %5222 = vmatpush1.msra.mxu0 %v3845
        %5223 = vmatprep.subr.mxu0 %v3853
        %5224 = vmatpush1.msra.mxu0 %v3851
        %5225 = vmatprep.subr.mxu0 %v3859
        %5226 = vmatpush1.msra.mxu0 %v3857
        %5227 = vmatprep.subr.mxu0 %v3865
        %5228 = vmatpush1.msra.mxu0 %v3863
        %5229 = vmatprep.subr.mxu0 %v3871
        %5230 = vmatpush1.msra.mxu0 %v3869
        %5231 = vmatprep.subr.mxu0 %v3877
        %5232 = vmatpush1.msra.mxu0 %v3875
        %5233 = vmatprep.subr.mxu0 0.0
        %5234 = vmatpush1.msra.mxu0 0.0
        %5235 = vmatprep.subr.mxu0 0.0
        %5236 = vmatpush1.msra.mxu0 0.0
        %5237 = vmatprep.subr.mxu0 0.0
        %5238 = vmatpush1.msra.mxu0 0.0
        %5239 = vmatprep.subr.mxu0 0.0
        %5240 = vmatpush1.msra.mxu0 0.0
        %5241 = vmatprep.subr.mxu0 0.0
        %5242 = vmatpush1.msra.mxu0 0.0
        %5243 = vmatprep.subr.mxu0 0.0
        %5244 = vmatpush1.msra.mxu0 0.0
        %5245 = vmatprep.subr.mxu0 0.0
        %5246 = vmatpush1.msra.mxu0 0.0
        %5247 = vmatprep.subr.mxu0 0.0
        %5248 = vmatpush1.msra.mxu0 0.0
        %5249 = vmatprep.subr.mxu0 0.0
        %5250 = vmatpush1.msra.mxu0 0.0
        %5251 = vmatprep.subr.mxu0 0.0
        %5252 = vmatpush1.msra.mxu0 0.0
        %5253 = vmatprep.subr.mxu0 0.0
        %5254 = vmatpush1.msra.mxu0 0.0
        %5255 = vmatprep.subr.mxu0 0.0
        %5256 = vmatpush1.msra.mxu0 0.0
        %5257 = vmatprep.subr.mxu0 0.0
        %5258 = vmatpush1.msra.mxu0 0.0
        %5259 = vmatprep.subr.mxu0 0.0
        %5260 = vmatpush1.msra.mxu0 0.0
        %5261 = vmatprep.subr.mxu0 0.0
        %5262 = vmatpush1.msra.mxu0 0.0
        %5263 = vmatprep.subr.mxu0 0.0
        %5264 = vmatpush1.msra.mxu0 0.0
        %5265 = vmatprep.subr.mxu0 0.0
        %5266 = vmatpush1.msra.mxu0 0.0
        %5267 = vmatprep.subr.mxu0 0.0
        %5268 = vmatpush1.msra.mxu0 0.0
        %5269 = vmatprep.subr.mxu0 0.0
        %5270 = vmatpush1.msra.mxu0 0.0
        %5271 = vmatprep.subr.mxu0 0.0
        %5272 = vmatpush1.msra.mxu0 0.0
        %5273 = vmatprep.subr.mxu0 0.0
        %5274 = vmatpush1.msra.mxu0 0.0
        %5275 = vmatprep.subr.mxu0 0.0
        %5276 = vmatpush1.msra.mxu0 0.0
        %5277 = vmatprep.subr.mxu0 0.0
        %5278 = vmatpush1.msra.mxu0 0.0
        %5279 = vmatprep.subr.mxu0 0.0
        %5280 = vmatpush1.msra.mxu0 0.0
        %5281 = vmatprep.mubr.f32.mxu0 0.0
        %5282 = vmatmul.mubr.f32.gmra.mrb[0].mxu0 %v5194
        %v5283 = vpop.f32.mrb[0].mxu0
        %v5284 = vadd.f32 0.0, %v5283
        %v5285 = vpop.f32.mrb[0].mxu0
        %v5286 = vadd.f32 0.0, %v5285
        %5287 = vmatprep.mubr.f32.mxu0 0.0
        %5288 = vmatmul.mubr.f32.gmra.mrb[0].mxu0 %v5197
        %v5289 = vpop.f32.mrb[0].mxu0
        %v5290 = vadd.f32 0.0, %v5289
        %v5291 = vpop.f32.mrb[0].mxu0
        %v5292 = vadd.f32 0.0, %v5291
        %5293 = vmatprep.mubr.f32.mxu0 0.0
        %5294 = vmatmul.mubr.f32.gmra.mrb[0].mxu0 %v5200
        %v5295 = vpop.f32.mrb[0].mxu0
        %v5296 = vadd.f32 0.0, %v5295
        %v5297 = vpop.f32.mrb[0].mxu0
        %v5298 = vadd.f32 0.0, %v5297
        %5299 = vmatprep.mubr.f32.mxu0 0.0
        %5300 = vmatmul.mubr.f32.gmra.mrb[0].mxu0 %v5203
        %v5301 = vpop.f32.mrb[0].mxu0
        %v5302 = vadd.f32 0.0, %v5301
        %v5303 = vpop.f32.mrb[0].mxu0
        %v5304 = vadd.f32 0.0, %v5303
        %5305 = vmatprep.mubr.f32.mxu0 0.0
        %5306 = vmatmul.mubr.f32.gmra.mrb[0].mxu0 %v5206
        %v5307 = vpop.f32.mrb[0].mxu0
        %v5308 = vadd.f32 0.0, %v5307
        %v5309 = vpop.f32.mrb[0].mxu0
        %v5310 = vadd.f32 0.0, %v5309
        %5311 = vmatprep.mubr.f32.mxu0 0.0
        %5312 = vmatmul.mubr.f32.gmra.mrb[0].mxu0 %v5209
        %v5313 = vpop.f32.mrb[0].mxu0
        %v5314 = vadd.f32 0.0, %v5313
        %v5315 = vpop.f32.mrb[0].mxu0
        %v5316 = vadd.f32 0.0, %v5315
        %5317 = vmatprep.mubr.f32.mxu0 0.0
        %5318 = vmatmul.mubr.f32.gmra.mrb[0].mxu0 %v5212
        %v5319 = vpop.f32.mrb[0].mxu0
        %v5320 = vadd.f32 0.0, %v5319
        %v5321 = vpop.f32.mrb[0].mxu0
        %v5322 = vadd.f32 0.0, %v5321
        %5323 = vmatprep.mubr.f32.mxu0 0.0
        %5324 = vmatmul.mubr.f32.gmra.mrb[0].mxu0 %v5215
        %v5325 = vpop.f32.mrb[0].mxu0
        %v5326 = vadd.f32 0.0, %v5325
        %v5327 = vpop.f32.mrb[0].mxu0
        %v5328 = vadd.f32 0.0, %v5327
        %5329 = vdwg.mxu0
        %v5330 = vlaneseq
        %v5331 = vshrl.u32 %v5330, 7
        %v5332 = vsub.s32 7, %v5331
        %v5333 = vrot.slane %v3879, %v5332
        %v5334 = vlaneseq
        %v5335 = vshrl.u32 %v5334, 7
        %v5336 = vsub.s32 7, %v5335
        %v5337 = vrot.slane %v3880, %v5336
        %v5338 = vmul.f32 %v5284, %v5333
        %v5339 = vmul.f32 %v5286, %v5337
        %v5340 = vmul.f32 %v5290, %v5333
        %v5341 = vmul.f32 %v5292, %v5337
        %v5342 = vmul.f32 %v5296, %v5333
        %v5343 = vmul.f32 %v5298, %v5337
        %v5344 = vmul.f32 %v5302, %v5333
        %v5345 = vmul.f32 %v5304, %v5337
        %v5346 = vmul.f32 %v5308, %v5333
        %v5347 = vmul.f32 %v5310, %v5337
        %v5348 = vmul.f32 %v5314, %v5333
        %v5349 = vmul.f32 %v5316, %v5337
        %v5350 = vmul.f32 %v5320, %v5333
        %v5351 = vmul.f32 %v5322, %v5337
        %v5352 = vmul.f32 %v5326, %v5333
        %v5353 = vmul.f32 %v5328, %v5337
        %v5354 = vadd.f32 %v5168, %v5338
        %v5355 = vadd.f32 %v5169, %v5339
        %v5356 = vadd.f32 %v5170, %v5340
        %v5357 = vadd.f32 %v5171, %v5341
        %v5358 = vadd.f32 %v5172, %v5342
        %v5359 = vadd.f32 %v5173, %v5343
        %v5360 = vadd.f32 %v5174, %v5344
        %v5361 = vadd.f32 %v5175, %v5345
        %v5362 = vadd.f32 %v5176, %v5346
        %v5363 = vadd.f32 %v5177, %v5347
        %v5364 = vadd.f32 %v5178, %v5348
        %v5365 = vadd.f32 %v5179, %v5349
        %v5366 = vadd.f32 %v5180, %v5350
        %v5367 = vadd.f32 %v5181, %v5351
        %v5368 = vadd.f32 %v5182, %v5352
        %v5369 = vadd.f32 %v5183, %v5353
        %s5370 = scalar_lea.vmem %s20, 512
        %v5371 = vld [vmem:[%s5370] sm:$0xff]
        %v5372 = vld [vmem:[%s5370 + $0x8] sm:$0xff]
        %v5373 = vld [vmem:[%s5370 + $0x10] sm:$0xff]
        %v5374 = vld [vmem:[%s5370 + $0x18] sm:$0xff]
        %v5375 = vld [vmem:[%s5370 + $0x20] sm:$0xff]
        %v5376 = vld [vmem:[%s5370 + $0x28] sm:$0xff]
        %v5377 = vld [vmem:[%s5370 + $0x30] sm:$0xff]
        %v5378 = vld [vmem:[%s5370 + $0x38] sm:$0xff]
        %v5380 = vsel %vm793, %v5371, 0
        %v5383 = vsel %vm793, %v5372, 0
        %v5386 = vsel %vm793, %v5373, 0
        %v5389 = vsel %vm793, %v5374, 0
        %v5392 = vsel %vm793, %v5375, 0
        %v5395 = vsel %vm793, %v5376, 0
        %v5398 = vsel %vm793, %v5377, 0
        %v5401 = vsel %vm793, %v5378, 0
        %5403 = vmatprep.subr.mxu0 %v3835
        %5404 = vmatpush1.msra.mxu0 %v3833
        %5405 = vmatprep.subr.mxu0 %v3841
        %5406 = vmatpush1.msra.mxu0 %v3839
        %5407 = vmatprep.subr.mxu0 %v3847
        %5408 = vmatpush1.msra.mxu0 %v3845
        %5409 = vmatprep.subr.mxu0 %v3853
        %5410 = vmatpush1.msra.mxu0 %v3851
        %5411 = vmatprep.subr.mxu0 %v3859
        %5412 = vmatpush1.msra.mxu0 %v3857
        %5413 = vmatprep.subr.mxu0 %v3865
        %5414 = vmatpush1.msra.mxu0 %v3863
        %5415 = vmatprep.subr.mxu0 %v3871
        %5416 = vmatpush1.msra.mxu0 %v3869
        %5417 = vmatprep.subr.mxu0 %v3877
        %5418 = vmatpush1.msra.mxu0 %v3875
        %5419 = vmatprep.subr.mxu0 0.0
        %5420 = vmatpush1.msra.mxu0 0.0
        %5421 = vmatprep.subr.mxu0 0.0
        %5422 = vmatpush1.msra.mxu0 0.0
        %5423 = vmatprep.subr.mxu0 0.0
        %5424 = vmatpush1.msra.mxu0 0.0
        %5425 = vmatprep.subr.mxu0 0.0
        %5426 = vmatpush1.msra.mxu0 0.0
        %5427 = vmatprep.subr.mxu0 0.0
        %5428 = vmatpush1.msra.mxu0 0.0
        %5429 = vmatprep.subr.mxu0 0.0
        %5430 = vmatpush1.msra.mxu0 0.0
        %5431 = vmatprep.subr.mxu0 0.0
        %5432 = vmatpush1.msra.mxu0 0.0
        %5433 = vmatprep.subr.mxu0 0.0
        %5434 = vmatpush1.msra.mxu0 0.0
        %5435 = vmatprep.subr.mxu0 0.0
        %5436 = vmatpush1.msra.mxu0 0.0
        %5437 = vmatprep.subr.mxu0 0.0
        %5438 = vmatpush1.msra.mxu0 0.0
        %5439 = vmatprep.subr.mxu0 0.0
        %5440 = vmatpush1.msra.mxu0 0.0
        %5441 = vmatprep.subr.mxu0 0.0
        %5442 = vmatpush1.msra.mxu0 0.0
        %5443 = vmatprep.subr.mxu0 0.0
        %5444 = vmatpush1.msra.mxu0 0.0
        %5445 = vmatprep.subr.mxu0 0.0
        %5446 = vmatpush1.msra.mxu0 0.0
        %5447 = vmatprep.subr.mxu0 0.0
        %5448 = vmatpush1.msra.mxu0 0.0
        %5449 = vmatprep.subr.mxu0 0.0
        %5450 = vmatpush1.msra.mxu0 0.0
        %5451 = vmatprep.subr.mxu0 0.0
        %5452 = vmatpush1.msra.mxu0 0.0
        %5453 = vmatprep.subr.mxu0 0.0
        %5454 = vmatpush1.msra.mxu0 0.0
        %5455 = vmatprep.subr.mxu0 0.0
        %5456 = vmatpush1.msra.mxu0 0.0
        %5457 = vmatprep.subr.mxu0 0.0
        %5458 = vmatpush1.msra.mxu0 0.0
        %5459 = vmatprep.subr.mxu0 0.0
        %5460 = vmatpush1.msra.mxu0 0.0
        %5461 = vmatprep.subr.mxu0 0.0
        %5462 = vmatpush1.msra.mxu0 0.0
        %5463 = vmatprep.subr.mxu0 0.0
        %5464 = vmatpush1.msra.mxu0 0.0
        %5465 = vmatprep.subr.mxu0 0.0
        %5466 = vmatpush1.msra.mxu0 0.0
        %5467 = vmatprep.mubr.f32.mxu0 0.0
        %5468 = vmatmul.mubr.f32.gmra.mrb[0].mxu0 %v5380
        %v5469 = vpop.f32.mrb[0].mxu0
        %v5470 = vadd.f32 0.0, %v5469
        %v5471 = vpop.f32.mrb[0].mxu0
        %v5472 = vadd.f32 0.0, %v5471
        %5473 = vmatprep.mubr.f32.mxu0 0.0
        %5474 = vmatmul.mubr.f32.gmra.mrb[0].mxu0 %v5383
        %v5475 = vpop.f32.mrb[0].mxu0
        %v5476 = vadd.f32 0.0, %v5475
        %v5477 = vpop.f32.mrb[0].mxu0
        %v5478 = vadd.f32 0.0, %v5477
        %5479 = vmatprep.mubr.f32.mxu0 0.0
        %5480 = vmatmul.mubr.f32.gmra.mrb[0].mxu0 %v5386
        %v5481 = vpop.f32.mrb[0].mxu0
        %v5482 = vadd.f32 0.0, %v5481
        %v5483 = vpop.f32.mrb[0].mxu0
        %v5484 = vadd.f32 0.0, %v5483
        %5485 = vmatprep.mubr.f32.mxu0 0.0
        %5486 = vmatmul.mubr.f32.gmra.mrb[0].mxu0 %v5389
        %v5487 = vpop.f32.mrb[0].mxu0
        %v5488 = vadd.f32 0.0, %v5487
        %v5489 = vpop.f32.mrb[0].mxu0
        %v5490 = vadd.f32 0.0, %v5489
        %5491 = vmatprep.mubr.f32.mxu0 0.0
        %5492 = vmatmul.mubr.f32.gmra.mrb[0].mxu0 %v5392
        %v5493 = vpop.f32.mrb[0].mxu0
        %v5494 = vadd.f32 0.0, %v5493
        %v5495 = vpop.f32.mrb[0].mxu0
        %v5496 = vadd.f32 0.0, %v5495
        %5497 = vmatprep.mubr.f32.mxu0 0.0
        %5498 = vmatmul.mubr.f32.gmra.mrb[0].mxu0 %v5395
        %v5499 = vpop.f32.mrb[0].mxu0
        %v5500 = vadd.f32 0.0, %v5499
        %v5501 = vpop.f32.mrb[0].mxu0
        %v5502 = vadd.f32 0.0, %v5501
        %5503 = vmatprep.mubr.f32.mxu0 0.0
        %5504 = vmatmul.mubr.f32.gmra.mrb[0].mxu0 %v5398
        %v5505 = vpop.f32.mrb[0].mxu0
        %v5506 = vadd.f32 0.0, %v5505
        %v5507 = vpop.f32.mrb[0].mxu0
        %v5508 = vadd.f32 0.0, %v5507
        %5509 = vmatprep.mubr.f32.mxu0 0.0
        %5510 = vmatmul.mubr.f32.gmra.mrb[0].mxu0 %v5401
        %v5511 = vpop.f32.mrb[0].mxu0
        %v5512 = vadd.f32 0.0, %v5511
        %v5513 = vpop.f32.mrb[0].mxu0
        %v5514 = vadd.f32 0.0, %v5513
        %5515 = vdwg.mxu0
        %v5516 = vlaneseq
        %v5517 = vshrl.u32 %v5516, 7
        %v5518 = vsub.s32 0, %v5517
        %v5519 = vrot.slane %v3881, %v5518
        %v5520 = vlaneseq
        %v5521 = vshrl.u32 %v5520, 7
        %v5522 = vsub.s32 0, %v5521
        %v5523 = vrot.slane %v3882, %v5522
        %v5524 = vmul.f32 %v5470, %v5519
        %v5525 = vmul.f32 %v5472, %v5523
        %v5526 = vmul.f32 %v5476, %v5519
        %v5527 = vmul.f32 %v5478, %v5523
        %v5528 = vmul.f32 %v5482, %v5519
        %v5529 = vmul.f32 %v5484, %v5523
        %v5530 = vmul.f32 %v5488, %v5519
        %v5531 = vmul.f32 %v5490, %v5523
        %v5532 = vmul.f32 %v5494, %v5519
        %v5533 = vmul.f32 %v5496, %v5523
        %v5534 = vmul.f32 %v5500, %v5519
        %v5535 = vmul.f32 %v5502, %v5523
        %v5536 = vmul.f32 %v5506, %v5519
        %v5537 = vmul.f32 %v5508, %v5523
        %v5538 = vmul.f32 %v5512, %v5519
        %v5539 = vmul.f32 %v5514, %v5523
        %v5540 = vadd.f32 %v5354, %v5524
        %v5541 = vadd.f32 %v5355, %v5525
        %v5542 = vadd.f32 %v5356, %v5526
        %v5543 = vadd.f32 %v5357, %v5527
        %v5544 = vadd.f32 %v5358, %v5528
        %v5545 = vadd.f32 %v5359, %v5529
        %v5546 = vadd.f32 %v5360, %v5530
        %v5547 = vadd.f32 %v5361, %v5531
        %v5548 = vadd.f32 %v5362, %v5532
        %v5549 = vadd.f32 %v5363, %v5533
        %v5550 = vadd.f32 %v5364, %v5534
        %v5551 = vadd.f32 %v5365, %v5535
        %v5552 = vadd.f32 %v5366, %v5536
        %v5553 = vadd.f32 %v5367, %v5537
        %v5554 = vadd.f32 %v5368, %v5538
        %v5555 = vadd.f32 %v5369, %v5539
        %v5556 = vld [vmem:[%s22] sm:$0x3]
        %v5558 = vlaneseq
        %v5559 = vshrl.u32 %v5558, 7
        %v5560 = vsub.s32 0, %v5559
        %v5561 = vrot.slane %v5556, %v5560
        %v5562 = vlaneseq
        %v5563 = vshrl.u32 %v5562, 7
        %v5564 = vsub.s32 1, %v5563
        %v5565 = vrot.slane %v5556, %v5564
        %v5568 = vadd.f32 %v5540, %v5561
        %v5569 = vadd.f32 %v5541, %v5565
        %v5570 = vadd.f32 %v5542, %v5561
        %v5571 = vadd.f32 %v5543, %v5565
        %v5572 = vadd.f32 %v5544, %v5561
        %v5573 = vadd.f32 %v5545, %v5565
        %v5574 = vadd.f32 %v5546, %v5561
        %v5575 = vadd.f32 %v5547, %v5565
        %v5576 = vadd.f32 %v5548, %v5561
        %v5577 = vadd.f32 %v5549, %v5565
        %v5578 = vadd.f32 %v5550, %v5561
        %v5579 = vadd.f32 %v5551, %v5565
        %v5580 = vadd.f32 %v5552, %v5561
        %v5581 = vadd.f32 %v5553, %v5565
        %v5582 = vadd.f32 %v5554, %v5561
        %v5583 = vadd.f32 %v5555, %v5565
        %v5584 = vmul.f32 %v5568, 0.5
        %v5585 = vmul.f32 %v5569, 0.5
        %v5586 = vmul.f32 %v5570, 0.5
        %v5587 = vmul.f32 %v5571, 0.5
        %v5588 = vmul.f32 %v5572, 0.5
        %v5589 = vmul.f32 %v5573, 0.5
        %v5590 = vmul.f32 %v5574, 0.5
        %v5591 = vmul.f32 %v5575, 0.5
        %v5592 = vmul.f32 %v5576, 0.5
        %v5593 = vmul.f32 %v5577, 0.5
        %v5594 = vmul.f32 %v5578, 0.5
        %v5595 = vmul.f32 %v5579, 0.5
        %v5596 = vmul.f32 %v5580, 0.5
        %v5597 = vmul.f32 %v5581, 0.5
        %v5598 = vmul.f32 %v5582, 0.5
        %v5599 = vmul.f32 %v5583, 0.5
        %v5600 = vmul.f32 %v5568, 0.70710677
        %v5601 = vmul.f32 %v5569, 0.70710677
        %v5602 = vmul.f32 %v5570, 0.70710677
        %v5603 = vmul.f32 %v5571, 0.70710677
        %v5604 = vmul.f32 %v5572, 0.70710677
        %v5605 = vmul.f32 %v5573, 0.70710677
        %v5606 = vmul.f32 %v5574, 0.70710677
        %v5607 = vmul.f32 %v5575, 0.70710677
        %v5608 = vmul.f32 %v5576, 0.70710677
        %v5609 = vmul.f32 %v5577, 0.70710677
        %v5610 = vmul.f32 %v5578, 0.70710677
        %v5611 = vmul.f32 %v5579, 0.70710677
        %v5612 = vmul.f32 %v5580, 0.70710677
        %v5613 = vmul.f32 %v5581, 0.70710677
        %v5614 = vmul.f32 %v5582, 0.70710677
        %v5615 = vmul.f32 %v5583, 0.70710677
        %vm5616 = vcmp.ge.f32.partialorder %v5600, 0.0
        %vm5617 = vcmp.ge.f32.partialorder %v5601, 0.0
        %vm5618 = vcmp.ge.f32.partialorder %v5602, 0.0
        %vm5619 = vcmp.ge.f32.partialorder %v5603, 0.0
        %vm5620 = vcmp.ge.f32.partialorder %v5604, 0.0
        %vm5621 = vcmp.ge.f32.partialorder %v5605, 0.0
        %vm5622 = vcmp.ge.f32.partialorder %v5606, 0.0
        %vm5623 = vcmp.ge.f32.partialorder %v5607, 0.0
        %vm5624 = vcmp.ge.f32.partialorder %v5608, 0.0
        %vm5625 = vcmp.ge.f32.partialorder %v5609, 0.0
        %vm5626 = vcmp.ge.f32.partialorder %v5610, 0.0
        %vm5627 = vcmp.ge.f32.partialorder %v5611, 0.0
        %vm5628 = vcmp.ge.f32.partialorder %v5612, 0.0
        %vm5629 = vcmp.ge.f32.partialorder %v5613, 0.0
        %vm5630 = vcmp.ge.f32.partialorder %v5614, 0.0
        %vm5631 = vcmp.ge.f32.partialorder %v5615, 0.0
        %v5632 = vsel %vm5616, 1.0, -1.0
        %v5633 = vsel %vm5617, 1.0, -1.0
        %v5634 = vsel %vm5618, 1.0, -1.0
        %v5635 = vsel %vm5619, 1.0, -1.0
        %v5636 = vsel %vm5620, 1.0, -1.0
        %v5637 = vsel %vm5621, 1.0, -1.0
        %v5638 = vsel %vm5622, 1.0, -1.0
        %v5639 = vsel %vm5623, 1.0, -1.0
        %v5640 = vsel %vm5624, 1.0, -1.0
        %v5641 = vsel %vm5625, 1.0, -1.0
        %v5642 = vsel %vm5626, 1.0, -1.0
        %v5643 = vsel %vm5627, 1.0, -1.0
        %v5644 = vsel %vm5628, 1.0, -1.0
        %v5645 = vsel %vm5629, 1.0, -1.0
        %v5646 = vsel %vm5630, 1.0, -1.0
        %v5647 = vsel %vm5631, 1.0, -1.0
        %v5648 = vand.u32 2147483647, %v5600
        %v5649 = vand.u32 2147483647, %v5601
        %v5650 = vand.u32 2147483647, %v5602
        %v5651 = vand.u32 2147483647, %v5603
        %v5652 = vand.u32 2147483647, %v5604
        %v5653 = vand.u32 2147483647, %v5605
        %v5654 = vand.u32 2147483647, %v5606
        %v5655 = vand.u32 2147483647, %v5607
        %v5656 = vand.u32 2147483647, %v5608
        %v5657 = vand.u32 2147483647, %v5609
        %v5658 = vand.u32 2147483647, %v5610
        %v5659 = vand.u32 2147483647, %v5611
        %v5660 = vand.u32 2147483647, %v5612
        %v5661 = vand.u32 2147483647, %v5613
        %v5662 = vand.u32 2147483647, %v5614
        %v5663 = vand.u32 2147483647, %v5615
        %v5664 = vmul.f32 %v5648, 0.3275911
        %v5665 = vmul.f32 %v5649, 0.3275911
        %v5666 = vmul.f32 %v5650, 0.3275911
        %v5667 = vmul.f32 %v5651, 0.3275911
        %v5668 = vmul.f32 %v5652, 0.3275911
        %v5669 = vmul.f32 %v5653, 0.3275911
        %v5670 = vmul.f32 %v5654, 0.3275911
        %v5671 = vmul.f32 %v5655, 0.3275911
        %v5672 = vmul.f32 %v5656, 0.3275911
        %v5673 = vmul.f32 %v5657, 0.3275911
        %v5674 = vmul.f32 %v5658, 0.3275911
        %v5675 = vmul.f32 %v5659, 0.3275911
        %v5676 = vmul.f32 %v5660, 0.3275911
        %v5677 = vmul.f32 %v5661, 0.3275911
        %v5678 = vmul.f32 %v5662, 0.3275911
        %v5679 = vmul.f32 %v5663, 0.3275911
        %v5680 = vadd.f32 %v5664, 1.0
        %v5681 = vadd.f32 %v5665, 1.0
        %v5682 = vadd.f32 %v5666, 1.0
        %v5683 = vadd.f32 %v5667, 1.0
        %v5684 = vadd.f32 %v5668, 1.0
        %v5685 = vadd.f32 %v5669, 1.0
        %v5686 = vadd.f32 %v5670, 1.0
        %v5687 = vadd.f32 %v5671, 1.0
        %v5688 = vadd.f32 %v5672, 1.0
        %v5689 = vadd.f32 %v5673, 1.0
        %v5690 = vadd.f32 %v5674, 1.0
        %v5691 = vadd.f32 %v5675, 1.0
        %v5692 = vadd.f32 %v5676, 1.0
        %v5693 = vadd.f32 %v5677, 1.0
        %v5694 = vadd.f32 %v5678, 1.0
        %v5695 = vadd.f32 %v5679, 1.0
        %v5696 = vrcp.pop %v5680
        %v5697 = vmul.f32 1.0, %v5696
        %v5698 = vrcp.pop %v5681
        %v5699 = vmul.f32 1.0, %v5698
        %v5700 = vrcp.pop %v5682
        %v5701 = vmul.f32 1.0, %v5700
        %v5702 = vrcp.pop %v5683
        %v5703 = vmul.f32 1.0, %v5702
        %v5704 = vrcp.pop %v5684
        %v5705 = vmul.f32 1.0, %v5704
        %v5706 = vrcp.pop %v5685
        %v5707 = vmul.f32 1.0, %v5706
        %v5708 = vrcp.pop %v5686
        %v5709 = vmul.f32 1.0, %v5708
        %v5710 = vrcp.pop %v5687
        %v5711 = vmul.f32 1.0, %v5710
        %v5712 = vrcp.pop %v5688
        %v5713 = vmul.f32 1.0, %v5712
        %v5714 = vrcp.pop %v5689
        %v5715 = vmul.f32 1.0, %v5714
        %v5716 = vrcp.pop %v5690
        %v5717 = vmul.f32 1.0, %v5716
        %v5718 = vrcp.pop %v5691
        %v5719 = vmul.f32 1.0, %v5718
        %v5720 = vrcp.pop %v5692
        %v5721 = vmul.f32 1.0, %v5720
        %v5722 = vrcp.pop %v5693
        %v5723 = vmul.f32 1.0, %v5722
        %v5724 = vrcp.pop %v5694
        %v5725 = vmul.f32 1.0, %v5724
        %v5726 = vrcp.pop %v5695
        %v5727 = vmul.f32 1.0, %v5726
        %v5728 = vmul.f32 %v5697, 1.0614054
        %v5729 = vmul.f32 %v5699, 1.0614054
        %v5730 = vmul.f32 %v5701, 1.0614054
        %v5731 = vmul.f32 %v5703, 1.0614054
        %v5732 = vmul.f32 %v5705, 1.0614054
        %v5733 = vmul.f32 %v5707, 1.0614054
        %v5734 = vmul.f32 %v5709, 1.0614054
        %v5735 = vmul.f32 %v5711, 1.0614054
        %v5736 = vmul.f32 %v5713, 1.0614054
        %v5737 = vmul.f32 %v5715, 1.0614054
        %v5738 = vmul.f32 %v5717, 1.0614054
        %v5739 = vmul.f32 %v5719, 1.0614054
        %v5740 = vmul.f32 %v5721, 1.0614054
        %v5741 = vmul.f32 %v5723, 1.0614054
        %v5742 = vmul.f32 %v5725, 1.0614054
        %v5743 = vmul.f32 %v5727, 1.0614054
        %v5744 = vadd.f32 %v5728, -1.4531521
        %v5745 = vadd.f32 %v5729, -1.4531521
        %v5746 = vadd.f32 %v5730, -1.4531521
        %v5747 = vadd.f32 %v5731, -1.4531521
        %v5748 = vadd.f32 %v5732, -1.4531521
        %v5749 = vadd.f32 %v5733, -1.4531521
        %v5750 = vadd.f32 %v5734, -1.4531521
        %v5751 = vadd.f32 %v5735, -1.4531521
        %v5752 = vadd.f32 %v5736, -1.4531521
        %v5753 = vadd.f32 %v5737, -1.4531521
        %v5754 = vadd.f32 %v5738, -1.4531521
        %v5755 = vadd.f32 %v5739, -1.4531521
        %v5756 = vadd.f32 %v5740, -1.4531521
        %v5757 = vadd.f32 %v5741, -1.4531521
        %v5758 = vadd.f32 %v5742, -1.4531521
        %v5759 = vadd.f32 %v5743, -1.4531521
        %v5760 = vmul.f32 %v5744, %v5697
        %v5761 = vmul.f32 %v5745, %v5699
        %v5762 = vmul.f32 %v5746, %v5701
        %v5763 = vmul.f32 %v5747, %v5703
        %v5764 = vmul.f32 %v5748, %v5705
        %v5765 = vmul.f32 %v5749, %v5707
        %v5766 = vmul.f32 %v5750, %v5709
        %v5767 = vmul.f32 %v5751, %v5711
        %v5768 = vmul.f32 %v5752, %v5713
        %v5769 = vmul.f32 %v5753, %v5715
        %v5770 = vmul.f32 %v5754, %v5717
        %v5771 = vmul.f32 %v5755, %v5719
        %v5772 = vmul.f32 %v5756, %v5721
        %v5773 = vmul.f32 %v5757, %v5723
        %v5774 = vmul.f32 %v5758, %v5725
        %v5775 = vmul.f32 %v5759, %v5727
        %v5776 = vadd.f32 %v5760, 1.4214138
        %v5777 = vadd.f32 %v5761, 1.4214138
        %v5778 = vadd.f32 %v5762, 1.4214138
        %v5779 = vadd.f32 %v5763, 1.4214138
        %v5780 = vadd.f32 %v5764, 1.4214138
        %v5781 = vadd.f32 %v5765, 1.4214138
        %v5782 = vadd.f32 %v5766, 1.4214138
        %v5783 = vadd.f32 %v5767, 1.4214138
        %v5784 = vadd.f32 %v5768, 1.4214138
        %v5785 = vadd.f32 %v5769, 1.4214138
        %v5786 = vadd.f32 %v5770, 1.4214138
        %v5787 = vadd.f32 %v5771, 1.4214138
        %v5788 = vadd.f32 %v5772, 1.4214138
        %v5789 = vadd.f32 %v5773, 1.4214138
        %v5790 = vadd.f32 %v5774, 1.4214138
        %v5791 = vadd.f32 %v5775, 1.4214138
        %v5792 = vmul.f32 %v5776, %v5697
        %v5793 = vmul.f32 %v5777, %v5699
        %v5794 = vmul.f32 %v5778, %v5701
        %v5795 = vmul.f32 %v5779, %v5703
        %v5796 = vmul.f32 %v5780, %v5705
        %v5797 = vmul.f32 %v5781, %v5707
        %v5798 = vmul.f32 %v5782, %v5709
        %v5799 = vmul.f32 %v5783, %v5711
        %v5800 = vmul.f32 %v5784, %v5713
        %v5801 = vmul.f32 %v5785, %v5715
        %v5802 = vmul.f32 %v5786, %v5717
        %v5803 = vmul.f32 %v5787, %v5719
        %v5804 = vmul.f32 %v5788, %v5721
        %v5805 = vmul.f32 %v5789, %v5723
        %v5806 = vmul.f32 %v5790, %v5725
        %v5807 = vmul.f32 %v5791, %v5727
        %v5808 = vadd.f32 %v5792, -0.28449672
        %v5809 = vadd.f32 %v5793, -0.28449672
        %v5810 = vadd.f32 %v5794, -0.28449672
        %v5811 = vadd.f32 %v5795, -0.28449672
        %v5812 = vadd.f32 %v5796, -0.28449672
        %v5813 = vadd.f32 %v5797, -0.28449672
        %v5814 = vadd.f32 %v5798, -0.28449672
        %v5815 = vadd.f32 %v5799, -0.28449672
        %v5816 = vadd.f32 %v5800, -0.28449672
        %v5817 = vadd.f32 %v5801, -0.28449672
        %v5818 = vadd.f32 %v5802, -0.28449672
        %v5819 = vadd.f32 %v5803, -0.28449672
        %v5820 = vadd.f32 %v5804, -0.28449672
        %v5821 = vadd.f32 %v5805, -0.28449672
        %v5822 = vadd.f32 %v5806, -0.28449672
        %v5823 = vadd.f32 %v5807, -0.28449672
        %v5824 = vmul.f32 %v5808, %v5697
        %v5825 = vmul.f32 %v5809, %v5699
        %v5826 = vmul.f32 %v5810, %v5701
        %v5827 = vmul.f32 %v5811, %v5703
        %v5828 = vmul.f32 %v5812, %v5705
        %v5829 = vmul.f32 %v5813, %v5707
        %v5830 = vmul.f32 %v5814, %v5709
        %v5831 = vmul.f32 %v5815, %v5711
        %v5832 = vmul.f32 %v5816, %v5713
        %v5833 = vmul.f32 %v5817, %v5715
        %v5834 = vmul.f32 %v5818, %v5717
        %v5835 = vmul.f32 %v5819, %v5719
        %v5836 = vmul.f32 %v5820, %v5721
        %v5837 = vmul.f32 %v5821, %v5723
        %v5838 = vmul.f32 %v5822, %v5725
        %v5839 = vmul.f32 %v5823, %v5727
        %v5840 = vadd.f32 %v5824, 0.2548296
        %v5841 = vadd.f32 %v5825, 0.2548296
        %v5842 = vadd.f32 %v5826, 0.2548296
        %v5843 = vadd.f32 %v5827, 0.2548296
        %v5844 = vadd.f32 %v5828, 0.2548296
        %v5845 = vadd.f32 %v5829, 0.2548296
        %v5846 = vadd.f32 %v5830, 0.2548296
        %v5847 = vadd.f32 %v5831, 0.2548296
        %v5848 = vadd.f32 %v5832, 0.2548296
        %v5849 = vadd.f32 %v5833, 0.2548296
        %v5850 = vadd.f32 %v5834, 0.2548296
        %v5851 = vadd.f32 %v5835, 0.2548296
        %v5852 = vadd.f32 %v5836, 0.2548296
        %v5853 = vadd.f32 %v5837, 0.2548296
        %v5854 = vadd.f32 %v5838, 0.2548296
        %v5855 = vadd.f32 %v5839, 0.2548296
        %v5856 = vmul.f32 %v5840, %v5697
        %v5857 = vmul.f32 %v5841, %v5699
        %v5858 = vmul.f32 %v5842, %v5701
        %v5859 = vmul.f32 %v5843, %v5703
        %v5860 = vmul.f32 %v5844, %v5705
        %v5861 = vmul.f32 %v5845, %v5707
        %v5862 = vmul.f32 %v5846, %v5709
        %v5863 = vmul.f32 %v5847, %v5711
        %v5864 = vmul.f32 %v5848, %v5713
        %v5865 = vmul.f32 %v5849, %v5715
        %v5866 = vmul.f32 %v5850, %v5717
        %v5867 = vmul.f32 %v5851, %v5719
        %v5868 = vmul.f32 %v5852, %v5721
        %v5869 = vmul.f32 %v5853, %v5723
        %v5870 = vmul.f32 %v5854, %v5725
        %v5871 = vmul.f32 %v5855, %v5727
        %v5872 = vsub.f32 0.0, %v5648
        %v5873 = vsub.f32 0.0, %v5649
        %v5874 = vsub.f32 0.0, %v5650
        %v5875 = vsub.f32 0.0, %v5651
        %v5876 = vsub.f32 0.0, %v5652
        %v5877 = vsub.f32 0.0, %v5653
        %v5878 = vsub.f32 0.0, %v5654
        %v5879 = vsub.f32 0.0, %v5655
        %v5880 = vsub.f32 0.0, %v5656
        %v5881 = vsub.f32 0.0, %v5657
        %v5882 = vsub.f32 0.0, %v5658
        %v5883 = vsub.f32 0.0, %v5659
        %v5884 = vsub.f32 0.0, %v5660
        %v5885 = vsub.f32 0.0, %v5661
        %v5886 = vsub.f32 0.0, %v5662
        %v5887 = vsub.f32 0.0, %v5663
        %v5888 = vmul.f32 %v5872, %v5648
        %v5889 = vmul.f32 %v5873, %v5649
        %v5890 = vmul.f32 %v5874, %v5650
        %v5891 = vmul.f32 %v5875, %v5651
        %v5892 = vmul.f32 %v5876, %v5652
        %v5893 = vmul.f32 %v5877, %v5653
        %v5894 = vmul.f32 %v5878, %v5654
        %v5895 = vmul.f32 %v5879, %v5655
        %v5896 = vmul.f32 %v5880, %v5656
        %v5897 = vmul.f32 %v5881, %v5657
        %v5898 = vmul.f32 %v5882, %v5658
        %v5899 = vmul.f32 %v5883, %v5659
        %v5900 = vmul.f32 %v5884, %v5660
        %v5901 = vmul.f32 %v5885, %v5661
        %v5902 = vmul.f32 %v5886, %v5662
        %v5903 = vmul.f32 %v5887, %v5663
        %v5904 = vmul.f32 %v5888, 1.442695
        %v5905 = vpow.pop %v5904
        %v5906 = vmul.f32 %v5889, 1.442695
        %v5907 = vpow.pop %v5906
        %v5908 = vmul.f32 %v5890, 1.442695
        %v5909 = vpow.pop %v5908
        %v5910 = vmul.f32 %v5891, 1.442695
        %v5911 = vpow.pop %v5910
        %v5912 = vmul.f32 %v5892, 1.442695
        %v5913 = vpow.pop %v5912
        %v5914 = vmul.f32 %v5893, 1.442695
        %v5915 = vpow.pop %v5914
        %v5916 = vmul.f32 %v5894, 1.442695
        %v5917 = vpow.pop %v5916
        %v5918 = vmul.f32 %v5895, 1.442695
        %v5919 = vpow.pop %v5918
        %v5920 = vmul.f32 %v5896, 1.442695
        %v5921 = vpow.pop %v5920
        %v5922 = vmul.f32 %v5897, 1.442695
        %v5923 = vpow.pop %v5922
        %v5924 = vmul.f32 %v5898, 1.442695
        %v5925 = vpow.pop %v5924
        %v5926 = vmul.f32 %v5899, 1.442695
        %v5927 = vpow.pop %v5926
        %v5928 = vmul.f32 %v5900, 1.442695
        %v5929 = vpow.pop %v5928
        %v5930 = vmul.f32 %v5901, 1.442695
        %v5931 = vpow.pop %v5930
        %v5932 = vmul.f32 %v5902, 1.442695
        %v5933 = vpow.pop %v5932
        %v5934 = vmul.f32 %v5903, 1.442695
        %v5935 = vpow.pop %v5934
        %v5936 = vmul.f32 %v5856, %v5905
        %v5937 = vmul.f32 %v5857, %v5907
        %v5938 = vmul.f32 %v5858, %v5909
        %v5939 = vmul.f32 %v5859, %v5911
        %v5940 = vmul.f32 %v5860, %v5913
        %v5941 = vmul.f32 %v5861, %v5915
        %v5942 = vmul.f32 %v5862, %v5917
        %v5943 = vmul.f32 %v5863, %v5919
        %v5944 = vmul.f32 %v5864, %v5921
        %v5945 = vmul.f32 %v5865, %v5923
        %v5946 = vmul.f32 %v5866, %v5925
        %v5947 = vmul.f32 %v5867, %v5927
        %v5948 = vmul.f32 %v5868, %v5929
        %v5949 = vmul.f32 %v5869, %v5931
        %v5950 = vmul.f32 %v5870, %v5933
        %v5951 = vmul.f32 %v5871, %v5935
        %v5952 = vsub.f32 1.0, %v5936
        %v5953 = vsub.f32 1.0, %v5937
        %v5954 = vsub.f32 1.0, %v5938
        %v5955 = vsub.f32 1.0, %v5939
        %v5956 = vsub.f32 1.0, %v5940
        %v5957 = vsub.f32 1.0, %v5941
        %v5958 = vsub.f32 1.0, %v5942
        %v5959 = vsub.f32 1.0, %v5943
        %v5960 = vsub.f32 1.0, %v5944
        %v5961 = vsub.f32 1.0, %v5945
        %v5962 = vsub.f32 1.0, %v5946
        %v5963 = vsub.f32 1.0, %v5947
        %v5964 = vsub.f32 1.0, %v5948
        %v5965 = vsub.f32 1.0, %v5949
        %v5966 = vsub.f32 1.0, %v5950
        %v5967 = vsub.f32 1.0, %v5951
        %v5968 = vmul.f32 %v5632, %v5952
        %v5969 = vmul.f32 %v5633, %v5953
        %v5970 = vmul.f32 %v5634, %v5954
        %v5971 = vmul.f32 %v5635, %v5955
        %v5972 = vmul.f32 %v5636, %v5956
        %v5973 = vmul.f32 %v5637, %v5957
        %v5974 = vmul.f32 %v5638, %v5958
        %v5975 = vmul.f32 %v5639, %v5959
        %v5976 = vmul.f32 %v5640, %v5960
        %v5977 = vmul.f32 %v5641, %v5961
        %v5978 = vmul.f32 %v5642, %v5962
        %v5979 = vmul.f32 %v5643, %v5963
        %v5980 = vmul.f32 %v5644, %v5964
        %v5981 = vmul.f32 %v5645, %v5965
        %v5982 = vmul.f32 %v5646, %v5966
        %v5983 = vmul.f32 %v5647, %v5967
        %v5984 = vadd.f32 %v5968, 1.0
        %v5985 = vadd.f32 %v5969, 1.0
        %v5986 = vadd.f32 %v5970, 1.0
        %v5987 = vadd.f32 %v5971, 1.0
        %v5988 = vadd.f32 %v5972, 1.0
        %v5989 = vadd.f32 %v5973, 1.0
        %v5990 = vadd.f32 %v5974, 1.0
        %v5991 = vadd.f32 %v5975, 1.0
        %v5992 = vadd.f32 %v5976, 1.0
        %v5993 = vadd.f32 %v5977, 1.0
        %v5994 = vadd.f32 %v5978, 1.0
        %v5995 = vadd.f32 %v5979, 1.0
        %v5996 = vadd.f32 %v5980, 1.0
        %v5997 = vadd.f32 %v5981, 1.0
        %v5998 = vadd.f32 %v5982, 1.0
        %v5999 = vadd.f32 %v5983, 1.0
        %v6000 = vmul.f32 %v5584, %v5984
        %v6001 = vmul.f32 %v5585, %v5985
        %v6002 = vmul.f32 %v5586, %v5986
        %v6003 = vmul.f32 %v5587, %v5987
        %v6004 = vmul.f32 %v5588, %v5988
        %v6005 = vmul.f32 %v5589, %v5989
        %v6006 = vmul.f32 %v5590, %v5990
        %v6007 = vmul.f32 %v5591, %v5991
        %v6008 = vmul.f32 %v5592, %v5992
        %v6009 = vmul.f32 %v5593, %v5993
        %v6010 = vmul.f32 %v5594, %v5994
        %v6011 = vmul.f32 %v5595, %v5995
        %v6012 = vmul.f32 %v5596, %v5996
        %v6013 = vmul.f32 %v5597, %v5997
        %v6014 = vmul.f32 %v5598, %v5998
        %v6015 = vmul.f32 %v5599, %v5999
        %v6016 = vld [vmem:[%s23] sm:$0xff]
        %v6017 = vld [vmem:[%s23 + $0x8] sm:$0xff]
        %v6018 = vld [vmem:[%s23 + $0x10] sm:$0xff]
        %v6019 = vld [vmem:[%s23 + $0x18] sm:$0xff]
        %v6020 = vld [vmem:[%s23 + $0x20] sm:$0xff]
        %v6021 = vld [vmem:[%s23 + $0x28] sm:$0xff]
        %v6022 = vld [vmem:[%s23 + $0x30] sm:$0xff]
        %v6023 = vld [vmem:[%s23 + $0x38] sm:$0xff]
        %v6024 = vld [vmem:[%s23 + $0x40] sm:$0xff]
        %v6025 = vld [vmem:[%s23 + $0x48] sm:$0xff]
        %v6026 = vld [vmem:[%s23 + $0x50] sm:$0xff]
        %v6027 = vld [vmem:[%s23 + $0x58] sm:$0xff]
        %v6028 = vld [vmem:[%s23 + $0x60] sm:$0xff]
        %v6029 = vld [vmem:[%s23 + $0x68] sm:$0xff]
        %v6030 = vld [vmem:[%s23 + $0x70] sm:$0xff]
        %v6031 = vld [vmem:[%s23 + $0x78] sm:$0xff]
        %v6032 = vld [vmem:[%s23 + $0x80] sm:$0xff]
        %v6033 = vld [vmem:[%s23 + $0x88] sm:$0xff]
        %v6034 = vld [vmem:[%s23 + $0x90] sm:$0xff]
        %v6035 = vld [vmem:[%s23 + $0x98] sm:$0xff]
        %v6036 = vld [vmem:[%s23 + $0xa0] sm:$0xff]
        %v6037 = vld [vmem:[%s23 + $0xa8] sm:$0xff]
        %v6038 = vld [vmem:[%s23 + $0xb0] sm:$0xff]
        %v6039 = vld [vmem:[%s23 + $0xb8] sm:$0xff]
        %v6040 = vld [vmem:[%s23 + $0xc0] sm:$0xff]
        %v6041 = vld [vmem:[%s23 + $0xc8] sm:$0xff]
        %v6042 = vld [vmem:[%s23 + $0xd0] sm:$0xff]
        %v6043 = vld [vmem:[%s23 + $0xd8] sm:$0xff]
        %v6044 = vld [vmem:[%s23 + $0xe0] sm:$0xff]
        %v6045 = vld [vmem:[%s23 + $0xe8] sm:$0xff]
        %v6046 = vld [vmem:[%s23 + $0xf0] sm:$0xff]
        %v6047 = vld [vmem:[%s23 + $0xf8] sm:$0xff]
        %6048 = vmatprep.subr.mxu0 0.0
        %6049 = vmatpush1.msra.mxu0 %v6016
        %6050 = vmatprep.subr.mxu0 0.0
        %6051 = vmatpush1.msra.mxu0 %v6017
        %6052 = vmatprep.subr.mxu0 0.0
        %6053 = vmatpush1.msra.mxu0 %v6018
        %6054 = vmatprep.subr.mxu0 0.0
        %6055 = vmatpush1.msra.mxu0 %v6019
        %6056 = vmatprep.subr.mxu0 0.0
        %6057 = vmatpush1.msra.mxu0 %v6020
        %6058 = vmatprep.subr.mxu0 0.0
        %6059 = vmatpush1.msra.mxu0 %v6021
        %6060 = vmatprep.subr.mxu0 0.0
        %6061 = vmatpush1.msra.mxu0 %v6022
        %6062 = vmatprep.subr.mxu0 0.0
        %6063 = vmatpush1.msra.mxu0 %v6023
        %6064 = vmatprep.subr.mxu0 0.0
        %6065 = vmatpush1.msra.mxu0 %v6024
        %6066 = vmatprep.subr.mxu0 0.0
        %6067 = vmatpush1.msra.mxu0 %v6025
        %6068 = vmatprep.subr.mxu0 0.0
        %6069 = vmatpush1.msra.mxu0 %v6026
        %6070 = vmatprep.subr.mxu0 0.0
        %6071 = vmatpush1.msra.mxu0 %v6027
        %6072 = vmatprep.subr.mxu0 0.0
        %6073 = vmatpush1.msra.mxu0 %v6028
        %6074 = vmatprep.subr.mxu0 0.0
        %6075 = vmatpush1.msra.mxu0 %v6029
        %6076 = vmatprep.subr.mxu0 0.0
        %6077 = vmatpush1.msra.mxu0 %v6030
        %6078 = vmatprep.subr.mxu0 0.0
        %6079 = vmatpush1.msra.mxu0 %v6031
        %6080 = vmatprep.subr.mxu0 0.0
        %6081 = vmatpush1.msra.mxu0 %v6032
        %6082 = vmatprep.subr.mxu0 0.0
        %6083 = vmatpush1.msra.mxu0 %v6033
        %6084 = vmatprep.subr.mxu0 0.0
        %6085 = vmatpush1.msra.mxu0 %v6034
        %6086 = vmatprep.subr.mxu0 0.0
        %6087 = vmatpush1.msra.mxu0 %v6035
        %6088 = vmatprep.subr.mxu0 0.0
        %6089 = vmatpush1.msra.mxu0 %v6036
        %6090 = vmatprep.subr.mxu0 0.0
        %6091 = vmatpush1.msra.mxu0 %v6037
        %6092 = vmatprep.subr.mxu0 0.0
        %6093 = vmatpush1.msra.mxu0 %v6038
        %6094 = vmatprep.subr.mxu0 0.0
        %6095 = vmatpush1.msra.mxu0 %v6039
        %6096 = vmatprep.subr.mxu0 0.0
        %6097 = vmatpush1.msra.mxu0 %v6040
        %6098 = vmatprep.subr.mxu0 0.0
        %6099 = vmatpush1.msra.mxu0 %v6041
        %6100 = vmatprep.subr.mxu0 0.0
        %6101 = vmatpush1.msra.mxu0 %v6042
        %6102 = vmatprep.subr.mxu0 0.0
        %6103 = vmatpush1.msra.mxu0 %v6043
        %6104 = vmatprep.subr.mxu0 0.0
        %6105 = vmatpush1.msra.mxu0 %v6044
        %6106 = vmatprep.subr.mxu0 0.0
        %6107 = vmatpush1.msra.mxu0 %v6045
        %6108 = vmatprep.subr.mxu0 0.0
        %6109 = vmatpush1.msra.mxu0 %v6046
        %6110 = vmatprep.subr.mxu0 0.0
        %6111 = vmatpush1.msra.mxu0 %v6047
        %6112 = vmatprep.mubr.f32.mxu0 %v6001
        %6113 = vmatmul.mubr.f32.gmra.mrb[0].mxu0 %v6000
        %v6114 = vpop.f32.mrb[0].mxu0
        %v6115 = vadd.f32 0.0, %v6114
        %v6116 = vpop.f32.mrb[0].mxu0
        %6117 = vmatprep.mubr.f32.mxu0 %v6003
        %6118 = vmatmul.mubr.f32.gmra.mrb[0].mxu0 %v6002
        %v6119 = vpop.f32.mrb[0].mxu0
        %v6120 = vadd.f32 0.0, %v6119
        %v6121 = vpop.f32.mrb[0].mxu0
        %6122 = vmatprep.mubr.f32.mxu0 %v6005
        %6123 = vmatmul.mubr.f32.gmra.mrb[0].mxu0 %v6004
        %v6124 = vpop.f32.mrb[0].mxu0
        %v6125 = vadd.f32 0.0, %v6124
        %v6126 = vpop.f32.mrb[0].mxu0
        %6127 = vmatprep.mubr.f32.mxu0 %v6007
        %6128 = vmatmul.mubr.f32.gmra.mrb[0].mxu0 %v6006
        %v6129 = vpop.f32.mrb[0].mxu0
        %v6130 = vadd.f32 0.0, %v6129
        %v6131 = vpop.f32.mrb[0].mxu0
        %6132 = vmatprep.mubr.f32.mxu0 %v6009
        %6133 = vmatmul.mubr.f32.gmra.mrb[0].mxu0 %v6008
        %v6134 = vpop.f32.mrb[0].mxu0
        %v6135 = vadd.f32 0.0, %v6134
        %v6136 = vpop.f32.mrb[0].mxu0
        %6137 = vmatprep.mubr.f32.mxu0 %v6011
        %6138 = vmatmul.mubr.f32.gmra.mrb[0].mxu0 %v6010
        %v6139 = vpop.f32.mrb[0].mxu0
        %v6140 = vadd.f32 0.0, %v6139
        %v6141 = vpop.f32.mrb[0].mxu0
        %6142 = vmatprep.mubr.f32.mxu0 %v6013
        %6143 = vmatmul.mubr.f32.gmra.mrb[0].mxu0 %v6012
        %v6144 = vpop.f32.mrb[0].mxu0
        %v6145 = vadd.f32 0.0, %v6144
        %v6146 = vpop.f32.mrb[0].mxu0
        %6147 = vmatprep.mubr.f32.mxu0 %v6015
        %6148 = vmatmul.mubr.f32.gmra.mrb[0].mxu0 %v6014
        %v6149 = vpop.f32.mrb[0].mxu0
        %v6150 = vadd.f32 0.0, %v6149
        %v6151 = vpop.f32.mrb[0].mxu0
        %6152 = vdwg.mxu0
        %v6153 = vadd.f32 %v3706, %v6115
        %v6154 = vadd.f32 %v3707, %v6120
        %v6155 = vadd.f32 %v3708, %v6125
        %v6156 = vadd.f32 %v3709, %v6130
        %v6157 = vadd.f32 %v3710, %v6135
        %v6158 = vadd.f32 %v3711, %v6140
        %v6159 = vadd.f32 %v3712, %v6145
        %v6160 = vadd.f32 %v3713, %v6150
        %v6161 = vld [vmem:[%s24] sm:$0x1]
        %v6163 = vlaneseq
        %v6164 = vshrl.u32 %v6163, 7
        %v6165 = vsub.s32 0, %v6164
        %v6166 = vrot.slane %v6161, %v6165
        %v6168 = vadd.f32 %v6153, %v6166
        %v6169 = vadd.f32 %v6154, %v6166
        %v6170 = vadd.f32 %v6155, %v6166
        %v6171 = vadd.f32 %v6156, %v6166
        %v6172 = vadd.f32 %v6157, %v6166
        %v6173 = vadd.f32 %v6158, %v6166
        %v6174 = vadd.f32 %v6159, %v6166
        %v6175 = vadd.f32 %v6160, %v6166
        %6176 = vst.msk [vmem:[%s772] sm:$0xff] %vm793, %v6168
        %6177 = vst.msk [vmem:[%s772 + $0x8] sm:$0xff] %vm793, %v6169
        %6178 = vst.msk [vmem:[%s772 + $0x10] sm:$0xff] %vm793, %v6170
        %6179 = vst.msk [vmem:[%s772 + $0x18] sm:$0xff] %vm793, %v6171
        %6180 = vst.msk [vmem:[%s772 + $0x20] sm:$0xff] %vm793, %v6172
        %6181 = vst.msk [vmem:[%s772 + $0x28] sm:$0xff] %vm793, %v6173
        %6182 = vst.msk [vmem:[%s772 + $0x30] sm:$0xff] %vm793, %v6174
        %6183 = vst.msk [vmem:[%s772 + $0x38] sm:$0xff] %vm793, %v6175
        %s6184 = sand.u32 %s582, 1
        %s6185 = scalar_lea.sflag [#allocation4], %s6184
        %s6186 = sand.u32 %s582, 1
        %s6187 = smul.addr %s6186, 64
        %s6188 = scalar_lea.vmem [#allocation3], %s6187
        // Predicated region
        $region121: #{tpu_custom_call.1} parent=119 // pred_check
          %p6189 = pneg %p592
        $region122: #{tpu_custom_call.1} parent=119 // pred_check_branch
          %6191 = sbr.rel (%p6189) target = $region124
        $region123: #{tpu_custom_call.1} parent=119 // pred_region
          %s6193 = ssub.s32 1024, 1024
          %6194 = vsyncadd %s6185, %s6193
          %s6195 = smul.addr %s39, 8
          %s6196 = smul.addr %s6195, 128
          %s6197 = scalar_lea.hbm %s25, %s6196
          %s6198 = sshll.u32 %s6188, 4
          %s6199 = int_to_ptr.vmem [resolvable:$true] %s6198
          %6204 = dma.vmem_to_hbm [thread:$0]  %s6199, 1024, %s6197, %s6185, 128, 128, 8
        $region124: #{tpu_custom_call.1} parent=119 // pred_fallthru
          _
      $region120: #{tpu_custom_call.1} parent=5 // pred_fallthru
        _
      %p6205 = scmp.le.s32.totalorder 2, %s34
      // Predicated region
      $region125: #{tpu_custom_call.1} parent=5 // pred_check
        %p6206 = pneg %p6205
      $region126: #{tpu_custom_call.1} parent=5 // pred_check_branch
        %6208 = sbr.rel (%p6206) target = $region128
      $region127: #{tpu_custom_call.1} parent=5 // pred_region
        %s6209 = ssub.s32 %s34, 2
        // Predicated region
        $region129: #{tpu_custom_call.1} parent=127 // pred_check
          %p6210 = pneg %p598
        $region130: #{tpu_custom_call.1} parent=127 // pred_check_branch
          %6212 = sbr.rel (%p6210) target = $region132
        $region131: #{tpu_custom_call.1} parent=127 // pred_region
          %s6213 = sand.u32 %s583, 1
          %s6214 = scalar_lea.sflag [#allocation4], %s6213
          %s6215 = sand.u32 %s583, 1
          %s6216 = smul.addr %s6215, 64
          %s6217 = scalar_lea.vmem [#allocation3], %s6216
          %6218 = dma.done %s6214, 1024
        $region132: #{tpu_custom_call.1} parent=127 // pred_fallthru
          _
      $region128: #{tpu_custom_call.1} parent=5 // pred_fallthru
        _
    $region6: #{tpu_custom_call.1} parent=1 // loop_footer
      %s38 = sadd.s32 1, %s34
    $region7: #{tpu_custom_call.1} parent=1 // loop_footer_branch
      %33 = sbr.rel target = $region3
    $region8: #{tpu_custom_call.1} parent=1 // loop_exit
      _
    %6219 = vsyncpa [#allocation4], 1
    %s6220 = scalar_lea.sflag [#allocation4], 1
    %6221 = vsyncpa %s6220, 1

</llo_original>
